<compile_context>
chip_gen: v7x
topology: tpu7x:2x2x1
jax: 0.10.0
libtpu: 0.0.40
codegen_flags: <defaults>
</compile_context>

<pallas_src>
import functools
import math

import numpy as np

import jax
import jax.numpy as jnp
from jax.experimental import pallas as pl
from jax.experimental.pallas import tpu as pltpu


# ----------------------------------------------------------------------------
# Fused Pallas kernel: conv1_1 + ReLU + conv1_2 + ReLU + 2x2 max pool
# ----------------------------------------------------------------------------

def _zero_halo(ref, H, W, C):
    """Zero only the 1-pixel border of a (H+2, W+2, C) padded scratch."""
    dt = ref.dtype
    ref[0] = jnp.zeros((W + 2, C), dt)
    ref[H + 1] = jnp.zeros((W + 2, C), dt)
    ref[:, 0:1, :] = jnp.zeros((H + 2, 1, C), dt)
    ref[:, W + 1:W + 2, :] = jnp.zeros((H + 2, 1, C), dt)


def _vgg_block1_kernel(x_ref, w1_ref, b1_ref, w2_ref, b2_ref,
                       relu1_ref, pool1_ref,
                       xpad1_ref, patch1_ref, xpad2_ref, patch2_ref, a2s_ref,
                       *, H, W, C, Cin):
    """One image per grid step; everything stays in VMEM.

    x_ref      : (1, H, W, Cin)     bf16  raw 3-channel input (NHWC)
    w1_ref     : (9*Cin, C)         bf16  conv1_1 im2col weights (K=27)
    b1_ref     : (1, C)             f32
    w2_ref     : (9*C, C)           bf16  conv1_2 im2col weights (K=576)
    b2_ref     : (1, C)             f32
    relu1_ref  : (1, C, H*W)        f32   relu1_1, NCHW-ready / lane-dense
    pool1_ref  : (1, C, H*W//4)     f32   pool1,   NCHW-ready
    xpad1_ref  : (H+2, W+2, Cin)    bf16  scratch: zero-halo padded input
    patch1_ref : (H*W, 9*Cin)       bf16  scratch: conv1 im2col patches
    xpad2_ref  : (H+2, W+2, C)      bf16  scratch: zero-halo padded activation
    patch2_ref : (H*W, 9*C)         bf16  scratch: conv2 im2col patches
    a2s_ref    : (H*W, C)           f32   scratch: conv2 output for pooling
    """
    HW = H * W
    OH, OW = H // 2, W // 2
    HW2 = HW // 2

    def conv3x3_bias_relu(xpad_ref, patch_ref, w_ref, b_ref, cin):
        # im2col: patch[y*W + x, t*cin + c] = xpad[y+dy, x+dx, c], t = dy*3+dx
        for dy in range(3):
            for dx in range(3):
                t = dy * 3 + dx
                piece = xpad_ref[dy:dy + H, dx:dx + W, :]          # (H, W, cin)
                patch_ref[:, t * cin:(t + 1) * cin] = piece.reshape(HW, cin)
        acc = jnp.dot(patch_ref[...], w_ref[...],
                      preferred_element_type=jnp.float32)          # one MXU GEMM
        return jnp.maximum(acc + b_ref[...], 0.0)                  # fused bias+ReLU

    # ---- conv1_1 + ReLU (features[0], features[1]) -------------------------
    # Raw 3-channel input, K = 9*3 = 27 (no 3->64 zero padding anymore).
    xpad1_ref[...] = jnp.zeros_like(xpad1_ref)        # tiny (H+2, W+2, 3) scratch
    xpad1_ref[1:H + 1, 1:W + 1, :] = x_ref[0]
    a1 = conv3x3_bias_relu(xpad1_ref, patch1_ref, w1_ref, b1_ref, Cin)   # (HW, C)
    relu1_ref[0] = a1.T.astype(relu1_ref.dtype)       # (C, HW), lane-dense

    # ---- conv1_2 + ReLU (features[2], features[3]) --------------------------
    # NOTE: conv1_2 consumes a bf16-rounded copy of a1 while relu1 is returned in
    # f32 (slight divergence, fine for a perceptual loss).
    _zero_halo(xpad2_ref, H, W, C)                    # only the halo, every step
    xpad2_ref[1:H + 1, 1:W + 1, :] = a1.astype(xpad2_ref.dtype).reshape(H, W, C)
    a2 = conv3x3_bias_relu(xpad2_ref, patch2_ref, w2_ref, b2_ref, C)     # (HW, C)
    # TODO(synk): pair consecutive taps (lane-concat two (HW,64) pieces to 128)
    # so every patch2 store is an unmasked full-width vst.

    # ---- MaxPool2d(2, 2) (features[4]) --------------------------------------
    # Pure VPU/XLU pooling, O(HW*C): stride-2 row reads + free reshapes + max.
    a2s_ref[...] = a2
    h = jnp.maximum(a2s_ref[pl.ds(0, HW2, 2), :],     # rows y*W + even x
                    a2s_ref[pl.ds(1, HW2, 2), :])     # rows y*W + odd  x
    h4 = h.reshape(OH, 2, OW, C)                      # row k = y*OW + ow
    p = jnp.maximum(h4[:, 0], h4[:, 1])               # (OH, OW, C)
    pool1_ref[0] = p.reshape(OH * OW, C).T.astype(pool1_ref.dtype)   # (C, OH*OW)


# ----------------------------------------------------------------------------
# Wrapper
# ----------------------------------------------------------------------------

def vgg_block1_features(x_nchw, params):
    """Fused VGG19 features[0:5]; returns (relu1_1, pool1) in NCHW."""
    N, Cin, H, W = x_nchw.shape
    assert Cin == 3 and H % 2 == 0 and W % 2 == 0
    C = 64
    HW = H * W
    OH, OW = H // 2, W // 2
    # TODO(synk): for large resolutions (e.g. 224x224) tile H into row blocks
    # (grid=(N, H/TH) with a 2-row halo) so per-step VMEM stays small on v7x.
    assert HW <= 4096 and W % 8 == 0, "whole-image-per-block path (small inputs)"

    # One-time tiny input / weight prep (all heavy work happens in the kernel).
    x_in = jnp.transpose(x_nchw, (0, 2, 3, 1)).astype(jnp.bfloat16)     # (N,H,W,3)

    w1, b1 = params["w1"], params["b1"]                                 # (3,3,3,C)
    w2, b2 = params["w2"], params["b2"]                                 # (3,3,C,C)
    w1m = w1.reshape(9 * Cin, C).astype(jnp.bfloat16)                   # (27, C)
    w2m = w2.reshape(9 * C, C).astype(jnp.bfloat16)                     # (576, C)
    b1m = b1.reshape(1, C).astype(jnp.float32)
    b2m = b2.reshape(1, C).astype(jnp.float32)

    kern = functools.partial(_vgg_block1_kernel, H=H, W=W, C=C, Cin=Cin)
    relu1_flat, pool1_flat = pl.pallas_call(
        kern,
        out_shape=(jax.ShapeDtypeStruct((N, C, HW), jnp.float32),
                   jax.ShapeDtypeStruct((N, C, OH * OW), jnp.float32)),
        grid=(N,),
        in_specs=[
            pl.BlockSpec((1, H, W, Cin), lambda n: (n, 0, 0, 0)),
            pl.BlockSpec((9 * Cin, C), lambda n: (0, 0)),
            pl.BlockSpec((1, C), lambda n: (0, 0)),
            pl.BlockSpec((9 * C, C), lambda n: (0, 0)),
            pl.BlockSpec((1, C), lambda n: (0, 0)),
        ],
        out_specs=(
            pl.BlockSpec((1, C, HW), lambda n: (n, 0, 0)),
            # TODO(synk): when OH*OW < 128, a flattened (1, C*OH*OW) block would
            # make the writeback lane-dense (currently masked 64-wide stores).
            pl.BlockSpec((1, C, OH * OW), lambda n: (n, 0, 0)),
        ),
        scratch_shapes=[
            pltpu.VMEM((H + 2, W + 2, Cin), jnp.bfloat16),   # conv1 padded input
            pltpu.VMEM((HW, 9 * Cin), jnp.bfloat16),         # conv1 im2col (K=27)
            pltpu.VMEM((H + 2, W + 2, C), jnp.bfloat16),     # conv2 padded act.
            pltpu.VMEM((HW, 9 * C), jnp.bfloat16),           # conv2 im2col (K=576)
            pltpu.VMEM((HW, C), jnp.float32),                # conv2 out for pooling
        ],
        compiler_params=pltpu.CompilerParams(
            # batch axis parallel: with even N both v7x TensorCores stay busy;
            # no effect on v5e/v6e (single TC).
            dimension_semantics=("parallel",)),
    )(x_in, w1m, b1m, w2m, b2m)

    relu1 = relu1_flat.reshape(N, C, H, W)                   # free reshapes (NCHW)
    pool1 = pool1_flat.reshape(N, C, OH, OW)
    return relu1, pool1


def vgg19_forward(params, x_nchw, vgg_indices):
    """Mirrors Vgg19.forward for the FSRCNN-loss configuration.

    features[] indices: 0 conv1_1, 1 relu1_1, 2 conv1_2, 3 relu1_2, 4 maxpool1.
    The module collects X after layer i when (i+1) in vgg_indices, so
    vgg_indices == (2, 5) -> [relu1_1, pool1].
    """
    assert tuple(vgg_indices) == (2, 5), "fused kernel implements vgg_indices == (2, 5)"
    # TODO(synk): deeper vgg_indices (later VGG blocks) would reuse the same fused
    # pattern with row-tiled grids; not needed for this loss configuration.
    relu1, pool1 = vgg_block1_features(x_nchw, params)
    return [relu1, pool1]


# ----------------------------------------------------------------------------
# Synthetic deterministic VGG19 block-1 parameters (no pretrained file I/O)
# ----------------------------------------------------------------------------

def init_vgg19_block1_params(key):
    def he(k, shape):
        fan_in = shape[0] * shape[1] * shape[2]
        return jax.random.normal(k, shape, jnp.float32) * jnp.float32(
            math.sqrt(2.0 / fan_in))

    k1, k2, k3, k4 = jax.random.split(key, 4)
    return {
        "w1": he(k1, (3, 3, 3, 64)),                       # HWIO
        "b1": 0.01 * jax.random.normal(k2, (64,), jnp.float32),
        "w2": he(k3, (3, 3, 64, 64)),
        "b2": 0.01 * jax.random.normal(k4, (64,), jnp.float32),
    }


# ----------------------------------------------------------------------------
# Pure-JAX reference (f32) for a tolerance check
# ----------------------------------------------------------------------------

def _reference_forward(params, x_nchw):
    def conv_relu(x, w, b):
        y = jax.lax.conv_general_dilated(
            x, w, window_strides=(1, 1), padding="SAME",
            dimension_numbers=("NCHW", "HWIO", "NCHW"))
        return jax.nn.relu(y + b[None, :, None, None])

    a1 = conv_relu(x_nchw, params["w1"], params["b1"])
    a2 = conv_relu(a1, params["w2"], params["b2"])
    N, C, H, W = a2.shape
    p = a2.reshape(N, C, H // 2, 2, W // 2, 2).max(axis=(3, 5))
    return a1, p


# ----------------------------------------------------------------------------
# main
# ----------------------------------------------------------------------------

if __name__ == "__main__":
    class Args:
        # collect relu1_1 (after features[1]) and pool1 (after features[4])
        vgg_indices = (2, 5)

    args = Args()
    key = jax.random.PRNGKey(0)
    k_x, k_p = jax.random.split(key)

    # small, VGG-consistent input: batch=2, RGB channels=3, spatial=16x16 (NCHW)
    x = jax.random.normal(k_x, (2, 3, 16, 16), jnp.float32)
    params = init_vgg19_block1_params(k_p)

    fwd = jax.jit(lambda inp: vgg19_forward(params, inp, args.vgg_indices))
    outs = fwd(x)
    outs = [jax.block_until_ready(o) for o in outs]

    assert outs[0].shape == (2, 64, 16, 16)
    assert outs[1].shape == (2, 64, 8, 8)

    # bf16-operand / f32-accumulate kernel vs f32 reference: loose tolerance.
    ref_relu1, ref_pool1 = jax.jit(lambda inp: _reference_forward(params, inp))(x)
    np.testing.assert_allclose(np.asarray(outs[0]), np.asarray(ref_relu1),
                               rtol=0.1, atol=0.1)
    np.testing.assert_allclose(np.asarray(outs[1]), np.asarray(ref_pool1),
                               rtol=0.1, atol=0.1)

    print("KERNEL_OK")
</pallas_src>

<mosaic_0001>
module attributes {stable_mosaic.version = 11 : i64} {
  func.func @_vgg_block1_kernel(%arg0: i32, %arg1: memref<1x16x16x3xbf16, #tpu.memory_space<vmem>>, %arg2: memref<27x64xbf16, #tpu.memory_space<vmem>>, %arg3: memref<1x64xf32, #tpu.memory_space<vmem>>, %arg4: memref<576x64xbf16, #tpu.memory_space<vmem>>, %arg5: memref<1x64xf32, #tpu.memory_space<vmem>>, %arg6: memref<1x64x256xf32, #tpu.memory_space<vmem>>, %arg7: memref<1x64x64xf32, #tpu.memory_space<vmem>>, %arg8: memref<18x18x3xbf16, #tpu.memory_space<vmem>>, %arg9: memref<256x27xbf16, #tpu.memory_space<vmem>>, %arg10: memref<18x18x64xbf16, #tpu.memory_space<vmem>>, %arg11: memref<256x576xbf16, #tpu.memory_space<vmem>>, %arg12: memref<256x64xf32, #tpu.memory_space<vmem>>) attributes {dimension_semantics = [#tpu.dimension_semantics<parallel>], iteration_bounds = array<i64: 2>, scalar_prefetch = 0 : i64, scratch_operands = 5 : i64, tpu.core_type = #tpu.core_type<tc>, window_params = [{transform_indices = @transform_0, window_bounds = array<i64: 1, 16, 16, 3>}, {pipeline_mode = #tpu.pipeline_mode<synchronous>, transform_indices = @transform_1, window_bounds = array<i64: 27, 64>}, {pipeline_mode = #tpu.pipeline_mode<synchronous>, transform_indices = @transform_2, window_bounds = array<i64: 1, 64>}, {pipeline_mode = #tpu.pipeline_mode<synchronous>, transform_indices = @transform_3, window_bounds = array<i64: 576, 64>}, {pipeline_mode = #tpu.pipeline_mode<synchronous>, transform_indices = @transform_4, window_bounds = array<i64: 1, 64>}, {transform_indices = @transform_5, window_bounds = array<i64: 1, 64, 256>}, {transform_indices = @transform_6, window_bounds = array<i64: 1, 64, 64>}]} {
    %cst = arith.constant 0.000000e+00 : bf16
    %0 = vector.broadcast %cst : bf16 to vector<18x18x3xbf16>
    %c0 = arith.constant 0 : index
    %c0_0 = arith.constant 0 : index
    %c0_1 = arith.constant 0 : index
    %1 = vector.load %arg8[%c0, %c0_0, %c0_1] : memref<18x18x3xbf16, #tpu.memory_space<vmem>>, vector<18x18x3xbf16>
    tpu.vector_store %arg8[%c0, %c0_0, %c0_1], %0 {strides = array<i32>} : memref<18x18x3xbf16, #tpu.memory_space<vmem>>, vector<18x18x3xbf16>,
    %c0_2 = arith.constant 0 : index
    %c0_3 = arith.constant 0 : index
    %c0_4 = arith.constant 0 : index
    %c0_5 = arith.constant 0 : index
    %2 = vector.load %arg1[%c0_2, %c0_3, %c0_4, %c0_5] : memref<1x16x16x3xbf16, #tpu.memory_space<vmem>>, vector<1x16x16x3xbf16>
    %3 = vector.shape_cast %2 : vector<1x16x16x3xbf16> to vector<16x16x3xbf16>
    %c1 = arith.constant 1 : index
    %c1_6 = arith.constant 1 : index
    %c0_7 = arith.constant 0 : index
    %4 = vector.load %arg8[%c1, %c1_6, %c0_7] : memref<18x18x3xbf16, #tpu.memory_space<vmem>>, vector<16x16x3xbf16>
    tpu.vector_store %arg8[%c1, %c1_6, %c0_7], %3 {strides = array<i32>} : memref<18x18x3xbf16, #tpu.memory_space<vmem>>, vector<16x16x3xbf16>,
    %c0_8 = arith.constant 0 : index
    %c0_9 = arith.constant 0 : index
    %c0_10 = arith.constant 0 : index
    %5 = vector.load %arg8[%c0_8, %c0_9, %c0_10] : memref<18x18x3xbf16, #tpu.memory_space<vmem>>, vector<16x16x3xbf16>
    %6 = vector.shape_cast %5 : vector<16x16x3xbf16> to vector<256x3xbf16>
    %c0_11 = arith.constant 0 : index
    %c0_12 = arith.constant 0 : index
    %7 = vector.load %arg9[%c0_11, %c0_12] : memref<256x27xbf16, #tpu.memory_space<vmem>>, vector<256x3xbf16>
    tpu.vector_store %arg9[%c0_11, %c0_12], %6 {strides = array<i32>} : memref<256x27xbf16, #tpu.memory_space<vmem>>, vector<256x3xbf16>,
    %c0_13 = arith.constant 0 : index
    %c1_14 = arith.constant 1 : index
    %c0_15 = arith.constant 0 : index
    %8 = vector.load %arg8[%c0_13, %c1_14, %c0_15] : memref<18x18x3xbf16, #tpu.memory_space<vmem>>, vector<16x16x3xbf16>
    %9 = vector.shape_cast %8 : vector<16x16x3xbf16> to vector<256x3xbf16>
    %c0_16 = arith.constant 0 : index
    %c3 = arith.constant 3 : index
    %10 = vector.load %arg9[%c0_16, %c3] : memref<256x27xbf16, #tpu.memory_space<vmem>>, vector<256x3xbf16>
    tpu.vector_store %arg9[%c0_16, %c3], %9 {strides = array<i32>} : memref<256x27xbf16, #tpu.memory_space<vmem>>, vector<256x3xbf16>,
    %c0_17 = arith.constant 0 : index
    %c2 = arith.constant 2 : index
    %c0_18 = arith.constant 0 : index
    %11 = vector.load %arg8[%c0_17, %c2, %c0_18] : memref<18x18x3xbf16, #tpu.memory_space<vmem>>, vector<16x16x3xbf16>
    %12 = vector.shape_cast %11 : vector<16x16x3xbf16> to vector<256x3xbf16>
    %c0_19 = arith.constant 0 : index
    %c6 = arith.constant 6 : index
    %13 = vector.load %arg9[%c0_19, %c6] : memref<256x27xbf16, #tpu.memory_space<vmem>>, vector<256x3xbf16>
    tpu.vector_store %arg9[%c0_19, %c6], %12 {strides = array<i32>} : memref<256x27xbf16, #tpu.memory_space<vmem>>, vector<256x3xbf16>,
    %c1_20 = arith.constant 1 : index
    %c0_21 = arith.constant 0 : index
    %c0_22 = arith.constant 0 : index
    %14 = vector.load %arg8[%c1_20, %c0_21, %c0_22] : memref<18x18x3xbf16, #tpu.memory_space<vmem>>, vector<16x16x3xbf16>
    %15 = vector.shape_cast %14 : vector<16x16x3xbf16> to vector<256x3xbf16>
    %c0_23 = arith.constant 0 : index
    %c9 = arith.constant 9 : index
    %16 = vector.load %arg9[%c0_23, %c9] : memref<256x27xbf16, #tpu.memory_space<vmem>>, vector<256x3xbf16>
    tpu.vector_store %arg9[%c0_23, %c9], %15 {strides = array<i32>} : memref<256x27xbf16, #tpu.memory_space<vmem>>, vector<256x3xbf16>,
    %c1_24 = arith.constant 1 : index
    %c1_25 = arith.constant 1 : index
    %c0_26 = arith.constant 0 : index
    %17 = vector.load %arg8[%c1_24, %c1_25, %c0_26] : memref<18x18x3xbf16, #tpu.memory_space<vmem>>, vector<16x16x3xbf16>
    %18 = vector.shape_cast %17 : vector<16x16x3xbf16> to vector<256x3xbf16>
    %c0_27 = arith.constant 0 : index
    %c12 = arith.constant 12 : index
    %19 = vector.load %arg9[%c0_27, %c12] : memref<256x27xbf16, #tpu.memory_space<vmem>>, vector<256x3xbf16>
    tpu.vector_store %arg9[%c0_27, %c12], %18 {strides = array<i32>} : memref<256x27xbf16, #tpu.memory_space<vmem>>, vector<256x3xbf16>,
    %c1_28 = arith.constant 1 : index
    %c2_29 = arith.constant 2 : index
    %c0_30 = arith.constant 0 : index
    %20 = vector.load %arg8[%c1_28, %c2_29, %c0_30] : memref<18x18x3xbf16, #tpu.memory_space<vmem>>, vector<16x16x3xbf16>
    %21 = vector.shape_cast %20 : vector<16x16x3xbf16> to vector<256x3xbf16>
    %c0_31 = arith.constant 0 : index
    %c15 = arith.constant 15 : index
    %22 = vector.load %arg9[%c0_31, %c15] : memref<256x27xbf16, #tpu.memory_space<vmem>>, vector<256x3xbf16>
    tpu.vector_store %arg9[%c0_31, %c15], %21 {strides = array<i32>} : memref<256x27xbf16, #tpu.memory_space<vmem>>, vector<256x3xbf16>,
    %c2_32 = arith.constant 2 : index
    %c0_33 = arith.constant 0 : index
    %c0_34 = arith.constant 0 : index
    %23 = vector.load %arg8[%c2_32, %c0_33, %c0_34] : memref<18x18x3xbf16, #tpu.memory_space<vmem>>, vector<16x16x3xbf16>
    %24 = vector.shape_cast %23 : vector<16x16x3xbf16> to vector<256x3xbf16>
    %c0_35 = arith.constant 0 : index
    %c18 = arith.constant 18 : index
    %25 = vector.load %arg9[%c0_35, %c18] : memref<256x27xbf16, #tpu.memory_space<vmem>>, vector<256x3xbf16>
    tpu.vector_store %arg9[%c0_35, %c18], %24 {strides = array<i32>} : memref<256x27xbf16, #tpu.memory_space<vmem>>, vector<256x3xbf16>,
    %c2_36 = arith.constant 2 : index
    %c1_37 = arith.constant 1 : index
    %c0_38 = arith.constant 0 : index
    %26 = vector.load %arg8[%c2_36, %c1_37, %c0_38] : memref<18x18x3xbf16, #tpu.memory_space<vmem>>, vector<16x16x3xbf16>
    %27 = vector.shape_cast %26 : vector<16x16x3xbf16> to vector<256x3xbf16>
    %c0_39 = arith.constant 0 : index
    %c21 = arith.constant 21 : index
    %28 = vector.load %arg9[%c0_39, %c21] : memref<256x27xbf16, #tpu.memory_space<vmem>>, vector<256x3xbf16>
    tpu.vector_store %arg9[%c0_39, %c21], %27 {strides = array<i32>} : memref<256x27xbf16, #tpu.memory_space<vmem>>, vector<256x3xbf16>,
    %c2_40 = arith.constant 2 : index
    %c2_41 = arith.constant 2 : index
    %c0_42 = arith.constant 0 : index
    %29 = vector.load %arg8[%c2_40, %c2_41, %c0_42] : memref<18x18x3xbf16, #tpu.memory_space<vmem>>, vector<16x16x3xbf16>
    %30 = vector.shape_cast %29 : vector<16x16x3xbf16> to vector<256x3xbf16>
    %c0_43 = arith.constant 0 : index
    %c24 = arith.constant 24 : index
    %31 = vector.load %arg9[%c0_43, %c24] : memref<256x27xbf16, #tpu.memory_space<vmem>>, vector<256x3xbf16>
    tpu.vector_store %arg9[%c0_43, %c24], %30 {strides = array<i32>} : memref<256x27xbf16, #tpu.memory_space<vmem>>, vector<256x3xbf16>,
    %c0_44 = arith.constant 0 : index
    %c0_45 = arith.constant 0 : index
    %32 = vector.load %arg9[%c0_44, %c0_45] : memref<256x27xbf16, #tpu.memory_space<vmem>>, vector<256x27xbf16>
    %c0_46 = arith.constant 0 : index
    %c0_47 = arith.constant 0 : index
    %33 = vector.load %arg2[%c0_46, %c0_47] : memref<27x64xbf16, #tpu.memory_space<vmem>>, vector<27x64xbf16>
    %cst_48 = arith.constant dense<0.000000e+00> : vector<256x64xf32>
    %34 = tpu.matmul %32, %33, %cst_48 {dimension_numbers = #tpu.dot_dimension_numbers<[1], [0], [0], [1], [0, 0, 1, 1], [], []>} : vector<256x27xbf16>, vector<27x64xbf16>, vector<256x64xf32> -> vector<256x64xf32>
    %c0_49 = arith.constant 0 : index
    %c0_50 = arith.constant 0 : index
    %35 = vector.load %arg3[%c0_49, %c0_50] : memref<1x64xf32, #tpu.memory_space<vmem>>, vector<1x64xf32>
    %36 = vector.broadcast %35 : vector<1x64xf32> to vector<256x64xf32>
    %37 = arith.addf %34, %36 : vector<256x64xf32>
    %cst_51 = arith.constant 0.000000e+00 : f32
    %38 = vector.broadcast %cst_51 : f32 to vector<256x64xf32>
    %39 = arith.maximumf %37, %38 : vector<256x64xf32>
    %40 = tpu.transpose %39, [1, 0] : vector<256x64xf32> -> vector<64x256xf32>
    %c0_52 = arith.constant 0 : index
    %c0_53 = arith.constant 0 : index
    %c0_54 = arith.constant 0 : index
    %41 = vector.load %arg6[%c0_52, %c0_53, %c0_54] : memref<1x64x256xf32, #tpu.memory_space<vmem>>, vector<1x64x256xf32>
    %42 = vector.shape_cast %41 : vector<1x64x256xf32> to vector<64x256xf32>
    %43 = vector.shape_cast %40 : vector<64x256xf32> to vector<1x64x256xf32>
    tpu.vector_store %arg6[%c0_52, %c0_53, %c0_54], %43 {strides = array<i32>} : memref<1x64x256xf32, #tpu.memory_space<vmem>>, vector<1x64x256xf32>,
    %cst_55 = arith.constant 0.000000e+00 : bf16
    %44 = vector.broadcast %cst_55 : bf16 to vector<18x64xbf16>
    %c0_56 = arith.constant 0 : index
    %c0_57 = arith.constant 0 : index
    %c0_58 = arith.constant 0 : index
    %45 = vector.load %arg10[%c0_56, %c0_57, %c0_58] : memref<18x18x64xbf16, #tpu.memory_space<vmem>>, vector<1x18x64xbf16>
    %46 = vector.shape_cast %45 : vector<1x18x64xbf16> to vector<18x64xbf16>
    %47 = vector.shape_cast %44 : vector<18x64xbf16> to vector<1x18x64xbf16>
    tpu.vector_store %arg10[%c0_56, %c0_57, %c0_58], %47 {strides = array<i32>} : memref<18x18x64xbf16, #tpu.memory_space<vmem>>, vector<1x18x64xbf16>,
    %cst_59 = arith.constant 0.000000e+00 : bf16
    %48 = vector.broadcast %cst_59 : bf16 to vector<18x64xbf16>
    %c17 = arith.constant 17 : index
    %c0_60 = arith.constant 0 : index
    %c0_61 = arith.constant 0 : index
    %49 = vector.load %arg10[%c17, %c0_60, %c0_61] : memref<18x18x64xbf16, #tpu.memory_space<vmem>>, vector<1x18x64xbf16>
    %50 = vector.shape_cast %49 : vector<1x18x64xbf16> to vector<18x64xbf16>
    %51 = vector.shape_cast %48 : vector<18x64xbf16> to vector<1x18x64xbf16>
    tpu.vector_store %arg10[%c17, %c0_60, %c0_61], %51 {strides = array<i32>} : memref<18x18x64xbf16, #tpu.memory_space<vmem>>, vector<1x18x64xbf16>,
    %cst_62 = arith.constant 0.000000e+00 : bf16
    %52 = vector.broadcast %cst_62 : bf16 to vector<18x1x64xbf16>
    %c0_63 = arith.constant 0 : index
    %c0_64 = arith.constant 0 : index
    %c0_65 = arith.constant 0 : index
    %53 = vector.load %arg10[%c0_63, %c0_64, %c0_65] : memref<18x18x64xbf16, #tpu.memory_space<vmem>>, vector<18x1x64xbf16>
    tpu.vector_store %arg10[%c0_63, %c0_64, %c0_65], %52 {strides = array<i32>} : memref<18x18x64xbf16, #tpu.memory_space<vmem>>, vector<18x1x64xbf16>,
    %cst_66 = arith.constant 0.000000e+00 : bf16
    %54 = vector.broadcast %cst_66 : bf16 to vector<18x1x64xbf16>
    %c0_67 = arith.constant 0 : index
    %c17_68 = arith.constant 17 : index
    %c0_69 = arith.constant 0 : index
    %55 = vector.load %arg10[%c0_67, %c17_68, %c0_69] : memref<18x18x64xbf16, #tpu.memory_space<vmem>>, vector<18x1x64xbf16>
    tpu.vector_store %arg10[%c0_67, %c17_68, %c0_69], %54 {strides = array<i32>} : memref<18x18x64xbf16, #tpu.memory_space<vmem>>, vector<18x1x64xbf16>,
    %56 = arith.truncf %39 : vector<256x64xf32> to vector<256x64xbf16>
    %57 = vector.shape_cast %56 : vector<256x64xbf16> to vector<16x16x64xbf16>
    %c1_70 = arith.constant 1 : index
    %c1_71 = arith.constant 1 : index
    %c0_72 = arith.constant 0 : index
    %58 = vector.load %arg10[%c1_70, %c1_71, %c0_72] : memref<18x18x64xbf16, #tpu.memory_space<vmem>>, vector<16x16x64xbf16>
    tpu.vector_store %arg10[%c1_70, %c1_71, %c0_72], %57 {strides = array<i32>} : memref<18x18x64xbf16, #tpu.memory_space<vmem>>, vector<16x16x64xbf16>,
    %c0_73 = arith.constant 0 : index
    %c0_74 = arith.constant 0 : index
    %c0_75 = arith.constant 0 : index
    %59 = vector.load %arg10[%c0_73, %c0_74, %c0_75] : memref<18x18x64xbf16, #tpu.memory_space<vmem>>, vector<16x16x64xbf16>
    %60 = vector.shape_cast %59 : vector<16x16x64xbf16> to vector<256x64xbf16>
    %c0_76 = arith.constant 0 : index
    %c0_77 = arith.constant 0 : index
    %61 = vector.load %arg11[%c0_76, %c0_77] : memref<256x576xbf16, #tpu.memory_space<vmem>>, vector<256x64xbf16>
    tpu.vector_store %arg11[%c0_76, %c0_77], %60 {strides = array<i32>} : memref<256x576xbf16, #tpu.memory_space<vmem>>, vector<256x64xbf16>,
    %c0_78 = arith.constant 0 : index
    %c1_79 = arith.constant 1 : index
    %c0_80 = arith.constant 0 : index
    %62 = vector.load %arg10[%c0_78, %c1_79, %c0_80] : memref<18x18x64xbf16, #tpu.memory_space<vmem>>, vector<16x16x64xbf16>
    %63 = vector.shape_cast %62 : vector<16x16x64xbf16> to vector<256x64xbf16>
    %c0_81 = arith.constant 0 : index
    %c64 = arith.constant 64 : index
    %64 = vector.load %arg11[%c0_81, %c64] : memref<256x576xbf16, #tpu.memory_space<vmem>>, vector<256x64xbf16>
    tpu.vector_store %arg11[%c0_81, %c64], %63 {strides = array<i32>} : memref<256x576xbf16, #tpu.memory_space<vmem>>, vector<256x64xbf16>,
    %c0_82 = arith.constant 0 : index
    %c2_83 = arith.constant 2 : index
    %c0_84 = arith.constant 0 : index
    %65 = vector.load %arg10[%c0_82, %c2_83, %c0_84] : memref<18x18x64xbf16, #tpu.memory_space<vmem>>, vector<16x16x64xbf16>
    %66 = vector.shape_cast %65 : vector<16x16x64xbf16> to vector<256x64xbf16>
    %c0_85 = arith.constant 0 : index
    %c128 = arith.constant 128 : index
    %67 = vector.load %arg11[%c0_85, %c128] : memref<256x576xbf16, #tpu.memory_space<vmem>>, vector<256x64xbf16>
    tpu.vector_store %arg11[%c0_85, %c128], %66 {strides = array<i32>} : memref<256x576xbf16, #tpu.memory_space<vmem>>, vector<256x64xbf16>,
    %c1_86 = arith.constant 1 : index
    %c0_87 = arith.constant 0 : index
    %c0_88 = arith.constant 0 : index
    %68 = vector.load %arg10[%c1_86, %c0_87, %c0_88] : memref<18x18x64xbf16, #tpu.memory_space<vmem>>, vector<16x16x64xbf16>
    %69 = vector.shape_cast %68 : vector<16x16x64xbf16> to vector<256x64xbf16>
    %c0_89 = arith.constant 0 : index
    %c192 = arith.constant 192 : index
    %70 = vector.load %arg11[%c0_89, %c192] : memref<256x576xbf16, #tpu.memory_space<vmem>>, vector<256x64xbf16>
    tpu.vector_store %arg11[%c0_89, %c192], %69 {strides = array<i32>} : memref<256x576xbf16, #tpu.memory_space<vmem>>, vector<256x64xbf16>,
    %c1_90 = arith.constant 1 : index
    %c1_91 = arith.constant 1 : index
    %c0_92 = arith.constant 0 : index
    %71 = vector.load %arg10[%c1_90, %c1_91, %c0_92] : memref<18x18x64xbf16, #tpu.memory_space<vmem>>, vector<16x16x64xbf16>
    %72 = vector.shape_cast %71 : vector<16x16x64xbf16> to vector<256x64xbf16>
    %c0_93 = arith.constant 0 : index
    %c256 = arith.constant 256 : index
    %73 = vector.load %arg11[%c0_93, %c256] : memref<256x576xbf16, #tpu.memory_space<vmem>>, vector<256x64xbf16>
    tpu.vector_store %arg11[%c0_93, %c256], %72 {strides = array<i32>} : memref<256x576xbf16, #tpu.memory_space<vmem>>, vector<256x64xbf16>,
    %c1_94 = arith.constant 1 : index
    %c2_95 = arith.constant 2 : index
    %c0_96 = arith.constant 0 : index
    %74 = vector.load %arg10[%c1_94, %c2_95, %c0_96] : memref<18x18x64xbf16, #tpu.memory_space<vmem>>, vector<16x16x64xbf16>
    %75 = vector.shape_cast %74 : vector<16x16x64xbf16> to vector<256x64xbf16>
    %c0_97 = arith.constant 0 : index
    %c320 = arith.constant 320 : index
    %76 = vector.load %arg11[%c0_97, %c320] : memref<256x576xbf16, #tpu.memory_space<vmem>>, vector<256x64xbf16>
    tpu.vector_store %arg11[%c0_97, %c320], %75 {strides = array<i32>} : memref<256x576xbf16, #tpu.memory_space<vmem>>, vector<256x64xbf16>,
    %c2_98 = arith.constant 2 : index
    %c0_99 = arith.constant 0 : index
    %c0_100 = arith.constant 0 : index
    %77 = vector.load %arg10[%c2_98, %c0_99, %c0_100] : memref<18x18x64xbf16, #tpu.memory_space<vmem>>, vector<16x16x64xbf16>
    %78 = vector.shape_cast %77 : vector<16x16x64xbf16> to vector<256x64xbf16>
    %c0_101 = arith.constant 0 : index
    %c384 = arith.constant 384 : index
    %79 = vector.load %arg11[%c0_101, %c384] : memref<256x576xbf16, #tpu.memory_space<vmem>>, vector<256x64xbf16>
    tpu.vector_store %arg11[%c0_101, %c384], %78 {strides = array<i32>} : memref<256x576xbf16, #tpu.memory_space<vmem>>, vector<256x64xbf16>,
    %c2_102 = arith.constant 2 : index
    %c1_103 = arith.constant 1 : index
    %c0_104 = arith.constant 0 : index
    %80 = vector.load %arg10[%c2_102, %c1_103, %c0_104] : memref<18x18x64xbf16, #tpu.memory_space<vmem>>, vector<16x16x64xbf16>
    %81 = vector.shape_cast %80 : vector<16x16x64xbf16> to vector<256x64xbf16>
    %c0_105 = arith.constant 0 : index
    %c448 = arith.constant 448 : index
    %82 = vector.load %arg11[%c0_105, %c448] : memref<256x576xbf16, #tpu.memory_space<vmem>>, vector<256x64xbf16>
    tpu.vector_store %arg11[%c0_105, %c448], %81 {strides = array<i32>} : memref<256x576xbf16, #tpu.memory_space<vmem>>, vector<256x64xbf16>,
    %c2_106 = arith.constant 2 : index
    %c2_107 = arith.constant 2 : index
    %c0_108 = arith.constant 0 : index
    %83 = vector.load %arg10[%c2_106, %c2_107, %c0_108] : memref<18x18x64xbf16, #tpu.memory_space<vmem>>, vector<16x16x64xbf16>
    %84 = vector.shape_cast %83 : vector<16x16x64xbf16> to vector<256x64xbf16>
    %c0_109 = arith.constant 0 : index
    %c512 = arith.constant 512 : index
    %85 = vector.load %arg11[%c0_109, %c512] : memref<256x576xbf16, #tpu.memory_space<vmem>>, vector<256x64xbf16>
    tpu.vector_store %arg11[%c0_109, %c512], %84 {strides = array<i32>} : memref<256x576xbf16, #tpu.memory_space<vmem>>, vector<256x64xbf16>,
    %c0_110 = arith.constant 0 : index
    %c0_111 = arith.constant 0 : index
    %86 = vector.load %arg11[%c0_110, %c0_111] : memref<256x576xbf16, #tpu.memory_space<vmem>>, vector<256x576xbf16>
    %c0_112 = arith.constant 0 : index
    %c0_113 = arith.constant 0 : index
    %87 = vector.load %arg4[%c0_112, %c0_113] : memref<576x64xbf16, #tpu.memory_space<vmem>>, vector<576x64xbf16>
    %cst_114 = arith.constant dense<0.000000e+00> : vector<256x64xf32>
    %88 = tpu.matmul %86, %87, %cst_114 {dimension_numbers = #tpu.dot_dimension_numbers<[1], [0], [0], [1], [0, 0, 1, 1], [], []>} : vector<256x576xbf16>, vector<576x64xbf16>, vector<256x64xf32> -> vector<256x64xf32>
    %c0_115 = arith.constant 0 : index
    %c0_116 = arith.constant 0 : index
    %89 = vector.load %arg5[%c0_115, %c0_116] : memref<1x64xf32, #tpu.memory_space<vmem>>, vector<1x64xf32>
    %90 = vector.broadcast %89 : vector<1x64xf32> to vector<256x64xf32>
    %91 = arith.addf %88, %90 : vector<256x64xf32>
    %cst_117 = arith.constant 0.000000e+00 : f32
    %92 = vector.broadcast %cst_117 : f32 to vector<256x64xf32>
    %93 = arith.maximumf %91, %92 : vector<256x64xf32>
    %c0_118 = arith.constant 0 : index
    %c0_119 = arith.constant 0 : index
    %94 = vector.load %arg12[%c0_118, %c0_119] : memref<256x64xf32, #tpu.memory_space<vmem>>, vector<256x64xf32>
    tpu.vector_store %arg12[%c0_118, %c0_119], %93 {strides = array<i32>} : memref<256x64xf32, #tpu.memory_space<vmem>>, vector<256x64xf32>,
    %c0_120 = arith.constant 0 : index
    %c0_121 = arith.constant 0 : index
    %95 = tpu.strided_load %arg12[%c0_120, %c0_121] {strides = array<i32: 2, 1>} : memref<256x64xf32, #tpu.memory_space<vmem>>, vector<128x64xf32>
    %c1_122 = arith.constant 1 : index
    %c0_123 = arith.constant 0 : index
    %96 = tpu.strided_load %arg12[%c1_122, %c0_123] {strides = array<i32: 2, 1>} : memref<256x64xf32, #tpu.memory_space<vmem>>, vector<128x64xf32>
    %97 = arith.maximumf %95, %96 : vector<128x64xf32>
    %98 = vector.shape_cast %97 : vector<128x64xf32> to vector<8x2x8x64xf32>
    %99 = vector.extract_strided_slice %98 {offsets = [0, 0, 0, 0], sizes = [8, 1, 8, 64], strides = [1, 1, 1, 1]} : vector<8x2x8x64xf32> to vector<8x1x8x64xf32>
    %100 = vector.shape_cast %99 : vector<8x1x8x64xf32> to vector<8x8x64xf32>
    %101 = vector.extract_strided_slice %98 {offsets = [0, 1, 0, 0], sizes = [8, 1, 8, 64], strides = [1, 1, 1, 1]} : vector<8x2x8x64xf32> to vector<8x1x8x64xf32>
    %102 = vector.shape_cast %101 : vector<8x1x8x64xf32> to vector<8x8x64xf32>
    %103 = arith.maximumf %100, %102 : vector<8x8x64xf32>
    %104 = vector.shape_cast %103 : vector<8x8x64xf32> to vector<64x64xf32>
    %105 = tpu.transpose %104, [1, 0] : vector<64x64xf32> -> vector<64x64xf32>
    %c0_124 = arith.constant 0 : index
    %c0_125 = arith.constant 0 : index
    %c0_126 = arith.constant 0 : index
    %106 = vector.load %arg7[%c0_124, %c0_125, %c0_126] : memref<1x64x64xf32, #tpu.memory_space<vmem>>, vector<1x64x64xf32>
    %107 = vector.shape_cast %106 : vector<1x64x64xf32> to vector<64x64xf32>
    %108 = vector.shape_cast %105 : vector<64x64xf32> to vector<1x64x64xf32>
    tpu.vector_store %arg7[%c0_124, %c0_125, %c0_126], %108 {strides = array<i32>} : memref<1x64x64xf32, #tpu.memory_space<vmem>>, vector<1x64x64xf32>,
    return
  }
  func.func @transform_0(%arg0: i32) -> (i32, i32, i32, i32) {
    %c0_i32 = arith.constant 0 : i32
    %c0_i32_0 = arith.constant 0 : i32
    %c0_i32_1 = arith.constant 0 : i32
    %c0_i32_2 = arith.constant 0 : i32
    return %arg0, %c0_i32, %c0_i32_0, %c0_i32_1 : i32, i32, i32, i32
  }
  func.func @transform_1(%arg0: i32) -> (i32, i32) {
    %c0_i32 = arith.constant 0 : i32
    %c0_i32_0 = arith.constant 0 : i32
    %c0_i32_1 = arith.constant 0 : i32
    return %c0_i32, %c0_i32_0 : i32, i32
  }
  func.func @transform_2(%arg0: i32) -> (i32, i32) {
    %c0_i32 = arith.constant 0 : i32
    %c0_i32_0 = arith.constant 0 : i32
    %c0_i32_1 = arith.constant 0 : i32
    return %c0_i32, %c0_i32_0 : i32, i32
  }
  func.func @transform_3(%arg0: i32) -> (i32, i32) {
    %c0_i32 = arith.constant 0 : i32
    %c0_i32_0 = arith.constant 0 : i32
    %c0_i32_1 = arith.constant 0 : i32
    return %c0_i32, %c0_i32_0 : i32, i32
  }
  func.func @transform_4(%arg0: i32) -> (i32, i32) {
    %c0_i32 = arith.constant 0 : i32
    %c0_i32_0 = arith.constant 0 : i32
    %c0_i32_1 = arith.constant 0 : i32
    return %c0_i32, %c0_i32_0 : i32, i32
  }
  func.func @transform_5(%arg0: i32) -> (i32, i32, i32) {
    %c0_i32 = arith.constant 0 : i32
    %c0_i32_0 = arith.constant 0 : i32
    %c0_i32_1 = arith.constant 0 : i32
    return %arg0, %c0_i32, %c0_i32_0 : i32, i32, i32
  }
  func.func @transform_6(%arg0: i32) -> (i32, i32, i32) {
    %c0_i32 = arith.constant 0 : i32
    %c0_i32_0 = arith.constant 0 : i32
    %c0_i32_1 = arith.constant 0 : i32
    return %arg0, %c0_i32, %c0_i32_0 : i32, i32, i32
  }
}

</mosaic_0001>

<llo_original>
// kernel: _lambda_.1
$region0: #{_lambda_.1}
  #allocation0 [shape = 'u32[]', space=smem, size = 0x4, offset = 0x4, fixed_abs, tag = 'smem constant byte address 0x4 - core index']
  #allocation1 [shape = 'u32[144,128]{1,0:T(1,128)}', space=vmem, size = 0x12000, scoped, tag = 'internal scratch']
  #allocation2 [shape = 'bf16[18,18,3]{2,1,0:T(8,128)(2,1)}', space=vmem, size = 0x1b000, scoped, tag = 'scratch operand']
  #allocation3 [shape = 'bf16[256,27]{1,0:T(16,128)(2,1)}', space=vmem, size = 0x10000, scoped, tag = 'scratch operand']
  #allocation4 [shape = 'bf16[18,18,64]{2,1,0:T(8,128)(2,1)}', space=vmem, size = 0x1b000, scoped, tag = 'scratch operand']
  #allocation5 [shape = 'bf16[256,576]{1,0:T(16,128)(2,1)}', space=vmem, size = 0x50000, scoped, tag = 'scratch operand']
  #allocation6 [shape = 'f32[256,64]{1,0:T(8,128)}', space=vmem, size = 0x20000, scoped, tag = 'scratch operand']
  %s0 = inlined_call_operand.vmem [shape: bf16[2,16,16,3], index: 0, kind: input, shape index: {}]
  %s1 = inlined_call_operand.vmem [shape: bf16[27,64], index: 1, kind: input, shape index: {}]
  %s2 = inlined_call_operand.vmem [shape: f32[1,64], index: 2, kind: input, shape index: {}]
  %s3 = inlined_call_operand.vmem [shape: bf16[576,64], index: 3, kind: input, shape index: {}]
  %s4 = inlined_call_operand.vmem [shape: f32[1,64], index: 4, kind: input, shape index: {}]
  %s5 = inlined_call_operand.vmem [shape: f32[2,64,256], index: 5, kind: output, shape index: {0}]
  %s6 = inlined_call_operand.vmem [shape: f32[2,64,64], index: 6, kind: output, shape index: {1}]
  %7 = xla_tuple %s5, %s6
  %s8 = sld [smem:[#allocation0]]
  $region61: #{_lambda_.1} parent=0
    _
  %s10 = ssub.s32 1, %s8
  %s11 = scalar_select 0, %s10, %s8
  loop: start=0, step=1, limit=4
  $region2: #{_lambda_.1} parent=0 // loop_pre_header
    _
  $region3: #{_lambda_.1} parent=0 // loop_header
    %s13 = sphi 0, %s17
    %p14 = scmp.ge.s32.totalorder %s13, 4
    %s23 = sphi 0, %s25
    %s26 = sphi 0, %s23
    %s27 = sphi 0, %s26
    %s43 = sphi 0, %s27
    %s47 = sphi 0, %s47
    %s49 = sphi 0, %s47
    %s50 = sphi 0, %s49
    %s64 = sphi 0, %s50
    %s68 = sphi 0, %s68
    %s70 = sphi 0, %s68
    %s71 = sphi 0, %s70
    %s85 = sphi 0, %s71
    %s89 = sphi 0, %s89
    %s91 = sphi 0, %s89
    %s92 = sphi 0, %s91
    %s106 = sphi 0, %s92
    %s110 = sphi 0, %s110
    %s112 = sphi 0, %s110
    %s113 = sphi 0, %s112
    %s127 = sphi 0, %s113
    %s133 = sphi 0, %s135
    %s136 = sphi 0, %s133
    %s137 = sphi 0, %s136
    %s153 = sphi 0, %s137
    %s159 = sphi 0, %s161
    %s162 = sphi 0, %s159
    %s163 = sphi 0, %s162
    %s179 = sphi 0, %s163
  $region4: #{_lambda_.1} parent=0 // loop_header_branch
    %16 = sbr.rel (%p14) target = $region8
  $region5: #{_lambda_.1} parent=0 // loop_body
    %s18 = ssub.s32 %s13, 1
    %s19 = ssub.s32 %s13, 2
    %s20 = sadd.s32 %s13, 1
    %s21 = ssub.s32 %s13, %s20
    %p22 = scmp.eq.s32.totalorder %s21, 0
    %s24 = sadd.s32 %s23, 1
    %s25 = scalar_select %p22, %s23, %s24
    %p28 = pneg %p22
    %p29 = scmp.eq.s32.totalorder %s13, 1
    %p30 = por %p28, %p29
    %p31 = scmp.ne.s32.totalorder %s23, %s26
    %p32 = scmp.eq.s32.totalorder %s13, 0
    %p33 = por %p31, %p32
    %p34 = scmp.ne.s32.totalorder %s23, %s26
    %p35 = scmp.eq.s32.totalorder %s18, 1
    %p36 = por %p34, %p35
    %p37 = scmp.ne.s32.totalorder %s26, %s27
    %p38 = scmp.eq.s32.totalorder %s18, 0
    %p39 = por %p37, %p38
    %p40 = scmp.ne.s32.totalorder %s26, %s27
    %p41 = scmp.eq.s32.totalorder %s19, 1
    %p42 = por %p40, %p41
    %p44 = scmp.ne.s32.totalorder %s27, %s43
    %p45 = scmp.eq.s32.totalorder %s19, 0
    %p46 = por %p44, %p45
    %s48 = sadd.s32 %s47, 1
    %p51 = scmp.eq.s32.totalorder %s13, 1
    %p52 = scmp.ne.s32.totalorder %s47, %s49
    %p53 = scmp.eq.s32.totalorder %s13, 0
    %p54 = por %p52, %p53
    %p55 = scmp.ne.s32.totalorder %s47, %s49
    %p56 = scmp.eq.s32.totalorder %s18, 1
    %p57 = por %p55, %p56
    %p58 = scmp.ne.s32.totalorder %s49, %s50
    %p59 = scmp.eq.s32.totalorder %s18, 0
    %p60 = por %p58, %p59
    %p61 = scmp.ne.s32.totalorder %s49, %s50
    %p62 = scmp.eq.s32.totalorder %s19, 1
    %p63 = por %p61, %p62
    %p65 = scmp.ne.s32.totalorder %s50, %s64
    %p66 = scmp.eq.s32.totalorder %s19, 0
    %p67 = por %p65, %p66
    %s69 = sadd.s32 %s68, 1
    %p72 = scmp.eq.s32.totalorder %s13, 1
    %p73 = scmp.ne.s32.totalorder %s68, %s70
    %p74 = scmp.eq.s32.totalorder %s13, 0
    %p75 = por %p73, %p74
    %p76 = scmp.ne.s32.totalorder %s68, %s70
    %p77 = scmp.eq.s32.totalorder %s18, 1
    %p78 = por %p76, %p77
    %p79 = scmp.ne.s32.totalorder %s70, %s71
    %p80 = scmp.eq.s32.totalorder %s18, 0
    %p81 = por %p79, %p80
    %p82 = scmp.ne.s32.totalorder %s70, %s71
    %p83 = scmp.eq.s32.totalorder %s19, 1
    %p84 = por %p82, %p83
    %p86 = scmp.ne.s32.totalorder %s71, %s85
    %p87 = scmp.eq.s32.totalorder %s19, 0
    %p88 = por %p86, %p87
    %s90 = sadd.s32 %s89, 1
    %p93 = scmp.eq.s32.totalorder %s13, 1
    %p94 = scmp.ne.s32.totalorder %s89, %s91
    %p95 = scmp.eq.s32.totalorder %s13, 0
    %p96 = por %p94, %p95
    %p97 = scmp.ne.s32.totalorder %s89, %s91
    %p98 = scmp.eq.s32.totalorder %s18, 1
    %p99 = por %p97, %p98
    %p100 = scmp.ne.s32.totalorder %s91, %s92
    %p101 = scmp.eq.s32.totalorder %s18, 0
    %p102 = por %p100, %p101
    %p103 = scmp.ne.s32.totalorder %s91, %s92
    %p104 = scmp.eq.s32.totalorder %s19, 1
    %p105 = por %p103, %p104
    %p107 = scmp.ne.s32.totalorder %s92, %s106
    %p108 = scmp.eq.s32.totalorder %s19, 0
    %p109 = por %p107, %p108
    %s111 = sadd.s32 %s110, 1
    %p114 = scmp.eq.s32.totalorder %s13, 1
    %p115 = scmp.ne.s32.totalorder %s110, %s112
    %p116 = scmp.eq.s32.totalorder %s13, 0
    %p117 = por %p115, %p116
    %p118 = scmp.ne.s32.totalorder %s110, %s112
    %p119 = scmp.eq.s32.totalorder %s18, 1
    %p120 = por %p118, %p119
    %p121 = scmp.ne.s32.totalorder %s112, %s113
    %p122 = scmp.eq.s32.totalorder %s18, 0
    %p123 = por %p121, %p122
    %p124 = scmp.ne.s32.totalorder %s112, %s113
    %p125 = scmp.eq.s32.totalorder %s19, 1
    %p126 = por %p124, %p125
    %p128 = scmp.ne.s32.totalorder %s113, %s127
    %p129 = scmp.eq.s32.totalorder %s19, 0
    %p130 = por %p128, %p129
    %s131 = ssub.s32 %s13, %s20
    %p132 = scmp.eq.s32.totalorder %s131, 0
    %s134 = sadd.s32 %s133, 1
    %s135 = scalar_select %p132, %s133, %s134
    %p138 = pneg %p132
    %p139 = scmp.eq.s32.totalorder %s13, 1
    %p140 = por %p138, %p139
    %p141 = scmp.ne.s32.totalorder %s133, %s136
    %p142 = scmp.eq.s32.totalorder %s13, 0
    %p143 = por %p141, %p142
    %p144 = scmp.ne.s32.totalorder %s133, %s136
    %p145 = scmp.eq.s32.totalorder %s18, 1
    %p146 = por %p144, %p145
    %p147 = scmp.ne.s32.totalorder %s136, %s137
    %p148 = scmp.eq.s32.totalorder %s18, 0
    %p149 = por %p147, %p148
    %p150 = scmp.ne.s32.totalorder %s136, %s137
    %p151 = scmp.eq.s32.totalorder %s19, 1
    %p152 = por %p150, %p151
    %p154 = scmp.ne.s32.totalorder %s137, %s153
    %p155 = scmp.eq.s32.totalorder %s19, 0
    %p156 = por %p154, %p155
    %s157 = ssub.s32 %s13, %s20
    %p158 = scmp.eq.s32.totalorder %s157, 0
    %s160 = sadd.s32 %s159, 1
    %s161 = scalar_select %p158, %s159, %s160
    %p164 = pneg %p158
    %p165 = scmp.eq.s32.totalorder %s13, 1
    %p166 = por %p164, %p165
    %p167 = scmp.ne.s32.totalorder %s159, %s162
    %p168 = scmp.eq.s32.totalorder %s13, 0
    %p169 = por %p167, %p168
    %p170 = scmp.ne.s32.totalorder %s159, %s162
    %p171 = scmp.eq.s32.totalorder %s18, 1
    %p172 = por %p170, %p171
    %p173 = scmp.ne.s32.totalorder %s162, %s163
    %p174 = scmp.eq.s32.totalorder %s18, 0
    %p175 = por %p173, %p174
    %p176 = scmp.ne.s32.totalorder %s162, %s163
    %p177 = scmp.eq.s32.totalorder %s19, 1
    %p178 = por %p176, %p177
    %p180 = scmp.ne.s32.totalorder %s163, %s179
    %p181 = scmp.eq.s32.totalorder %s19, 0
    %p182 = por %p180, %p181
    %p183 = scmp.le.s32.totalorder 1, %s13
    %p184 = scmp.lt.s32.totalorder %s13, 3
    %p185 = pnand %p183, %p184
    %p186 = pneg %p185
    // Predicated region
    $region9: #{_lambda_.1} parent=5 // pred_check
      _
    $region10: #{_lambda_.1} parent=5 // pred_check_branch
      %188 = sbr.rel (%p185) target = $region12
    $region11: #{_lambda_.1} parent=5 // pred_region
      %s189 = ssub.s32 %s13, 1
      // Predicated region
      $region13: #{_lambda_.1} parent=11 // pred_check
        %p190 = pneg %p60
      $region14: #{_lambda_.1} parent=11 // pred_check_branch
        %192 = sbr.rel (%p190) target = $region16
      $region15: #{_lambda_.1} parent=11 // pred_region
        _
      $region16: #{_lambda_.1} parent=11 // pred_fallthru
        _
      // Predicated region
      $region17: #{_lambda_.1} parent=11 // pred_check
        %p193 = pneg %p81
      $region18: #{_lambda_.1} parent=11 // pred_check_branch
        %195 = sbr.rel (%p193) target = $region20
      $region19: #{_lambda_.1} parent=11 // pred_region
        _
      $region20: #{_lambda_.1} parent=11 // pred_fallthru
        _
      // Predicated region
      $region21: #{_lambda_.1} parent=11 // pred_check
        %p196 = pneg %p102
      $region22: #{_lambda_.1} parent=11 // pred_check_branch
        %198 = sbr.rel (%p196) target = $region24
      $region23: #{_lambda_.1} parent=11 // pred_region
        _
      $region24: #{_lambda_.1} parent=11 // pred_fallthru
        _
      // Predicated region
      $region25: #{_lambda_.1} parent=11 // pred_check
        %p199 = pneg %p123
      $region26: #{_lambda_.1} parent=11 // pred_check_branch
        %201 = sbr.rel (%p199) target = $region28
      $region27: #{_lambda_.1} parent=11 // pred_region
        _
      $region28: #{_lambda_.1} parent=11 // pred_fallthru
        _
    $region12: #{_lambda_.1} parent=5 // pred_fallthru
      _
    %p202 = scmp.lt.s32.totalorder %s13, 2
    // Predicated region
    $region29: #{_lambda_.1} parent=5 // pred_check
      %p203 = pneg %p202
    $region30: #{_lambda_.1} parent=5 // pred_check_branch
      %205 = sbr.rel (%p203) target = $region32
    $region31: #{_lambda_.1} parent=5 // pred_region
      // Predicated region
      $region33: #{_lambda_.1} parent=31 // pred_check
        %p206 = pneg %p33
      $region34: #{_lambda_.1} parent=31 // pred_check_branch
        %208 = sbr.rel (%p206) target = $region36
      $region35: #{_lambda_.1} parent=31 // pred_region
        %p209 = scmp.lt.s32.totalorder %s13, 1
        %s210 = scalar_select %p209, %s13, 1
        %s211 = smul.addr %s210, 32
        %s212 = smul.addr %s211, 4
        %s213 = scalar_lea.vmem %s0, %s212
      $region36: #{_lambda_.1} parent=31 // pred_fallthru
        _
    $region32: #{_lambda_.1} parent=5 // pred_fallthru
      _
    %p214 = scmp.le.s32.totalorder 1, %s13
    %p215 = scmp.lt.s32.totalorder %s13, 3
    %p216 = pnand %p214, %p215
    %p217 = pneg %p216
    // Predicated region
    $region37: #{_lambda_.1} parent=5 // pred_check
      _
    $region38: #{_lambda_.1} parent=5 // pred_check_branch
      %219 = sbr.rel (%p216) target = $region40
    $region39: #{_lambda_.1} parent=5 // pred_region
      %s220 = ssub.s32 %s13, 1
      %p221 = scmp.lt.s32.totalorder %s18, 1
      %s222 = scalar_select %p221, %s18, 1
      %s223 = smul.addr %s222, 32
      %s224 = smul.addr %s223, 4
      %s225 = scalar_lea.vmem %s0, %s224
      %p226 = pneg %p39
      %p227 = pneg %p36
      %p228 = pneg %p60
      %p229 = pneg %p57
      %p230 = pneg %p81
      %p231 = pneg %p78
      %p232 = pneg %p102
      %p233 = pneg %p99
      %p234 = pneg %p123
      %p235 = pneg %p120
      %p236 = pneg %p149
      %p237 = pneg %p146
      %p238 = scmp.lt.s32.totalorder %s18, 1
      %s239 = scalar_select %p238, %s18, 1
      %s240 = smul.addr %s239, 16
      %s241 = smul.addr %s240, 8
      %s242 = scalar_lea.vmem %s5, %s241
      %p243 = pneg %p175
      %p244 = pneg %p172
      %p245 = scmp.lt.s32.totalorder %s18, 1
      %s246 = scalar_select %p245, %s18, 1
      %s247 = smul.addr %s246, 8
      %s248 = smul.addr %s247, 8
      %s249 = scalar_lea.vmem %s6, %s248
      %p250 = scmp.lt.s32.totalorder %s18, 1
      %s251 = scalar_select %p250, %s18, 1
      %s252 = smul.addr %s251, 32
      %s253 = smul.addr %s252, 4
      %s254 = scalar_lea.vmem %s0, %s253
      %p255 = scmp.lt.s32.totalorder %s18, 1
      %s256 = scalar_select %p255, %s18, 1
      %s257 = smul.addr %s256, 16
      %s258 = smul.addr %s257, 8
      %s259 = scalar_lea.vmem %s5, %s258
      %p260 = scmp.lt.s32.totalorder %s18, 1
      %s261 = scalar_select %p260, %s18, 1
      %s262 = smul.addr %s261, 8
      %s263 = smul.addr %s262, 8
      %s264 = scalar_lea.vmem %s6, %s263
      %vm266 = vcmask 19456
      %267 = vst.msk [vmem:[#allocation2] sm:$0xf] %vm266, 0
      %268 = vst.msk [vmem:[#allocation2 + $0x4] sm:$0xf] %vm266, 0
      %vm269 = vcmask 16384
      %270 = vst.msk [vmem:[#allocation2 + $0x8] sm:$0x1] %vm269, 0
      %271 = vst.msk [vmem:[#allocation2 + $0xc] sm:$0xf] %vm266, 0
      %272 = vst.msk [vmem:[#allocation2 + $0x10] sm:$0xf] %vm266, 0
      %273 = vst.msk [vmem:[#allocation2 + $0x14] sm:$0x1] %vm269, 0
      %274 = vst.msk [vmem:[#allocation2 + $0x18] sm:$0xf] %vm266, 0
      %275 = vst.msk [vmem:[#allocation2 + $0x1c] sm:$0xf] %vm266, 0
      %276 = vst.msk [vmem:[#allocation2 + $0x20] sm:$0x1] %vm269, 0
      %277 = vst.msk [vmem:[#allocation2 + $0x24] sm:$0xf] %vm266, 0
      %278 = vst.msk [vmem:[#allocation2 + $0x28] sm:$0xf] %vm266, 0
      %279 = vst.msk [vmem:[#allocation2 + $0x2c] sm:$0x1] %vm269, 0
      %280 = vst.msk [vmem:[#allocation2 + $0x30] sm:$0xf] %vm266, 0
      %281 = vst.msk [vmem:[#allocation2 + $0x34] sm:$0xf] %vm266, 0
      %282 = vst.msk [vmem:[#allocation2 + $0x38] sm:$0x1] %vm269, 0
      %283 = vst.msk [vmem:[#allocation2 + $0x3c] sm:$0xf] %vm266, 0
      %284 = vst.msk [vmem:[#allocation2 + $0x40] sm:$0xf] %vm266, 0
      %285 = vst.msk [vmem:[#allocation2 + $0x44] sm:$0x1] %vm269, 0
      %286 = vst.msk [vmem:[#allocation2 + $0x48] sm:$0xf] %vm266, 0
      %287 = vst.msk [vmem:[#allocation2 + $0x4c] sm:$0xf] %vm266, 0
      %288 = vst.msk [vmem:[#allocation2 + $0x50] sm:$0x1] %vm269, 0
      %289 = vst.msk [vmem:[#allocation2 + $0x54] sm:$0xf] %vm266, 0
      %290 = vst.msk [vmem:[#allocation2 + $0x58] sm:$0xf] %vm266, 0
      %291 = vst.msk [vmem:[#allocation2 + $0x5c] sm:$0x1] %vm269, 0
      %292 = vst.msk [vmem:[#allocation2 + $0x60] sm:$0xf] %vm266, 0
      %293 = vst.msk [vmem:[#allocation2 + $0x64] sm:$0xf] %vm266, 0
      %294 = vst.msk [vmem:[#allocation2 + $0x68] sm:$0x1] %vm269, 0
      %295 = vst.msk [vmem:[#allocation2 + $0x6c] sm:$0xf] %vm266, 0
      %296 = vst.msk [vmem:[#allocation2 + $0x70] sm:$0xf] %vm266, 0
      %297 = vst.msk [vmem:[#allocation2 + $0x74] sm:$0x1] %vm269, 0
      %298 = vst.msk [vmem:[#allocation2 + $0x78] sm:$0xf] %vm266, 0
      %299 = vst.msk [vmem:[#allocation2 + $0x7c] sm:$0xf] %vm266, 0
      %300 = vst.msk [vmem:[#allocation2 + $0x80] sm:$0x1] %vm269, 0
      %301 = vst.msk [vmem:[#allocation2 + $0x84] sm:$0xf] %vm266, 0
      %302 = vst.msk [vmem:[#allocation2 + $0x88] sm:$0xf] %vm266, 0
      %303 = vst.msk [vmem:[#allocation2 + $0x8c] sm:$0x1] %vm269, 0
      %304 = vst.msk [vmem:[#allocation2 + $0x90] sm:$0xf] %vm266, 0
      %305 = vst.msk [vmem:[#allocation2 + $0x94] sm:$0xf] %vm266, 0
      %306 = vst.msk [vmem:[#allocation2 + $0x98] sm:$0x1] %vm269, 0
      %307 = vst.msk [vmem:[#allocation2 + $0x9c] sm:$0xf] %vm266, 0
      %308 = vst.msk [vmem:[#allocation2 + $0xa0] sm:$0xf] %vm266, 0
      %309 = vst.msk [vmem:[#allocation2 + $0xa4] sm:$0x1] %vm269, 0
      %310 = vst.msk [vmem:[#allocation2 + $0xa8] sm:$0xf] %vm266, 0
      %311 = vst.msk [vmem:[#allocation2 + $0xac] sm:$0xf] %vm266, 0
      %312 = vst.msk [vmem:[#allocation2 + $0xb0] sm:$0x1] %vm269, 0
      %313 = vst.msk [vmem:[#allocation2 + $0xb4] sm:$0xf] %vm266, 0
      %314 = vst.msk [vmem:[#allocation2 + $0xb8] sm:$0xf] %vm266, 0
      %315 = vst.msk [vmem:[#allocation2 + $0xbc] sm:$0x1] %vm269, 0
      %316 = vst.msk [vmem:[#allocation2 + $0xc0] sm:$0xf] %vm266, 0
      %317 = vst.msk [vmem:[#allocation2 + $0xc4] sm:$0xf] %vm266, 0
      %318 = vst.msk [vmem:[#allocation2 + $0xc8] sm:$0x1] %vm269, 0
      %319 = vst.msk [vmem:[#allocation2 + $0xcc] sm:$0xf] %vm266, 0
      %320 = vst.msk [vmem:[#allocation2 + $0xd0] sm:$0xf] %vm266, 0
      %321 = vst.msk [vmem:[#allocation2 + $0xd4] sm:$0x1] %vm269, 0
      %v322 = vld [vmem:[%s254] sm:$0xf]
      %v323 = vld [vmem:[%s254 + $0x4] sm:$0xf]
      %v324 = vld [vmem:[%s254 + $0x8] sm:$0xf]
      %v325 = vld [vmem:[%s254 + $0xc] sm:$0xf]
      %v326 = vld [vmem:[%s254 + $0x10] sm:$0xf]
      %v327 = vld [vmem:[%s254 + $0x14] sm:$0xf]
      %v328 = vld [vmem:[%s254 + $0x18] sm:$0xf]
      %v329 = vld [vmem:[%s254 + $0x1c] sm:$0xf]
      %v330 = vld [vmem:[%s254 + $0x20] sm:$0xf]
      %v331 = vld [vmem:[%s254 + $0x24] sm:$0xf]
      %v332 = vld [vmem:[%s254 + $0x28] sm:$0xf]
      %v333 = vld [vmem:[%s254 + $0x2c] sm:$0xf]
      %v334 = vld [vmem:[%s254 + $0x30] sm:$0xf]
      %v335 = vld [vmem:[%s254 + $0x34] sm:$0xf]
      %v336 = vld [vmem:[%s254 + $0x38] sm:$0xf]
      %v337 = vld [vmem:[%s254 + $0x3c] sm:$0xf]
      %v338 = vld [vmem:[%s254 + $0x40] sm:$0xf]
      %v339 = vld [vmem:[%s254 + $0x44] sm:$0xf]
      %v340 = vld [vmem:[%s254 + $0x48] sm:$0xf]
      %v341 = vld [vmem:[%s254 + $0x4c] sm:$0xf]
      %v342 = vld [vmem:[%s254 + $0x50] sm:$0xf]
      %v343 = vld [vmem:[%s254 + $0x54] sm:$0xf]
      %v344 = vld [vmem:[%s254 + $0x58] sm:$0xf]
      %v345 = vld [vmem:[%s254 + $0x5c] sm:$0xf]
      %v346 = vld [vmem:[%s254 + $0x60] sm:$0xf]
      %v347 = vld [vmem:[%s254 + $0x64] sm:$0xf]
      %v348 = vld [vmem:[%s254 + $0x68] sm:$0xf]
      %v349 = vld [vmem:[%s254 + $0x6c] sm:$0xf]
      %v350 = vld [vmem:[%s254 + $0x70] sm:$0xf]
      %v351 = vld [vmem:[%s254 + $0x74] sm:$0xf]
      %v352 = vld [vmem:[%s254 + $0x78] sm:$0xf]
      %v353 = vld [vmem:[%s254 + $0x7c] sm:$0xf]
      %vm354 = vsmask.f32 256
      %vm355 = vsmask.f32 4368
      %vm356 = vmor %vm354, %vm355
      %v358 = vshrl.u32 %v322, 16
      %v360 = vrot.slane %v358, 7
      %v361 = vshll.u32 %v322, 16
      %v363 = vor.u32 %v360, %v361
      %v364 = vrot.slane %v360, 4
      %v366 = vshrl.u32 %v323, 16
      %v368 = vrot.slane %v366, 7
      %v369 = vshll.u32 %v323, 16
      %v371 = vor.u32 %v368, %v369
      %v372 = vsel %vm356, %v364, %v371
      %v373 = vrot.slane %v368, 4
      %v375 = vshrl.u32 %v324, 16
      %v377 = vrot.slane %v375, 7
      %v378 = vshll.u32 %v324, 16
      %v380 = vor.u32 %v377, %v378
      %v381 = vrot.slane %v377, 4
      %v383 = vshrl.u32 %v325, 16
      %v385 = vrot.slane %v383, 7
      %v386 = vshll.u32 %v325, 16
      %v388 = vor.u32 %v385, %v386
      %v389 = vsel %vm356, %v381, %v388
      %v390 = vrot.slane %v385, 4
      %v392 = vshrl.u32 %v326, 16
      %v394 = vrot.slane %v392, 7
      %v395 = vshll.u32 %v326, 16
      %v397 = vor.u32 %v394, %v395
      %v398 = vrot.slane %v394, 4
      %v400 = vshrl.u32 %v327, 16
      %v402 = vrot.slane %v400, 7
      %v403 = vshll.u32 %v327, 16
      %v405 = vor.u32 %v402, %v403
      %v406 = vsel %vm356, %v398, %v405
      %v407 = vrot.slane %v402, 4
      %v409 = vshrl.u32 %v328, 16
      %v411 = vrot.slane %v409, 7
      %v412 = vshll.u32 %v328, 16
      %v414 = vor.u32 %v411, %v412
      %v415 = vrot.slane %v411, 4
      %v417 = vshrl.u32 %v329, 16
      %v419 = vrot.slane %v417, 7
      %v420 = vshll.u32 %v329, 16
      %v422 = vor.u32 %v419, %v420
      %v423 = vsel %vm356, %v415, %v422
      %v424 = vrot.slane %v419, 4
      %v426 = vshrl.u32 %v330, 16
      %v428 = vrot.slane %v426, 7
      %v429 = vshll.u32 %v330, 16
      %v431 = vor.u32 %v428, %v429
      %v432 = vrot.slane %v428, 4
      %v434 = vshrl.u32 %v331, 16
      %v436 = vrot.slane %v434, 7
      %v437 = vshll.u32 %v331, 16
      %v439 = vor.u32 %v436, %v437
      %v440 = vsel %vm356, %v432, %v439
      %v441 = vrot.slane %v436, 4
      %v443 = vshrl.u32 %v332, 16
      %v445 = vrot.slane %v443, 7
      %v446 = vshll.u32 %v332, 16
      %v448 = vor.u32 %v445, %v446
      %v449 = vrot.slane %v445, 4
      %v451 = vshrl.u32 %v333, 16
      %v453 = vrot.slane %v451, 7
      %v454 = vshll.u32 %v333, 16
      %v456 = vor.u32 %v453, %v454
      %v457 = vsel %vm356, %v449, %v456
      %v458 = vrot.slane %v453, 4
      %v460 = vshrl.u32 %v334, 16
      %v462 = vrot.slane %v460, 7
      %v463 = vshll.u32 %v334, 16
      %v465 = vor.u32 %v462, %v463
      %v466 = vrot.slane %v462, 4
      %v468 = vshrl.u32 %v335, 16
      %v470 = vrot.slane %v468, 7
      %v471 = vshll.u32 %v335, 16
      %v473 = vor.u32 %v470, %v471
      %v474 = vsel %vm356, %v466, %v473
      %v475 = vrot.slane %v470, 4
      %v477 = vshrl.u32 %v336, 16
      %v479 = vrot.slane %v477, 7
      %v480 = vshll.u32 %v336, 16
      %v482 = vor.u32 %v479, %v480
      %v483 = vrot.slane %v479, 4
      %v485 = vshrl.u32 %v337, 16
      %v487 = vrot.slane %v485, 7
      %v488 = vshll.u32 %v337, 16
      %v490 = vor.u32 %v487, %v488
      %v491 = vsel %vm356, %v483, %v490
      %v492 = vrot.slane %v487, 4
      %v494 = vshrl.u32 %v338, 16
      %v496 = vrot.slane %v494, 7
      %v497 = vshll.u32 %v338, 16
      %v499 = vor.u32 %v496, %v497
      %v500 = vrot.slane %v496, 4
      %v502 = vshrl.u32 %v339, 16
      %v504 = vrot.slane %v502, 7
      %v505 = vshll.u32 %v339, 16
      %v507 = vor.u32 %v504, %v505
      %v508 = vsel %vm356, %v500, %v507
      %v509 = vrot.slane %v504, 4
      %v511 = vshrl.u32 %v340, 16
      %v513 = vrot.slane %v511, 7
      %v514 = vshll.u32 %v340, 16
      %v516 = vor.u32 %v513, %v514
      %v517 = vrot.slane %v513, 4
      %v519 = vshrl.u32 %v341, 16
      %v521 = vrot.slane %v519, 7
      %v522 = vshll.u32 %v341, 16
      %v524 = vor.u32 %v521, %v522
      %v525 = vsel %vm356, %v517, %v524
      %v526 = vrot.slane %v521, 4
      %v528 = vshrl.u32 %v342, 16
      %v530 = vrot.slane %v528, 7
      %v531 = vshll.u32 %v342, 16
      %v533 = vor.u32 %v530, %v531
      %v534 = vrot.slane %v530, 4
      %v536 = vshrl.u32 %v343, 16
      %v538 = vrot.slane %v536, 7
      %v539 = vshll.u32 %v343, 16
      %v541 = vor.u32 %v538, %v539
      %v542 = vsel %vm356, %v534, %v541
      %v543 = vrot.slane %v538, 4
      %v545 = vshrl.u32 %v344, 16
      %v547 = vrot.slane %v545, 7
      %v548 = vshll.u32 %v344, 16
      %v550 = vor.u32 %v547, %v548
      %v551 = vrot.slane %v547, 4
      %v553 = vshrl.u32 %v345, 16
      %v555 = vrot.slane %v553, 7
      %v556 = vshll.u32 %v345, 16
      %v558 = vor.u32 %v555, %v556
      %v559 = vsel %vm356, %v551, %v558
      %v560 = vrot.slane %v555, 4
      %v562 = vshrl.u32 %v346, 16
      %v564 = vrot.slane %v562, 7
      %v565 = vshll.u32 %v346, 16
      %v567 = vor.u32 %v564, %v565
      %v568 = vrot.slane %v564, 4
      %v570 = vshrl.u32 %v347, 16
      %v572 = vrot.slane %v570, 7
      %v573 = vshll.u32 %v347, 16
      %v575 = vor.u32 %v572, %v573
      %v576 = vsel %vm356, %v568, %v575
      %v577 = vrot.slane %v572, 4
      %v579 = vshrl.u32 %v348, 16
      %v581 = vrot.slane %v579, 7
      %v582 = vshll.u32 %v348, 16
      %v584 = vor.u32 %v581, %v582
      %v585 = vrot.slane %v581, 4
      %v587 = vshrl.u32 %v349, 16
      %v589 = vrot.slane %v587, 7
      %v590 = vshll.u32 %v349, 16
      %v592 = vor.u32 %v589, %v590
      %v593 = vsel %vm356, %v585, %v592
      %v594 = vrot.slane %v589, 4
      %v596 = vshrl.u32 %v350, 16
      %v598 = vrot.slane %v596, 7
      %v599 = vshll.u32 %v350, 16
      %v601 = vor.u32 %v598, %v599
      %v602 = vrot.slane %v598, 4
      %v604 = vshrl.u32 %v351, 16
      %v606 = vrot.slane %v604, 7
      %v607 = vshll.u32 %v351, 16
      %v609 = vor.u32 %v606, %v607
      %v610 = vsel %vm356, %v602, %v609
      %v611 = vrot.slane %v606, 4
      %v613 = vshrl.u32 %v352, 16
      %v615 = vrot.slane %v613, 7
      %v616 = vshll.u32 %v352, 16
      %v618 = vor.u32 %v615, %v616
      %v619 = vrot.slane %v615, 4
      %v621 = vshrl.u32 %v353, 16
      %v623 = vrot.slane %v621, 7
      %v624 = vshll.u32 %v353, 16
      %v626 = vor.u32 %v623, %v624
      %v627 = vsel %vm356, %v619, %v626
      %v628 = vrot.slane %v623, 4
      %s677 = scalar_lea.vmem [#allocation2], 12
      %vm678 = vcmask 19456
      %vm679 = vsmask.f32 7938
      %vm680 = vmand %vm678, %vm679
      %v681 = vld [vmem:[%s677] sm:$0xf]
      %v682 = vsel %vm680, %v363, %v681
      %683 = vst [vmem:[%s677] sm:$0xf] %v682
      %684 = vst.msk [vmem:[%s677 + $0x4] sm:$0xf] %vm266, %v372
      %vm685 = vcmask 16384
      %vm686 = vmand %vm685, %vm354
      %v687 = vld [vmem:[%s677 + $0x8] sm:$0x1]
      %v688 = vsel %vm686, %v373, %v687
      %689 = vst [vmem:[%s677 + $0x8] sm:$0x1] %v688
      %v690 = vld [vmem:[%s677 + $0xc] sm:$0xf]
      %v691 = vsel %vm680, %v380, %v690
      %692 = vst [vmem:[%s677 + $0xc] sm:$0xf] %v691
      %693 = vst.msk [vmem:[%s677 + $0x10] sm:$0xf] %vm266, %v389
      %v694 = vld [vmem:[%s677 + $0x14] sm:$0x1]
      %v695 = vsel %vm686, %v390, %v694
      %696 = vst [vmem:[%s677 + $0x14] sm:$0x1] %v695
      %v697 = vld [vmem:[%s677 + $0x18] sm:$0xf]
      %v698 = vsel %vm680, %v397, %v697
      %699 = vst [vmem:[%s677 + $0x18] sm:$0xf] %v698
      %700 = vst.msk [vmem:[%s677 + $0x1c] sm:$0xf] %vm266, %v406
      %v701 = vld [vmem:[%s677 + $0x20] sm:$0x1]
      %v702 = vsel %vm686, %v407, %v701
      %703 = vst [vmem:[%s677 + $0x20] sm:$0x1] %v702
      %v704 = vld [vmem:[%s677 + $0x24] sm:$0xf]
      %v705 = vsel %vm680, %v414, %v704
      %706 = vst [vmem:[%s677 + $0x24] sm:$0xf] %v705
      %707 = vst.msk [vmem:[%s677 + $0x28] sm:$0xf] %vm266, %v423
      %v708 = vld [vmem:[%s677 + $0x2c] sm:$0x1]
      %v709 = vsel %vm686, %v424, %v708
      %710 = vst [vmem:[%s677 + $0x2c] sm:$0x1] %v709
      %v711 = vld [vmem:[%s677 + $0x30] sm:$0xf]
      %v712 = vsel %vm680, %v431, %v711
      %713 = vst [vmem:[%s677 + $0x30] sm:$0xf] %v712
      %714 = vst.msk [vmem:[%s677 + $0x34] sm:$0xf] %vm266, %v440
      %v715 = vld [vmem:[%s677 + $0x38] sm:$0x1]
      %v716 = vsel %vm686, %v441, %v715
      %717 = vst [vmem:[%s677 + $0x38] sm:$0x1] %v716
      %v718 = vld [vmem:[%s677 + $0x3c] sm:$0xf]
      %v719 = vsel %vm680, %v448, %v718
      %720 = vst [vmem:[%s677 + $0x3c] sm:$0xf] %v719
      %721 = vst.msk [vmem:[%s677 + $0x40] sm:$0xf] %vm266, %v457
      %v722 = vld [vmem:[%s677 + $0x44] sm:$0x1]
      %v723 = vsel %vm686, %v458, %v722
      %724 = vst [vmem:[%s677 + $0x44] sm:$0x1] %v723
      %v725 = vld [vmem:[%s677 + $0x48] sm:$0xf]
      %v726 = vsel %vm680, %v465, %v725
      %727 = vst [vmem:[%s677 + $0x48] sm:$0xf] %v726
      %728 = vst.msk [vmem:[%s677 + $0x4c] sm:$0xf] %vm266, %v474
      %v729 = vld [vmem:[%s677 + $0x50] sm:$0x1]
      %v730 = vsel %vm686, %v475, %v729
      %731 = vst [vmem:[%s677 + $0x50] sm:$0x1] %v730
      %v732 = vld [vmem:[%s677 + $0x54] sm:$0xf]
      %v733 = vsel %vm680, %v482, %v732
      %734 = vst [vmem:[%s677 + $0x54] sm:$0xf] %v733
      %735 = vst.msk [vmem:[%s677 + $0x58] sm:$0xf] %vm266, %v491
      %v736 = vld [vmem:[%s677 + $0x5c] sm:$0x1]
      %v737 = vsel %vm686, %v492, %v736
      %738 = vst [vmem:[%s677 + $0x5c] sm:$0x1] %v737
      %v739 = vld [vmem:[%s677 + $0x60] sm:$0xf]
      %v740 = vsel %vm680, %v499, %v739
      %741 = vst [vmem:[%s677 + $0x60] sm:$0xf] %v740
      %742 = vst.msk [vmem:[%s677 + $0x64] sm:$0xf] %vm266, %v508
      %v743 = vld [vmem:[%s677 + $0x68] sm:$0x1]
      %v744 = vsel %vm686, %v509, %v743
      %745 = vst [vmem:[%s677 + $0x68] sm:$0x1] %v744
      %v746 = vld [vmem:[%s677 + $0x6c] sm:$0xf]
      %v747 = vsel %vm680, %v516, %v746
      %748 = vst [vmem:[%s677 + $0x6c] sm:$0xf] %v747
      %749 = vst.msk [vmem:[%s677 + $0x70] sm:$0xf] %vm266, %v525
      %v750 = vld [vmem:[%s677 + $0x74] sm:$0x1]
      %v751 = vsel %vm686, %v526, %v750
      %752 = vst [vmem:[%s677 + $0x74] sm:$0x1] %v751
      %v753 = vld [vmem:[%s677 + $0x78] sm:$0xf]
      %v754 = vsel %vm680, %v533, %v753
      %755 = vst [vmem:[%s677 + $0x78] sm:$0xf] %v754
      %756 = vst.msk [vmem:[%s677 + $0x7c] sm:$0xf] %vm266, %v542
      %v757 = vld [vmem:[%s677 + $0x80] sm:$0x1]
      %v758 = vsel %vm686, %v543, %v757
      %759 = vst [vmem:[%s677 + $0x80] sm:$0x1] %v758
      %v760 = vld [vmem:[%s677 + $0x84] sm:$0xf]
      %v761 = vsel %vm680, %v550, %v760
      %762 = vst [vmem:[%s677 + $0x84] sm:$0xf] %v761
      %763 = vst.msk [vmem:[%s677 + $0x88] sm:$0xf] %vm266, %v559
      %v764 = vld [vmem:[%s677 + $0x8c] sm:$0x1]
      %v765 = vsel %vm686, %v560, %v764
      %766 = vst [vmem:[%s677 + $0x8c] sm:$0x1] %v765
      %v767 = vld [vmem:[%s677 + $0x90] sm:$0xf]
      %v768 = vsel %vm680, %v567, %v767
      %769 = vst [vmem:[%s677 + $0x90] sm:$0xf] %v768
      %770 = vst.msk [vmem:[%s677 + $0x94] sm:$0xf] %vm266, %v576
      %v771 = vld [vmem:[%s677 + $0x98] sm:$0x1]
      %v772 = vsel %vm686, %v577, %v771
      %773 = vst [vmem:[%s677 + $0x98] sm:$0x1] %v772
      %v774 = vld [vmem:[%s677 + $0x9c] sm:$0xf]
      %v775 = vsel %vm680, %v584, %v774
      %776 = vst [vmem:[%s677 + $0x9c] sm:$0xf] %v775
      %777 = vst.msk [vmem:[%s677 + $0xa0] sm:$0xf] %vm266, %v593
      %v778 = vld [vmem:[%s677 + $0xa4] sm:$0x1]
      %v779 = vsel %vm686, %v594, %v778
      %780 = vst [vmem:[%s677 + $0xa4] sm:$0x1] %v779
      %v781 = vld [vmem:[%s677 + $0xa8] sm:$0xf]
      %v782 = vsel %vm680, %v601, %v781
      %783 = vst [vmem:[%s677 + $0xa8] sm:$0xf] %v782
      %784 = vst.msk [vmem:[%s677 + $0xac] sm:$0xf] %vm266, %v610
      %v785 = vld [vmem:[%s677 + $0xb0] sm:$0x1]
      %v786 = vsel %vm686, %v611, %v785
      %787 = vst [vmem:[%s677 + $0xb0] sm:$0x1] %v786
      %v788 = vld [vmem:[%s677 + $0xb4] sm:$0xf]
      %v789 = vsel %vm680, %v618, %v788
      %790 = vst [vmem:[%s677 + $0xb4] sm:$0xf] %v789
      %791 = vst.msk [vmem:[%s677 + $0xb8] sm:$0xf] %vm266, %v627
      %v792 = vld [vmem:[%s677 + $0xbc] sm:$0x1]
      %v793 = vsel %vm686, %v628, %v792
      %794 = vst [vmem:[%s677 + $0xbc] sm:$0x1] %v793
      %v795 = vld [vmem:[#allocation2] sm:$0xf]
      %v796 = vld [vmem:[#allocation2 + $0x4] sm:$0xf]
      %v797 = vld [vmem:[#allocation2 + $0xc] sm:$0xf]
      %v798 = vld [vmem:[#allocation2 + $0x10] sm:$0xf]
      %v799 = vld [vmem:[#allocation2 + $0x18] sm:$0xf]
      %v800 = vld [vmem:[#allocation2 + $0x1c] sm:$0xf]
      %v801 = vld [vmem:[#allocation2 + $0x24] sm:$0xf]
      %v802 = vld [vmem:[#allocation2 + $0x28] sm:$0xf]
      %v803 = vld [vmem:[#allocation2 + $0x30] sm:$0xf]
      %v804 = vld [vmem:[#allocation2 + $0x34] sm:$0xf]
      %v805 = vld [vmem:[#allocation2 + $0x3c] sm:$0xf]
      %v806 = vld [vmem:[#allocation2 + $0x40] sm:$0xf]
      %v807 = vld [vmem:[#allocation2 + $0x48] sm:$0xf]
      %v808 = vld [vmem:[#allocation2 + $0x4c] sm:$0xf]
      %v809 = vld [vmem:[#allocation2 + $0x54] sm:$0xf]
      %v810 = vld [vmem:[#allocation2 + $0x58] sm:$0xf]
      %v811 = vld [vmem:[#allocation2 + $0x60] sm:$0xf]
      %v812 = vld [vmem:[#allocation2 + $0x64] sm:$0xf]
      %v813 = vld [vmem:[#allocation2 + $0x6c] sm:$0xf]
      %v814 = vld [vmem:[#allocation2 + $0x70] sm:$0xf]
      %v815 = vld [vmem:[#allocation2 + $0x78] sm:$0xf]
      %v816 = vld [vmem:[#allocation2 + $0x7c] sm:$0xf]
      %v817 = vld [vmem:[#allocation2 + $0x84] sm:$0xf]
      %v818 = vld [vmem:[#allocation2 + $0x88] sm:$0xf]
      %v819 = vld [vmem:[#allocation2 + $0x90] sm:$0xf]
      %v820 = vld [vmem:[#allocation2 + $0x94] sm:$0xf]
      %v821 = vld [vmem:[#allocation2 + $0x9c] sm:$0xf]
      %v822 = vld [vmem:[#allocation2 + $0xa0] sm:$0xf]
      %v823 = vld [vmem:[#allocation2 + $0xa8] sm:$0xf]
      %v824 = vld [vmem:[#allocation2 + $0xac] sm:$0xf]
      %v825 = vld [vmem:[#allocation2 + $0xb4] sm:$0xf]
      %v826 = vld [vmem:[#allocation2 + $0xb8] sm:$0xf]
      %v859 = vunpack.c.l.b16 %v795
      %v860 = vunpack.c.l.b16 %v796
      %v861 = vunpack.c.l.b16 %v797
      %v862 = vunpack.c.l.b16 %v798
      %v863 = vunpack.c.l.b16 %v799
      %v864 = vunpack.c.l.b16 %v800
      %v865 = vunpack.c.l.b16 %v801
      %v866 = vunpack.c.l.b16 %v802
      %v867 = vunpack.c.l.b16 %v803
      %v868 = vunpack.c.l.b16 %v804
      %v869 = vunpack.c.l.b16 %v805
      %v870 = vunpack.c.l.b16 %v806
      %v871 = vunpack.c.l.b16 %v807
      %v872 = vunpack.c.l.b16 %v808
      %v873 = vunpack.c.l.b16 %v809
      %v874 = vunpack.c.l.b16 %v810
      %v875 = vunpack.c.l.b16 %v811
      %v876 = vunpack.c.l.b16 %v812
      %v877 = vunpack.c.l.b16 %v813
      %v878 = vunpack.c.l.b16 %v814
      %v879 = vunpack.c.l.b16 %v815
      %v880 = vunpack.c.l.b16 %v816
      %v881 = vunpack.c.l.b16 %v817
      %v882 = vunpack.c.l.b16 %v818
      %v883 = vunpack.c.l.b16 %v819
      %v884 = vunpack.c.l.b16 %v820
      %v885 = vunpack.c.l.b16 %v821
      %v886 = vunpack.c.l.b16 %v822
      %v887 = vunpack.c.l.b16 %v823
      %v888 = vunpack.c.l.b16 %v824
      %v889 = vunpack.c.l.b16 %v825
      %v890 = vunpack.c.l.b16 %v826
      %v891 = vpack.c.b16 %v860, %v859
      %v892 = vpack.c.b16 %v862, %v861
      %v893 = vpack.c.b16 %v864, %v863
      %v894 = vpack.c.b16 %v866, %v865
      %v895 = vpack.c.b16 %v868, %v867
      %v896 = vpack.c.b16 %v870, %v869
      %v897 = vpack.c.b16 %v872, %v871
      %v898 = vpack.c.b16 %v874, %v873
      %v899 = vpack.c.b16 %v876, %v875
      %v900 = vpack.c.b16 %v878, %v877
      %v901 = vpack.c.b16 %v880, %v879
      %v902 = vpack.c.b16 %v882, %v881
      %v903 = vpack.c.b16 %v884, %v883
      %v904 = vpack.c.b16 %v886, %v885
      %v905 = vpack.c.b16 %v888, %v887
      %v906 = vpack.c.b16 %v890, %v889
      %vm923 = vcmask 23552
      %924 = vst.msk [vmem:[#allocation3] sm:$0xff] %vm923, %v891
      %925 = vst.msk [vmem:[#allocation3 + $0x8] sm:$0xff] %vm923, %v892
      %926 = vst.msk [vmem:[#allocation3 + $0x10] sm:$0xff] %vm923, %v893
      %927 = vst.msk [vmem:[#allocation3 + $0x18] sm:$0xff] %vm923, %v894
      %928 = vst.msk [vmem:[#allocation3 + $0x20] sm:$0xff] %vm923, %v895
      %929 = vst.msk [vmem:[#allocation3 + $0x28] sm:$0xff] %vm923, %v896
      %930 = vst.msk [vmem:[#allocation3 + $0x30] sm:$0xff] %vm923, %v897
      %931 = vst.msk [vmem:[#allocation3 + $0x38] sm:$0xff] %vm923, %v898
      %932 = vst.msk [vmem:[#allocation3 + $0x40] sm:$0xff] %vm923, %v899
      %933 = vst.msk [vmem:[#allocation3 + $0x48] sm:$0xff] %vm923, %v900
      %934 = vst.msk [vmem:[#allocation3 + $0x50] sm:$0xff] %vm923, %v901
      %935 = vst.msk [vmem:[#allocation3 + $0x58] sm:$0xff] %vm923, %v902
      %936 = vst.msk [vmem:[#allocation3 + $0x60] sm:$0xff] %vm923, %v903
      %937 = vst.msk [vmem:[#allocation3 + $0x68] sm:$0xff] %vm923, %v904
      %938 = vst.msk [vmem:[#allocation3 + $0x70] sm:$0xff] %vm923, %v905
      %939 = vst.msk [vmem:[#allocation3 + $0x78] sm:$0xff] %vm923, %v906
      %v940 = vld [vmem:[#allocation2] sm:$0xf]
      %v941 = vld [vmem:[#allocation2 + $0x4] sm:$0xf]
      %v942 = vld [vmem:[#allocation2 + $0x8] sm:$0x1]
      %v943 = vld [vmem:[#allocation2 + $0xc] sm:$0xf]
      %v944 = vld [vmem:[#allocation2 + $0x10] sm:$0xf]
      %v945 = vld [vmem:[#allocation2 + $0x14] sm:$0x1]
      %v946 = vld [vmem:[#allocation2 + $0x18] sm:$0xf]
      %v947 = vld [vmem:[#allocation2 + $0x1c] sm:$0xf]
      %v948 = vld [vmem:[#allocation2 + $0x20] sm:$0x1]
      %v949 = vld [vmem:[#allocation2 + $0x24] sm:$0xf]
      %v950 = vld [vmem:[#allocation2 + $0x28] sm:$0xf]
      %v951 = vld [vmem:[#allocation2 + $0x2c] sm:$0x1]
      %v952 = vld [vmem:[#allocation2 + $0x30] sm:$0xf]
      %v953 = vld [vmem:[#allocation2 + $0x34] sm:$0xf]
      %v954 = vld [vmem:[#allocation2 + $0x38] sm:$0x1]
      %v955 = vld [vmem:[#allocation2 + $0x3c] sm:$0xf]
      %v956 = vld [vmem:[#allocation2 + $0x40] sm:$0xf]
      %v957 = vld [vmem:[#allocation2 + $0x44] sm:$0x1]
      %v958 = vld [vmem:[#allocation2 + $0x48] sm:$0xf]
      %v959 = vld [vmem:[#allocation2 + $0x4c] sm:$0xf]
      %v960 = vld [vmem:[#allocation2 + $0x50] sm:$0x1]
      %v961 = vld [vmem:[#allocation2 + $0x54] sm:$0xf]
      %v962 = vld [vmem:[#allocation2 + $0x58] sm:$0xf]
      %v963 = vld [vmem:[#allocation2 + $0x5c] sm:$0x1]
      %v964 = vld [vmem:[#allocation2 + $0x60] sm:$0xf]
      %v965 = vld [vmem:[#allocation2 + $0x64] sm:$0xf]
      %v966 = vld [vmem:[#allocation2 + $0x68] sm:$0x1]
      %v967 = vld [vmem:[#allocation2 + $0x6c] sm:$0xf]
      %v968 = vld [vmem:[#allocation2 + $0x70] sm:$0xf]
      %v969 = vld [vmem:[#allocation2 + $0x74] sm:$0x1]
      %v970 = vld [vmem:[#allocation2 + $0x78] sm:$0xf]
      %v971 = vld [vmem:[#allocation2 + $0x7c] sm:$0xf]
      %v972 = vld [vmem:[#allocation2 + $0x80] sm:$0x1]
      %v973 = vld [vmem:[#allocation2 + $0x84] sm:$0xf]
      %v974 = vld [vmem:[#allocation2 + $0x88] sm:$0xf]
      %v975 = vld [vmem:[#allocation2 + $0x8c] sm:$0x1]
      %v976 = vld [vmem:[#allocation2 + $0x90] sm:$0xf]
      %v977 = vld [vmem:[#allocation2 + $0x94] sm:$0xf]
      %v978 = vld [vmem:[#allocation2 + $0x98] sm:$0x1]
      %v979 = vld [vmem:[#allocation2 + $0x9c] sm:$0xf]
      %v980 = vld [vmem:[#allocation2 + $0xa0] sm:$0xf]
      %v981 = vld [vmem:[#allocation2 + $0xa4] sm:$0x1]
      %v982 = vld [vmem:[#allocation2 + $0xa8] sm:$0xf]
      %v983 = vld [vmem:[#allocation2 + $0xac] sm:$0xf]
      %v984 = vld [vmem:[#allocation2 + $0xb0] sm:$0x1]
      %v985 = vld [vmem:[#allocation2 + $0xb4] sm:$0xf]
      %v986 = vld [vmem:[#allocation2 + $0xb8] sm:$0xf]
      %v987 = vld [vmem:[#allocation2 + $0xbc] sm:$0x1]
      %vm988 = vsmask.f32 3328
      %vm989 = vsmask.f32 7440
      %vm990 = vmor %vm988, %vm989
      %v992 = vshrl.u32 %v940, 16
      %v994 = vrot.slane %v992, 4
      %v995 = vshll.u32 %v940, 16
      %v997 = vrot.slane %v995, 5
      %v998 = vor.u32 %v994, %v997
      %v999 = vrot.slane %v998, 4
      %v1001 = vshll.u32 %v941, 16
      %v1003 = vrot.slane %v1001, 5
      %v1004 = vsel %vm990, %v999, %v1003
      %v1005 = vshrl.u32 %v941, 16
      %v1007 = vrot.slane %v1005, 4
      %v1008 = vor.u32 %v1007, %v1003
      %v1009 = vrot.slane %v1008, 4
      %v1011 = vshll.u32 %v942, 16
      %v1013 = vrot.slane %v1011, 5
      %v1014 = vsel %vm990, %v1009, %v1013
      %v1016 = vshrl.u32 %v943, 16
      %v1018 = vrot.slane %v1016, 4
      %v1019 = vshll.u32 %v943, 16
      %v1021 = vrot.slane %v1019, 5
      %v1022 = vor.u32 %v1018, %v1021
      %v1023 = vrot.slane %v1022, 4
      %v1025 = vshll.u32 %v944, 16
      %v1027 = vrot.slane %v1025, 5
      %v1028 = vsel %vm990, %v1023, %v1027
      %v1029 = vshrl.u32 %v944, 16
      %v1031 = vrot.slane %v1029, 4
      %v1032 = vor.u32 %v1031, %v1027
      %v1033 = vrot.slane %v1032, 4
      %v1035 = vshll.u32 %v945, 16
      %v1037 = vrot.slane %v1035, 5
      %v1038 = vsel %vm990, %v1033, %v1037
      %v1040 = vshrl.u32 %v946, 16
      %v1042 = vrot.slane %v1040, 4
      %v1043 = vshll.u32 %v946, 16
      %v1045 = vrot.slane %v1043, 5
      %v1046 = vor.u32 %v1042, %v1045
      %v1047 = vrot.slane %v1046, 4
      %v1049 = vshll.u32 %v947, 16
      %v1051 = vrot.slane %v1049, 5
      %v1052 = vsel %vm990, %v1047, %v1051
      %v1053 = vshrl.u32 %v947, 16
      %v1055 = vrot.slane %v1053, 4
      %v1056 = vor.u32 %v1055, %v1051
      %v1057 = vrot.slane %v1056, 4
      %v1059 = vshll.u32 %v948, 16
      %v1061 = vrot.slane %v1059, 5
      %v1062 = vsel %vm990, %v1057, %v1061
      %v1064 = vshrl.u32 %v949, 16
      %v1066 = vrot.slane %v1064, 4
      %v1067 = vshll.u32 %v949, 16
      %v1069 = vrot.slane %v1067, 5
      %v1070 = vor.u32 %v1066, %v1069
      %v1071 = vrot.slane %v1070, 4
      %v1073 = vshll.u32 %v950, 16
      %v1075 = vrot.slane %v1073, 5
      %v1076 = vsel %vm990, %v1071, %v1075
      %v1077 = vshrl.u32 %v950, 16
      %v1079 = vrot.slane %v1077, 4
      %v1080 = vor.u32 %v1079, %v1075
      %v1081 = vrot.slane %v1080, 4
      %v1083 = vshll.u32 %v951, 16
      %v1085 = vrot.slane %v1083, 5
      %v1086 = vsel %vm990, %v1081, %v1085
      %v1088 = vshrl.u32 %v952, 16
      %v1090 = vrot.slane %v1088, 4
      %v1091 = vshll.u32 %v952, 16
      %v1093 = vrot.slane %v1091, 5
      %v1094 = vor.u32 %v1090, %v1093
      %v1095 = vrot.slane %v1094, 4
      %v1097 = vshll.u32 %v953, 16
      %v1099 = vrot.slane %v1097, 5
      %v1100 = vsel %vm990, %v1095, %v1099
      %v1101 = vshrl.u32 %v953, 16
      %v1103 = vrot.slane %v1101, 4
      %v1104 = vor.u32 %v1103, %v1099
      %v1105 = vrot.slane %v1104, 4
      %v1107 = vshll.u32 %v954, 16
      %v1109 = vrot.slane %v1107, 5
      %v1110 = vsel %vm990, %v1105, %v1109
      %v1112 = vshrl.u32 %v955, 16
      %v1114 = vrot.slane %v1112, 4
      %v1115 = vshll.u32 %v955, 16
      %v1117 = vrot.slane %v1115, 5
      %v1118 = vor.u32 %v1114, %v1117
      %v1119 = vrot.slane %v1118, 4
      %v1121 = vshll.u32 %v956, 16
      %v1123 = vrot.slane %v1121, 5
      %v1124 = vsel %vm990, %v1119, %v1123
      %v1125 = vshrl.u32 %v956, 16
      %v1127 = vrot.slane %v1125, 4
      %v1128 = vor.u32 %v1127, %v1123
      %v1129 = vrot.slane %v1128, 4
      %v1131 = vshll.u32 %v957, 16
      %v1133 = vrot.slane %v1131, 5
      %v1134 = vsel %vm990, %v1129, %v1133
      %v1136 = vshrl.u32 %v958, 16
      %v1138 = vrot.slane %v1136, 4
      %v1139 = vshll.u32 %v958, 16
      %v1141 = vrot.slane %v1139, 5
      %v1142 = vor.u32 %v1138, %v1141
      %v1143 = vrot.slane %v1142, 4
      %v1145 = vshll.u32 %v959, 16
      %v1147 = vrot.slane %v1145, 5
      %v1148 = vsel %vm990, %v1143, %v1147
      %v1149 = vshrl.u32 %v959, 16
      %v1151 = vrot.slane %v1149, 4
      %v1152 = vor.u32 %v1151, %v1147
      %v1153 = vrot.slane %v1152, 4
      %v1155 = vshll.u32 %v960, 16
      %v1157 = vrot.slane %v1155, 5
      %v1158 = vsel %vm990, %v1153, %v1157
      %v1160 = vshrl.u32 %v961, 16
      %v1162 = vrot.slane %v1160, 4
      %v1163 = vshll.u32 %v961, 16
      %v1165 = vrot.slane %v1163, 5
      %v1166 = vor.u32 %v1162, %v1165
      %v1167 = vrot.slane %v1166, 4
      %v1169 = vshll.u32 %v962, 16
      %v1171 = vrot.slane %v1169, 5
      %v1172 = vsel %vm990, %v1167, %v1171
      %v1173 = vshrl.u32 %v962, 16
      %v1175 = vrot.slane %v1173, 4
      %v1176 = vor.u32 %v1175, %v1171
      %v1177 = vrot.slane %v1176, 4
      %v1179 = vshll.u32 %v963, 16
      %v1181 = vrot.slane %v1179, 5
      %v1182 = vsel %vm990, %v1177, %v1181
      %v1184 = vshrl.u32 %v964, 16
      %v1186 = vrot.slane %v1184, 4
      %v1187 = vshll.u32 %v964, 16
      %v1189 = vrot.slane %v1187, 5
      %v1190 = vor.u32 %v1186, %v1189
      %v1191 = vrot.slane %v1190, 4
      %v1193 = vshll.u32 %v965, 16
      %v1195 = vrot.slane %v1193, 5
      %v1196 = vsel %vm990, %v1191, %v1195
      %v1197 = vshrl.u32 %v965, 16
      %v1199 = vrot.slane %v1197, 4
      %v1200 = vor.u32 %v1199, %v1195
      %v1201 = vrot.slane %v1200, 4
      %v1203 = vshll.u32 %v966, 16
      %v1205 = vrot.slane %v1203, 5
      %v1206 = vsel %vm990, %v1201, %v1205
      %v1208 = vshrl.u32 %v967, 16
      %v1210 = vrot.slane %v1208, 4
      %v1211 = vshll.u32 %v967, 16
      %v1213 = vrot.slane %v1211, 5
      %v1214 = vor.u32 %v1210, %v1213
      %v1215 = vrot.slane %v1214, 4
      %v1217 = vshll.u32 %v968, 16
      %v1219 = vrot.slane %v1217, 5
      %v1220 = vsel %vm990, %v1215, %v1219
      %v1221 = vshrl.u32 %v968, 16
      %v1223 = vrot.slane %v1221, 4
      %v1224 = vor.u32 %v1223, %v1219
      %v1225 = vrot.slane %v1224, 4
      %v1227 = vshll.u32 %v969, 16
      %v1229 = vrot.slane %v1227, 5
      %v1230 = vsel %vm990, %v1225, %v1229
      %v1232 = vshrl.u32 %v970, 16
      %v1234 = vrot.slane %v1232, 4
      %v1235 = vshll.u32 %v970, 16
      %v1237 = vrot.slane %v1235, 5
      %v1238 = vor.u32 %v1234, %v1237
      %v1239 = vrot.slane %v1238, 4
      %v1241 = vshll.u32 %v971, 16
      %v1243 = vrot.slane %v1241, 5
      %v1244 = vsel %vm990, %v1239, %v1243
      %v1245 = vshrl.u32 %v971, 16
      %v1247 = vrot.slane %v1245, 4
      %v1248 = vor.u32 %v1247, %v1243
      %v1249 = vrot.slane %v1248, 4
      %v1251 = vshll.u32 %v972, 16
      %v1253 = vrot.slane %v1251, 5
      %v1254 = vsel %vm990, %v1249, %v1253
      %v1256 = vshrl.u32 %v973, 16
      %v1258 = vrot.slane %v1256, 4
      %v1259 = vshll.u32 %v973, 16
      %v1261 = vrot.slane %v1259, 5
      %v1262 = vor.u32 %v1258, %v1261
      %v1263 = vrot.slane %v1262, 4
      %v1265 = vshll.u32 %v974, 16
      %v1267 = vrot.slane %v1265, 5
      %v1268 = vsel %vm990, %v1263, %v1267
      %v1269 = vshrl.u32 %v974, 16
      %v1271 = vrot.slane %v1269, 4
      %v1272 = vor.u32 %v1271, %v1267
      %v1273 = vrot.slane %v1272, 4
      %v1275 = vshll.u32 %v975, 16
      %v1277 = vrot.slane %v1275, 5
      %v1278 = vsel %vm990, %v1273, %v1277
      %v1280 = vshrl.u32 %v976, 16
      %v1282 = vrot.slane %v1280, 4
      %v1283 = vshll.u32 %v976, 16
      %v1285 = vrot.slane %v1283, 5
      %v1286 = vor.u32 %v1282, %v1285
      %v1287 = vrot.slane %v1286, 4
      %v1289 = vshll.u32 %v977, 16
      %v1291 = vrot.slane %v1289, 5
      %v1292 = vsel %vm990, %v1287, %v1291
      %v1293 = vshrl.u32 %v977, 16
      %v1295 = vrot.slane %v1293, 4
      %v1296 = vor.u32 %v1295, %v1291
      %v1297 = vrot.slane %v1296, 4
      %v1299 = vshll.u32 %v978, 16
      %v1301 = vrot.slane %v1299, 5
      %v1302 = vsel %vm990, %v1297, %v1301
      %v1304 = vshrl.u32 %v979, 16
      %v1306 = vrot.slane %v1304, 4
      %v1307 = vshll.u32 %v979, 16
      %v1309 = vrot.slane %v1307, 5
      %v1310 = vor.u32 %v1306, %v1309
      %v1311 = vrot.slane %v1310, 4
      %v1313 = vshll.u32 %v980, 16
      %v1315 = vrot.slane %v1313, 5
      %v1316 = vsel %vm990, %v1311, %v1315
      %v1317 = vshrl.u32 %v980, 16
      %v1319 = vrot.slane %v1317, 4
      %v1320 = vor.u32 %v1319, %v1315
      %v1321 = vrot.slane %v1320, 4
      %v1323 = vshll.u32 %v981, 16
      %v1325 = vrot.slane %v1323, 5
      %v1326 = vsel %vm990, %v1321, %v1325
      %v1328 = vshrl.u32 %v982, 16
      %v1330 = vrot.slane %v1328, 4
      %v1331 = vshll.u32 %v982, 16
      %v1333 = vrot.slane %v1331, 5
      %v1334 = vor.u32 %v1330, %v1333
      %v1335 = vrot.slane %v1334, 4
      %v1337 = vshll.u32 %v983, 16
      %v1339 = vrot.slane %v1337, 5
      %v1340 = vsel %vm990, %v1335, %v1339
      %v1341 = vshrl.u32 %v983, 16
      %v1343 = vrot.slane %v1341, 4
      %v1344 = vor.u32 %v1343, %v1339
      %v1345 = vrot.slane %v1344, 4
      %v1347 = vshll.u32 %v984, 16
      %v1349 = vrot.slane %v1347, 5
      %v1350 = vsel %vm990, %v1345, %v1349
      %v1352 = vshrl.u32 %v985, 16
      %v1354 = vrot.slane %v1352, 4
      %v1355 = vshll.u32 %v985, 16
      %v1357 = vrot.slane %v1355, 5
      %v1358 = vor.u32 %v1354, %v1357
      %v1359 = vrot.slane %v1358, 4
      %v1361 = vshll.u32 %v986, 16
      %v1363 = vrot.slane %v1361, 5
      %v1364 = vsel %vm990, %v1359, %v1363
      %v1365 = vshrl.u32 %v986, 16
      %v1367 = vrot.slane %v1365, 4
      %v1368 = vor.u32 %v1367, %v1363
      %v1369 = vrot.slane %v1368, 4
      %v1371 = vshll.u32 %v987, 16
      %v1373 = vrot.slane %v1371, 5
      %v1374 = vsel %vm990, %v1369, %v1373
      %v1375 = vunpack.c.l.b16 %v1004
      %v1376 = vunpack.c.l.b16 %v1014
      %v1377 = vunpack.c.l.b16 %v1028
      %v1378 = vunpack.c.l.b16 %v1038
      %v1379 = vunpack.c.l.b16 %v1052
      %v1380 = vunpack.c.l.b16 %v1062
      %v1381 = vunpack.c.l.b16 %v1076
      %v1382 = vunpack.c.l.b16 %v1086
      %v1383 = vunpack.c.l.b16 %v1100
      %v1384 = vunpack.c.l.b16 %v1110
      %v1385 = vunpack.c.l.b16 %v1124
      %v1386 = vunpack.c.l.b16 %v1134
      %v1387 = vunpack.c.l.b16 %v1148
      %v1388 = vunpack.c.l.b16 %v1158
      %v1389 = vunpack.c.l.b16 %v1172
      %v1390 = vunpack.c.l.b16 %v1182
      %v1391 = vunpack.c.l.b16 %v1196
      %v1392 = vunpack.c.l.b16 %v1206
      %v1393 = vunpack.c.l.b16 %v1220
      %v1394 = vunpack.c.l.b16 %v1230
      %v1395 = vunpack.c.l.b16 %v1244
      %v1396 = vunpack.c.l.b16 %v1254
      %v1397 = vunpack.c.l.b16 %v1268
      %v1398 = vunpack.c.l.b16 %v1278
      %v1399 = vunpack.c.l.b16 %v1292
      %v1400 = vunpack.c.l.b16 %v1302
      %v1401 = vunpack.c.l.b16 %v1316
      %v1402 = vunpack.c.l.b16 %v1326
      %v1403 = vunpack.c.l.b16 %v1340
      %v1404 = vunpack.c.l.b16 %v1350
      %v1405 = vunpack.c.l.b16 %v1364
      %v1406 = vunpack.c.l.b16 %v1374
      %v1407 = vpack.c.b16 %v1376, %v1375
      %v1408 = vpack.c.b16 %v1378, %v1377
      %v1409 = vpack.c.b16 %v1380, %v1379
      %v1410 = vpack.c.b16 %v1382, %v1381
      %v1411 = vpack.c.b16 %v1384, %v1383
      %v1412 = vpack.c.b16 %v1386, %v1385
      %v1413 = vpack.c.b16 %v1388, %v1387
      %v1414 = vpack.c.b16 %v1390, %v1389
      %v1415 = vpack.c.b16 %v1392, %v1391
      %v1416 = vpack.c.b16 %v1394, %v1393
      %v1417 = vpack.c.b16 %v1396, %v1395
      %v1418 = vpack.c.b16 %v1398, %v1397
      %v1419 = vpack.c.b16 %v1400, %v1399
      %v1420 = vpack.c.b16 %v1402, %v1401
      %v1421 = vpack.c.b16 %v1404, %v1403
      %v1422 = vpack.c.b16 %v1406, %v1405
      %1423 = vrot.lane.b32.xlu0 %v1407, 3
      %v1424 = vpop.permute.xlu0 %1423
      %1425 = vrot.lane.b32.xlu0 %v1408, 3
      %v1426 = vpop.permute.xlu0 %1425
      %1427 = vrot.lane.b32.xlu0 %v1409, 3
      %v1428 = vpop.permute.xlu0 %1427
      %1429 = vrot.lane.b32.xlu0 %v1410, 3
      %v1430 = vpop.permute.xlu0 %1429
      %1431 = vrot.lane.b32.xlu0 %v1411, 3
      %v1432 = vpop.permute.xlu0 %1431
      %1433 = vrot.lane.b32.xlu0 %v1412, 3
      %v1434 = vpop.permute.xlu0 %1433
      %1435 = vrot.lane.b32.xlu0 %v1413, 3
      %v1436 = vpop.permute.xlu0 %1435
      %1437 = vrot.lane.b32.xlu0 %v1414, 3
      %v1438 = vpop.permute.xlu0 %1437
      %1439 = vrot.lane.b32.xlu0 %v1415, 3
      %v1440 = vpop.permute.xlu0 %1439
      %1441 = vrot.lane.b32.xlu0 %v1416, 3
      %v1442 = vpop.permute.xlu0 %1441
      %1443 = vrot.lane.b32.xlu0 %v1417, 3
      %v1444 = vpop.permute.xlu0 %1443
      %1445 = vrot.lane.b32.xlu0 %v1418, 3
      %v1446 = vpop.permute.xlu0 %1445
      %1447 = vrot.lane.b32.xlu0 %v1419, 3
      %v1448 = vpop.permute.xlu0 %1447
      %1449 = vrot.lane.b32.xlu0 %v1420, 3
      %v1450 = vpop.permute.xlu0 %1449
      %1451 = vrot.lane.b32.xlu0 %v1421, 3
      %v1452 = vpop.permute.xlu0 %1451
      %1453 = vrot.lane.b32.xlu0 %v1422, 3
      %v1454 = vpop.permute.xlu0 %1453
      %vm1471 = vcmask 48152
      %1472 = vst.msk [vmem:[#allocation3] sm:$0xff] %vm1471, %v1424
      %1473 = vst.msk [vmem:[#allocation3 + $0x8] sm:$0xff] %vm1471, %v1426
      %1474 = vst.msk [vmem:[#allocation3 + $0x10] sm:$0xff] %vm1471, %v1428
      %1475 = vst.msk [vmem:[#allocation3 + $0x18] sm:$0xff] %vm1471, %v1430
      %1476 = vst.msk [vmem:[#allocation3 + $0x20] sm:$0xff] %vm1471, %v1432
      %1477 = vst.msk [vmem:[#allocation3 + $0x28] sm:$0xff] %vm1471, %v1434
      %1478 = vst.msk [vmem:[#allocation3 + $0x30] sm:$0xff] %vm1471, %v1436
      %1479 = vst.msk [vmem:[#allocation3 + $0x38] sm:$0xff] %vm1471, %v1438
      %1480 = vst.msk [vmem:[#allocation3 + $0x40] sm:$0xff] %vm1471, %v1440
      %1481 = vst.msk [vmem:[#allocation3 + $0x48] sm:$0xff] %vm1471, %v1442
      %1482 = vst.msk [vmem:[#allocation3 + $0x50] sm:$0xff] %vm1471, %v1444
      %1483 = vst.msk [vmem:[#allocation3 + $0x58] sm:$0xff] %vm1471, %v1446
      %1484 = vst.msk [vmem:[#allocation3 + $0x60] sm:$0xff] %vm1471, %v1448
      %1485 = vst.msk [vmem:[#allocation3 + $0x68] sm:$0xff] %vm1471, %v1450
      %1486 = vst.msk [vmem:[#allocation3 + $0x70] sm:$0xff] %vm1471, %v1452
      %1487 = vst.msk [vmem:[#allocation3 + $0x78] sm:$0xff] %vm1471, %v1454
      %v1488 = vld [vmem:[#allocation2] sm:$0xe]
      %v1489 = vld [vmem:[#allocation2 + $0x4] sm:$0xf]
      %v1490 = vld [vmem:[#allocation2 + $0x8] sm:$0x1]
      %v1491 = vld [vmem:[#allocation2 + $0xc] sm:$0xe]
      %v1492 = vld [vmem:[#allocation2 + $0x10] sm:$0xf]
      %v1493 = vld [vmem:[#allocation2 + $0x14] sm:$0x1]
      %v1494 = vld [vmem:[#allocation2 + $0x18] sm:$0xe]
      %v1495 = vld [vmem:[#allocation2 + $0x1c] sm:$0xf]
      %v1496 = vld [vmem:[#allocation2 + $0x20] sm:$0x1]
      %v1497 = vld [vmem:[#allocation2 + $0x24] sm:$0xe]
      %v1498 = vld [vmem:[#allocation2 + $0x28] sm:$0xf]
      %v1499 = vld [vmem:[#allocation2 + $0x2c] sm:$0x1]
      %v1500 = vld [vmem:[#allocation2 + $0x30] sm:$0xe]
      %v1501 = vld [vmem:[#allocation2 + $0x34] sm:$0xf]
      %v1502 = vld [vmem:[#allocation2 + $0x38] sm:$0x1]
      %v1503 = vld [vmem:[#allocation2 + $0x3c] sm:$0xe]
      %v1504 = vld [vmem:[#allocation2 + $0x40] sm:$0xf]
      %v1505 = vld [vmem:[#allocation2 + $0x44] sm:$0x1]
      %v1506 = vld [vmem:[#allocation2 + $0x48] sm:$0xe]
      %v1507 = vld [vmem:[#allocation2 + $0x4c] sm:$0xf]
      %v1508 = vld [vmem:[#allocation2 + $0x50] sm:$0x1]
      %v1509 = vld [vmem:[#allocation2 + $0x54] sm:$0xe]
      %v1510 = vld [vmem:[#allocation2 + $0x58] sm:$0xf]
      %v1511 = vld [vmem:[#allocation2 + $0x5c] sm:$0x1]
      %v1512 = vld [vmem:[#allocation2 + $0x60] sm:$0xe]
      %v1513 = vld [vmem:[#allocation2 + $0x64] sm:$0xf]
      %v1514 = vld [vmem:[#allocation2 + $0x68] sm:$0x1]
      %v1515 = vld [vmem:[#allocation2 + $0x6c] sm:$0xe]
      %v1516 = vld [vmem:[#allocation2 + $0x70] sm:$0xf]
      %v1517 = vld [vmem:[#allocation2 + $0x74] sm:$0x1]
      %v1518 = vld [vmem:[#allocation2 + $0x78] sm:$0xe]
      %v1519 = vld [vmem:[#allocation2 + $0x7c] sm:$0xf]
      %v1520 = vld [vmem:[#allocation2 + $0x80] sm:$0x1]
      %v1521 = vld [vmem:[#allocation2 + $0x84] sm:$0xe]
      %v1522 = vld [vmem:[#allocation2 + $0x88] sm:$0xf]
      %v1523 = vld [vmem:[#allocation2 + $0x8c] sm:$0x1]
      %v1524 = vld [vmem:[#allocation2 + $0x90] sm:$0xe]
      %v1525 = vld [vmem:[#allocation2 + $0x94] sm:$0xf]
      %v1526 = vld [vmem:[#allocation2 + $0x98] sm:$0x1]
      %v1527 = vld [vmem:[#allocation2 + $0x9c] sm:$0xe]
      %v1528 = vld [vmem:[#allocation2 + $0xa0] sm:$0xf]
      %v1529 = vld [vmem:[#allocation2 + $0xa4] sm:$0x1]
      %v1530 = vld [vmem:[#allocation2 + $0xa8] sm:$0xe]
      %v1531 = vld [vmem:[#allocation2 + $0xac] sm:$0xf]
      %v1532 = vld [vmem:[#allocation2 + $0xb0] sm:$0x1]
      %v1533 = vld [vmem:[#allocation2 + $0xb4] sm:$0xe]
      %v1534 = vld [vmem:[#allocation2 + $0xb8] sm:$0xf]
      %v1535 = vld [vmem:[#allocation2 + $0xbc] sm:$0x1]
      %vm1584 = vcmask 1042432
      %vm1585 = vcmask 1046532
      %vm1586 = vmor %vm1584, %vm1585
      %v1587 = vrot.slane %v1488, 5
      %v1588 = vrot.slane %v1587, 4
      %v1589 = vrot.slane %v1489, 5
      %v1590 = vsel %vm1586, %v1588, %v1589
      %v1591 = vrot.slane %v1589, 4
      %v1592 = vrot.slane %v1490, 5
      %v1593 = vsel %vm1586, %v1591, %v1592
      %v1594 = vrot.slane %v1491, 5
      %v1595 = vrot.slane %v1594, 4
      %v1596 = vrot.slane %v1492, 5
      %v1597 = vsel %vm1586, %v1595, %v1596
      %v1598 = vrot.slane %v1596, 4
      %v1599 = vrot.slane %v1493, 5
      %v1600 = vsel %vm1586, %v1598, %v1599
      %v1601 = vrot.slane %v1494, 5
      %v1602 = vrot.slane %v1601, 4
      %v1603 = vrot.slane %v1495, 5
      %v1604 = vsel %vm1586, %v1602, %v1603
      %v1605 = vrot.slane %v1603, 4
      %v1606 = vrot.slane %v1496, 5
      %v1607 = vsel %vm1586, %v1605, %v1606
      %v1608 = vrot.slane %v1497, 5
      %v1609 = vrot.slane %v1608, 4
      %v1610 = vrot.slane %v1498, 5
      %v1611 = vsel %vm1586, %v1609, %v1610
      %v1612 = vrot.slane %v1610, 4
      %v1613 = vrot.slane %v1499, 5
      %v1614 = vsel %vm1586, %v1612, %v1613
      %v1615 = vrot.slane %v1500, 5
      %v1616 = vrot.slane %v1615, 4
      %v1617 = vrot.slane %v1501, 5
      %v1618 = vsel %vm1586, %v1616, %v1617
      %v1619 = vrot.slane %v1617, 4
      %v1620 = vrot.slane %v1502, 5
      %v1621 = vsel %vm1586, %v1619, %v1620
      %v1622 = vrot.slane %v1503, 5
      %v1623 = vrot.slane %v1622, 4
      %v1624 = vrot.slane %v1504, 5
      %v1625 = vsel %vm1586, %v1623, %v1624
      %v1626 = vrot.slane %v1624, 4
      %v1627 = vrot.slane %v1505, 5
      %v1628 = vsel %vm1586, %v1626, %v1627
      %v1629 = vrot.slane %v1506, 5
      %v1630 = vrot.slane %v1629, 4
      %v1631 = vrot.slane %v1507, 5
      %v1632 = vsel %vm1586, %v1630, %v1631
      %v1633 = vrot.slane %v1631, 4
      %v1634 = vrot.slane %v1508, 5
      %v1635 = vsel %vm1586, %v1633, %v1634
      %v1636 = vrot.slane %v1509, 5
      %v1637 = vrot.slane %v1636, 4
      %v1638 = vrot.slane %v1510, 5
      %v1639 = vsel %vm1586, %v1637, %v1638
      %v1640 = vrot.slane %v1638, 4
      %v1641 = vrot.slane %v1511, 5
      %v1642 = vsel %vm1586, %v1640, %v1641
      %v1643 = vrot.slane %v1512, 5
      %v1644 = vrot.slane %v1643, 4
      %v1645 = vrot.slane %v1513, 5
      %v1646 = vsel %vm1586, %v1644, %v1645
      %v1647 = vrot.slane %v1645, 4
      %v1648 = vrot.slane %v1514, 5
      %v1649 = vsel %vm1586, %v1647, %v1648
      %v1650 = vrot.slane %v1515, 5
      %v1651 = vrot.slane %v1650, 4
      %v1652 = vrot.slane %v1516, 5
      %v1653 = vsel %vm1586, %v1651, %v1652
      %v1654 = vrot.slane %v1652, 4
      %v1655 = vrot.slane %v1517, 5
      %v1656 = vsel %vm1586, %v1654, %v1655
      %v1657 = vrot.slane %v1518, 5
      %v1658 = vrot.slane %v1657, 4
      %v1659 = vrot.slane %v1519, 5
      %v1660 = vsel %vm1586, %v1658, %v1659
      %v1661 = vrot.slane %v1659, 4
      %v1662 = vrot.slane %v1520, 5
      %v1663 = vsel %vm1586, %v1661, %v1662
      %v1664 = vrot.slane %v1521, 5
      %v1665 = vrot.slane %v1664, 4
      %v1666 = vrot.slane %v1522, 5
      %v1667 = vsel %vm1586, %v1665, %v1666
      %v1668 = vrot.slane %v1666, 4
      %v1669 = vrot.slane %v1523, 5
      %v1670 = vsel %vm1586, %v1668, %v1669
      %v1671 = vrot.slane %v1524, 5
      %v1672 = vrot.slane %v1671, 4
      %v1673 = vrot.slane %v1525, 5
      %v1674 = vsel %vm1586, %v1672, %v1673
      %v1675 = vrot.slane %v1673, 4
      %v1676 = vrot.slane %v1526, 5
      %v1677 = vsel %vm1586, %v1675, %v1676
      %v1678 = vrot.slane %v1527, 5
      %v1679 = vrot.slane %v1678, 4
      %v1680 = vrot.slane %v1528, 5
      %v1681 = vsel %vm1586, %v1679, %v1680
      %v1682 = vrot.slane %v1680, 4
      %v1683 = vrot.slane %v1529, 5
      %v1684 = vsel %vm1586, %v1682, %v1683
      %v1685 = vrot.slane %v1530, 5
      %v1686 = vrot.slane %v1685, 4
      %v1687 = vrot.slane %v1531, 5
      %v1688 = vsel %vm1586, %v1686, %v1687
      %v1689 = vrot.slane %v1687, 4
      %v1690 = vrot.slane %v1532, 5
      %v1691 = vsel %vm1586, %v1689, %v1690
      %v1692 = vrot.slane %v1533, 5
      %v1693 = vrot.slane %v1692, 4
      %v1694 = vrot.slane %v1534, 5
      %v1695 = vsel %vm1586, %v1693, %v1694
      %v1696 = vrot.slane %v1694, 4
      %v1697 = vrot.slane %v1535, 5
      %v1698 = vsel %vm1586, %v1696, %v1697
      %v1699 = vunpack.c.l.b16 %v1590
      %v1700 = vunpack.c.l.b16 %v1593
      %v1701 = vunpack.c.l.b16 %v1597
      %v1702 = vunpack.c.l.b16 %v1600
      %v1703 = vunpack.c.l.b16 %v1604
      %v1704 = vunpack.c.l.b16 %v1607
      %v1705 = vunpack.c.l.b16 %v1611
      %v1706 = vunpack.c.l.b16 %v1614
      %v1707 = vunpack.c.l.b16 %v1618
      %v1708 = vunpack.c.l.b16 %v1621
      %v1709 = vunpack.c.l.b16 %v1625
      %v1710 = vunpack.c.l.b16 %v1628
      %v1711 = vunpack.c.l.b16 %v1632
      %v1712 = vunpack.c.l.b16 %v1635
      %v1713 = vunpack.c.l.b16 %v1639
      %v1714 = vunpack.c.l.b16 %v1642
      %v1715 = vunpack.c.l.b16 %v1646
      %v1716 = vunpack.c.l.b16 %v1649
      %v1717 = vunpack.c.l.b16 %v1653
      %v1718 = vunpack.c.l.b16 %v1656
      %v1719 = vunpack.c.l.b16 %v1660
      %v1720 = vunpack.c.l.b16 %v1663
      %v1721 = vunpack.c.l.b16 %v1667
      %v1722 = vunpack.c.l.b16 %v1670
      %v1723 = vunpack.c.l.b16 %v1674
      %v1724 = vunpack.c.l.b16 %v1677
      %v1725 = vunpack.c.l.b16 %v1681
      %v1726 = vunpack.c.l.b16 %v1684
      %v1727 = vunpack.c.l.b16 %v1688
      %v1728 = vunpack.c.l.b16 %v1691
      %v1729 = vunpack.c.l.b16 %v1695
      %v1730 = vunpack.c.l.b16 %v1698
      %v1731 = vpack.c.b16 %v1700, %v1699
      %v1732 = vpack.c.b16 %v1702, %v1701
      %v1733 = vpack.c.b16 %v1704, %v1703
      %v1734 = vpack.c.b16 %v1706, %v1705
      %v1735 = vpack.c.b16 %v1708, %v1707
      %v1736 = vpack.c.b16 %v1710, %v1709
      %v1737 = vpack.c.b16 %v1712, %v1711
      %v1738 = vpack.c.b16 %v1714, %v1713
      %v1739 = vpack.c.b16 %v1716, %v1715
      %v1740 = vpack.c.b16 %v1718, %v1717
      %v1741 = vpack.c.b16 %v1720, %v1719
      %v1742 = vpack.c.b16 %v1722, %v1721
      %v1743 = vpack.c.b16 %v1724, %v1723
      %v1744 = vpack.c.b16 %v1726, %v1725
      %v1745 = vpack.c.b16 %v1728, %v1727
      %v1746 = vpack.c.b16 %v1730, %v1729
      %1747 = vrot.lane.b32.xlu0 %v1731, 6
      %v1748 = vpop.permute.xlu0 %1747
      %1749 = vrot.lane.b32.xlu0 %v1732, 6
      %v1750 = vpop.permute.xlu0 %1749
      %1751 = vrot.lane.b32.xlu0 %v1733, 6
      %v1752 = vpop.permute.xlu0 %1751
      %1753 = vrot.lane.b32.xlu0 %v1734, 6
      %v1754 = vpop.permute.xlu0 %1753
      %1755 = vrot.lane.b32.xlu0 %v1735, 6
      %v1756 = vpop.permute.xlu0 %1755
      %1757 = vrot.lane.b32.xlu0 %v1736, 6
      %v1758 = vpop.permute.xlu0 %1757
      %1759 = vrot.lane.b32.xlu0 %v1737, 6
      %v1760 = vpop.permute.xlu0 %1759
      %1761 = vrot.lane.b32.xlu0 %v1738, 6
      %v1762 = vpop.permute.xlu0 %1761
      %1763 = vrot.lane.b32.xlu0 %v1739, 6
      %v1764 = vpop.permute.xlu0 %1763
      %1765 = vrot.lane.b32.xlu0 %v1740, 6
      %v1766 = vpop.permute.xlu0 %1765
      %1767 = vrot.lane.b32.xlu0 %v1741, 6
      %v1768 = vpop.permute.xlu0 %1767
      %1769 = vrot.lane.b32.xlu0 %v1742, 6
      %v1770 = vpop.permute.xlu0 %1769
      %1771 = vrot.lane.b32.xlu0 %v1743, 6
      %v1772 = vpop.permute.xlu0 %1771
      %1773 = vrot.lane.b32.xlu0 %v1744, 6
      %v1774 = vpop.permute.xlu0 %1773
      %1775 = vrot.lane.b32.xlu0 %v1745, 6
      %v1776 = vpop.permute.xlu0 %1775
      %1777 = vrot.lane.b32.xlu0 %v1746, 6
      %v1778 = vpop.permute.xlu0 %1777
      %vm1795 = vcmask 72752
      %1796 = vst.msk [vmem:[#allocation3] sm:$0xff] %vm1795, %v1748
      %1797 = vst.msk [vmem:[#allocation3 + $0x8] sm:$0xff] %vm1795, %v1750
      %1798 = vst.msk [vmem:[#allocation3 + $0x10] sm:$0xff] %vm1795, %v1752
      %1799 = vst.msk [vmem:[#allocation3 + $0x18] sm:$0xff] %vm1795, %v1754
      %1800 = vst.msk [vmem:[#allocation3 + $0x20] sm:$0xff] %vm1795, %v1756
      %1801 = vst.msk [vmem:[#allocation3 + $0x28] sm:$0xff] %vm1795, %v1758
      %1802 = vst.msk [vmem:[#allocation3 + $0x30] sm:$0xff] %vm1795, %v1760
      %1803 = vst.msk [vmem:[#allocation3 + $0x38] sm:$0xff] %vm1795, %v1762
      %1804 = vst.msk [vmem:[#allocation3 + $0x40] sm:$0xff] %vm1795, %v1764
      %1805 = vst.msk [vmem:[#allocation3 + $0x48] sm:$0xff] %vm1795, %v1766
      %1806 = vst.msk [vmem:[#allocation3 + $0x50] sm:$0xff] %vm1795, %v1768
      %1807 = vst.msk [vmem:[#allocation3 + $0x58] sm:$0xff] %vm1795, %v1770
      %1808 = vst.msk [vmem:[#allocation3 + $0x60] sm:$0xff] %vm1795, %v1772
      %1809 = vst.msk [vmem:[#allocation3 + $0x68] sm:$0xff] %vm1795, %v1774
      %1810 = vst.msk [vmem:[#allocation3 + $0x70] sm:$0xff] %vm1795, %v1776
      %1811 = vst.msk [vmem:[#allocation3 + $0x78] sm:$0xff] %vm1795, %v1778
      %v1812 = vld [vmem:[%s677] sm:$0xf]
      %v1813 = vld [vmem:[%s677 + $0x4] sm:$0xf]
      %v1814 = vld [vmem:[%s677 + $0xc] sm:$0xf]
      %v1815 = vld [vmem:[%s677 + $0x10] sm:$0xf]
      %v1816 = vld [vmem:[%s677 + $0x18] sm:$0xf]
      %v1817 = vld [vmem:[%s677 + $0x1c] sm:$0xf]
      %v1818 = vld [vmem:[%s677 + $0x24] sm:$0xf]
      %v1819 = vld [vmem:[%s677 + $0x28] sm:$0xf]
      %v1820 = vld [vmem:[%s677 + $0x30] sm:$0xf]
      %v1821 = vld [vmem:[%s677 + $0x34] sm:$0xf]
      %v1822 = vld [vmem:[%s677 + $0x3c] sm:$0xf]
      %v1823 = vld [vmem:[%s677 + $0x40] sm:$0xf]
      %v1824 = vld [vmem:[%s677 + $0x48] sm:$0xf]
      %v1825 = vld [vmem:[%s677 + $0x4c] sm:$0xf]
      %v1826 = vld [vmem:[%s677 + $0x54] sm:$0xf]
      %v1827 = vld [vmem:[%s677 + $0x58] sm:$0xf]
      %v1828 = vld [vmem:[%s677 + $0x60] sm:$0xf]
      %v1829 = vld [vmem:[%s677 + $0x64] sm:$0xf]
      %v1830 = vld [vmem:[%s677 + $0x6c] sm:$0xf]
      %v1831 = vld [vmem:[%s677 + $0x70] sm:$0xf]
      %v1832 = vld [vmem:[%s677 + $0x78] sm:$0xf]
      %v1833 = vld [vmem:[%s677 + $0x7c] sm:$0xf]
      %v1834 = vld [vmem:[%s677 + $0x84] sm:$0xf]
      %v1835 = vld [vmem:[%s677 + $0x88] sm:$0xf]
      %v1836 = vld [vmem:[%s677 + $0x90] sm:$0xf]
      %v1837 = vld [vmem:[%s677 + $0x94] sm:$0xf]
      %v1838 = vld [vmem:[%s677 + $0x9c] sm:$0xf]
      %v1839 = vld [vmem:[%s677 + $0xa0] sm:$0xf]
      %v1840 = vld [vmem:[%s677 + $0xa8] sm:$0xf]
      %v1841 = vld [vmem:[%s677 + $0xac] sm:$0xf]
      %v1842 = vld [vmem:[%s677 + $0xb4] sm:$0xf]
      %v1843 = vld [vmem:[%s677 + $0xb8] sm:$0xf]
      %v1876 = vunpack.c.l.b16 %v1812
      %v1877 = vunpack.c.l.b16 %v1813
      %v1878 = vunpack.c.l.b16 %v1814
      %v1879 = vunpack.c.l.b16 %v1815
      %v1880 = vunpack.c.l.b16 %v1816
      %v1881 = vunpack.c.l.b16 %v1817
      %v1882 = vunpack.c.l.b16 %v1818
      %v1883 = vunpack.c.l.b16 %v1819
      %v1884 = vunpack.c.l.b16 %v1820
      %v1885 = vunpack.c.l.b16 %v1821
      %v1886 = vunpack.c.l.b16 %v1822
      %v1887 = vunpack.c.l.b16 %v1823
      %v1888 = vunpack.c.l.b16 %v1824
      %v1889 = vunpack.c.l.b16 %v1825
      %v1890 = vunpack.c.l.b16 %v1826
      %v1891 = vunpack.c.l.b16 %v1827
      %v1892 = vunpack.c.l.b16 %v1828
      %v1893 = vunpack.c.l.b16 %v1829
      %v1894 = vunpack.c.l.b16 %v1830
      %v1895 = vunpack.c.l.b16 %v1831
      %v1896 = vunpack.c.l.b16 %v1832
      %v1897 = vunpack.c.l.b16 %v1833
      %v1898 = vunpack.c.l.b16 %v1834
      %v1899 = vunpack.c.l.b16 %v1835
      %v1900 = vunpack.c.l.b16 %v1836
      %v1901 = vunpack.c.l.b16 %v1837
      %v1902 = vunpack.c.l.b16 %v1838
      %v1903 = vunpack.c.l.b16 %v1839
      %v1904 = vunpack.c.l.b16 %v1840
      %v1905 = vunpack.c.l.b16 %v1841
      %v1906 = vunpack.c.l.b16 %v1842
      %v1907 = vunpack.c.l.b16 %v1843
      %v1908 = vpack.c.b16 %v1877, %v1876
      %v1909 = vpack.c.b16 %v1879, %v1878
      %v1910 = vpack.c.b16 %v1881, %v1880
      %v1911 = vpack.c.b16 %v1883, %v1882
      %v1912 = vpack.c.b16 %v1885, %v1884
      %v1913 = vpack.c.b16 %v1887, %v1886
      %v1914 = vpack.c.b16 %v1889, %v1888
      %v1915 = vpack.c.b16 %v1891, %v1890
      %v1916 = vpack.c.b16 %v1893, %v1892
      %v1917 = vpack.c.b16 %v1895, %v1894
      %v1918 = vpack.c.b16 %v1897, %v1896
      %v1919 = vpack.c.b16 %v1899, %v1898
      %v1920 = vpack.c.b16 %v1901, %v1900
      %v1921 = vpack.c.b16 %v1903, %v1902
      %v1922 = vpack.c.b16 %v1905, %v1904
      %v1923 = vpack.c.b16 %v1907, %v1906
      %1924 = vrot.lane.b32.xlu0 %v1908, 9
      %v1925 = vpop.permute.xlu0 %1924
      %1926 = vrot.lane.b32.xlu0 %v1909, 9
      %v1927 = vpop.permute.xlu0 %1926
      %1928 = vrot.lane.b32.xlu0 %v1910, 9
      %v1929 = vpop.permute.xlu0 %1928
      %1930 = vrot.lane.b32.xlu0 %v1911, 9
      %v1931 = vpop.permute.xlu0 %1930
      %1932 = vrot.lane.b32.xlu0 %v1912, 9
      %v1933 = vpop.permute.xlu0 %1932
      %1934 = vrot.lane.b32.xlu0 %v1913, 9
      %v1935 = vpop.permute.xlu0 %1934
      %1936 = vrot.lane.b32.xlu0 %v1914, 9
      %v1937 = vpop.permute.xlu0 %1936
      %1938 = vrot.lane.b32.xlu0 %v1915, 9
      %v1939 = vpop.permute.xlu0 %1938
      %1940 = vrot.lane.b32.xlu0 %v1916, 9
      %v1941 = vpop.permute.xlu0 %1940
      %1942 = vrot.lane.b32.xlu0 %v1917, 9
      %v1943 = vpop.permute.xlu0 %1942
      %1944 = vrot.lane.b32.xlu0 %v1918, 9
      %v1945 = vpop.permute.xlu0 %1944
      %1946 = vrot.lane.b32.xlu0 %v1919, 9
      %v1947 = vpop.permute.xlu0 %1946
      %1948 = vrot.lane.b32.xlu0 %v1920, 9
      %v1949 = vpop.permute.xlu0 %1948
      %1950 = vrot.lane.b32.xlu0 %v1921, 9
      %v1951 = vpop.permute.xlu0 %1950
      %1952 = vrot.lane.b32.xlu0 %v1922, 9
      %v1953 = vpop.permute.xlu0 %1952
      %1954 = vrot.lane.b32.xlu0 %v1923, 9
      %v1955 = vpop.permute.xlu0 %1954
      %vm1972 = vcmask 97352
      %1973 = vst.msk [vmem:[#allocation3] sm:$0xff] %vm1972, %v1925
      %1974 = vst.msk [vmem:[#allocation3 + $0x8] sm:$0xff] %vm1972, %v1927
      %1975 = vst.msk [vmem:[#allocation3 + $0x10] sm:$0xff] %vm1972, %v1929
      %1976 = vst.msk [vmem:[#allocation3 + $0x18] sm:$0xff] %vm1972, %v1931
      %1977 = vst.msk [vmem:[#allocation3 + $0x20] sm:$0xff] %vm1972, %v1933
      %1978 = vst.msk [vmem:[#allocation3 + $0x28] sm:$0xff] %vm1972, %v1935
      %1979 = vst.msk [vmem:[#allocation3 + $0x30] sm:$0xff] %vm1972, %v1937
      %1980 = vst.msk [vmem:[#allocation3 + $0x38] sm:$0xff] %vm1972, %v1939
      %1981 = vst.msk [vmem:[#allocation3 + $0x40] sm:$0xff] %vm1972, %v1941
      %1982 = vst.msk [vmem:[#allocation3 + $0x48] sm:$0xff] %vm1972, %v1943
      %1983 = vst.msk [vmem:[#allocation3 + $0x50] sm:$0xff] %vm1972, %v1945
      %1984 = vst.msk [vmem:[#allocation3 + $0x58] sm:$0xff] %vm1972, %v1947
      %1985 = vst.msk [vmem:[#allocation3 + $0x60] sm:$0xff] %vm1972, %v1949
      %1986 = vst.msk [vmem:[#allocation3 + $0x68] sm:$0xff] %vm1972, %v1951
      %1987 = vst.msk [vmem:[#allocation3 + $0x70] sm:$0xff] %vm1972, %v1953
      %1988 = vst.msk [vmem:[#allocation3 + $0x78] sm:$0xff] %vm1972, %v1955
      %v1989 = vld [vmem:[%s677] sm:$0xf]
      %v1990 = vld [vmem:[%s677 + $0x4] sm:$0xf]
      %v1991 = vld [vmem:[%s677 + $0x8] sm:$0x1]
      %v1992 = vld [vmem:[%s677 + $0xc] sm:$0xf]
      %v1993 = vld [vmem:[%s677 + $0x10] sm:$0xf]
      %v1994 = vld [vmem:[%s677 + $0x14] sm:$0x1]
      %v1995 = vld [vmem:[%s677 + $0x18] sm:$0xf]
      %v1996 = vld [vmem:[%s677 + $0x1c] sm:$0xf]
      %v1997 = vld [vmem:[%s677 + $0x20] sm:$0x1]
      %v1998 = vld [vmem:[%s677 + $0x24] sm:$0xf]
      %v1999 = vld [vmem:[%s677 + $0x28] sm:$0xf]
      %v2000 = vld [vmem:[%s677 + $0x2c] sm:$0x1]
      %v2001 = vld [vmem:[%s677 + $0x30] sm:$0xf]
      %v2002 = vld [vmem:[%s677 + $0x34] sm:$0xf]
      %v2003 = vld [vmem:[%s677 + $0x38] sm:$0x1]
      %v2004 = vld [vmem:[%s677 + $0x3c] sm:$0xf]
      %v2005 = vld [vmem:[%s677 + $0x40] sm:$0xf]
      %v2006 = vld [vmem:[%s677 + $0x44] sm:$0x1]
      %v2007 = vld [vmem:[%s677 + $0x48] sm:$0xf]
      %v2008 = vld [vmem:[%s677 + $0x4c] sm:$0xf]
      %v2009 = vld [vmem:[%s677 + $0x50] sm:$0x1]
      %v2010 = vld [vmem:[%s677 + $0x54] sm:$0xf]
      %v2011 = vld [vmem:[%s677 + $0x58] sm:$0xf]
      %v2012 = vld [vmem:[%s677 + $0x5c] sm:$0x1]
      %v2013 = vld [vmem:[%s677 + $0x60] sm:$0xf]
      %v2014 = vld [vmem:[%s677 + $0x64] sm:$0xf]
      %v2015 = vld [vmem:[%s677 + $0x68] sm:$0x1]
      %v2016 = vld [vmem:[%s677 + $0x6c] sm:$0xf]
      %v2017 = vld [vmem:[%s677 + $0x70] sm:$0xf]
      %v2018 = vld [vmem:[%s677 + $0x74] sm:$0x1]
      %v2019 = vld [vmem:[%s677 + $0x78] sm:$0xf]
      %v2020 = vld [vmem:[%s677 + $0x7c] sm:$0xf]
      %v2021 = vld [vmem:[%s677 + $0x80] sm:$0x1]
      %v2022 = vld [vmem:[%s677 + $0x84] sm:$0xf]
      %v2023 = vld [vmem:[%s677 + $0x88] sm:$0xf]
      %v2024 = vld [vmem:[%s677 + $0x8c] sm:$0x1]
      %v2025 = vld [vmem:[%s677 + $0x90] sm:$0xf]
      %v2026 = vld [vmem:[%s677 + $0x94] sm:$0xf]
      %v2027 = vld [vmem:[%s677 + $0x98] sm:$0x1]
      %v2028 = vld [vmem:[%s677 + $0x9c] sm:$0xf]
      %v2029 = vld [vmem:[%s677 + $0xa0] sm:$0xf]
      %v2030 = vld [vmem:[%s677 + $0xa4] sm:$0x1]
      %v2031 = vld [vmem:[%s677 + $0xa8] sm:$0xf]
      %v2032 = vld [vmem:[%s677 + $0xac] sm:$0xf]
      %v2033 = vld [vmem:[%s677 + $0xb0] sm:$0x1]
      %v2034 = vld [vmem:[%s677 + $0xb4] sm:$0xf]
      %v2035 = vld [vmem:[%s677 + $0xb8] sm:$0xf]
      %v2036 = vld [vmem:[%s677 + $0xbc] sm:$0x1]
      %v2038 = vshrl.u32 %v1989, 16
      %v2040 = vrot.slane %v2038, 4
      %v2041 = vshll.u32 %v1989, 16
      %v2043 = vrot.slane %v2041, 5
      %v2044 = vor.u32 %v2040, %v2043
      %v2045 = vrot.slane %v2044, 4
      %v2047 = vshll.u32 %v1990, 16
      %v2049 = vrot.slane %v2047, 5
      %v2050 = vsel %vm990, %v2045, %v2049
      %v2051 = vshrl.u32 %v1990, 16
      %v2053 = vrot.slane %v2051, 4
      %v2054 = vor.u32 %v2053, %v2049
      %v2055 = vrot.slane %v2054, 4
      %v2057 = vshll.u32 %v1991, 16
      %v2059 = vrot.slane %v2057, 5
      %v2060 = vsel %vm990, %v2055, %v2059
      %v2062 = vshrl.u32 %v1992, 16
      %v2064 = vrot.slane %v2062, 4
      %v2065 = vshll.u32 %v1992, 16
      %v2067 = vrot.slane %v2065, 5
      %v2068 = vor.u32 %v2064, %v2067
      %v2069 = vrot.slane %v2068, 4
      %v2071 = vshll.u32 %v1993, 16
      %v2073 = vrot.slane %v2071, 5
      %v2074 = vsel %vm990, %v2069, %v2073
      %v2075 = vshrl.u32 %v1993, 16
      %v2077 = vrot.slane %v2075, 4
      %v2078 = vor.u32 %v2077, %v2073
      %v2079 = vrot.slane %v2078, 4
      %v2081 = vshll.u32 %v1994, 16
      %v2083 = vrot.slane %v2081, 5
      %v2084 = vsel %vm990, %v2079, %v2083
      %v2086 = vshrl.u32 %v1995, 16
      %v2088 = vrot.slane %v2086, 4
      %v2089 = vshll.u32 %v1995, 16
      %v2091 = vrot.slane %v2089, 5
      %v2092 = vor.u32 %v2088, %v2091
      %v2093 = vrot.slane %v2092, 4
      %v2095 = vshll.u32 %v1996, 16
      %v2097 = vrot.slane %v2095, 5
      %v2098 = vsel %vm990, %v2093, %v2097
      %v2099 = vshrl.u32 %v1996, 16
      %v2101 = vrot.slane %v2099, 4
      %v2102 = vor.u32 %v2101, %v2097
      %v2103 = vrot.slane %v2102, 4
      %v2105 = vshll.u32 %v1997, 16
      %v2107 = vrot.slane %v2105, 5
      %v2108 = vsel %vm990, %v2103, %v2107
      %v2110 = vshrl.u32 %v1998, 16
      %v2112 = vrot.slane %v2110, 4
      %v2113 = vshll.u32 %v1998, 16
      %v2115 = vrot.slane %v2113, 5
      %v2116 = vor.u32 %v2112, %v2115
      %v2117 = vrot.slane %v2116, 4
      %v2119 = vshll.u32 %v1999, 16
      %v2121 = vrot.slane %v2119, 5
      %v2122 = vsel %vm990, %v2117, %v2121
      %v2123 = vshrl.u32 %v1999, 16
      %v2125 = vrot.slane %v2123, 4
      %v2126 = vor.u32 %v2125, %v2121
      %v2127 = vrot.slane %v2126, 4
      %v2129 = vshll.u32 %v2000, 16
      %v2131 = vrot.slane %v2129, 5
      %v2132 = vsel %vm990, %v2127, %v2131
      %v2134 = vshrl.u32 %v2001, 16
      %v2136 = vrot.slane %v2134, 4
      %v2137 = vshll.u32 %v2001, 16
      %v2139 = vrot.slane %v2137, 5
      %v2140 = vor.u32 %v2136, %v2139
      %v2141 = vrot.slane %v2140, 4
      %v2143 = vshll.u32 %v2002, 16
      %v2145 = vrot.slane %v2143, 5
      %v2146 = vsel %vm990, %v2141, %v2145
      %v2147 = vshrl.u32 %v2002, 16
      %v2149 = vrot.slane %v2147, 4
      %v2150 = vor.u32 %v2149, %v2145
      %v2151 = vrot.slane %v2150, 4
      %v2153 = vshll.u32 %v2003, 16
      %v2155 = vrot.slane %v2153, 5
      %v2156 = vsel %vm990, %v2151, %v2155
      %v2158 = vshrl.u32 %v2004, 16
      %v2160 = vrot.slane %v2158, 4
      %v2161 = vshll.u32 %v2004, 16
      %v2163 = vrot.slane %v2161, 5
      %v2164 = vor.u32 %v2160, %v2163
      %v2165 = vrot.slane %v2164, 4
      %v2167 = vshll.u32 %v2005, 16
      %v2169 = vrot.slane %v2167, 5
      %v2170 = vsel %vm990, %v2165, %v2169
      %v2171 = vshrl.u32 %v2005, 16
      %v2173 = vrot.slane %v2171, 4
      %v2174 = vor.u32 %v2173, %v2169
      %v2175 = vrot.slane %v2174, 4
      %v2177 = vshll.u32 %v2006, 16
      %v2179 = vrot.slane %v2177, 5
      %v2180 = vsel %vm990, %v2175, %v2179
      %v2182 = vshrl.u32 %v2007, 16
      %v2184 = vrot.slane %v2182, 4
      %v2185 = vshll.u32 %v2007, 16
      %v2187 = vrot.slane %v2185, 5
      %v2188 = vor.u32 %v2184, %v2187
      %v2189 = vrot.slane %v2188, 4
      %v2191 = vshll.u32 %v2008, 16
      %v2193 = vrot.slane %v2191, 5
      %v2194 = vsel %vm990, %v2189, %v2193
      %v2195 = vshrl.u32 %v2008, 16
      %v2197 = vrot.slane %v2195, 4
      %v2198 = vor.u32 %v2197, %v2193
      %v2199 = vrot.slane %v2198, 4
      %v2201 = vshll.u32 %v2009, 16
      %v2203 = vrot.slane %v2201, 5
      %v2204 = vsel %vm990, %v2199, %v2203
      %v2206 = vshrl.u32 %v2010, 16
      %v2208 = vrot.slane %v2206, 4
      %v2209 = vshll.u32 %v2010, 16
      %v2211 = vrot.slane %v2209, 5
      %v2212 = vor.u32 %v2208, %v2211
      %v2213 = vrot.slane %v2212, 4
      %v2215 = vshll.u32 %v2011, 16
      %v2217 = vrot.slane %v2215, 5
      %v2218 = vsel %vm990, %v2213, %v2217
      %v2219 = vshrl.u32 %v2011, 16
      %v2221 = vrot.slane %v2219, 4
      %v2222 = vor.u32 %v2221, %v2217
      %v2223 = vrot.slane %v2222, 4
      %v2225 = vshll.u32 %v2012, 16
      %v2227 = vrot.slane %v2225, 5
      %v2228 = vsel %vm990, %v2223, %v2227
      %v2230 = vshrl.u32 %v2013, 16
      %v2232 = vrot.slane %v2230, 4
      %v2233 = vshll.u32 %v2013, 16
      %v2235 = vrot.slane %v2233, 5
      %v2236 = vor.u32 %v2232, %v2235
      %v2237 = vrot.slane %v2236, 4
      %v2239 = vshll.u32 %v2014, 16
      %v2241 = vrot.slane %v2239, 5
      %v2242 = vsel %vm990, %v2237, %v2241
      %v2243 = vshrl.u32 %v2014, 16
      %v2245 = vrot.slane %v2243, 4
      %v2246 = vor.u32 %v2245, %v2241
      %v2247 = vrot.slane %v2246, 4
      %v2249 = vshll.u32 %v2015, 16
      %v2251 = vrot.slane %v2249, 5
      %v2252 = vsel %vm990, %v2247, %v2251
      %v2254 = vshrl.u32 %v2016, 16
      %v2256 = vrot.slane %v2254, 4
      %v2257 = vshll.u32 %v2016, 16
      %v2259 = vrot.slane %v2257, 5
      %v2260 = vor.u32 %v2256, %v2259
      %v2261 = vrot.slane %v2260, 4
      %v2263 = vshll.u32 %v2017, 16
      %v2265 = vrot.slane %v2263, 5
      %v2266 = vsel %vm990, %v2261, %v2265
      %v2267 = vshrl.u32 %v2017, 16
      %v2269 = vrot.slane %v2267, 4
      %v2270 = vor.u32 %v2269, %v2265
      %v2271 = vrot.slane %v2270, 4
      %v2273 = vshll.u32 %v2018, 16
      %v2275 = vrot.slane %v2273, 5
      %v2276 = vsel %vm990, %v2271, %v2275
      %v2278 = vshrl.u32 %v2019, 16
      %v2280 = vrot.slane %v2278, 4
      %v2281 = vshll.u32 %v2019, 16
      %v2283 = vrot.slane %v2281, 5
      %v2284 = vor.u32 %v2280, %v2283
      %v2285 = vrot.slane %v2284, 4
      %v2287 = vshll.u32 %v2020, 16
      %v2289 = vrot.slane %v2287, 5
      %v2290 = vsel %vm990, %v2285, %v2289
      %v2291 = vshrl.u32 %v2020, 16
      %v2293 = vrot.slane %v2291, 4
      %v2294 = vor.u32 %v2293, %v2289
      %v2295 = vrot.slane %v2294, 4
      %v2297 = vshll.u32 %v2021, 16
      %v2299 = vrot.slane %v2297, 5
      %v2300 = vsel %vm990, %v2295, %v2299
      %v2302 = vshrl.u32 %v2022, 16
      %v2304 = vrot.slane %v2302, 4
      %v2305 = vshll.u32 %v2022, 16
      %v2307 = vrot.slane %v2305, 5
      %v2308 = vor.u32 %v2304, %v2307
      %v2309 = vrot.slane %v2308, 4
      %v2311 = vshll.u32 %v2023, 16
      %v2313 = vrot.slane %v2311, 5
      %v2314 = vsel %vm990, %v2309, %v2313
      %v2315 = vshrl.u32 %v2023, 16
      %v2317 = vrot.slane %v2315, 4
      %v2318 = vor.u32 %v2317, %v2313
      %v2319 = vrot.slane %v2318, 4
      %v2321 = vshll.u32 %v2024, 16
      %v2323 = vrot.slane %v2321, 5
      %v2324 = vsel %vm990, %v2319, %v2323
      %v2326 = vshrl.u32 %v2025, 16
      %v2328 = vrot.slane %v2326, 4
      %v2329 = vshll.u32 %v2025, 16
      %v2331 = vrot.slane %v2329, 5
      %v2332 = vor.u32 %v2328, %v2331
      %v2333 = vrot.slane %v2332, 4
      %v2335 = vshll.u32 %v2026, 16
      %v2337 = vrot.slane %v2335, 5
      %v2338 = vsel %vm990, %v2333, %v2337
      %v2339 = vshrl.u32 %v2026, 16
      %v2341 = vrot.slane %v2339, 4
      %v2342 = vor.u32 %v2341, %v2337
      %v2343 = vrot.slane %v2342, 4
      %v2345 = vshll.u32 %v2027, 16
      %v2347 = vrot.slane %v2345, 5
      %v2348 = vsel %vm990, %v2343, %v2347
      %v2350 = vshrl.u32 %v2028, 16
      %v2352 = vrot.slane %v2350, 4
      %v2353 = vshll.u32 %v2028, 16
      %v2355 = vrot.slane %v2353, 5
      %v2356 = vor.u32 %v2352, %v2355
      %v2357 = vrot.slane %v2356, 4
      %v2359 = vshll.u32 %v2029, 16
      %v2361 = vrot.slane %v2359, 5
      %v2362 = vsel %vm990, %v2357, %v2361
      %v2363 = vshrl.u32 %v2029, 16
      %v2365 = vrot.slane %v2363, 4
      %v2366 = vor.u32 %v2365, %v2361
      %v2367 = vrot.slane %v2366, 4
      %v2369 = vshll.u32 %v2030, 16
      %v2371 = vrot.slane %v2369, 5
      %v2372 = vsel %vm990, %v2367, %v2371
      %v2374 = vshrl.u32 %v2031, 16
      %v2376 = vrot.slane %v2374, 4
      %v2377 = vshll.u32 %v2031, 16
      %v2379 = vrot.slane %v2377, 5
      %v2380 = vor.u32 %v2376, %v2379
      %v2381 = vrot.slane %v2380, 4
      %v2383 = vshll.u32 %v2032, 16
      %v2385 = vrot.slane %v2383, 5
      %v2386 = vsel %vm990, %v2381, %v2385
      %v2387 = vshrl.u32 %v2032, 16
      %v2389 = vrot.slane %v2387, 4
      %v2390 = vor.u32 %v2389, %v2385
      %v2391 = vrot.slane %v2390, 4
      %v2393 = vshll.u32 %v2033, 16
      %v2395 = vrot.slane %v2393, 5
      %v2396 = vsel %vm990, %v2391, %v2395
      %v2398 = vshrl.u32 %v2034, 16
      %v2400 = vrot.slane %v2398, 4
      %v2401 = vshll.u32 %v2034, 16
      %v2403 = vrot.slane %v2401, 5
      %v2404 = vor.u32 %v2400, %v2403
      %v2405 = vrot.slane %v2404, 4
      %v2407 = vshll.u32 %v2035, 16
      %v2409 = vrot.slane %v2407, 5
      %v2410 = vsel %vm990, %v2405, %v2409
      %v2411 = vshrl.u32 %v2035, 16
      %v2413 = vrot.slane %v2411, 4
      %v2414 = vor.u32 %v2413, %v2409
      %v2415 = vrot.slane %v2414, 4
      %v2417 = vshll.u32 %v2036, 16
      %v2419 = vrot.slane %v2417, 5
      %v2420 = vsel %vm990, %v2415, %v2419
      %v2421 = vunpack.c.l.b16 %v2050
      %v2422 = vunpack.c.l.b16 %v2060
      %v2423 = vunpack.c.l.b16 %v2074
      %v2424 = vunpack.c.l.b16 %v2084
      %v2425 = vunpack.c.l.b16 %v2098
      %v2426 = vunpack.c.l.b16 %v2108
      %v2427 = vunpack.c.l.b16 %v2122
      %v2428 = vunpack.c.l.b16 %v2132
      %v2429 = vunpack.c.l.b16 %v2146
      %v2430 = vunpack.c.l.b16 %v2156
      %v2431 = vunpack.c.l.b16 %v2170
      %v2432 = vunpack.c.l.b16 %v2180
      %v2433 = vunpack.c.l.b16 %v2194
      %v2434 = vunpack.c.l.b16 %v2204
      %v2435 = vunpack.c.l.b16 %v2218
      %v2436 = vunpack.c.l.b16 %v2228
      %v2437 = vunpack.c.l.b16 %v2242
      %v2438 = vunpack.c.l.b16 %v2252
      %v2439 = vunpack.c.l.b16 %v2266
      %v2440 = vunpack.c.l.b16 %v2276
      %v2441 = vunpack.c.l.b16 %v2290
      %v2442 = vunpack.c.l.b16 %v2300
      %v2443 = vunpack.c.l.b16 %v2314
      %v2444 = vunpack.c.l.b16 %v2324
      %v2445 = vunpack.c.l.b16 %v2338
      %v2446 = vunpack.c.l.b16 %v2348
      %v2447 = vunpack.c.l.b16 %v2362
      %v2448 = vunpack.c.l.b16 %v2372
      %v2449 = vunpack.c.l.b16 %v2386
      %v2450 = vunpack.c.l.b16 %v2396
      %v2451 = vunpack.c.l.b16 %v2410
      %v2452 = vunpack.c.l.b16 %v2420
      %v2453 = vpack.c.b16 %v2422, %v2421
      %v2454 = vpack.c.b16 %v2424, %v2423
      %v2455 = vpack.c.b16 %v2426, %v2425
      %v2456 = vpack.c.b16 %v2428, %v2427
      %v2457 = vpack.c.b16 %v2430, %v2429
      %v2458 = vpack.c.b16 %v2432, %v2431
      %v2459 = vpack.c.b16 %v2434, %v2433
      %v2460 = vpack.c.b16 %v2436, %v2435
      %v2461 = vpack.c.b16 %v2438, %v2437
      %v2462 = vpack.c.b16 %v2440, %v2439
      %v2463 = vpack.c.b16 %v2442, %v2441
      %v2464 = vpack.c.b16 %v2444, %v2443
      %v2465 = vpack.c.b16 %v2446, %v2445
      %v2466 = vpack.c.b16 %v2448, %v2447
      %v2467 = vpack.c.b16 %v2450, %v2449
      %v2468 = vpack.c.b16 %v2452, %v2451
      %2469 = vrot.lane.b32.xlu0 %v2453, 12
      %v2470 = vpop.permute.xlu0 %2469
      %2471 = vrot.lane.b32.xlu0 %v2454, 12
      %v2472 = vpop.permute.xlu0 %2471
      %2473 = vrot.lane.b32.xlu0 %v2455, 12
      %v2474 = vpop.permute.xlu0 %2473
      %2475 = vrot.lane.b32.xlu0 %v2456, 12
      %v2476 = vpop.permute.xlu0 %2475
      %2477 = vrot.lane.b32.xlu0 %v2457, 12
      %v2478 = vpop.permute.xlu0 %2477
      %2479 = vrot.lane.b32.xlu0 %v2458, 12
      %v2480 = vpop.permute.xlu0 %2479
      %2481 = vrot.lane.b32.xlu0 %v2459, 12
      %v2482 = vpop.permute.xlu0 %2481
      %2483 = vrot.lane.b32.xlu0 %v2460, 12
      %v2484 = vpop.permute.xlu0 %2483
      %2485 = vrot.lane.b32.xlu0 %v2461, 12
      %v2486 = vpop.permute.xlu0 %2485
      %2487 = vrot.lane.b32.xlu0 %v2462, 12
      %v2488 = vpop.permute.xlu0 %2487
      %2489 = vrot.lane.b32.xlu0 %v2463, 12
      %v2490 = vpop.permute.xlu0 %2489
      %2491 = vrot.lane.b32.xlu0 %v2464, 12
      %v2492 = vpop.permute.xlu0 %2491
      %2493 = vrot.lane.b32.xlu0 %v2465, 12
      %v2494 = vpop.permute.xlu0 %2493
      %2495 = vrot.lane.b32.xlu0 %v2466, 12
      %v2496 = vpop.permute.xlu0 %2495
      %2497 = vrot.lane.b32.xlu0 %v2467, 12
      %v2498 = vpop.permute.xlu0 %2497
      %2499 = vrot.lane.b32.xlu0 %v2468, 12
      %v2500 = vpop.permute.xlu0 %2499
      %vm2517 = vcmask 121952
      %2518 = vst.msk [vmem:[#allocation3] sm:$0xff] %vm2517, %v2470
      %2519 = vst.msk [vmem:[#allocation3 + $0x8] sm:$0xff] %vm2517, %v2472
      %2520 = vst.msk [vmem:[#allocation3 + $0x10] sm:$0xff] %vm2517, %v2474
      %2521 = vst.msk [vmem:[#allocation3 + $0x18] sm:$0xff] %vm2517, %v2476
      %2522 = vst.msk [vmem:[#allocation3 + $0x20] sm:$0xff] %vm2517, %v2478
      %2523 = vst.msk [vmem:[#allocation3 + $0x28] sm:$0xff] %vm2517, %v2480
      %2524 = vst.msk [vmem:[#allocation3 + $0x30] sm:$0xff] %vm2517, %v2482
      %2525 = vst.msk [vmem:[#allocation3 + $0x38] sm:$0xff] %vm2517, %v2484
      %2526 = vst.msk [vmem:[#allocation3 + $0x40] sm:$0xff] %vm2517, %v2486
      %2527 = vst.msk [vmem:[#allocation3 + $0x48] sm:$0xff] %vm2517, %v2488
      %2528 = vst.msk [vmem:[#allocation3 + $0x50] sm:$0xff] %vm2517, %v2490
      %2529 = vst.msk [vmem:[#allocation3 + $0x58] sm:$0xff] %vm2517, %v2492
      %2530 = vst.msk [vmem:[#allocation3 + $0x60] sm:$0xff] %vm2517, %v2494
      %2531 = vst.msk [vmem:[#allocation3 + $0x68] sm:$0xff] %vm2517, %v2496
      %2532 = vst.msk [vmem:[#allocation3 + $0x70] sm:$0xff] %vm2517, %v2498
      %2533 = vst.msk [vmem:[#allocation3 + $0x78] sm:$0xff] %vm2517, %v2500
      %v2534 = vld [vmem:[%s677] sm:$0xe]
      %v2535 = vld [vmem:[%s677 + $0x4] sm:$0xf]
      %v2536 = vld [vmem:[%s677 + $0x8] sm:$0x1]
      %v2537 = vld [vmem:[%s677 + $0xc] sm:$0xe]
      %v2538 = vld [vmem:[%s677 + $0x10] sm:$0xf]
      %v2539 = vld [vmem:[%s677 + $0x14] sm:$0x1]
      %v2540 = vld [vmem:[%s677 + $0x18] sm:$0xe]
      %v2541 = vld [vmem:[%s677 + $0x1c] sm:$0xf]
      %v2542 = vld [vmem:[%s677 + $0x20] sm:$0x1]
      %v2543 = vld [vmem:[%s677 + $0x24] sm:$0xe]
      %v2544 = vld [vmem:[%s677 + $0x28] sm:$0xf]
      %v2545 = vld [vmem:[%s677 + $0x2c] sm:$0x1]
      %v2546 = vld [vmem:[%s677 + $0x30] sm:$0xe]
      %v2547 = vld [vmem:[%s677 + $0x34] sm:$0xf]
      %v2548 = vld [vmem:[%s677 + $0x38] sm:$0x1]
      %v2549 = vld [vmem:[%s677 + $0x3c] sm:$0xe]
      %v2550 = vld [vmem:[%s677 + $0x40] sm:$0xf]
      %v2551 = vld [vmem:[%s677 + $0x44] sm:$0x1]
      %v2552 = vld [vmem:[%s677 + $0x48] sm:$0xe]
      %v2553 = vld [vmem:[%s677 + $0x4c] sm:$0xf]
      %v2554 = vld [vmem:[%s677 + $0x50] sm:$0x1]
      %v2555 = vld [vmem:[%s677 + $0x54] sm:$0xe]
      %v2556 = vld [vmem:[%s677 + $0x58] sm:$0xf]
      %v2557 = vld [vmem:[%s677 + $0x5c] sm:$0x1]
      %v2558 = vld [vmem:[%s677 + $0x60] sm:$0xe]
      %v2559 = vld [vmem:[%s677 + $0x64] sm:$0xf]
      %v2560 = vld [vmem:[%s677 + $0x68] sm:$0x1]
      %v2561 = vld [vmem:[%s677 + $0x6c] sm:$0xe]
      %v2562 = vld [vmem:[%s677 + $0x70] sm:$0xf]
      %v2563 = vld [vmem:[%s677 + $0x74] sm:$0x1]
      %v2564 = vld [vmem:[%s677 + $0x78] sm:$0xe]
      %v2565 = vld [vmem:[%s677 + $0x7c] sm:$0xf]
      %v2566 = vld [vmem:[%s677 + $0x80] sm:$0x1]
      %v2567 = vld [vmem:[%s677 + $0x84] sm:$0xe]
      %v2568 = vld [vmem:[%s677 + $0x88] sm:$0xf]
      %v2569 = vld [vmem:[%s677 + $0x8c] sm:$0x1]
      %v2570 = vld [vmem:[%s677 + $0x90] sm:$0xe]
      %v2571 = vld [vmem:[%s677 + $0x94] sm:$0xf]
      %v2572 = vld [vmem:[%s677 + $0x98] sm:$0x1]
      %v2573 = vld [vmem:[%s677 + $0x9c] sm:$0xe]
      %v2574 = vld [vmem:[%s677 + $0xa0] sm:$0xf]
      %v2575 = vld [vmem:[%s677 + $0xa4] sm:$0x1]
      %v2576 = vld [vmem:[%s677 + $0xa8] sm:$0xe]
      %v2577 = vld [vmem:[%s677 + $0xac] sm:$0xf]
      %v2578 = vld [vmem:[%s677 + $0xb0] sm:$0x1]
      %v2579 = vld [vmem:[%s677 + $0xb4] sm:$0xe]
      %v2580 = vld [vmem:[%s677 + $0xb8] sm:$0xf]
      %v2581 = vld [vmem:[%s677 + $0xbc] sm:$0x1]
      %v2630 = vrot.slane %v2534, 5
      %v2631 = vrot.slane %v2630, 4
      %v2632 = vrot.slane %v2535, 5
      %v2633 = vsel %vm1586, %v2631, %v2632
      %v2634 = vrot.slane %v2632, 4
      %v2635 = vrot.slane %v2536, 5
      %v2636 = vsel %vm1586, %v2634, %v2635
      %v2637 = vrot.slane %v2537, 5
      %v2638 = vrot.slane %v2637, 4
      %v2639 = vrot.slane %v2538, 5
      %v2640 = vsel %vm1586, %v2638, %v2639
      %v2641 = vrot.slane %v2639, 4
      %v2642 = vrot.slane %v2539, 5
      %v2643 = vsel %vm1586, %v2641, %v2642
      %v2644 = vrot.slane %v2540, 5
      %v2645 = vrot.slane %v2644, 4
      %v2646 = vrot.slane %v2541, 5
      %v2647 = vsel %vm1586, %v2645, %v2646
      %v2648 = vrot.slane %v2646, 4
      %v2649 = vrot.slane %v2542, 5
      %v2650 = vsel %vm1586, %v2648, %v2649
      %v2651 = vrot.slane %v2543, 5
      %v2652 = vrot.slane %v2651, 4
      %v2653 = vrot.slane %v2544, 5
      %v2654 = vsel %vm1586, %v2652, %v2653
      %v2655 = vrot.slane %v2653, 4
      %v2656 = vrot.slane %v2545, 5
      %v2657 = vsel %vm1586, %v2655, %v2656
      %v2658 = vrot.slane %v2546, 5
      %v2659 = vrot.slane %v2658, 4
      %v2660 = vrot.slane %v2547, 5
      %v2661 = vsel %vm1586, %v2659, %v2660
      %v2662 = vrot.slane %v2660, 4
      %v2663 = vrot.slane %v2548, 5
      %v2664 = vsel %vm1586, %v2662, %v2663
      %v2665 = vrot.slane %v2549, 5
      %v2666 = vrot.slane %v2665, 4
      %v2667 = vrot.slane %v2550, 5
      %v2668 = vsel %vm1586, %v2666, %v2667
      %v2669 = vrot.slane %v2667, 4
      %v2670 = vrot.slane %v2551, 5
      %v2671 = vsel %vm1586, %v2669, %v2670
      %v2672 = vrot.slane %v2552, 5
      %v2673 = vrot.slane %v2672, 4
      %v2674 = vrot.slane %v2553, 5
      %v2675 = vsel %vm1586, %v2673, %v2674
      %v2676 = vrot.slane %v2674, 4
      %v2677 = vrot.slane %v2554, 5
      %v2678 = vsel %vm1586, %v2676, %v2677
      %v2679 = vrot.slane %v2555, 5
      %v2680 = vrot.slane %v2679, 4
      %v2681 = vrot.slane %v2556, 5
      %v2682 = vsel %vm1586, %v2680, %v2681
      %v2683 = vrot.slane %v2681, 4
      %v2684 = vrot.slane %v2557, 5
      %v2685 = vsel %vm1586, %v2683, %v2684
      %v2686 = vrot.slane %v2558, 5
      %v2687 = vrot.slane %v2686, 4
      %v2688 = vrot.slane %v2559, 5
      %v2689 = vsel %vm1586, %v2687, %v2688
      %v2690 = vrot.slane %v2688, 4
      %v2691 = vrot.slane %v2560, 5
      %v2692 = vsel %vm1586, %v2690, %v2691
      %v2693 = vrot.slane %v2561, 5
      %v2694 = vrot.slane %v2693, 4
      %v2695 = vrot.slane %v2562, 5
      %v2696 = vsel %vm1586, %v2694, %v2695
      %v2697 = vrot.slane %v2695, 4
      %v2698 = vrot.slane %v2563, 5
      %v2699 = vsel %vm1586, %v2697, %v2698
      %v2700 = vrot.slane %v2564, 5
      %v2701 = vrot.slane %v2700, 4
      %v2702 = vrot.slane %v2565, 5
      %v2703 = vsel %vm1586, %v2701, %v2702
      %v2704 = vrot.slane %v2702, 4
      %v2705 = vrot.slane %v2566, 5
      %v2706 = vsel %vm1586, %v2704, %v2705
      %v2707 = vrot.slane %v2567, 5
      %v2708 = vrot.slane %v2707, 4
      %v2709 = vrot.slane %v2568, 5
      %v2710 = vsel %vm1586, %v2708, %v2709
      %v2711 = vrot.slane %v2709, 4
      %v2712 = vrot.slane %v2569, 5
      %v2713 = vsel %vm1586, %v2711, %v2712
      %v2714 = vrot.slane %v2570, 5
      %v2715 = vrot.slane %v2714, 4
      %v2716 = vrot.slane %v2571, 5
      %v2717 = vsel %vm1586, %v2715, %v2716
      %v2718 = vrot.slane %v2716, 4
      %v2719 = vrot.slane %v2572, 5
      %v2720 = vsel %vm1586, %v2718, %v2719
      %v2721 = vrot.slane %v2573, 5
      %v2722 = vrot.slane %v2721, 4
      %v2723 = vrot.slane %v2574, 5
      %v2724 = vsel %vm1586, %v2722, %v2723
      %v2725 = vrot.slane %v2723, 4
      %v2726 = vrot.slane %v2575, 5
      %v2727 = vsel %vm1586, %v2725, %v2726
      %v2728 = vrot.slane %v2576, 5
      %v2729 = vrot.slane %v2728, 4
      %v2730 = vrot.slane %v2577, 5
      %v2731 = vsel %vm1586, %v2729, %v2730
      %v2732 = vrot.slane %v2730, 4
      %v2733 = vrot.slane %v2578, 5
      %v2734 = vsel %vm1586, %v2732, %v2733
      %v2735 = vrot.slane %v2579, 5
      %v2736 = vrot.slane %v2735, 4
      %v2737 = vrot.slane %v2580, 5
      %v2738 = vsel %vm1586, %v2736, %v2737
      %v2739 = vrot.slane %v2737, 4
      %v2740 = vrot.slane %v2581, 5
      %v2741 = vsel %vm1586, %v2739, %v2740
      %v2742 = vunpack.c.l.b16 %v2633
      %v2743 = vunpack.c.l.b16 %v2636
      %v2744 = vunpack.c.l.b16 %v2640
      %v2745 = vunpack.c.l.b16 %v2643
      %v2746 = vunpack.c.l.b16 %v2647
      %v2747 = vunpack.c.l.b16 %v2650
      %v2748 = vunpack.c.l.b16 %v2654
      %v2749 = vunpack.c.l.b16 %v2657
      %v2750 = vunpack.c.l.b16 %v2661
      %v2751 = vunpack.c.l.b16 %v2664
      %v2752 = vunpack.c.l.b16 %v2668
      %v2753 = vunpack.c.l.b16 %v2671
      %v2754 = vunpack.c.l.b16 %v2675
      %v2755 = vunpack.c.l.b16 %v2678
      %v2756 = vunpack.c.l.b16 %v2682
      %v2757 = vunpack.c.l.b16 %v2685
      %v2758 = vunpack.c.l.b16 %v2689
      %v2759 = vunpack.c.l.b16 %v2692
      %v2760 = vunpack.c.l.b16 %v2696
      %v2761 = vunpack.c.l.b16 %v2699
      %v2762 = vunpack.c.l.b16 %v2703
      %v2763 = vunpack.c.l.b16 %v2706
      %v2764 = vunpack.c.l.b16 %v2710
      %v2765 = vunpack.c.l.b16 %v2713
      %v2766 = vunpack.c.l.b16 %v2717
      %v2767 = vunpack.c.l.b16 %v2720
      %v2768 = vunpack.c.l.b16 %v2724
      %v2769 = vunpack.c.l.b16 %v2727
      %v2770 = vunpack.c.l.b16 %v2731
      %v2771 = vunpack.c.l.b16 %v2734
      %v2772 = vunpack.c.l.b16 %v2738
      %v2773 = vunpack.c.l.b16 %v2741
      %v2774 = vpack.c.b16 %v2743, %v2742
      %v2775 = vpack.c.b16 %v2745, %v2744
      %v2776 = vpack.c.b16 %v2747, %v2746
      %v2777 = vpack.c.b16 %v2749, %v2748
      %v2778 = vpack.c.b16 %v2751, %v2750
      %v2779 = vpack.c.b16 %v2753, %v2752
      %v2780 = vpack.c.b16 %v2755, %v2754
      %v2781 = vpack.c.b16 %v2757, %v2756
      %v2782 = vpack.c.b16 %v2759, %v2758
      %v2783 = vpack.c.b16 %v2761, %v2760
      %v2784 = vpack.c.b16 %v2763, %v2762
      %v2785 = vpack.c.b16 %v2765, %v2764
      %v2786 = vpack.c.b16 %v2767, %v2766
      %v2787 = vpack.c.b16 %v2769, %v2768
      %v2788 = vpack.c.b16 %v2771, %v2770
      %v2789 = vpack.c.b16 %v2773, %v2772
      %2790 = vrot.lane.b32.xlu0 %v2774, 15
      %v2791 = vpop.permute.xlu0 %2790
      %2792 = vrot.lane.b32.xlu0 %v2775, 15
      %v2793 = vpop.permute.xlu0 %2792
      %2794 = vrot.lane.b32.xlu0 %v2776, 15
      %v2795 = vpop.permute.xlu0 %2794
      %2796 = vrot.lane.b32.xlu0 %v2777, 15
      %v2797 = vpop.permute.xlu0 %2796
      %2798 = vrot.lane.b32.xlu0 %v2778, 15
      %v2799 = vpop.permute.xlu0 %2798
      %2800 = vrot.lane.b32.xlu0 %v2779, 15
      %v2801 = vpop.permute.xlu0 %2800
      %2802 = vrot.lane.b32.xlu0 %v2780, 15
      %v2803 = vpop.permute.xlu0 %2802
      %2804 = vrot.lane.b32.xlu0 %v2781, 15
      %v2805 = vpop.permute.xlu0 %2804
      %2806 = vrot.lane.b32.xlu0 %v2782, 15
      %v2807 = vpop.permute.xlu0 %2806
      %2808 = vrot.lane.b32.xlu0 %v2783, 15
      %v2809 = vpop.permute.xlu0 %2808
      %2810 = vrot.lane.b32.xlu0 %v2784, 15
      %v2811 = vpop.permute.xlu0 %2810
      %2812 = vrot.lane.b32.xlu0 %v2785, 15
      %v2813 = vpop.permute.xlu0 %2812
      %2814 = vrot.lane.b32.xlu0 %v2786, 15
      %v2815 = vpop.permute.xlu0 %2814
      %2816 = vrot.lane.b32.xlu0 %v2787, 15
      %v2817 = vpop.permute.xlu0 %2816
      %2818 = vrot.lane.b32.xlu0 %v2788, 15
      %v2819 = vpop.permute.xlu0 %2818
      %2820 = vrot.lane.b32.xlu0 %v2789, 15
      %v2821 = vpop.permute.xlu0 %2820
      %vm2838 = vcmask 146552
      %2839 = vst.msk [vmem:[#allocation3] sm:$0xff] %vm2838, %v2791
      %2840 = vst.msk [vmem:[#allocation3 + $0x8] sm:$0xff] %vm2838, %v2793
      %2841 = vst.msk [vmem:[#allocation3 + $0x10] sm:$0xff] %vm2838, %v2795
      %2842 = vst.msk [vmem:[#allocation3 + $0x18] sm:$0xff] %vm2838, %v2797
      %2843 = vst.msk [vmem:[#allocation3 + $0x20] sm:$0xff] %vm2838, %v2799
      %2844 = vst.msk [vmem:[#allocation3 + $0x28] sm:$0xff] %vm2838, %v2801
      %2845 = vst.msk [vmem:[#allocation3 + $0x30] sm:$0xff] %vm2838, %v2803
      %2846 = vst.msk [vmem:[#allocation3 + $0x38] sm:$0xff] %vm2838, %v2805
      %2847 = vst.msk [vmem:[#allocation3 + $0x40] sm:$0xff] %vm2838, %v2807
      %2848 = vst.msk [vmem:[#allocation3 + $0x48] sm:$0xff] %vm2838, %v2809
      %2849 = vst.msk [vmem:[#allocation3 + $0x50] sm:$0xff] %vm2838, %v2811
      %2850 = vst.msk [vmem:[#allocation3 + $0x58] sm:$0xff] %vm2838, %v2813
      %2851 = vst.msk [vmem:[#allocation3 + $0x60] sm:$0xff] %vm2838, %v2815
      %2852 = vst.msk [vmem:[#allocation3 + $0x68] sm:$0xff] %vm2838, %v2817
      %2853 = vst.msk [vmem:[#allocation3 + $0x70] sm:$0xff] %vm2838, %v2819
      %2854 = vst.msk [vmem:[#allocation3 + $0x78] sm:$0xff] %vm2838, %v2821
      %s2855 = scalar_lea.vmem [#allocation2], 24
      %v2856 = vld [vmem:[%s2855] sm:$0xf]
      %v2857 = vld [vmem:[%s2855 + $0x4] sm:$0xf]
      %v2858 = vld [vmem:[%s2855 + $0xc] sm:$0xf]
      %v2859 = vld [vmem:[%s2855 + $0x10] sm:$0xf]
      %v2860 = vld [vmem:[%s2855 + $0x18] sm:$0xf]
      %v2861 = vld [vmem:[%s2855 + $0x1c] sm:$0xf]
      %v2862 = vld [vmem:[%s2855 + $0x24] sm:$0xf]
      %v2863 = vld [vmem:[%s2855 + $0x28] sm:$0xf]
      %v2864 = vld [vmem:[%s2855 + $0x30] sm:$0xf]
      %v2865 = vld [vmem:[%s2855 + $0x34] sm:$0xf]
      %v2866 = vld [vmem:[%s2855 + $0x3c] sm:$0xf]
      %v2867 = vld [vmem:[%s2855 + $0x40] sm:$0xf]
      %v2868 = vld [vmem:[%s2855 + $0x48] sm:$0xf]
      %v2869 = vld [vmem:[%s2855 + $0x4c] sm:$0xf]
      %v2870 = vld [vmem:[%s2855 + $0x54] sm:$0xf]
      %v2871 = vld [vmem:[%s2855 + $0x58] sm:$0xf]
      %v2872 = vld [vmem:[%s2855 + $0x60] sm:$0xf]
      %v2873 = vld [vmem:[%s2855 + $0x64] sm:$0xf]
      %v2874 = vld [vmem:[%s2855 + $0x6c] sm:$0xf]
      %v2875 = vld [vmem:[%s2855 + $0x70] sm:$0xf]
      %v2876 = vld [vmem:[%s2855 + $0x78] sm:$0xf]
      %v2877 = vld [vmem:[%s2855 + $0x7c] sm:$0xf]
      %v2878 = vld [vmem:[%s2855 + $0x84] sm:$0xf]
      %v2879 = vld [vmem:[%s2855 + $0x88] sm:$0xf]
      %v2880 = vld [vmem:[%s2855 + $0x90] sm:$0xf]
      %v2881 = vld [vmem:[%s2855 + $0x94] sm:$0xf]
      %v2882 = vld [vmem:[%s2855 + $0x9c] sm:$0xf]
      %v2883 = vld [vmem:[%s2855 + $0xa0] sm:$0xf]
      %v2884 = vld [vmem:[%s2855 + $0xa8] sm:$0xf]
      %v2885 = vld [vmem:[%s2855 + $0xac] sm:$0xf]
      %v2886 = vld [vmem:[%s2855 + $0xb4] sm:$0xf]
      %v2887 = vld [vmem:[%s2855 + $0xb8] sm:$0xf]
      %v2920 = vunpack.c.l.b16 %v2856
      %v2921 = vunpack.c.l.b16 %v2857
      %v2922 = vunpack.c.l.b16 %v2858
      %v2923 = vunpack.c.l.b16 %v2859
      %v2924 = vunpack.c.l.b16 %v2860
      %v2925 = vunpack.c.l.b16 %v2861
      %v2926 = vunpack.c.l.b16 %v2862
      %v2927 = vunpack.c.l.b16 %v2863
      %v2928 = vunpack.c.l.b16 %v2864
      %v2929 = vunpack.c.l.b16 %v2865
      %v2930 = vunpack.c.l.b16 %v2866
      %v2931 = vunpack.c.l.b16 %v2867
      %v2932 = vunpack.c.l.b16 %v2868
      %v2933 = vunpack.c.l.b16 %v2869
      %v2934 = vunpack.c.l.b16 %v2870
      %v2935 = vunpack.c.l.b16 %v2871
      %v2936 = vunpack.c.l.b16 %v2872
      %v2937 = vunpack.c.l.b16 %v2873
      %v2938 = vunpack.c.l.b16 %v2874
      %v2939 = vunpack.c.l.b16 %v2875
      %v2940 = vunpack.c.l.b16 %v2876
      %v2941 = vunpack.c.l.b16 %v2877
      %v2942 = vunpack.c.l.b16 %v2878
      %v2943 = vunpack.c.l.b16 %v2879
      %v2944 = vunpack.c.l.b16 %v2880
      %v2945 = vunpack.c.l.b16 %v2881
      %v2946 = vunpack.c.l.b16 %v2882
      %v2947 = vunpack.c.l.b16 %v2883
      %v2948 = vunpack.c.l.b16 %v2884
      %v2949 = vunpack.c.l.b16 %v2885
      %v2950 = vunpack.c.l.b16 %v2886
      %v2951 = vunpack.c.l.b16 %v2887
      %v2952 = vpack.c.b16 %v2921, %v2920
      %v2953 = vpack.c.b16 %v2923, %v2922
      %v2954 = vpack.c.b16 %v2925, %v2924
      %v2955 = vpack.c.b16 %v2927, %v2926
      %v2956 = vpack.c.b16 %v2929, %v2928
      %v2957 = vpack.c.b16 %v2931, %v2930
      %v2958 = vpack.c.b16 %v2933, %v2932
      %v2959 = vpack.c.b16 %v2935, %v2934
      %v2960 = vpack.c.b16 %v2937, %v2936
      %v2961 = vpack.c.b16 %v2939, %v2938
      %v2962 = vpack.c.b16 %v2941, %v2940
      %v2963 = vpack.c.b16 %v2943, %v2942
      %v2964 = vpack.c.b16 %v2945, %v2944
      %v2965 = vpack.c.b16 %v2947, %v2946
      %v2966 = vpack.c.b16 %v2949, %v2948
      %v2967 = vpack.c.b16 %v2951, %v2950
      %2968 = vrot.lane.b32.xlu0 %v2952, 18
      %v2969 = vpop.permute.xlu0 %2968
      %2970 = vrot.lane.b32.xlu0 %v2953, 18
      %v2971 = vpop.permute.xlu0 %2970
      %2972 = vrot.lane.b32.xlu0 %v2954, 18
      %v2973 = vpop.permute.xlu0 %2972
      %2974 = vrot.lane.b32.xlu0 %v2955, 18
      %v2975 = vpop.permute.xlu0 %2974
      %2976 = vrot.lane.b32.xlu0 %v2956, 18
      %v2977 = vpop.permute.xlu0 %2976
      %2978 = vrot.lane.b32.xlu0 %v2957, 18
      %v2979 = vpop.permute.xlu0 %2978
      %2980 = vrot.lane.b32.xlu0 %v2958, 18
      %v2981 = vpop.permute.xlu0 %2980
      %2982 = vrot.lane.b32.xlu0 %v2959, 18
      %v2983 = vpop.permute.xlu0 %2982
      %2984 = vrot.lane.b32.xlu0 %v2960, 18
      %v2985 = vpop.permute.xlu0 %2984
      %2986 = vrot.lane.b32.xlu0 %v2961, 18
      %v2987 = vpop.permute.xlu0 %2986
      %2988 = vrot.lane.b32.xlu0 %v2962, 18
      %v2989 = vpop.permute.xlu0 %2988
      %2990 = vrot.lane.b32.xlu0 %v2963, 18
      %v2991 = vpop.permute.xlu0 %2990
      %2992 = vrot.lane.b32.xlu0 %v2964, 18
      %v2993 = vpop.permute.xlu0 %2992
      %2994 = vrot.lane.b32.xlu0 %v2965, 18
      %v2995 = vpop.permute.xlu0 %2994
      %2996 = vrot.lane.b32.xlu0 %v2966, 18
      %v2997 = vpop.permute.xlu0 %2996
      %2998 = vrot.lane.b32.xlu0 %v2967, 18
      %v2999 = vpop.permute.xlu0 %2998
      %vm3016 = vcmask 171152
      %3017 = vst.msk [vmem:[#allocation3] sm:$0xff] %vm3016, %v2969
      %3018 = vst.msk [vmem:[#allocation3 + $0x8] sm:$0xff] %vm3016, %v2971
      %3019 = vst.msk [vmem:[#allocation3 + $0x10] sm:$0xff] %vm3016, %v2973
      %3020 = vst.msk [vmem:[#allocation3 + $0x18] sm:$0xff] %vm3016, %v2975
      %3021 = vst.msk [vmem:[#allocation3 + $0x20] sm:$0xff] %vm3016, %v2977
      %3022 = vst.msk [vmem:[#allocation3 + $0x28] sm:$0xff] %vm3016, %v2979
      %3023 = vst.msk [vmem:[#allocation3 + $0x30] sm:$0xff] %vm3016, %v2981
      %3024 = vst.msk [vmem:[#allocation3 + $0x38] sm:$0xff] %vm3016, %v2983
      %3025 = vst.msk [vmem:[#allocation3 + $0x40] sm:$0xff] %vm3016, %v2985
      %3026 = vst.msk [vmem:[#allocation3 + $0x48] sm:$0xff] %vm3016, %v2987
      %3027 = vst.msk [vmem:[#allocation3 + $0x50] sm:$0xff] %vm3016, %v2989
      %3028 = vst.msk [vmem:[#allocation3 + $0x58] sm:$0xff] %vm3016, %v2991
      %3029 = vst.msk [vmem:[#allocation3 + $0x60] sm:$0xff] %vm3016, %v2993
      %3030 = vst.msk [vmem:[#allocation3 + $0x68] sm:$0xff] %vm3016, %v2995
      %3031 = vst.msk [vmem:[#allocation3 + $0x70] sm:$0xff] %vm3016, %v2997
      %3032 = vst.msk [vmem:[#allocation3 + $0x78] sm:$0xff] %vm3016, %v2999
      %v3033 = vld [vmem:[%s2855] sm:$0xf]
      %v3034 = vld [vmem:[%s2855 + $0x4] sm:$0xf]
      %v3035 = vld [vmem:[%s2855 + $0x8] sm:$0x1]
      %v3036 = vld [vmem:[%s2855 + $0xc] sm:$0xf]
      %v3037 = vld [vmem:[%s2855 + $0x10] sm:$0xf]
      %v3038 = vld [vmem:[%s2855 + $0x14] sm:$0x1]
      %v3039 = vld [vmem:[%s2855 + $0x18] sm:$0xf]
      %v3040 = vld [vmem:[%s2855 + $0x1c] sm:$0xf]
      %v3041 = vld [vmem:[%s2855 + $0x20] sm:$0x1]
      %v3042 = vld [vmem:[%s2855 + $0x24] sm:$0xf]
      %v3043 = vld [vmem:[%s2855 + $0x28] sm:$0xf]
      %v3044 = vld [vmem:[%s2855 + $0x2c] sm:$0x1]
      %v3045 = vld [vmem:[%s2855 + $0x30] sm:$0xf]
      %v3046 = vld [vmem:[%s2855 + $0x34] sm:$0xf]
      %v3047 = vld [vmem:[%s2855 + $0x38] sm:$0x1]
      %v3048 = vld [vmem:[%s2855 + $0x3c] sm:$0xf]
      %v3049 = vld [vmem:[%s2855 + $0x40] sm:$0xf]
      %v3050 = vld [vmem:[%s2855 + $0x44] sm:$0x1]
      %v3051 = vld [vmem:[%s2855 + $0x48] sm:$0xf]
      %v3052 = vld [vmem:[%s2855 + $0x4c] sm:$0xf]
      %v3053 = vld [vmem:[%s2855 + $0x50] sm:$0x1]
      %v3054 = vld [vmem:[%s2855 + $0x54] sm:$0xf]
      %v3055 = vld [vmem:[%s2855 + $0x58] sm:$0xf]
      %v3056 = vld [vmem:[%s2855 + $0x5c] sm:$0x1]
      %v3057 = vld [vmem:[%s2855 + $0x60] sm:$0xf]
      %v3058 = vld [vmem:[%s2855 + $0x64] sm:$0xf]
      %v3059 = vld [vmem:[%s2855 + $0x68] sm:$0x1]
      %v3060 = vld [vmem:[%s2855 + $0x6c] sm:$0xf]
      %v3061 = vld [vmem:[%s2855 + $0x70] sm:$0xf]
      %v3062 = vld [vmem:[%s2855 + $0x74] sm:$0x1]
      %v3063 = vld [vmem:[%s2855 + $0x78] sm:$0xf]
      %v3064 = vld [vmem:[%s2855 + $0x7c] sm:$0xf]
      %v3065 = vld [vmem:[%s2855 + $0x80] sm:$0x1]
      %v3066 = vld [vmem:[%s2855 + $0x84] sm:$0xf]
      %v3067 = vld [vmem:[%s2855 + $0x88] sm:$0xf]
      %v3068 = vld [vmem:[%s2855 + $0x8c] sm:$0x1]
      %v3069 = vld [vmem:[%s2855 + $0x90] sm:$0xf]
      %v3070 = vld [vmem:[%s2855 + $0x94] sm:$0xf]
      %v3071 = vld [vmem:[%s2855 + $0x98] sm:$0x1]
      %v3072 = vld [vmem:[%s2855 + $0x9c] sm:$0xf]
      %v3073 = vld [vmem:[%s2855 + $0xa0] sm:$0xf]
      %v3074 = vld [vmem:[%s2855 + $0xa4] sm:$0x1]
      %v3075 = vld [vmem:[%s2855 + $0xa8] sm:$0xf]
      %v3076 = vld [vmem:[%s2855 + $0xac] sm:$0xf]
      %v3077 = vld [vmem:[%s2855 + $0xb0] sm:$0x1]
      %v3078 = vld [vmem:[%s2855 + $0xb4] sm:$0xf]
      %v3079 = vld [vmem:[%s2855 + $0xb8] sm:$0xf]
      %v3080 = vld [vmem:[%s2855 + $0xbc] sm:$0x1]
      %v3082 = vshrl.u32 %v3033, 16
      %v3084 = vrot.slane %v3082, 4
      %v3085 = vshll.u32 %v3033, 16
      %v3087 = vrot.slane %v3085, 5
      %v3088 = vor.u32 %v3084, %v3087
      %v3089 = vrot.slane %v3088, 4
      %v3091 = vshll.u32 %v3034, 16
      %v3093 = vrot.slane %v3091, 5
      %v3094 = vsel %vm990, %v3089, %v3093
      %v3095 = vshrl.u32 %v3034, 16
      %v3097 = vrot.slane %v3095, 4
      %v3098 = vor.u32 %v3097, %v3093
      %v3099 = vrot.slane %v3098, 4
      %v3101 = vshll.u32 %v3035, 16
      %v3103 = vrot.slane %v3101, 5
      %v3104 = vsel %vm990, %v3099, %v3103
      %v3106 = vshrl.u32 %v3036, 16
      %v3108 = vrot.slane %v3106, 4
      %v3109 = vshll.u32 %v3036, 16
      %v3111 = vrot.slane %v3109, 5
      %v3112 = vor.u32 %v3108, %v3111
      %v3113 = vrot.slane %v3112, 4
      %v3115 = vshll.u32 %v3037, 16
      %v3117 = vrot.slane %v3115, 5
      %v3118 = vsel %vm990, %v3113, %v3117
      %v3119 = vshrl.u32 %v3037, 16
      %v3121 = vrot.slane %v3119, 4
      %v3122 = vor.u32 %v3121, %v3117
      %v3123 = vrot.slane %v3122, 4
      %v3125 = vshll.u32 %v3038, 16
      %v3127 = vrot.slane %v3125, 5
      %v3128 = vsel %vm990, %v3123, %v3127
      %v3130 = vshrl.u32 %v3039, 16
      %v3132 = vrot.slane %v3130, 4
      %v3133 = vshll.u32 %v3039, 16
      %v3135 = vrot.slane %v3133, 5
      %v3136 = vor.u32 %v3132, %v3135
      %v3137 = vrot.slane %v3136, 4
      %v3139 = vshll.u32 %v3040, 16
      %v3141 = vrot.slane %v3139, 5
      %v3142 = vsel %vm990, %v3137, %v3141
      %v3143 = vshrl.u32 %v3040, 16
      %v3145 = vrot.slane %v3143, 4
      %v3146 = vor.u32 %v3145, %v3141
      %v3147 = vrot.slane %v3146, 4
      %v3149 = vshll.u32 %v3041, 16
      %v3151 = vrot.slane %v3149, 5
      %v3152 = vsel %vm990, %v3147, %v3151
      %v3154 = vshrl.u32 %v3042, 16
      %v3156 = vrot.slane %v3154, 4
      %v3157 = vshll.u32 %v3042, 16
      %v3159 = vrot.slane %v3157, 5
      %v3160 = vor.u32 %v3156, %v3159
      %v3161 = vrot.slane %v3160, 4
      %v3163 = vshll.u32 %v3043, 16
      %v3165 = vrot.slane %v3163, 5
      %v3166 = vsel %vm990, %v3161, %v3165
      %v3167 = vshrl.u32 %v3043, 16
      %v3169 = vrot.slane %v3167, 4
      %v3170 = vor.u32 %v3169, %v3165
      %v3171 = vrot.slane %v3170, 4
      %v3173 = vshll.u32 %v3044, 16
      %v3175 = vrot.slane %v3173, 5
      %v3176 = vsel %vm990, %v3171, %v3175
      %v3178 = vshrl.u32 %v3045, 16
      %v3180 = vrot.slane %v3178, 4
      %v3181 = vshll.u32 %v3045, 16
      %v3183 = vrot.slane %v3181, 5
      %v3184 = vor.u32 %v3180, %v3183
      %v3185 = vrot.slane %v3184, 4
      %v3187 = vshll.u32 %v3046, 16
      %v3189 = vrot.slane %v3187, 5
      %v3190 = vsel %vm990, %v3185, %v3189
      %v3191 = vshrl.u32 %v3046, 16
      %v3193 = vrot.slane %v3191, 4
      %v3194 = vor.u32 %v3193, %v3189
      %v3195 = vrot.slane %v3194, 4
      %v3197 = vshll.u32 %v3047, 16
      %v3199 = vrot.slane %v3197, 5
      %v3200 = vsel %vm990, %v3195, %v3199
      %v3202 = vshrl.u32 %v3048, 16
      %v3204 = vrot.slane %v3202, 4
      %v3205 = vshll.u32 %v3048, 16
      %v3207 = vrot.slane %v3205, 5
      %v3208 = vor.u32 %v3204, %v3207
      %v3209 = vrot.slane %v3208, 4
      %v3211 = vshll.u32 %v3049, 16
      %v3213 = vrot.slane %v3211, 5
      %v3214 = vsel %vm990, %v3209, %v3213
      %v3215 = vshrl.u32 %v3049, 16
      %v3217 = vrot.slane %v3215, 4
      %v3218 = vor.u32 %v3217, %v3213
      %v3219 = vrot.slane %v3218, 4
      %v3221 = vshll.u32 %v3050, 16
      %v3223 = vrot.slane %v3221, 5
      %v3224 = vsel %vm990, %v3219, %v3223
      %v3226 = vshrl.u32 %v3051, 16
      %v3228 = vrot.slane %v3226, 4
      %v3229 = vshll.u32 %v3051, 16
      %v3231 = vrot.slane %v3229, 5
      %v3232 = vor.u32 %v3228, %v3231
      %v3233 = vrot.slane %v3232, 4
      %v3235 = vshll.u32 %v3052, 16
      %v3237 = vrot.slane %v3235, 5
      %v3238 = vsel %vm990, %v3233, %v3237
      %v3239 = vshrl.u32 %v3052, 16
      %v3241 = vrot.slane %v3239, 4
      %v3242 = vor.u32 %v3241, %v3237
      %v3243 = vrot.slane %v3242, 4
      %v3245 = vshll.u32 %v3053, 16
      %v3247 = vrot.slane %v3245, 5
      %v3248 = vsel %vm990, %v3243, %v3247
      %v3250 = vshrl.u32 %v3054, 16
      %v3252 = vrot.slane %v3250, 4
      %v3253 = vshll.u32 %v3054, 16
      %v3255 = vrot.slane %v3253, 5
      %v3256 = vor.u32 %v3252, %v3255
      %v3257 = vrot.slane %v3256, 4
      %v3259 = vshll.u32 %v3055, 16
      %v3261 = vrot.slane %v3259, 5
      %v3262 = vsel %vm990, %v3257, %v3261
      %v3263 = vshrl.u32 %v3055, 16
      %v3265 = vrot.slane %v3263, 4
      %v3266 = vor.u32 %v3265, %v3261
      %v3267 = vrot.slane %v3266, 4
      %v3269 = vshll.u32 %v3056, 16
      %v3271 = vrot.slane %v3269, 5
      %v3272 = vsel %vm990, %v3267, %v3271
      %v3274 = vshrl.u32 %v3057, 16
      %v3276 = vrot.slane %v3274, 4
      %v3277 = vshll.u32 %v3057, 16
      %v3279 = vrot.slane %v3277, 5
      %v3280 = vor.u32 %v3276, %v3279
      %v3281 = vrot.slane %v3280, 4
      %v3283 = vshll.u32 %v3058, 16
      %v3285 = vrot.slane %v3283, 5
      %v3286 = vsel %vm990, %v3281, %v3285
      %v3287 = vshrl.u32 %v3058, 16
      %v3289 = vrot.slane %v3287, 4
      %v3290 = vor.u32 %v3289, %v3285
      %v3291 = vrot.slane %v3290, 4
      %v3293 = vshll.u32 %v3059, 16
      %v3295 = vrot.slane %v3293, 5
      %v3296 = vsel %vm990, %v3291, %v3295
      %v3298 = vshrl.u32 %v3060, 16
      %v3300 = vrot.slane %v3298, 4
      %v3301 = vshll.u32 %v3060, 16
      %v3303 = vrot.slane %v3301, 5
      %v3304 = vor.u32 %v3300, %v3303
      %v3305 = vrot.slane %v3304, 4
      %v3307 = vshll.u32 %v3061, 16
      %v3309 = vrot.slane %v3307, 5
      %v3310 = vsel %vm990, %v3305, %v3309
      %v3311 = vshrl.u32 %v3061, 16
      %v3313 = vrot.slane %v3311, 4
      %v3314 = vor.u32 %v3313, %v3309
      %v3315 = vrot.slane %v3314, 4
      %v3317 = vshll.u32 %v3062, 16
      %v3319 = vrot.slane %v3317, 5
      %v3320 = vsel %vm990, %v3315, %v3319
      %v3322 = vshrl.u32 %v3063, 16
      %v3324 = vrot.slane %v3322, 4
      %v3325 = vshll.u32 %v3063, 16
      %v3327 = vrot.slane %v3325, 5
      %v3328 = vor.u32 %v3324, %v3327
      %v3329 = vrot.slane %v3328, 4
      %v3331 = vshll.u32 %v3064, 16
      %v3333 = vrot.slane %v3331, 5
      %v3334 = vsel %vm990, %v3329, %v3333
      %v3335 = vshrl.u32 %v3064, 16
      %v3337 = vrot.slane %v3335, 4
      %v3338 = vor.u32 %v3337, %v3333
      %v3339 = vrot.slane %v3338, 4
      %v3341 = vshll.u32 %v3065, 16
      %v3343 = vrot.slane %v3341, 5
      %v3344 = vsel %vm990, %v3339, %v3343
      %v3346 = vshrl.u32 %v3066, 16
      %v3348 = vrot.slane %v3346, 4
      %v3349 = vshll.u32 %v3066, 16
      %v3351 = vrot.slane %v3349, 5
      %v3352 = vor.u32 %v3348, %v3351
      %v3353 = vrot.slane %v3352, 4
      %v3355 = vshll.u32 %v3067, 16
      %v3357 = vrot.slane %v3355, 5
      %v3358 = vsel %vm990, %v3353, %v3357
      %v3359 = vshrl.u32 %v3067, 16
      %v3361 = vrot.slane %v3359, 4
      %v3362 = vor.u32 %v3361, %v3357
      %v3363 = vrot.slane %v3362, 4
      %v3365 = vshll.u32 %v3068, 16
      %v3367 = vrot.slane %v3365, 5
      %v3368 = vsel %vm990, %v3363, %v3367
      %v3370 = vshrl.u32 %v3069, 16
      %v3372 = vrot.slane %v3370, 4
      %v3373 = vshll.u32 %v3069, 16
      %v3375 = vrot.slane %v3373, 5
      %v3376 = vor.u32 %v3372, %v3375
      %v3377 = vrot.slane %v3376, 4
      %v3379 = vshll.u32 %v3070, 16
      %v3381 = vrot.slane %v3379, 5
      %v3382 = vsel %vm990, %v3377, %v3381
      %v3383 = vshrl.u32 %v3070, 16
      %v3385 = vrot.slane %v3383, 4
      %v3386 = vor.u32 %v3385, %v3381
      %v3387 = vrot.slane %v3386, 4
      %v3389 = vshll.u32 %v3071, 16
      %v3391 = vrot.slane %v3389, 5
      %v3392 = vsel %vm990, %v3387, %v3391
      %v3394 = vshrl.u32 %v3072, 16
      %v3396 = vrot.slane %v3394, 4
      %v3397 = vshll.u32 %v3072, 16
      %v3399 = vrot.slane %v3397, 5
      %v3400 = vor.u32 %v3396, %v3399
      %v3401 = vrot.slane %v3400, 4
      %v3403 = vshll.u32 %v3073, 16
      %v3405 = vrot.slane %v3403, 5
      %v3406 = vsel %vm990, %v3401, %v3405
      %v3407 = vshrl.u32 %v3073, 16
      %v3409 = vrot.slane %v3407, 4
      %v3410 = vor.u32 %v3409, %v3405
      %v3411 = vrot.slane %v3410, 4
      %v3413 = vshll.u32 %v3074, 16
      %v3415 = vrot.slane %v3413, 5
      %v3416 = vsel %vm990, %v3411, %v3415
      %v3418 = vshrl.u32 %v3075, 16
      %v3420 = vrot.slane %v3418, 4
      %v3421 = vshll.u32 %v3075, 16
      %v3423 = vrot.slane %v3421, 5
      %v3424 = vor.u32 %v3420, %v3423
      %v3425 = vrot.slane %v3424, 4
      %v3427 = vshll.u32 %v3076, 16
      %v3429 = vrot.slane %v3427, 5
      %v3430 = vsel %vm990, %v3425, %v3429
      %v3431 = vshrl.u32 %v3076, 16
      %v3433 = vrot.slane %v3431, 4
      %v3434 = vor.u32 %v3433, %v3429
      %v3435 = vrot.slane %v3434, 4
      %v3437 = vshll.u32 %v3077, 16
      %v3439 = vrot.slane %v3437, 5
      %v3440 = vsel %vm990, %v3435, %v3439
      %v3442 = vshrl.u32 %v3078, 16
      %v3444 = vrot.slane %v3442, 4
      %v3445 = vshll.u32 %v3078, 16
      %v3447 = vrot.slane %v3445, 5
      %v3448 = vor.u32 %v3444, %v3447
      %v3449 = vrot.slane %v3448, 4
      %v3451 = vshll.u32 %v3079, 16
      %v3453 = vrot.slane %v3451, 5
      %v3454 = vsel %vm990, %v3449, %v3453
      %v3455 = vshrl.u32 %v3079, 16
      %v3457 = vrot.slane %v3455, 4
      %v3458 = vor.u32 %v3457, %v3453
      %v3459 = vrot.slane %v3458, 4
      %v3461 = vshll.u32 %v3080, 16
      %v3463 = vrot.slane %v3461, 5
      %v3464 = vsel %vm990, %v3459, %v3463
      %v3465 = vunpack.c.l.b16 %v3094
      %v3466 = vunpack.c.l.b16 %v3104
      %v3467 = vunpack.c.l.b16 %v3118
      %v3468 = vunpack.c.l.b16 %v3128
      %v3469 = vunpack.c.l.b16 %v3142
      %v3470 = vunpack.c.l.b16 %v3152
      %v3471 = vunpack.c.l.b16 %v3166
      %v3472 = vunpack.c.l.b16 %v3176
      %v3473 = vunpack.c.l.b16 %v3190
      %v3474 = vunpack.c.l.b16 %v3200
      %v3475 = vunpack.c.l.b16 %v3214
      %v3476 = vunpack.c.l.b16 %v3224
      %v3477 = vunpack.c.l.b16 %v3238
      %v3478 = vunpack.c.l.b16 %v3248
      %v3479 = vunpack.c.l.b16 %v3262
      %v3480 = vunpack.c.l.b16 %v3272
      %v3481 = vunpack.c.l.b16 %v3286
      %v3482 = vunpack.c.l.b16 %v3296
      %v3483 = vunpack.c.l.b16 %v3310
      %v3484 = vunpack.c.l.b16 %v3320
      %v3485 = vunpack.c.l.b16 %v3334
      %v3486 = vunpack.c.l.b16 %v3344
      %v3487 = vunpack.c.l.b16 %v3358
      %v3488 = vunpack.c.l.b16 %v3368
      %v3489 = vunpack.c.l.b16 %v3382
      %v3490 = vunpack.c.l.b16 %v3392
      %v3491 = vunpack.c.l.b16 %v3406
      %v3492 = vunpack.c.l.b16 %v3416
      %v3493 = vunpack.c.l.b16 %v3430
      %v3494 = vunpack.c.l.b16 %v3440
      %v3495 = vunpack.c.l.b16 %v3454
      %v3496 = vunpack.c.l.b16 %v3464
      %v3497 = vpack.c.b16 %v3466, %v3465
      %v3498 = vpack.c.b16 %v3468, %v3467
      %v3499 = vpack.c.b16 %v3470, %v3469
      %v3500 = vpack.c.b16 %v3472, %v3471
      %v3501 = vpack.c.b16 %v3474, %v3473
      %v3502 = vpack.c.b16 %v3476, %v3475
      %v3503 = vpack.c.b16 %v3478, %v3477
      %v3504 = vpack.c.b16 %v3480, %v3479
      %v3505 = vpack.c.b16 %v3482, %v3481
      %v3506 = vpack.c.b16 %v3484, %v3483
      %v3507 = vpack.c.b16 %v3486, %v3485
      %v3508 = vpack.c.b16 %v3488, %v3487
      %v3509 = vpack.c.b16 %v3490, %v3489
      %v3510 = vpack.c.b16 %v3492, %v3491
      %v3511 = vpack.c.b16 %v3494, %v3493
      %v3512 = vpack.c.b16 %v3496, %v3495
      %3513 = vrot.lane.b32.xlu0 %v3497, 21
      %v3514 = vpop.permute.xlu0 %3513
      %3515 = vrot.lane.b32.xlu0 %v3498, 21
      %v3516 = vpop.permute.xlu0 %3515
      %3517 = vrot.lane.b32.xlu0 %v3499, 21
      %v3518 = vpop.permute.xlu0 %3517
      %3519 = vrot.lane.b32.xlu0 %v3500, 21
      %v3520 = vpop.permute.xlu0 %3519
      %3521 = vrot.lane.b32.xlu0 %v3501, 21
      %v3522 = vpop.permute.xlu0 %3521
      %3523 = vrot.lane.b32.xlu0 %v3502, 21
      %v3524 = vpop.permute.xlu0 %3523
      %3525 = vrot.lane.b32.xlu0 %v3503, 21
      %v3526 = vpop.permute.xlu0 %3525
      %3527 = vrot.lane.b32.xlu0 %v3504, 21
      %v3528 = vpop.permute.xlu0 %3527
      %3529 = vrot.lane.b32.xlu0 %v3505, 21
      %v3530 = vpop.permute.xlu0 %3529
      %3531 = vrot.lane.b32.xlu0 %v3506, 21
      %v3532 = vpop.permute.xlu0 %3531
      %3533 = vrot.lane.b32.xlu0 %v3507, 21
      %v3534 = vpop.permute.xlu0 %3533
      %3535 = vrot.lane.b32.xlu0 %v3508, 21
      %v3536 = vpop.permute.xlu0 %3535
      %3537 = vrot.lane.b32.xlu0 %v3509, 21
      %v3538 = vpop.permute.xlu0 %3537
      %3539 = vrot.lane.b32.xlu0 %v3510, 21
      %v3540 = vpop.permute.xlu0 %3539
      %3541 = vrot.lane.b32.xlu0 %v3511, 21
      %v3542 = vpop.permute.xlu0 %3541
      %3543 = vrot.lane.b32.xlu0 %v3512, 21
      %v3544 = vpop.permute.xlu0 %3543
      %vm3561 = vcmask 195752
      %3562 = vst.msk [vmem:[#allocation3] sm:$0xff] %vm3561, %v3514
      %3563 = vst.msk [vmem:[#allocation3 + $0x8] sm:$0xff] %vm3561, %v3516
      %3564 = vst.msk [vmem:[#allocation3 + $0x10] sm:$0xff] %vm3561, %v3518
      %3565 = vst.msk [vmem:[#allocation3 + $0x18] sm:$0xff] %vm3561, %v3520
      %3566 = vst.msk [vmem:[#allocation3 + $0x20] sm:$0xff] %vm3561, %v3522
      %3567 = vst.msk [vmem:[#allocation3 + $0x28] sm:$0xff] %vm3561, %v3524
      %3568 = vst.msk [vmem:[#allocation3 + $0x30] sm:$0xff] %vm3561, %v3526
      %3569 = vst.msk [vmem:[#allocation3 + $0x38] sm:$0xff] %vm3561, %v3528
      %3570 = vst.msk [vmem:[#allocation3 + $0x40] sm:$0xff] %vm3561, %v3530
      %3571 = vst.msk [vmem:[#allocation3 + $0x48] sm:$0xff] %vm3561, %v3532
      %3572 = vst.msk [vmem:[#allocation3 + $0x50] sm:$0xff] %vm3561, %v3534
      %3573 = vst.msk [vmem:[#allocation3 + $0x58] sm:$0xff] %vm3561, %v3536
      %3574 = vst.msk [vmem:[#allocation3 + $0x60] sm:$0xff] %vm3561, %v3538
      %3575 = vst.msk [vmem:[#allocation3 + $0x68] sm:$0xff] %vm3561, %v3540
      %3576 = vst.msk [vmem:[#allocation3 + $0x70] sm:$0xff] %vm3561, %v3542
      %3577 = vst.msk [vmem:[#allocation3 + $0x78] sm:$0xff] %vm3561, %v3544
      %v3578 = vld [vmem:[%s2855] sm:$0xe]
      %v3579 = vld [vmem:[%s2855 + $0x4] sm:$0xf]
      %v3580 = vld [vmem:[%s2855 + $0x8] sm:$0x1]
      %v3581 = vld [vmem:[%s2855 + $0xc] sm:$0xe]
      %v3582 = vld [vmem:[%s2855 + $0x10] sm:$0xf]
      %v3583 = vld [vmem:[%s2855 + $0x14] sm:$0x1]
      %v3584 = vld [vmem:[%s2855 + $0x18] sm:$0xe]
      %v3585 = vld [vmem:[%s2855 + $0x1c] sm:$0xf]
      %v3586 = vld [vmem:[%s2855 + $0x20] sm:$0x1]
      %v3587 = vld [vmem:[%s2855 + $0x24] sm:$0xe]
      %v3588 = vld [vmem:[%s2855 + $0x28] sm:$0xf]
      %v3589 = vld [vmem:[%s2855 + $0x2c] sm:$0x1]
      %v3590 = vld [vmem:[%s2855 + $0x30] sm:$0xe]
      %v3591 = vld [vmem:[%s2855 + $0x34] sm:$0xf]
      %v3592 = vld [vmem:[%s2855 + $0x38] sm:$0x1]
      %v3593 = vld [vmem:[%s2855 + $0x3c] sm:$0xe]
      %v3594 = vld [vmem:[%s2855 + $0x40] sm:$0xf]
      %v3595 = vld [vmem:[%s2855 + $0x44] sm:$0x1]
      %v3596 = vld [vmem:[%s2855 + $0x48] sm:$0xe]
      %v3597 = vld [vmem:[%s2855 + $0x4c] sm:$0xf]
      %v3598 = vld [vmem:[%s2855 + $0x50] sm:$0x1]
      %v3599 = vld [vmem:[%s2855 + $0x54] sm:$0xe]
      %v3600 = vld [vmem:[%s2855 + $0x58] sm:$0xf]
      %v3601 = vld [vmem:[%s2855 + $0x5c] sm:$0x1]
      %v3602 = vld [vmem:[%s2855 + $0x60] sm:$0xe]
      %v3603 = vld [vmem:[%s2855 + $0x64] sm:$0xf]
      %v3604 = vld [vmem:[%s2855 + $0x68] sm:$0x1]
      %v3605 = vld [vmem:[%s2855 + $0x6c] sm:$0xe]
      %v3606 = vld [vmem:[%s2855 + $0x70] sm:$0xf]
      %v3607 = vld [vmem:[%s2855 + $0x74] sm:$0x1]
      %v3608 = vld [vmem:[%s2855 + $0x78] sm:$0xe]
      %v3609 = vld [vmem:[%s2855 + $0x7c] sm:$0xf]
      %v3610 = vld [vmem:[%s2855 + $0x80] sm:$0x1]
      %v3611 = vld [vmem:[%s2855 + $0x84] sm:$0xe]
      %v3612 = vld [vmem:[%s2855 + $0x88] sm:$0xf]
      %v3613 = vld [vmem:[%s2855 + $0x8c] sm:$0x1]
      %v3614 = vld [vmem:[%s2855 + $0x90] sm:$0xe]
      %v3615 = vld [vmem:[%s2855 + $0x94] sm:$0xf]
      %v3616 = vld [vmem:[%s2855 + $0x98] sm:$0x1]
      %v3617 = vld [vmem:[%s2855 + $0x9c] sm:$0xe]
      %v3618 = vld [vmem:[%s2855 + $0xa0] sm:$0xf]
      %v3619 = vld [vmem:[%s2855 + $0xa4] sm:$0x1]
      %v3620 = vld [vmem:[%s2855 + $0xa8] sm:$0xe]
      %v3621 = vld [vmem:[%s2855 + $0xac] sm:$0xf]
      %v3622 = vld [vmem:[%s2855 + $0xb0] sm:$0x1]
      %v3623 = vld [vmem:[%s2855 + $0xb4] sm:$0xe]
      %v3624 = vld [vmem:[%s2855 + $0xb8] sm:$0xf]
      %v3625 = vld [vmem:[%s2855 + $0xbc] sm:$0x1]
      %v3674 = vrot.slane %v3578, 5
      %v3675 = vrot.slane %v3674, 4
      %v3676 = vrot.slane %v3579, 5
      %v3677 = vsel %vm1586, %v3675, %v3676
      %v3678 = vrot.slane %v3676, 4
      %v3679 = vrot.slane %v3580, 5
      %v3680 = vsel %vm1586, %v3678, %v3679
      %v3681 = vrot.slane %v3581, 5
      %v3682 = vrot.slane %v3681, 4
      %v3683 = vrot.slane %v3582, 5
      %v3684 = vsel %vm1586, %v3682, %v3683
      %v3685 = vrot.slane %v3683, 4
      %v3686 = vrot.slane %v3583, 5
      %v3687 = vsel %vm1586, %v3685, %v3686
      %v3688 = vrot.slane %v3584, 5
      %v3689 = vrot.slane %v3688, 4
      %v3690 = vrot.slane %v3585, 5
      %v3691 = vsel %vm1586, %v3689, %v3690
      %v3692 = vrot.slane %v3690, 4
      %v3693 = vrot.slane %v3586, 5
      %v3694 = vsel %vm1586, %v3692, %v3693
      %v3695 = vrot.slane %v3587, 5
      %v3696 = vrot.slane %v3695, 4
      %v3697 = vrot.slane %v3588, 5
      %v3698 = vsel %vm1586, %v3696, %v3697
      %v3699 = vrot.slane %v3697, 4
      %v3700 = vrot.slane %v3589, 5
      %v3701 = vsel %vm1586, %v3699, %v3700
      %v3702 = vrot.slane %v3590, 5
      %v3703 = vrot.slane %v3702, 4
      %v3704 = vrot.slane %v3591, 5
      %v3705 = vsel %vm1586, %v3703, %v3704
      %v3706 = vrot.slane %v3704, 4
      %v3707 = vrot.slane %v3592, 5
      %v3708 = vsel %vm1586, %v3706, %v3707
      %v3709 = vrot.slane %v3593, 5
      %v3710 = vrot.slane %v3709, 4
      %v3711 = vrot.slane %v3594, 5
      %v3712 = vsel %vm1586, %v3710, %v3711
      %v3713 = vrot.slane %v3711, 4
      %v3714 = vrot.slane %v3595, 5
      %v3715 = vsel %vm1586, %v3713, %v3714
      %v3716 = vrot.slane %v3596, 5
      %v3717 = vrot.slane %v3716, 4
      %v3718 = vrot.slane %v3597, 5
      %v3719 = vsel %vm1586, %v3717, %v3718
      %v3720 = vrot.slane %v3718, 4
      %v3721 = vrot.slane %v3598, 5
      %v3722 = vsel %vm1586, %v3720, %v3721
      %v3723 = vrot.slane %v3599, 5
      %v3724 = vrot.slane %v3723, 4
      %v3725 = vrot.slane %v3600, 5
      %v3726 = vsel %vm1586, %v3724, %v3725
      %v3727 = vrot.slane %v3725, 4
      %v3728 = vrot.slane %v3601, 5
      %v3729 = vsel %vm1586, %v3727, %v3728
      %v3730 = vrot.slane %v3602, 5
      %v3731 = vrot.slane %v3730, 4
      %v3732 = vrot.slane %v3603, 5
      %v3733 = vsel %vm1586, %v3731, %v3732
      %v3734 = vrot.slane %v3732, 4
      %v3735 = vrot.slane %v3604, 5
      %v3736 = vsel %vm1586, %v3734, %v3735
      %v3737 = vrot.slane %v3605, 5
      %v3738 = vrot.slane %v3737, 4
      %v3739 = vrot.slane %v3606, 5
      %v3740 = vsel %vm1586, %v3738, %v3739
      %v3741 = vrot.slane %v3739, 4
      %v3742 = vrot.slane %v3607, 5
      %v3743 = vsel %vm1586, %v3741, %v3742
      %v3744 = vrot.slane %v3608, 5
      %v3745 = vrot.slane %v3744, 4
      %v3746 = vrot.slane %v3609, 5
      %v3747 = vsel %vm1586, %v3745, %v3746
      %v3748 = vrot.slane %v3746, 4
      %v3749 = vrot.slane %v3610, 5
      %v3750 = vsel %vm1586, %v3748, %v3749
      %v3751 = vrot.slane %v3611, 5
      %v3752 = vrot.slane %v3751, 4
      %v3753 = vrot.slane %v3612, 5
      %v3754 = vsel %vm1586, %v3752, %v3753
      %v3755 = vrot.slane %v3753, 4
      %v3756 = vrot.slane %v3613, 5
      %v3757 = vsel %vm1586, %v3755, %v3756
      %v3758 = vrot.slane %v3614, 5
      %v3759 = vrot.slane %v3758, 4
      %v3760 = vrot.slane %v3615, 5
      %v3761 = vsel %vm1586, %v3759, %v3760
      %v3762 = vrot.slane %v3760, 4
      %v3763 = vrot.slane %v3616, 5
      %v3764 = vsel %vm1586, %v3762, %v3763
      %v3765 = vrot.slane %v3617, 5
      %v3766 = vrot.slane %v3765, 4
      %v3767 = vrot.slane %v3618, 5
      %v3768 = vsel %vm1586, %v3766, %v3767
      %v3769 = vrot.slane %v3767, 4
      %v3770 = vrot.slane %v3619, 5
      %v3771 = vsel %vm1586, %v3769, %v3770
      %v3772 = vrot.slane %v3620, 5
      %v3773 = vrot.slane %v3772, 4
      %v3774 = vrot.slane %v3621, 5
      %v3775 = vsel %vm1586, %v3773, %v3774
      %v3776 = vrot.slane %v3774, 4
      %v3777 = vrot.slane %v3622, 5
      %v3778 = vsel %vm1586, %v3776, %v3777
      %v3779 = vrot.slane %v3623, 5
      %v3780 = vrot.slane %v3779, 4
      %v3781 = vrot.slane %v3624, 5
      %v3782 = vsel %vm1586, %v3780, %v3781
      %v3783 = vrot.slane %v3781, 4
      %v3784 = vrot.slane %v3625, 5
      %v3785 = vsel %vm1586, %v3783, %v3784
      %v3786 = vunpack.c.l.b16 %v3677
      %v3787 = vunpack.c.l.b16 %v3680
      %v3788 = vunpack.c.l.b16 %v3684
      %v3789 = vunpack.c.l.b16 %v3687
      %v3790 = vunpack.c.l.b16 %v3691
      %v3791 = vunpack.c.l.b16 %v3694
      %v3792 = vunpack.c.l.b16 %v3698
      %v3793 = vunpack.c.l.b16 %v3701
      %v3794 = vunpack.c.l.b16 %v3705
      %v3795 = vunpack.c.l.b16 %v3708
      %v3796 = vunpack.c.l.b16 %v3712
      %v3797 = vunpack.c.l.b16 %v3715
      %v3798 = vunpack.c.l.b16 %v3719
      %v3799 = vunpack.c.l.b16 %v3722
      %v3800 = vunpack.c.l.b16 %v3726
      %v3801 = vunpack.c.l.b16 %v3729
      %v3802 = vunpack.c.l.b16 %v3733
      %v3803 = vunpack.c.l.b16 %v3736
      %v3804 = vunpack.c.l.b16 %v3740
      %v3805 = vunpack.c.l.b16 %v3743
      %v3806 = vunpack.c.l.b16 %v3747
      %v3807 = vunpack.c.l.b16 %v3750
      %v3808 = vunpack.c.l.b16 %v3754
      %v3809 = vunpack.c.l.b16 %v3757
      %v3810 = vunpack.c.l.b16 %v3761
      %v3811 = vunpack.c.l.b16 %v3764
      %v3812 = vunpack.c.l.b16 %v3768
      %v3813 = vunpack.c.l.b16 %v3771
      %v3814 = vunpack.c.l.b16 %v3775
      %v3815 = vunpack.c.l.b16 %v3778
      %v3816 = vunpack.c.l.b16 %v3782
      %v3817 = vunpack.c.l.b16 %v3785
      %v3818 = vpack.c.b16 %v3787, %v3786
      %v3819 = vpack.c.b16 %v3789, %v3788
      %v3820 = vpack.c.b16 %v3791, %v3790
      %v3821 = vpack.c.b16 %v3793, %v3792
      %v3822 = vpack.c.b16 %v3795, %v3794
      %v3823 = vpack.c.b16 %v3797, %v3796
      %v3824 = vpack.c.b16 %v3799, %v3798
      %v3825 = vpack.c.b16 %v3801, %v3800
      %v3826 = vpack.c.b16 %v3803, %v3802
      %v3827 = vpack.c.b16 %v3805, %v3804
      %v3828 = vpack.c.b16 %v3807, %v3806
      %v3829 = vpack.c.b16 %v3809, %v3808
      %v3830 = vpack.c.b16 %v3811, %v3810
      %v3831 = vpack.c.b16 %v3813, %v3812
      %v3832 = vpack.c.b16 %v3815, %v3814
      %v3833 = vpack.c.b16 %v3817, %v3816
      %3834 = vrot.lane.b32.xlu0 %v3818, 24
      %v3835 = vpop.permute.xlu0 %3834
      %3836 = vrot.lane.b32.xlu0 %v3819, 24
      %v3837 = vpop.permute.xlu0 %3836
      %3838 = vrot.lane.b32.xlu0 %v3820, 24
      %v3839 = vpop.permute.xlu0 %3838
      %3840 = vrot.lane.b32.xlu0 %v3821, 24
      %v3841 = vpop.permute.xlu0 %3840
      %3842 = vrot.lane.b32.xlu0 %v3822, 24
      %v3843 = vpop.permute.xlu0 %3842
      %3844 = vrot.lane.b32.xlu0 %v3823, 24
      %v3845 = vpop.permute.xlu0 %3844
      %3846 = vrot.lane.b32.xlu0 %v3824, 24
      %v3847 = vpop.permute.xlu0 %3846
      %3848 = vrot.lane.b32.xlu0 %v3825, 24
      %v3849 = vpop.permute.xlu0 %3848
      %3850 = vrot.lane.b32.xlu0 %v3826, 24
      %v3851 = vpop.permute.xlu0 %3850
      %3852 = vrot.lane.b32.xlu0 %v3827, 24
      %v3853 = vpop.permute.xlu0 %3852
      %3854 = vrot.lane.b32.xlu0 %v3828, 24
      %v3855 = vpop.permute.xlu0 %3854
      %3856 = vrot.lane.b32.xlu0 %v3829, 24
      %v3857 = vpop.permute.xlu0 %3856
      %3858 = vrot.lane.b32.xlu0 %v3830, 24
      %v3859 = vpop.permute.xlu0 %3858
      %3860 = vrot.lane.b32.xlu0 %v3831, 24
      %v3861 = vpop.permute.xlu0 %3860
      %3862 = vrot.lane.b32.xlu0 %v3832, 24
      %v3863 = vpop.permute.xlu0 %3862
      %3864 = vrot.lane.b32.xlu0 %v3833, 24
      %v3865 = vpop.permute.xlu0 %3864
      %vm3882 = vcmask 220352
      %3883 = vst.msk [vmem:[#allocation3] sm:$0xff] %vm3882, %v3835
      %3884 = vst.msk [vmem:[#allocation3 + $0x8] sm:$0xff] %vm3882, %v3837
      %3885 = vst.msk [vmem:[#allocation3 + $0x10] sm:$0xff] %vm3882, %v3839
      %3886 = vst.msk [vmem:[#allocation3 + $0x18] sm:$0xff] %vm3882, %v3841
      %3887 = vst.msk [vmem:[#allocation3 + $0x20] sm:$0xff] %vm3882, %v3843
      %3888 = vst.msk [vmem:[#allocation3 + $0x28] sm:$0xff] %vm3882, %v3845
      %3889 = vst.msk [vmem:[#allocation3 + $0x30] sm:$0xff] %vm3882, %v3847
      %3890 = vst.msk [vmem:[#allocation3 + $0x38] sm:$0xff] %vm3882, %v3849
      %3891 = vst.msk [vmem:[#allocation3 + $0x40] sm:$0xff] %vm3882, %v3851
      %3892 = vst.msk [vmem:[#allocation3 + $0x48] sm:$0xff] %vm3882, %v3853
      %3893 = vst.msk [vmem:[#allocation3 + $0x50] sm:$0xff] %vm3882, %v3855
      %3894 = vst.msk [vmem:[#allocation3 + $0x58] sm:$0xff] %vm3882, %v3857
      %3895 = vst.msk [vmem:[#allocation3 + $0x60] sm:$0xff] %vm3882, %v3859
      %3896 = vst.msk [vmem:[#allocation3 + $0x68] sm:$0xff] %vm3882, %v3861
      %3897 = vst.msk [vmem:[#allocation3 + $0x70] sm:$0xff] %vm3882, %v3863
      %3898 = vst.msk [vmem:[#allocation3 + $0x78] sm:$0xff] %vm3882, %v3865
      %v3899 = vld [vmem:[#allocation3] sm:$0xff]
      %v3900 = vld [vmem:[#allocation3 + $0x8] sm:$0xff]
      %v3901 = vld [vmem:[#allocation3 + $0x10] sm:$0xff]
      %v3902 = vld [vmem:[#allocation3 + $0x18] sm:$0xff]
      %v3903 = vld [vmem:[#allocation3 + $0x20] sm:$0xff]
      %v3904 = vld [vmem:[#allocation3 + $0x28] sm:$0xff]
      %v3905 = vld [vmem:[#allocation3 + $0x30] sm:$0xff]
      %v3906 = vld [vmem:[#allocation3 + $0x38] sm:$0xff]
      %v3907 = vld [vmem:[#allocation3 + $0x40] sm:$0xff]
      %v3908 = vld [vmem:[#allocation3 + $0x48] sm:$0xff]
      %v3909 = vld [vmem:[#allocation3 + $0x50] sm:$0xff]
      %v3910 = vld [vmem:[#allocation3 + $0x58] sm:$0xff]
      %v3911 = vld [vmem:[#allocation3 + $0x60] sm:$0xff]
      %v3912 = vld [vmem:[#allocation3 + $0x68] sm:$0xff]
      %v3913 = vld [vmem:[#allocation3 + $0x70] sm:$0xff]
      %v3914 = vld [vmem:[#allocation3 + $0x78] sm:$0xff]
      %v3915 = vld [vmem:[%s1] sm:$0xf]
      %v3916 = vld [vmem:[%s1 + $0x4] sm:$0xf]
      %v3917 = vld [vmem:[%s1 + $0x8] sm:$0xf]
      %v3918 = vld [vmem:[%s1 + $0xc] sm:$0x3]
      %v3919 = vld [vmem:[%s2] sm:$0x1]
      %v3921 = vlaneseq
      %v3922 = vshrl.u32 %v3921, 7
      %v3923 = vsub.s32 0, %v3922
      %v3924 = vrot.slane %v3919, %v3923
      %v3930 = vunpack.c.l.b16 %v3915
      %v3931 = vunpack.c.l.b16 %v3916
      %v3932 = vunpack.c.l.b16 %v3917
      %v3933 = vunpack.c.l.b16 %v3918
      %v3934 = vpack.c.b16 %v3931, %v3930
      %v3935 = vpack.c.b16 %v3933, %v3932
      %vm3937 = vcmask 220160
      %v3939 = vsel %vm3937, %v3899, 0
      %v3942 = vsel %vm3937, %v3900, 0
      %v3945 = vsel %vm3937, %v3901, 0
      %v3948 = vsel %vm3937, %v3902, 0
      %v3951 = vsel %vm3937, %v3903, 0
      %v3954 = vsel %vm3937, %v3904, 0
      %v3957 = vsel %vm3937, %v3905, 0
      %v3960 = vsel %vm3937, %v3906, 0
      %v3963 = vsel %vm3937, %v3907, 0
      %v3966 = vsel %vm3937, %v3908, 0
      %v3969 = vsel %vm3937, %v3909, 0
      %v3972 = vsel %vm3937, %v3910, 0
      %v3975 = vsel %vm3937, %v3911, 0
      %v3978 = vsel %vm3937, %v3912, 0
      %v3981 = vsel %vm3937, %v3913, 0
      %v3984 = vsel %vm3937, %v3914, 0
      %vm3986 = vcmask 1044480
      %vm3987 = vcmask 1045504
      %v3988 = vsel %vm3986, 4294967295, 65535
      %v3989 = vsel %vm3987, %v3988, 0
      %v3991 = vand.u32 %v3935, %v3989
      %3993 = vmatprep.subr.bf16.mxu0 0
      %3994 = vmatpush1.bf16.msra.mxu0 %v3934
      %3995 = vmatprep.subr.bf16.mxu0 0
      %3996 = vmatpush1.bf16.msra.mxu0 %v3991
      %3997 = vmatprep.subr.bf16.mxu0 0
      %3998 = vmatpush1.bf16.msra.mxu0 0
      %3999 = vmatprep.subr.bf16.mxu0 0
      %4000 = vmatpush1.bf16.msra.mxu0 0
      %4001 = vmatprep.subr.bf16.mxu0 0
      %4002 = vmatpush1.bf16.msra.mxu0 0
      %4003 = vmatprep.subr.bf16.mxu0 0
      %4004 = vmatpush1.bf16.msra.mxu0 0
      %4005 = vmatprep.subr.bf16.mxu0 0
      %4006 = vmatpush1.bf16.msra.mxu0 0
      %4007 = vmatprep.subr.bf16.mxu0 0
      %4008 = vmatpush1.bf16.msra.mxu0 0
      %4009 = vmatprep.subr.bf16.mxu0 0
      %4010 = vmatpush1.bf16.msra.mxu0 0
      %4011 = vmatprep.subr.bf16.mxu0 0
      %4012 = vmatpush1.bf16.msra.mxu0 0
      %4013 = vmatprep.subr.bf16.mxu0 0
      %4014 = vmatpush1.bf16.msra.mxu0 0
      %4015 = vmatprep.subr.bf16.mxu0 0
      %4016 = vmatpush1.bf16.msra.mxu0 0
      %4017 = vmatprep.subr.bf16.mxu0 0
      %4018 = vmatpush1.bf16.msra.mxu0 0
      %4019 = vmatprep.subr.bf16.mxu0 0
      %4020 = vmatpush1.bf16.msra.mxu0 0
      %4021 = vmatprep.subr.bf16.mxu0 0
      %4022 = vmatpush1.bf16.msra.mxu0 0
      %4023 = vmatprep.subr.bf16.mxu0 0
      %4024 = vmatpush1.bf16.msra.mxu0 0
      %4025 = vmatprep.mubr.bf16.mxu0 0
      %4026 = vmatmul.mubr.bf16.gmra.mrb[0].mxu0 %v3939
      %v4027 = vpop.f32.mrb[0].mxu0
      %v4028 = vadd.f32 %v3924, %v4027
      %v4029 = vpop.f32.mrb[0].mxu0
      %v4030 = vpop.f32.mrb[0].mxu0
      %v4031 = vadd.f32 %v3924, %v4030
      %v4032 = vpop.f32.mrb[0].mxu0
      %4033 = vmatprep.mubr.bf16.mxu0 0
      %4034 = vmatmul.mubr.bf16.gmra.mrb[0].mxu0 %v3942
      %v4035 = vpop.f32.mrb[0].mxu0
      %v4036 = vadd.f32 %v3924, %v4035
      %v4037 = vpop.f32.mrb[0].mxu0
      %v4038 = vpop.f32.mrb[0].mxu0
      %v4039 = vadd.f32 %v3924, %v4038
      %v4040 = vpop.f32.mrb[0].mxu0
      %4041 = vmatprep.mubr.bf16.mxu0 0
      %4042 = vmatmul.mubr.bf16.gmra.mrb[0].mxu0 %v3945
      %v4043 = vpop.f32.mrb[0].mxu0
      %v4044 = vadd.f32 %v3924, %v4043
      %v4045 = vpop.f32.mrb[0].mxu0
      %v4046 = vpop.f32.mrb[0].mxu0
      %v4047 = vadd.f32 %v3924, %v4046
      %v4048 = vpop.f32.mrb[0].mxu0
      %4049 = vmatprep.mubr.bf16.mxu0 0
      %4050 = vmatmul.mubr.bf16.gmra.mrb[0].mxu0 %v3948
      %v4051 = vpop.f32.mrb[0].mxu0
      %v4052 = vadd.f32 %v3924, %v4051
      %v4053 = vpop.f32.mrb[0].mxu0
      %v4054 = vpop.f32.mrb[0].mxu0
      %v4055 = vadd.f32 %v3924, %v4054
      %v4056 = vpop.f32.mrb[0].mxu0
      %4057 = vmatprep.mubr.bf16.mxu0 0
      %4058 = vmatmul.mubr.bf16.gmra.mrb[0].mxu0 %v3951
      %v4059 = vpop.f32.mrb[0].mxu0
      %v4060 = vadd.f32 %v3924, %v4059
      %v4061 = vpop.f32.mrb[0].mxu0
      %v4062 = vpop.f32.mrb[0].mxu0
      %v4063 = vadd.f32 %v3924, %v4062
      %v4064 = vpop.f32.mrb[0].mxu0
      %4065 = vmatprep.mubr.bf16.mxu0 0
      %4066 = vmatmul.mubr.bf16.gmra.mrb[0].mxu0 %v3954
      %v4067 = vpop.f32.mrb[0].mxu0
      %v4068 = vadd.f32 %v3924, %v4067
      %v4069 = vpop.f32.mrb[0].mxu0
      %v4070 = vpop.f32.mrb[0].mxu0
      %v4071 = vadd.f32 %v3924, %v4070
      %v4072 = vpop.f32.mrb[0].mxu0
      %4073 = vmatprep.mubr.bf16.mxu0 0
      %4074 = vmatmul.mubr.bf16.gmra.mrb[0].mxu0 %v3957
      %v4075 = vpop.f32.mrb[0].mxu0
      %v4076 = vadd.f32 %v3924, %v4075
      %v4077 = vpop.f32.mrb[0].mxu0
      %v4078 = vpop.f32.mrb[0].mxu0
      %v4079 = vadd.f32 %v3924, %v4078
      %v4080 = vpop.f32.mrb[0].mxu0
      %4081 = vmatprep.mubr.bf16.mxu0 0
      %4082 = vmatmul.mubr.bf16.gmra.mrb[0].mxu0 %v3960
      %v4083 = vpop.f32.mrb[0].mxu0
      %v4084 = vadd.f32 %v3924, %v4083
      %v4085 = vpop.f32.mrb[0].mxu0
      %v4086 = vpop.f32.mrb[0].mxu0
      %v4087 = vadd.f32 %v3924, %v4086
      %v4088 = vpop.f32.mrb[0].mxu0
      %4089 = vmatprep.mubr.bf16.mxu0 0
      %4090 = vmatmul.mubr.bf16.gmra.mrb[0].mxu0 %v3963
      %v4091 = vpop.f32.mrb[0].mxu0
      %v4092 = vadd.f32 %v3924, %v4091
      %v4093 = vpop.f32.mrb[0].mxu0
      %v4094 = vpop.f32.mrb[0].mxu0
      %v4095 = vadd.f32 %v3924, %v4094
      %v4096 = vpop.f32.mrb[0].mxu0
      %4097 = vmatprep.mubr.bf16.mxu0 0
      %4098 = vmatmul.mubr.bf16.gmra.mrb[0].mxu0 %v3966
      %v4099 = vpop.f32.mrb[0].mxu0
      %v4100 = vadd.f32 %v3924, %v4099
      %v4101 = vpop.f32.mrb[0].mxu0
      %v4102 = vpop.f32.mrb[0].mxu0
      %v4103 = vadd.f32 %v3924, %v4102
      %v4104 = vpop.f32.mrb[0].mxu0
      %4105 = vmatprep.mubr.bf16.mxu0 0
      %4106 = vmatmul.mubr.bf16.gmra.mrb[0].mxu0 %v3969
      %v4107 = vpop.f32.mrb[0].mxu0
      %v4108 = vadd.f32 %v3924, %v4107
      %v4109 = vpop.f32.mrb[0].mxu0
      %v4110 = vpop.f32.mrb[0].mxu0
      %v4111 = vadd.f32 %v3924, %v4110
      %v4112 = vpop.f32.mrb[0].mxu0
      %4113 = vmatprep.mubr.bf16.mxu0 0
      %4114 = vmatmul.mubr.bf16.gmra.mrb[0].mxu0 %v3972
      %v4115 = vpop.f32.mrb[0].mxu0
      %v4116 = vadd.f32 %v3924, %v4115
      %v4117 = vpop.f32.mrb[0].mxu0
      %v4118 = vpop.f32.mrb[0].mxu0
      %v4119 = vadd.f32 %v3924, %v4118
      %v4120 = vpop.f32.mrb[0].mxu0
      %4121 = vmatprep.mubr.bf16.mxu0 0
      %4122 = vmatmul.mubr.bf16.gmra.mrb[0].mxu0 %v3975
      %v4123 = vpop.f32.mrb[0].mxu0
      %v4124 = vadd.f32 %v3924, %v4123
      %v4125 = vpop.f32.mrb[0].mxu0
      %v4126 = vpop.f32.mrb[0].mxu0
      %v4127 = vadd.f32 %v3924, %v4126
      %v4128 = vpop.f32.mrb[0].mxu0
      %4129 = vmatprep.mubr.bf16.mxu0 0
      %4130 = vmatmul.mubr.bf16.gmra.mrb[0].mxu0 %v3978
      %v4131 = vpop.f32.mrb[0].mxu0
      %v4132 = vadd.f32 %v3924, %v4131
      %v4133 = vpop.f32.mrb[0].mxu0
      %v4134 = vpop.f32.mrb[0].mxu0
      %v4135 = vadd.f32 %v3924, %v4134
      %v4136 = vpop.f32.mrb[0].mxu0
      %4137 = vmatprep.mubr.bf16.mxu0 0
      %4138 = vmatmul.mubr.bf16.gmra.mrb[0].mxu0 %v3981
      %v4139 = vpop.f32.mrb[0].mxu0
      %v4140 = vadd.f32 %v3924, %v4139
      %v4141 = vpop.f32.mrb[0].mxu0
      %v4142 = vpop.f32.mrb[0].mxu0
      %v4143 = vadd.f32 %v3924, %v4142
      %v4144 = vpop.f32.mrb[0].mxu0
      %4145 = vmatprep.mubr.bf16.mxu0 0
      %4146 = vmatmul.mubr.bf16.gmra.mrb[0].mxu0 %v3984
      %v4147 = vpop.f32.mrb[0].mxu0
      %v4148 = vadd.f32 %v3924, %v4147
      %v4149 = vpop.f32.mrb[0].mxu0
      %v4150 = vpop.f32.mrb[0].mxu0
      %v4151 = vadd.f32 %v3924, %v4150
      %v4152 = vpop.f32.mrb[0].mxu0
      %4153 = vdwg.mxu0
      %v4154 = vmax.f32 %v4028, 0.0
      %v4155 = vmax.f32 %v4031, 0.0
      %v4156 = vmax.f32 %v4036, 0.0
      %v4157 = vmax.f32 %v4039, 0.0
      %v4158 = vmax.f32 %v4044, 0.0
      %v4159 = vmax.f32 %v4047, 0.0
      %v4160 = vmax.f32 %v4052, 0.0
      %v4161 = vmax.f32 %v4055, 0.0
      %v4162 = vmax.f32 %v4060, 0.0
      %v4163 = vmax.f32 %v4063, 0.0
      %v4164 = vmax.f32 %v4068, 0.0
      %v4165 = vmax.f32 %v4071, 0.0
      %v4166 = vmax.f32 %v4076, 0.0
      %v4167 = vmax.f32 %v4079, 0.0
      %v4168 = vmax.f32 %v4084, 0.0
      %v4169 = vmax.f32 %v4087, 0.0
      %v4170 = vmax.f32 %v4092, 0.0
      %v4171 = vmax.f32 %v4095, 0.0
      %v4172 = vmax.f32 %v4100, 0.0
      %v4173 = vmax.f32 %v4103, 0.0
      %v4174 = vmax.f32 %v4108, 0.0
      %v4175 = vmax.f32 %v4111, 0.0
      %v4176 = vmax.f32 %v4116, 0.0
      %v4177 = vmax.f32 %v4119, 0.0
      %v4178 = vmax.f32 %v4124, 0.0
      %v4179 = vmax.f32 %v4127, 0.0
      %v4180 = vmax.f32 %v4132, 0.0
      %v4181 = vmax.f32 %v4135, 0.0
      %v4182 = vmax.f32 %v4140, 0.0
      %v4183 = vmax.f32 %v4143, 0.0
      %v4184 = vmax.f32 %v4148, 0.0
      %v4185 = vmax.f32 %v4151, 0.0
      %4186 = vxpose.xlu0.b32.start [1/16] %v4154, 128
      %4187 = vxpose.xlu0.b32.cont [2/16] %v4155, 128
      %4188 = vxpose.xlu0.b32.cont [3/16] %v4156, 128
      %4189 = vxpose.xlu0.b32.cont [4/16] %v4157, 128
      %4190 = vxpose.xlu0.b32.cont [5/16] %v4158, 128
      %4191 = vxpose.xlu0.b32.cont [6/16] %v4159, 128
      %4192 = vxpose.xlu0.b32.cont [7/16] %v4160, 128
      %4193 = vxpose.xlu0.b32.cont [8/16] %v4161, 128
      %4194 = vxpose.xlu0.b32.cont [9/16] %v4162, 128
      %4195 = vxpose.xlu0.b32.cont [10/16] %v4163, 128
      %4196 = vxpose.xlu0.b32.cont [11/16] %v4164, 128
      %4197 = vxpose.xlu0.b32.cont [12/16] %v4165, 128
      %4198 = vxpose.xlu0.b32.cont [13/16] %v4166, 128
      %4199 = vxpose.xlu0.b32.cont [14/16] %v4167, 128
      %4200 = vxpose.xlu0.b32.cont [15/16] %v4168, 128
      %4201 = vxpose.xlu0.b32.end [16/16] %v4169, 128
      %v4202 = vpop.trf.xlu0
      %v4203 = vpop.trf.xlu0
      %v4204 = vpop.trf.xlu0
      %v4205 = vpop.trf.xlu0
      %v4206 = vpop.trf.xlu0
      %v4207 = vpop.trf.xlu0
      %v4208 = vpop.trf.xlu0
      %v4209 = vpop.trf.xlu0
      %v4210 = vpop.trf.xlu0
      %v4211 = vpop.trf.xlu0
      %v4212 = vpop.trf.xlu0
      %v4213 = vpop.trf.xlu0
      %v4214 = vpop.trf.xlu0
      %v4215 = vpop.trf.xlu0
      %v4216 = vpop.trf.xlu0
      %v4217 = vpop.trf.xlu0
      %4218 = vxpose.xlu0.b32.start [1/16] %v4170, 128
      %4219 = vxpose.xlu0.b32.cont [2/16] %v4171, 128
      %4220 = vxpose.xlu0.b32.cont [3/16] %v4172, 128
      %4221 = vxpose.xlu0.b32.cont [4/16] %v4173, 128
      %4222 = vxpose.xlu0.b32.cont [5/16] %v4174, 128
      %4223 = vxpose.xlu0.b32.cont [6/16] %v4175, 128
      %4224 = vxpose.xlu0.b32.cont [7/16] %v4176, 128
      %4225 = vxpose.xlu0.b32.cont [8/16] %v4177, 128
      %4226 = vxpose.xlu0.b32.cont [9/16] %v4178, 128
      %4227 = vxpose.xlu0.b32.cont [10/16] %v4179, 128
      %4228 = vxpose.xlu0.b32.cont [11/16] %v4180, 128
      %4229 = vxpose.xlu0.b32.cont [12/16] %v4181, 128
      %4230 = vxpose.xlu0.b32.cont [13/16] %v4182, 128
      %4231 = vxpose.xlu0.b32.cont [14/16] %v4183, 128
      %4232 = vxpose.xlu0.b32.cont [15/16] %v4184, 128
      %4233 = vxpose.xlu0.b32.end [16/16] %v4185, 128
      %v4234 = vpop.trf.xlu0
      %v4235 = vpop.trf.xlu0
      %v4236 = vpop.trf.xlu0
      %v4237 = vpop.trf.xlu0
      %v4238 = vpop.trf.xlu0
      %v4239 = vpop.trf.xlu0
      %v4240 = vpop.trf.xlu0
      %v4241 = vpop.trf.xlu0
      %v4242 = vpop.trf.xlu0
      %v4243 = vpop.trf.xlu0
      %v4244 = vpop.trf.xlu0
      %v4245 = vpop.trf.xlu0
      %v4246 = vpop.trf.xlu0
      %v4247 = vpop.trf.xlu0
      %v4248 = vpop.trf.xlu0
      %v4249 = vpop.trf.xlu0
      %4250 = vst [vmem:[%s259] sm:$0xff] %v4202
      %4251 = vst [vmem:[%s259 + $0x8] sm:$0xff] %v4234
      %4252 = vst [vmem:[%s259 + $0x10] sm:$0xff] %v4203
      %4253 = vst [vmem:[%s259 + $0x18] sm:$0xff] %v4235
      %4254 = vst [vmem:[%s259 + $0x20] sm:$0xff] %v4204
      %4255 = vst [vmem:[%s259 + $0x28] sm:$0xff] %v4236
      %4256 = vst [vmem:[%s259 + $0x30] sm:$0xff] %v4205
      %4257 = vst [vmem:[%s259 + $0x38] sm:$0xff] %v4237
      %4258 = vst [vmem:[%s259 + $0x40] sm:$0xff] %v4206
      %4259 = vst [vmem:[%s259 + $0x48] sm:$0xff] %v4238
      %4260 = vst [vmem:[%s259 + $0x50] sm:$0xff] %v4207
      %4261 = vst [vmem:[%s259 + $0x58] sm:$0xff] %v4239
      %4262 = vst [vmem:[%s259 + $0x60] sm:$0xff] %v4208
      %4263 = vst [vmem:[%s259 + $0x68] sm:$0xff] %v4240
      %4264 = vst [vmem:[%s259 + $0x70] sm:$0xff] %v4209
      %4265 = vst [vmem:[%s259 + $0x78] sm:$0xff] %v4241
      %vm4266 = vcmask 519168
      %4267 = vst.msk [vmem:[#allocation4] sm:$0xf] %vm4266, 0
      %4268 = vst.msk [vmem:[#allocation4 + $0x4] sm:$0xf] %vm4266, 0
      %vm4269 = vcmask 516096
      %4270 = vst.msk [vmem:[#allocation4 + $0x8] sm:$0x1] %vm4269, 0
      %s4271 = scalar_lea.vmem [#allocation4], 204
      %4272 = vst.msk [vmem:[%s4271] sm:$0xf] %vm4266, 0
      %4273 = vst.msk [vmem:[%s4271 + $0x4] sm:$0xf] %vm4266, 0
      %4274 = vst.msk [vmem:[%s4271 + $0x8] sm:$0x1] %vm4269, 0
      %vm4275 = vcmask 516096
      %vm4276 = vmand %vm4275, %vm354
      %v4277 = vld [vmem:[#allocation4] sm:$0x1]
      %v4278 = vsel %vm4276, 0, %v4277
      %4279 = vst [vmem:[#allocation4] sm:$0x1] %v4278
      %v4280 = vld [vmem:[#allocation4 + $0xc] sm:$0x1]
      %v4281 = vsel %vm4276, 0, %v4280
      %4282 = vst [vmem:[#allocation4 + $0xc] sm:$0x1] %v4281
      %v4283 = vld [vmem:[#allocation4 + $0x18] sm:$0x1]
      %v4284 = vsel %vm4276, 0, %v4283
      %4285 = vst [vmem:[#allocation4 + $0x18] sm:$0x1] %v4284
      %v4286 = vld [vmem:[#allocation4 + $0x24] sm:$0x1]
      %v4287 = vsel %vm4276, 0, %v4286
      %4288 = vst [vmem:[#allocation4 + $0x24] sm:$0x1] %v4287
      %v4289 = vld [vmem:[#allocation4 + $0x30] sm:$0x1]
      %v4290 = vsel %vm4276, 0, %v4289
      %4291 = vst [vmem:[#allocation4 + $0x30] sm:$0x1] %v4290
      %v4292 = vld [vmem:[#allocation4 + $0x3c] sm:$0x1]
      %v4293 = vsel %vm4276, 0, %v4292
      %4294 = vst [vmem:[#allocation4 + $0x3c] sm:$0x1] %v4293
      %v4295 = vld [vmem:[#allocation4 + $0x48] sm:$0x1]
      %v4296 = vsel %vm4276, 0, %v4295
      %4297 = vst [vmem:[#allocation4 + $0x48] sm:$0x1] %v4296
      %v4298 = vld [vmem:[#allocation4 + $0x54] sm:$0x1]
      %v4299 = vsel %vm4276, 0, %v4298
      %4300 = vst [vmem:[#allocation4 + $0x54] sm:$0x1] %v4299
      %v4301 = vld [vmem:[#allocation4 + $0x60] sm:$0x1]
      %v4302 = vsel %vm4276, 0, %v4301
      %4303 = vst [vmem:[#allocation4 + $0x60] sm:$0x1] %v4302
      %v4304 = vld [vmem:[#allocation4 + $0x6c] sm:$0x1]
      %v4305 = vsel %vm4276, 0, %v4304
      %4306 = vst [vmem:[#allocation4 + $0x6c] sm:$0x1] %v4305
      %v4307 = vld [vmem:[#allocation4 + $0x78] sm:$0x1]
      %v4308 = vsel %vm4276, 0, %v4307
      %4309 = vst [vmem:[#allocation4 + $0x78] sm:$0x1] %v4308
      %v4310 = vld [vmem:[#allocation4 + $0x84] sm:$0x1]
      %v4311 = vsel %vm4276, 0, %v4310
      %4312 = vst [vmem:[#allocation4 + $0x84] sm:$0x1] %v4311
      %v4313 = vld [vmem:[#allocation4 + $0x90] sm:$0x1]
      %v4314 = vsel %vm4276, 0, %v4313
      %4315 = vst [vmem:[#allocation4 + $0x90] sm:$0x1] %v4314
      %v4316 = vld [vmem:[#allocation4 + $0x9c] sm:$0x1]
      %v4317 = vsel %vm4276, 0, %v4316
      %4318 = vst [vmem:[#allocation4 + $0x9c] sm:$0x1] %v4317
      %v4319 = vld [vmem:[#allocation4 + $0xa8] sm:$0x1]
      %v4320 = vsel %vm4276, 0, %v4319
      %4321 = vst [vmem:[#allocation4 + $0xa8] sm:$0x1] %v4320
      %v4322 = vld [vmem:[#allocation4 + $0xb4] sm:$0x1]
      %v4323 = vsel %vm4276, 0, %v4322
      %4324 = vst [vmem:[#allocation4 + $0xb4] sm:$0x1] %v4323
      %v4325 = vld [vmem:[#allocation4 + $0xc0] sm:$0x1]
      %v4326 = vsel %vm4276, 0, %v4325
      %4327 = vst [vmem:[#allocation4 + $0xc0] sm:$0x1] %v4326
      %v4328 = vld [vmem:[#allocation4 + $0xcc] sm:$0x1]
      %v4329 = vsel %vm4276, 0, %v4328
      %4330 = vst [vmem:[#allocation4 + $0xcc] sm:$0x1] %v4329
      %vm4331 = vmand %vm4275, %vm679
      %v4332 = vld [vmem:[#allocation4 + $0x8] sm:$0x1]
      %v4333 = vsel %vm4331, 0, %v4332
      %4334 = vst [vmem:[#allocation4 + $0x8] sm:$0x1] %v4333
      %v4335 = vld [vmem:[#allocation4 + $0x14] sm:$0x1]
      %v4336 = vsel %vm4331, 0, %v4335
      %4337 = vst [vmem:[#allocation4 + $0x14] sm:$0x1] %v4336
      %v4338 = vld [vmem:[#allocation4 + $0x20] sm:$0x1]
      %v4339 = vsel %vm4331, 0, %v4338
      %4340 = vst [vmem:[#allocation4 + $0x20] sm:$0x1] %v4339
      %v4341 = vld [vmem:[#allocation4 + $0x2c] sm:$0x1]
      %v4342 = vsel %vm4331, 0, %v4341
      %4343 = vst [vmem:[#allocation4 + $0x2c] sm:$0x1] %v4342
      %v4344 = vld [vmem:[#allocation4 + $0x38] sm:$0x1]
      %v4345 = vsel %vm4331, 0, %v4344
      %4346 = vst [vmem:[#allocation4 + $0x38] sm:$0x1] %v4345
      %v4347 = vld [vmem:[#allocation4 + $0x44] sm:$0x1]
      %v4348 = vsel %vm4331, 0, %v4347
      %4349 = vst [vmem:[#allocation4 + $0x44] sm:$0x1] %v4348
      %v4350 = vld [vmem:[#allocation4 + $0x50] sm:$0x1]
      %v4351 = vsel %vm4331, 0, %v4350
      %4352 = vst [vmem:[#allocation4 + $0x50] sm:$0x1] %v4351
      %v4353 = vld [vmem:[#allocation4 + $0x5c] sm:$0x1]
      %v4354 = vsel %vm4331, 0, %v4353
      %4355 = vst [vmem:[#allocation4 + $0x5c] sm:$0x1] %v4354
      %v4356 = vld [vmem:[#allocation4 + $0x68] sm:$0x1]
      %v4357 = vsel %vm4331, 0, %v4356
      %4358 = vst [vmem:[#allocation4 + $0x68] sm:$0x1] %v4357
      %v4359 = vld [vmem:[#allocation4 + $0x74] sm:$0x1]
      %v4360 = vsel %vm4331, 0, %v4359
      %4361 = vst [vmem:[#allocation4 + $0x74] sm:$0x1] %v4360
      %v4362 = vld [vmem:[#allocation4 + $0x80] sm:$0x1]
      %v4363 = vsel %vm4331, 0, %v4362
      %4364 = vst [vmem:[#allocation4 + $0x80] sm:$0x1] %v4363
      %v4365 = vld [vmem:[#allocation4 + $0x8c] sm:$0x1]
      %v4366 = vsel %vm4331, 0, %v4365
      %4367 = vst [vmem:[#allocation4 + $0x8c] sm:$0x1] %v4366
      %v4368 = vld [vmem:[#allocation4 + $0x98] sm:$0x1]
      %v4369 = vsel %vm4331, 0, %v4368
      %4370 = vst [vmem:[#allocation4 + $0x98] sm:$0x1] %v4369
      %v4371 = vld [vmem:[#allocation4 + $0xa4] sm:$0x1]
      %v4372 = vsel %vm4331, 0, %v4371
      %4373 = vst [vmem:[#allocation4 + $0xa4] sm:$0x1] %v4372
      %v4374 = vld [vmem:[#allocation4 + $0xb0] sm:$0x1]
      %v4375 = vsel %vm4331, 0, %v4374
      %4376 = vst [vmem:[#allocation4 + $0xb0] sm:$0x1] %v4375
      %v4377 = vld [vmem:[#allocation4 + $0xbc] sm:$0x1]
      %v4378 = vsel %vm4331, 0, %v4377
      %4379 = vst [vmem:[#allocation4 + $0xbc] sm:$0x1] %v4378
      %v4380 = vld [vmem:[#allocation4 + $0xc8] sm:$0x1]
      %v4381 = vsel %vm4331, 0, %v4380
      %4382 = vst [vmem:[#allocation4 + $0xc8] sm:$0x1] %v4381
      %v4383 = vld [vmem:[#allocation4 + $0xd4] sm:$0x1]
      %v4384 = vsel %vm4331, 0, %v4383
      %4385 = vst [vmem:[#allocation4 + $0xd4] sm:$0x1] %v4384
      %v4386 = vpack.c.bf16 %v4155, %v4154
      %v4387 = vpack.c.bf16 %v4157, %v4156
      %v4388 = vpack.c.bf16 %v4159, %v4158
      %v4389 = vpack.c.bf16 %v4161, %v4160
      %v4390 = vpack.c.bf16 %v4163, %v4162
      %v4391 = vpack.c.bf16 %v4165, %v4164
      %v4392 = vpack.c.bf16 %v4167, %v4166
      %v4393 = vpack.c.bf16 %v4169, %v4168
      %v4394 = vpack.c.bf16 %v4171, %v4170
      %v4395 = vpack.c.bf16 %v4173, %v4172
      %v4396 = vpack.c.bf16 %v4175, %v4174
      %v4397 = vpack.c.bf16 %v4177, %v4176
      %v4398 = vpack.c.bf16 %v4179, %v4178
      %v4399 = vpack.c.bf16 %v4181, %v4180
      %v4400 = vpack.c.bf16 %v4183, %v4182
      %v4401 = vpack.c.bf16 %v4185, %v4184
      %v4418 = vunpack.c.l.b16 %v4386
      %v4419 = vunpack.c.h.b16 %v4386
      %v4420 = vunpack.c.l.b16 %v4387
      %v4421 = vunpack.c.h.b16 %v4387
      %v4422 = vunpack.c.l.b16 %v4388
      %v4423 = vunpack.c.h.b16 %v4388
      %v4424 = vunpack.c.l.b16 %v4389
      %v4425 = vunpack.c.h.b16 %v4389
      %v4426 = vunpack.c.l.b16 %v4390
      %v4427 = vunpack.c.h.b16 %v4390
      %v4428 = vunpack.c.l.b16 %v4391
      %v4429 = vunpack.c.h.b16 %v4391
      %v4430 = vunpack.c.l.b16 %v4392
      %v4431 = vunpack.c.h.b16 %v4392
      %v4432 = vunpack.c.l.b16 %v4393
      %v4433 = vunpack.c.h.b16 %v4393
      %v4434 = vunpack.c.l.b16 %v4394
      %v4435 = vunpack.c.h.b16 %v4394
      %v4436 = vunpack.c.l.b16 %v4395
      %v4437 = vunpack.c.h.b16 %v4395
      %v4438 = vunpack.c.l.b16 %v4396
      %v4439 = vunpack.c.h.b16 %v4396
      %v4440 = vunpack.c.l.b16 %v4397
      %v4441 = vunpack.c.h.b16 %v4397
      %v4442 = vunpack.c.l.b16 %v4398
      %v4443 = vunpack.c.h.b16 %v4398
      %v4444 = vunpack.c.l.b16 %v4399
      %v4445 = vunpack.c.h.b16 %v4399
      %v4446 = vunpack.c.l.b16 %v4400
      %v4447 = vunpack.c.h.b16 %v4400
      %v4448 = vunpack.c.l.b16 %v4401
      %v4449 = vunpack.c.h.b16 %v4401
      %v4450 = vpack.c.b16 %v4418, %v4418
      %v4451 = vpack.c.b16 %v4419, %v4419
      %v4452 = vpack.c.b16 %v4420, %v4420
      %v4453 = vpack.c.b16 %v4421, %v4421
      %v4454 = vpack.c.b16 %v4422, %v4422
      %v4455 = vpack.c.b16 %v4423, %v4423
      %v4456 = vpack.c.b16 %v4424, %v4424
      %v4457 = vpack.c.b16 %v4425, %v4425
      %v4458 = vpack.c.b16 %v4426, %v4426
      %v4459 = vpack.c.b16 %v4427, %v4427
      %v4460 = vpack.c.b16 %v4428, %v4428
      %v4461 = vpack.c.b16 %v4429, %v4429
      %v4462 = vpack.c.b16 %v4430, %v4430
      %v4463 = vpack.c.b16 %v4431, %v4431
      %v4464 = vpack.c.b16 %v4432, %v4432
      %v4465 = vpack.c.b16 %v4433, %v4433
      %v4466 = vpack.c.b16 %v4434, %v4434
      %v4467 = vpack.c.b16 %v4435, %v4435
      %v4468 = vpack.c.b16 %v4436, %v4436
      %v4469 = vpack.c.b16 %v4437, %v4437
      %v4470 = vpack.c.b16 %v4438, %v4438
      %v4471 = vpack.c.b16 %v4439, %v4439
      %v4472 = vpack.c.b16 %v4440, %v4440
      %v4473 = vpack.c.b16 %v4441, %v4441
      %v4474 = vpack.c.b16 %v4442, %v4442
      %v4475 = vpack.c.b16 %v4443, %v4443
      %v4476 = vpack.c.b16 %v4444, %v4444
      %v4477 = vpack.c.b16 %v4445, %v4445
      %v4478 = vpack.c.b16 %v4446, %v4446
      %v4479 = vpack.c.b16 %v4447, %v4447
      %v4480 = vpack.c.b16 %v4448, %v4448
      %v4481 = vpack.c.b16 %v4449, %v4449
      %v4483 = vshrl.u32 %v4450, 16
      %v4485 = vrot.slane %v4483, 7
      %v4486 = vshll.u32 %v4450, 16
      %v4488 = vor.u32 %v4485, %v4486
      %v4489 = vrot.slane %v4485, 4
      %v4491 = vshrl.u32 %v4451, 16
      %v4493 = vrot.slane %v4491, 7
      %v4494 = vshll.u32 %v4451, 16
      %v4496 = vor.u32 %v4493, %v4494
      %v4497 = vsel %vm356, %v4489, %v4496
      %v4498 = vrot.slane %v4493, 4
      %v4500 = vshrl.u32 %v4452, 16
      %v4502 = vrot.slane %v4500, 7
      %v4503 = vshll.u32 %v4452, 16
      %v4505 = vor.u32 %v4502, %v4503
      %v4506 = vrot.slane %v4502, 4
      %v4508 = vshrl.u32 %v4453, 16
      %v4510 = vrot.slane %v4508, 7
      %v4511 = vshll.u32 %v4453, 16
      %v4513 = vor.u32 %v4510, %v4511
      %v4514 = vsel %vm356, %v4506, %v4513
      %v4515 = vrot.slane %v4510, 4
      %v4517 = vshrl.u32 %v4454, 16
      %v4519 = vrot.slane %v4517, 7
      %v4520 = vshll.u32 %v4454, 16
      %v4522 = vor.u32 %v4519, %v4520
      %v4523 = vrot.slane %v4519, 4
      %v4525 = vshrl.u32 %v4455, 16
      %v4527 = vrot.slane %v4525, 7
      %v4528 = vshll.u32 %v4455, 16
      %v4530 = vor.u32 %v4527, %v4528
      %v4531 = vsel %vm356, %v4523, %v4530
      %v4532 = vrot.slane %v4527, 4
      %v4534 = vshrl.u32 %v4456, 16
      %v4536 = vrot.slane %v4534, 7
      %v4537 = vshll.u32 %v4456, 16
      %v4539 = vor.u32 %v4536, %v4537
      %v4540 = vrot.slane %v4536, 4
      %v4542 = vshrl.u32 %v4457, 16
      %v4544 = vrot.slane %v4542, 7
      %v4545 = vshll.u32 %v4457, 16
      %v4547 = vor.u32 %v4544, %v4545
      %v4548 = vsel %vm356, %v4540, %v4547
      %v4549 = vrot.slane %v4544, 4
      %v4551 = vshrl.u32 %v4458, 16
      %v4553 = vrot.slane %v4551, 7
      %v4554 = vshll.u32 %v4458, 16
      %v4556 = vor.u32 %v4553, %v4554
      %v4557 = vrot.slane %v4553, 4
      %v4559 = vshrl.u32 %v4459, 16
      %v4561 = vrot.slane %v4559, 7
      %v4562 = vshll.u32 %v4459, 16
      %v4564 = vor.u32 %v4561, %v4562
      %v4565 = vsel %vm356, %v4557, %v4564
      %v4566 = vrot.slane %v4561, 4
      %v4568 = vshrl.u32 %v4460, 16
      %v4570 = vrot.slane %v4568, 7
      %v4571 = vshll.u32 %v4460, 16
      %v4573 = vor.u32 %v4570, %v4571
      %v4574 = vrot.slane %v4570, 4
      %v4576 = vshrl.u32 %v4461, 16
      %v4578 = vrot.slane %v4576, 7
      %v4579 = vshll.u32 %v4461, 16
      %v4581 = vor.u32 %v4578, %v4579
      %v4582 = vsel %vm356, %v4574, %v4581
      %v4583 = vrot.slane %v4578, 4
      %v4585 = vshrl.u32 %v4462, 16
      %v4587 = vrot.slane %v4585, 7
      %v4588 = vshll.u32 %v4462, 16
      %v4590 = vor.u32 %v4587, %v4588
      %v4591 = vrot.slane %v4587, 4
      %v4593 = vshrl.u32 %v4463, 16
      %v4595 = vrot.slane %v4593, 7
      %v4596 = vshll.u32 %v4463, 16
      %v4598 = vor.u32 %v4595, %v4596
      %v4599 = vsel %vm356, %v4591, %v4598
      %v4600 = vrot.slane %v4595, 4
      %v4602 = vshrl.u32 %v4464, 16
      %v4604 = vrot.slane %v4602, 7
      %v4605 = vshll.u32 %v4464, 16
      %v4607 = vor.u32 %v4604, %v4605
      %v4608 = vrot.slane %v4604, 4
      %v4610 = vshrl.u32 %v4465, 16
      %v4612 = vrot.slane %v4610, 7
      %v4613 = vshll.u32 %v4465, 16
      %v4615 = vor.u32 %v4612, %v4613
      %v4616 = vsel %vm356, %v4608, %v4615
      %v4617 = vrot.slane %v4612, 4
      %v4619 = vshrl.u32 %v4466, 16
      %v4621 = vrot.slane %v4619, 7
      %v4622 = vshll.u32 %v4466, 16
      %v4624 = vor.u32 %v4621, %v4622
      %v4625 = vrot.slane %v4621, 4
      %v4627 = vshrl.u32 %v4467, 16
      %v4629 = vrot.slane %v4627, 7
      %v4630 = vshll.u32 %v4467, 16
      %v4632 = vor.u32 %v4629, %v4630
      %v4633 = vsel %vm356, %v4625, %v4632
      %v4634 = vrot.slane %v4629, 4
      %v4636 = vshrl.u32 %v4468, 16
      %v4638 = vrot.slane %v4636, 7
      %v4639 = vshll.u32 %v4468, 16
      %v4641 = vor.u32 %v4638, %v4639
      %v4642 = vrot.slane %v4638, 4
      %v4644 = vshrl.u32 %v4469, 16
      %v4646 = vrot.slane %v4644, 7
      %v4647 = vshll.u32 %v4469, 16
      %v4649 = vor.u32 %v4646, %v4647
      %v4650 = vsel %vm356, %v4642, %v4649
      %v4651 = vrot.slane %v4646, 4
      %v4653 = vshrl.u32 %v4470, 16
      %v4655 = vrot.slane %v4653, 7
      %v4656 = vshll.u32 %v4470, 16
      %v4658 = vor.u32 %v4655, %v4656
      %v4659 = vrot.slane %v4655, 4
      %v4661 = vshrl.u32 %v4471, 16
      %v4663 = vrot.slane %v4661, 7
      %v4664 = vshll.u32 %v4471, 16
      %v4666 = vor.u32 %v4663, %v4664
      %v4667 = vsel %vm356, %v4659, %v4666
      %v4668 = vrot.slane %v4663, 4
      %v4670 = vshrl.u32 %v4472, 16
      %v4672 = vrot.slane %v4670, 7
      %v4673 = vshll.u32 %v4472, 16
      %v4675 = vor.u32 %v4672, %v4673
      %v4676 = vrot.slane %v4672, 4
      %v4678 = vshrl.u32 %v4473, 16
      %v4680 = vrot.slane %v4678, 7
      %v4681 = vshll.u32 %v4473, 16
      %v4683 = vor.u32 %v4680, %v4681
      %v4684 = vsel %vm356, %v4676, %v4683
      %v4685 = vrot.slane %v4680, 4
      %v4687 = vshrl.u32 %v4474, 16
      %v4689 = vrot.slane %v4687, 7
      %v4690 = vshll.u32 %v4474, 16
      %v4692 = vor.u32 %v4689, %v4690
      %v4693 = vrot.slane %v4689, 4
      %v4695 = vshrl.u32 %v4475, 16
      %v4697 = vrot.slane %v4695, 7
      %v4698 = vshll.u32 %v4475, 16
      %v4700 = vor.u32 %v4697, %v4698
      %v4701 = vsel %vm356, %v4693, %v4700
      %v4702 = vrot.slane %v4697, 4
      %v4704 = vshrl.u32 %v4476, 16
      %v4706 = vrot.slane %v4704, 7
      %v4707 = vshll.u32 %v4476, 16
      %v4709 = vor.u32 %v4706, %v4707
      %v4710 = vrot.slane %v4706, 4
      %v4712 = vshrl.u32 %v4477, 16
      %v4714 = vrot.slane %v4712, 7
      %v4715 = vshll.u32 %v4477, 16
      %v4717 = vor.u32 %v4714, %v4715
      %v4718 = vsel %vm356, %v4710, %v4717
      %v4719 = vrot.slane %v4714, 4
      %v4721 = vshrl.u32 %v4478, 16
      %v4723 = vrot.slane %v4721, 7
      %v4724 = vshll.u32 %v4478, 16
      %v4726 = vor.u32 %v4723, %v4724
      %v4727 = vrot.slane %v4723, 4
      %v4729 = vshrl.u32 %v4479, 16
      %v4731 = vrot.slane %v4729, 7
      %v4732 = vshll.u32 %v4479, 16
      %v4734 = vor.u32 %v4731, %v4732
      %v4735 = vsel %vm356, %v4727, %v4734
      %v4736 = vrot.slane %v4731, 4
      %v4738 = vshrl.u32 %v4480, 16
      %v4740 = vrot.slane %v4738, 7
      %v4741 = vshll.u32 %v4480, 16
      %v4743 = vor.u32 %v4740, %v4741
      %v4744 = vrot.slane %v4740, 4
      %v4746 = vshrl.u32 %v4481, 16
      %v4748 = vrot.slane %v4746, 7
      %v4749 = vshll.u32 %v4481, 16
      %v4751 = vor.u32 %v4748, %v4749
      %v4752 = vsel %vm356, %v4744, %v4751
      %v4753 = vrot.slane %v4748, 4
      %s4802 = scalar_lea.vmem [#allocation4], 12
      %vm4803 = vcmask 519168
      %vm4804 = vmand %vm4803, %vm679
      %v4805 = vld [vmem:[%s4802] sm:$0xf]
      %v4806 = vsel %vm4804, %v4488, %v4805
      %4807 = vst [vmem:[%s4802] sm:$0xf] %v4806
      %4808 = vst.msk [vmem:[%s4802 + $0x4] sm:$0xf] %vm4266, %v4497
      %v4809 = vld [vmem:[%s4802 + $0x8] sm:$0x1]
      %v4810 = vsel %vm4276, %v4498, %v4809
      %4811 = vst [vmem:[%s4802 + $0x8] sm:$0x1] %v4810
      %v4812 = vld [vmem:[%s4802 + $0xc] sm:$0xf]
      %v4813 = vsel %vm4804, %v4505, %v4812
      %4814 = vst [vmem:[%s4802 + $0xc] sm:$0xf] %v4813
      %4815 = vst.msk [vmem:[%s4802 + $0x10] sm:$0xf] %vm4266, %v4514
      %v4816 = vld [vmem:[%s4802 + $0x14] sm:$0x1]
      %v4817 = vsel %vm4276, %v4515, %v4816
      %4818 = vst [vmem:[%s4802 + $0x14] sm:$0x1] %v4817
      %v4819 = vld [vmem:[%s4802 + $0x18] sm:$0xf]
      %v4820 = vsel %vm4804, %v4522, %v4819
      %4821 = vst [vmem:[%s4802 + $0x18] sm:$0xf] %v4820
      %4822 = vst.msk [vmem:[%s4802 + $0x1c] sm:$0xf] %vm4266, %v4531
      %v4823 = vld [vmem:[%s4802 + $0x20] sm:$0x1]
      %v4824 = vsel %vm4276, %v4532, %v4823
      %4825 = vst [vmem:[%s4802 + $0x20] sm:$0x1] %v4824
      %v4826 = vld [vmem:[%s4802 + $0x24] sm:$0xf]
      %v4827 = vsel %vm4804, %v4539, %v4826
      %4828 = vst [vmem:[%s4802 + $0x24] sm:$0xf] %v4827
      %4829 = vst.msk [vmem:[%s4802 + $0x28] sm:$0xf] %vm4266, %v4548
      %v4830 = vld [vmem:[%s4802 + $0x2c] sm:$0x1]
      %v4831 = vsel %vm4276, %v4549, %v4830
      %4832 = vst [vmem:[%s4802 + $0x2c] sm:$0x1] %v4831
      %v4833 = vld [vmem:[%s4802 + $0x30] sm:$0xf]
      %v4834 = vsel %vm4804, %v4556, %v4833
      %4835 = vst [vmem:[%s4802 + $0x30] sm:$0xf] %v4834
      %4836 = vst.msk [vmem:[%s4802 + $0x34] sm:$0xf] %vm4266, %v4565
      %v4837 = vld [vmem:[%s4802 + $0x38] sm:$0x1]
      %v4838 = vsel %vm4276, %v4566, %v4837
      %4839 = vst [vmem:[%s4802 + $0x38] sm:$0x1] %v4838
      %v4840 = vld [vmem:[%s4802 + $0x3c] sm:$0xf]
      %v4841 = vsel %vm4804, %v4573, %v4840
      %4842 = vst [vmem:[%s4802 + $0x3c] sm:$0xf] %v4841
      %4843 = vst.msk [vmem:[%s4802 + $0x40] sm:$0xf] %vm4266, %v4582
      %v4844 = vld [vmem:[%s4802 + $0x44] sm:$0x1]
      %v4845 = vsel %vm4276, %v4583, %v4844
      %4846 = vst [vmem:[%s4802 + $0x44] sm:$0x1] %v4845
      %v4847 = vld [vmem:[%s4802 + $0x48] sm:$0xf]
      %v4848 = vsel %vm4804, %v4590, %v4847
      %4849 = vst [vmem:[%s4802 + $0x48] sm:$0xf] %v4848
      %4850 = vst.msk [vmem:[%s4802 + $0x4c] sm:$0xf] %vm4266, %v4599
      %v4851 = vld [vmem:[%s4802 + $0x50] sm:$0x1]
      %v4852 = vsel %vm4276, %v4600, %v4851
      %4853 = vst [vmem:[%s4802 + $0x50] sm:$0x1] %v4852
      %v4854 = vld [vmem:[%s4802 + $0x54] sm:$0xf]
      %v4855 = vsel %vm4804, %v4607, %v4854
      %4856 = vst [vmem:[%s4802 + $0x54] sm:$0xf] %v4855
      %4857 = vst.msk [vmem:[%s4802 + $0x58] sm:$0xf] %vm4266, %v4616
      %v4858 = vld [vmem:[%s4802 + $0x5c] sm:$0x1]
      %v4859 = vsel %vm4276, %v4617, %v4858
      %4860 = vst [vmem:[%s4802 + $0x5c] sm:$0x1] %v4859
      %v4861 = vld [vmem:[%s4802 + $0x60] sm:$0xf]
      %v4862 = vsel %vm4804, %v4624, %v4861
      %4863 = vst [vmem:[%s4802 + $0x60] sm:$0xf] %v4862
      %4864 = vst.msk [vmem:[%s4802 + $0x64] sm:$0xf] %vm4266, %v4633
      %v4865 = vld [vmem:[%s4802 + $0x68] sm:$0x1]
      %v4866 = vsel %vm4276, %v4634, %v4865
      %4867 = vst [vmem:[%s4802 + $0x68] sm:$0x1] %v4866
      %v4868 = vld [vmem:[%s4802 + $0x6c] sm:$0xf]
      %v4869 = vsel %vm4804, %v4641, %v4868
      %4870 = vst [vmem:[%s4802 + $0x6c] sm:$0xf] %v4869
      %4871 = vst.msk [vmem:[%s4802 + $0x70] sm:$0xf] %vm4266, %v4650
      %v4872 = vld [vmem:[%s4802 + $0x74] sm:$0x1]
      %v4873 = vsel %vm4276, %v4651, %v4872
      %4874 = vst [vmem:[%s4802 + $0x74] sm:$0x1] %v4873
      %v4875 = vld [vmem:[%s4802 + $0x78] sm:$0xf]
      %v4876 = vsel %vm4804, %v4658, %v4875
      %4877 = vst [vmem:[%s4802 + $0x78] sm:$0xf] %v4876
      %4878 = vst.msk [vmem:[%s4802 + $0x7c] sm:$0xf] %vm4266, %v4667
      %v4879 = vld [vmem:[%s4802 + $0x80] sm:$0x1]
      %v4880 = vsel %vm4276, %v4668, %v4879
      %4881 = vst [vmem:[%s4802 + $0x80] sm:$0x1] %v4880
      %v4882 = vld [vmem:[%s4802 + $0x84] sm:$0xf]
      %v4883 = vsel %vm4804, %v4675, %v4882
      %4884 = vst [vmem:[%s4802 + $0x84] sm:$0xf] %v4883
      %4885 = vst.msk [vmem:[%s4802 + $0x88] sm:$0xf] %vm4266, %v4684
      %v4886 = vld [vmem:[%s4802 + $0x8c] sm:$0x1]
      %v4887 = vsel %vm4276, %v4685, %v4886
      %4888 = vst [vmem:[%s4802 + $0x8c] sm:$0x1] %v4887
      %v4889 = vld [vmem:[%s4802 + $0x90] sm:$0xf]
      %v4890 = vsel %vm4804, %v4692, %v4889
      %4891 = vst [vmem:[%s4802 + $0x90] sm:$0xf] %v4890
      %4892 = vst.msk [vmem:[%s4802 + $0x94] sm:$0xf] %vm4266, %v4701
      %v4893 = vld [vmem:[%s4802 + $0x98] sm:$0x1]
      %v4894 = vsel %vm4276, %v4702, %v4893
      %4895 = vst [vmem:[%s4802 + $0x98] sm:$0x1] %v4894
      %v4896 = vld [vmem:[%s4802 + $0x9c] sm:$0xf]
      %v4897 = vsel %vm4804, %v4709, %v4896
      %4898 = vst [vmem:[%s4802 + $0x9c] sm:$0xf] %v4897
      %4899 = vst.msk [vmem:[%s4802 + $0xa0] sm:$0xf] %vm4266, %v4718
      %v4900 = vld [vmem:[%s4802 + $0xa4] sm:$0x1]
      %v4901 = vsel %vm4276, %v4719, %v4900
      %4902 = vst [vmem:[%s4802 + $0xa4] sm:$0x1] %v4901
      %v4903 = vld [vmem:[%s4802 + $0xa8] sm:$0xf]
      %v4904 = vsel %vm4804, %v4726, %v4903
      %4905 = vst [vmem:[%s4802 + $0xa8] sm:$0xf] %v4904
      %4906 = vst.msk [vmem:[%s4802 + $0xac] sm:$0xf] %vm4266, %v4735
      %v4907 = vld [vmem:[%s4802 + $0xb0] sm:$0x1]
      %v4908 = vsel %vm4276, %v4736, %v4907
      %4909 = vst [vmem:[%s4802 + $0xb0] sm:$0x1] %v4908
      %v4910 = vld [vmem:[%s4802 + $0xb4] sm:$0xf]
      %v4911 = vsel %vm4804, %v4743, %v4910
      %4912 = vst [vmem:[%s4802 + $0xb4] sm:$0xf] %v4911
      %4913 = vst.msk [vmem:[%s4802 + $0xb8] sm:$0xf] %vm4266, %v4752
      %v4914 = vld [vmem:[%s4802 + $0xbc] sm:$0x1]
      %v4915 = vsel %vm4276, %v4753, %v4914
      %4916 = vst [vmem:[%s4802 + $0xbc] sm:$0x1] %v4915
      %v4917 = vld [vmem:[#allocation4] sm:$0xf]
      %v4918 = vld [vmem:[#allocation4 + $0x4] sm:$0xf]
      %v4919 = vld [vmem:[#allocation4 + $0xc] sm:$0xf]
      %v4920 = vld [vmem:[#allocation4 + $0x10] sm:$0xf]
      %v4921 = vld [vmem:[#allocation4 + $0x18] sm:$0xf]
      %v4922 = vld [vmem:[#allocation4 + $0x1c] sm:$0xf]
      %v4923 = vld [vmem:[#allocation4 + $0x24] sm:$0xf]
      %v4924 = vld [vmem:[#allocation4 + $0x28] sm:$0xf]
      %v4925 = vld [vmem:[#allocation4 + $0x30] sm:$0xf]
      %v4926 = vld [vmem:[#allocation4 + $0x34] sm:$0xf]
      %v4927 = vld [vmem:[#allocation4 + $0x3c] sm:$0xf]
      %v4928 = vld [vmem:[#allocation4 + $0x40] sm:$0xf]
      %v4929 = vld [vmem:[#allocation4 + $0x48] sm:$0xf]
      %v4930 = vld [vmem:[#allocation4 + $0x4c] sm:$0xf]
      %v4931 = vld [vmem:[#allocation4 + $0x54] sm:$0xf]
      %v4932 = vld [vmem:[#allocation4 + $0x58] sm:$0xf]
      %v4933 = vld [vmem:[#allocation4 + $0x60] sm:$0xf]
      %v4934 = vld [vmem:[#allocation4 + $0x64] sm:$0xf]
      %v4935 = vld [vmem:[#allocation4 + $0x6c] sm:$0xf]
      %v4936 = vld [vmem:[#allocation4 + $0x70] sm:$0xf]
      %v4937 = vld [vmem:[#allocation4 + $0x78] sm:$0xf]
      %v4938 = vld [vmem:[#allocation4 + $0x7c] sm:$0xf]
      %v4939 = vld [vmem:[#allocation4 + $0x84] sm:$0xf]
      %v4940 = vld [vmem:[#allocation4 + $0x88] sm:$0xf]
      %v4941 = vld [vmem:[#allocation4 + $0x90] sm:$0xf]
      %v4942 = vld [vmem:[#allocation4 + $0x94] sm:$0xf]
      %v4943 = vld [vmem:[#allocation4 + $0x9c] sm:$0xf]
      %v4944 = vld [vmem:[#allocation4 + $0xa0] sm:$0xf]
      %v4945 = vld [vmem:[#allocation4 + $0xa8] sm:$0xf]
      %v4946 = vld [vmem:[#allocation4 + $0xac] sm:$0xf]
      %v4947 = vld [vmem:[#allocation4 + $0xb4] sm:$0xf]
      %v4948 = vld [vmem:[#allocation4 + $0xb8] sm:$0xf]
      %v4981 = vunpack.c.l.b16 %v4917
      %v4982 = vunpack.c.l.b16 %v4918
      %v4983 = vunpack.c.l.b16 %v4919
      %v4984 = vunpack.c.l.b16 %v4920
      %v4985 = vunpack.c.l.b16 %v4921
      %v4986 = vunpack.c.l.b16 %v4922
      %v4987 = vunpack.c.l.b16 %v4923
      %v4988 = vunpack.c.l.b16 %v4924
      %v4989 = vunpack.c.l.b16 %v4925
      %v4990 = vunpack.c.l.b16 %v4926
      %v4991 = vunpack.c.l.b16 %v4927
      %v4992 = vunpack.c.l.b16 %v4928
      %v4993 = vunpack.c.l.b16 %v4929
      %v4994 = vunpack.c.l.b16 %v4930
      %v4995 = vunpack.c.l.b16 %v4931
      %v4996 = vunpack.c.l.b16 %v4932
      %v4997 = vunpack.c.l.b16 %v4933
      %v4998 = vunpack.c.l.b16 %v4934
      %v4999 = vunpack.c.l.b16 %v4935
      %v5000 = vunpack.c.l.b16 %v4936
      %v5001 = vunpack.c.l.b16 %v4937
      %v5002 = vunpack.c.l.b16 %v4938
      %v5003 = vunpack.c.l.b16 %v4939
      %v5004 = vunpack.c.l.b16 %v4940
      %v5005 = vunpack.c.l.b16 %v4941
      %v5006 = vunpack.c.l.b16 %v4942
      %v5007 = vunpack.c.l.b16 %v4943
      %v5008 = vunpack.c.l.b16 %v4944
      %v5009 = vunpack.c.l.b16 %v4945
      %v5010 = vunpack.c.l.b16 %v4946
      %v5011 = vunpack.c.l.b16 %v4947
      %v5012 = vunpack.c.l.b16 %v4948
      %v5013 = vpack.c.b16 %v4982, %v4981
      %v5014 = vpack.c.b16 %v4984, %v4983
      %v5015 = vpack.c.b16 %v4986, %v4985
      %v5016 = vpack.c.b16 %v4988, %v4987
      %v5017 = vpack.c.b16 %v4990, %v4989
      %v5018 = vpack.c.b16 %v4992, %v4991
      %v5019 = vpack.c.b16 %v4994, %v4993
      %v5020 = vpack.c.b16 %v4996, %v4995
      %v5021 = vpack.c.b16 %v4998, %v4997
      %v5022 = vpack.c.b16 %v5000, %v4999
      %v5023 = vpack.c.b16 %v5002, %v5001
      %v5024 = vpack.c.b16 %v5004, %v5003
      %v5025 = vpack.c.b16 %v5006, %v5005
      %v5026 = vpack.c.b16 %v5008, %v5007
      %v5027 = vpack.c.b16 %v5010, %v5009
      %v5028 = vpack.c.b16 %v5012, %v5011
      %vm5045 = vcmask 523264
      %5046 = vst.msk [vmem:[#allocation5] sm:$0xff] %vm5045, %v5013
      %5047 = vst.msk [vmem:[#allocation5 + $0x28] sm:$0xff] %vm5045, %v5014
      %5048 = vst.msk [vmem:[#allocation5 + $0x50] sm:$0xff] %vm5045, %v5015
      %5049 = vst.msk [vmem:[#allocation5 + $0x78] sm:$0xff] %vm5045, %v5016
      %5050 = vst.msk [vmem:[#allocation5 + $0xa0] sm:$0xff] %vm5045, %v5017
      %5051 = vst.msk [vmem:[#allocation5 + $0xc8] sm:$0xff] %vm5045, %v5018
      %5052 = vst.msk [vmem:[#allocation5 + $0xf0] sm:$0xff] %vm5045, %v5019
      %5053 = vst.msk [vmem:[#allocation5 + $0x118] sm:$0xff] %vm5045, %v5020
      %5054 = vst.msk [vmem:[#allocation5 + $0x140] sm:$0xff] %vm5045, %v5021
      %5055 = vst.msk [vmem:[#allocation5 + $0x168] sm:$0xff] %vm5045, %v5022
      %5056 = vst.msk [vmem:[#allocation5 + $0x190] sm:$0xff] %vm5045, %v5023
      %5057 = vst.msk [vmem:[#allocation5 + $0x1b8] sm:$0xff] %vm5045, %v5024
      %5058 = vst.msk [vmem:[#allocation5 + $0x1e0] sm:$0xff] %vm5045, %v5025
      %5059 = vst.msk [vmem:[#allocation5 + $0x208] sm:$0xff] %vm5045, %v5026
      %5060 = vst.msk [vmem:[#allocation5 + $0x230] sm:$0xff] %vm5045, %v5027
      %5061 = vst.msk [vmem:[#allocation5 + $0x258] sm:$0xff] %vm5045, %v5028
      %v5062 = vld [vmem:[#allocation4] sm:$0xf]
      %v5063 = vld [vmem:[#allocation4 + $0x4] sm:$0xf]
      %v5064 = vld [vmem:[#allocation4 + $0x8] sm:$0x1]
      %v5065 = vld [vmem:[#allocation4 + $0xc] sm:$0xf]
      %v5066 = vld [vmem:[#allocation4 + $0x10] sm:$0xf]
      %v5067 = vld [vmem:[#allocation4 + $0x14] sm:$0x1]
      %v5068 = vld [vmem:[#allocation4 + $0x18] sm:$0xf]
      %v5069 = vld [vmem:[#allocation4 + $0x1c] sm:$0xf]
      %v5070 = vld [vmem:[#allocation4 + $0x20] sm:$0x1]
      %v5071 = vld [vmem:[#allocation4 + $0x24] sm:$0xf]
      %v5072 = vld [vmem:[#allocation4 + $0x28] sm:$0xf]
      %v5073 = vld [vmem:[#allocation4 + $0x2c] sm:$0x1]
      %v5074 = vld [vmem:[#allocation4 + $0x30] sm:$0xf]
      %v5075 = vld [vmem:[#allocation4 + $0x34] sm:$0xf]
      %v5076 = vld [vmem:[#allocation4 + $0x38] sm:$0x1]
      %v5077 = vld [vmem:[#allocation4 + $0x3c] sm:$0xf]
      %v5078 = vld [vmem:[#allocation4 + $0x40] sm:$0xf]
      %v5079 = vld [vmem:[#allocation4 + $0x44] sm:$0x1]
      %v5080 = vld [vmem:[#allocation4 + $0x48] sm:$0xf]
      %v5081 = vld [vmem:[#allocation4 + $0x4c] sm:$0xf]
      %v5082 = vld [vmem:[#allocation4 + $0x50] sm:$0x1]
      %v5083 = vld [vmem:[#allocation4 + $0x54] sm:$0xf]
      %v5084 = vld [vmem:[#allocation4 + $0x58] sm:$0xf]
      %v5085 = vld [vmem:[#allocation4 + $0x5c] sm:$0x1]
      %v5086 = vld [vmem:[#allocation4 + $0x60] sm:$0xf]
      %v5087 = vld [vmem:[#allocation4 + $0x64] sm:$0xf]
      %v5088 = vld [vmem:[#allocation4 + $0x68] sm:$0x1]
      %v5089 = vld [vmem:[#allocation4 + $0x6c] sm:$0xf]
      %v5090 = vld [vmem:[#allocation4 + $0x70] sm:$0xf]
      %v5091 = vld [vmem:[#allocation4 + $0x74] sm:$0x1]
      %v5092 = vld [vmem:[#allocation4 + $0x78] sm:$0xf]
      %v5093 = vld [vmem:[#allocation4 + $0x7c] sm:$0xf]
      %v5094 = vld [vmem:[#allocation4 + $0x80] sm:$0x1]
      %v5095 = vld [vmem:[#allocation4 + $0x84] sm:$0xf]
      %v5096 = vld [vmem:[#allocation4 + $0x88] sm:$0xf]
      %v5097 = vld [vmem:[#allocation4 + $0x8c] sm:$0x1]
      %v5098 = vld [vmem:[#allocation4 + $0x90] sm:$0xf]
      %v5099 = vld [vmem:[#allocation4 + $0x94] sm:$0xf]
      %v5100 = vld [vmem:[#allocation4 + $0x98] sm:$0x1]
      %v5101 = vld [vmem:[#allocation4 + $0x9c] sm:$0xf]
      %v5102 = vld [vmem:[#allocation4 + $0xa0] sm:$0xf]
      %v5103 = vld [vmem:[#allocation4 + $0xa4] sm:$0x1]
      %v5104 = vld [vmem:[#allocation4 + $0xa8] sm:$0xf]
      %v5105 = vld [vmem:[#allocation4 + $0xac] sm:$0xf]
      %v5106 = vld [vmem:[#allocation4 + $0xb0] sm:$0x1]
      %v5107 = vld [vmem:[#allocation4 + $0xb4] sm:$0xf]
      %v5108 = vld [vmem:[#allocation4 + $0xb8] sm:$0xf]
      %v5109 = vld [vmem:[#allocation4 + $0xbc] sm:$0x1]
      %v5111 = vshrl.u32 %v5062, 16
      %v5113 = vrot.slane %v5111, 4
      %v5114 = vshll.u32 %v5062, 16
      %v5116 = vrot.slane %v5114, 5
      %v5117 = vor.u32 %v5113, %v5116
      %v5118 = vrot.slane %v5117, 4
      %v5120 = vshll.u32 %v5063, 16
      %v5122 = vrot.slane %v5120, 5
      %v5123 = vsel %vm990, %v5118, %v5122
      %v5124 = vshrl.u32 %v5063, 16
      %v5126 = vrot.slane %v5124, 4
      %v5127 = vor.u32 %v5126, %v5122
      %v5128 = vrot.slane %v5127, 4
      %v5130 = vshll.u32 %v5064, 16
      %v5132 = vrot.slane %v5130, 5
      %v5133 = vsel %vm990, %v5128, %v5132
      %v5135 = vshrl.u32 %v5065, 16
      %v5137 = vrot.slane %v5135, 4
      %v5138 = vshll.u32 %v5065, 16
      %v5140 = vrot.slane %v5138, 5
      %v5141 = vor.u32 %v5137, %v5140
      %v5142 = vrot.slane %v5141, 4
      %v5144 = vshll.u32 %v5066, 16
      %v5146 = vrot.slane %v5144, 5
      %v5147 = vsel %vm990, %v5142, %v5146
      %v5148 = vshrl.u32 %v5066, 16
      %v5150 = vrot.slane %v5148, 4
      %v5151 = vor.u32 %v5150, %v5146
      %v5152 = vrot.slane %v5151, 4
      %v5154 = vshll.u32 %v5067, 16
      %v5156 = vrot.slane %v5154, 5
      %v5157 = vsel %vm990, %v5152, %v5156
      %v5159 = vshrl.u32 %v5068, 16
      %v5161 = vrot.slane %v5159, 4
      %v5162 = vshll.u32 %v5068, 16
      %v5164 = vrot.slane %v5162, 5
      %v5165 = vor.u32 %v5161, %v5164
      %v5166 = vrot.slane %v5165, 4
      %v5168 = vshll.u32 %v5069, 16
      %v5170 = vrot.slane %v5168, 5
      %v5171 = vsel %vm990, %v5166, %v5170
      %v5172 = vshrl.u32 %v5069, 16
      %v5174 = vrot.slane %v5172, 4
      %v5175 = vor.u32 %v5174, %v5170
      %v5176 = vrot.slane %v5175, 4
      %v5178 = vshll.u32 %v5070, 16
      %v5180 = vrot.slane %v5178, 5
      %v5181 = vsel %vm990, %v5176, %v5180
      %v5183 = vshrl.u32 %v5071, 16
      %v5185 = vrot.slane %v5183, 4
      %v5186 = vshll.u32 %v5071, 16
      %v5188 = vrot.slane %v5186, 5
      %v5189 = vor.u32 %v5185, %v5188
      %v5190 = vrot.slane %v5189, 4
      %v5192 = vshll.u32 %v5072, 16
      %v5194 = vrot.slane %v5192, 5
      %v5195 = vsel %vm990, %v5190, %v5194
      %v5196 = vshrl.u32 %v5072, 16
      %v5198 = vrot.slane %v5196, 4
      %v5199 = vor.u32 %v5198, %v5194
      %v5200 = vrot.slane %v5199, 4
      %v5202 = vshll.u32 %v5073, 16
      %v5204 = vrot.slane %v5202, 5
      %v5205 = vsel %vm990, %v5200, %v5204
      %v5207 = vshrl.u32 %v5074, 16
      %v5209 = vrot.slane %v5207, 4
      %v5210 = vshll.u32 %v5074, 16
      %v5212 = vrot.slane %v5210, 5
      %v5213 = vor.u32 %v5209, %v5212
      %v5214 = vrot.slane %v5213, 4
      %v5216 = vshll.u32 %v5075, 16
      %v5218 = vrot.slane %v5216, 5
      %v5219 = vsel %vm990, %v5214, %v5218
      %v5220 = vshrl.u32 %v5075, 16
      %v5222 = vrot.slane %v5220, 4
      %v5223 = vor.u32 %v5222, %v5218
      %v5224 = vrot.slane %v5223, 4
      %v5226 = vshll.u32 %v5076, 16
      %v5228 = vrot.slane %v5226, 5
      %v5229 = vsel %vm990, %v5224, %v5228
      %v5231 = vshrl.u32 %v5077, 16
      %v5233 = vrot.slane %v5231, 4
      %v5234 = vshll.u32 %v5077, 16
      %v5236 = vrot.slane %v5234, 5
      %v5237 = vor.u32 %v5233, %v5236
      %v5238 = vrot.slane %v5237, 4
      %v5240 = vshll.u32 %v5078, 16
      %v5242 = vrot.slane %v5240, 5
      %v5243 = vsel %vm990, %v5238, %v5242
      %v5244 = vshrl.u32 %v5078, 16
      %v5246 = vrot.slane %v5244, 4
      %v5247 = vor.u32 %v5246, %v5242
      %v5248 = vrot.slane %v5247, 4
      %v5250 = vshll.u32 %v5079, 16
      %v5252 = vrot.slane %v5250, 5
      %v5253 = vsel %vm990, %v5248, %v5252
      %v5255 = vshrl.u32 %v5080, 16
      %v5257 = vrot.slane %v5255, 4
      %v5258 = vshll.u32 %v5080, 16
      %v5260 = vrot.slane %v5258, 5
      %v5261 = vor.u32 %v5257, %v5260
      %v5262 = vrot.slane %v5261, 4
      %v5264 = vshll.u32 %v5081, 16
      %v5266 = vrot.slane %v5264, 5
      %v5267 = vsel %vm990, %v5262, %v5266
      %v5268 = vshrl.u32 %v5081, 16
      %v5270 = vrot.slane %v5268, 4
      %v5271 = vor.u32 %v5270, %v5266
      %v5272 = vrot.slane %v5271, 4
      %v5274 = vshll.u32 %v5082, 16
      %v5276 = vrot.slane %v5274, 5
      %v5277 = vsel %vm990, %v5272, %v5276
      %v5279 = vshrl.u32 %v5083, 16
      %v5281 = vrot.slane %v5279, 4
      %v5282 = vshll.u32 %v5083, 16
      %v5284 = vrot.slane %v5282, 5
      %v5285 = vor.u32 %v5281, %v5284
      %v5286 = vrot.slane %v5285, 4
      %v5288 = vshll.u32 %v5084, 16
      %v5290 = vrot.slane %v5288, 5
      %v5291 = vsel %vm990, %v5286, %v5290
      %v5292 = vshrl.u32 %v5084, 16
      %v5294 = vrot.slane %v5292, 4
      %v5295 = vor.u32 %v5294, %v5290
      %v5296 = vrot.slane %v5295, 4
      %v5298 = vshll.u32 %v5085, 16
      %v5300 = vrot.slane %v5298, 5
      %v5301 = vsel %vm990, %v5296, %v5300
      %v5303 = vshrl.u32 %v5086, 16
      %v5305 = vrot.slane %v5303, 4
      %v5306 = vshll.u32 %v5086, 16
      %v5308 = vrot.slane %v5306, 5
      %v5309 = vor.u32 %v5305, %v5308
      %v5310 = vrot.slane %v5309, 4
      %v5312 = vshll.u32 %v5087, 16
      %v5314 = vrot.slane %v5312, 5
      %v5315 = vsel %vm990, %v5310, %v5314
      %v5316 = vshrl.u32 %v5087, 16
      %v5318 = vrot.slane %v5316, 4
      %v5319 = vor.u32 %v5318, %v5314
      %v5320 = vrot.slane %v5319, 4
      %v5322 = vshll.u32 %v5088, 16
      %v5324 = vrot.slane %v5322, 5
      %v5325 = vsel %vm990, %v5320, %v5324
      %v5327 = vshrl.u32 %v5089, 16
      %v5329 = vrot.slane %v5327, 4
      %v5330 = vshll.u32 %v5089, 16
      %v5332 = vrot.slane %v5330, 5
      %v5333 = vor.u32 %v5329, %v5332
      %v5334 = vrot.slane %v5333, 4
      %v5336 = vshll.u32 %v5090, 16
      %v5338 = vrot.slane %v5336, 5
      %v5339 = vsel %vm990, %v5334, %v5338
      %v5340 = vshrl.u32 %v5090, 16
      %v5342 = vrot.slane %v5340, 4
      %v5343 = vor.u32 %v5342, %v5338
      %v5344 = vrot.slane %v5343, 4
      %v5346 = vshll.u32 %v5091, 16
      %v5348 = vrot.slane %v5346, 5
      %v5349 = vsel %vm990, %v5344, %v5348
      %v5351 = vshrl.u32 %v5092, 16
      %v5353 = vrot.slane %v5351, 4
      %v5354 = vshll.u32 %v5092, 16
      %v5356 = vrot.slane %v5354, 5
      %v5357 = vor.u32 %v5353, %v5356
      %v5358 = vrot.slane %v5357, 4
      %v5360 = vshll.u32 %v5093, 16
      %v5362 = vrot.slane %v5360, 5
      %v5363 = vsel %vm990, %v5358, %v5362
      %v5364 = vshrl.u32 %v5093, 16
      %v5366 = vrot.slane %v5364, 4
      %v5367 = vor.u32 %v5366, %v5362
      %v5368 = vrot.slane %v5367, 4
      %v5370 = vshll.u32 %v5094, 16
      %v5372 = vrot.slane %v5370, 5
      %v5373 = vsel %vm990, %v5368, %v5372
      %v5375 = vshrl.u32 %v5095, 16
      %v5377 = vrot.slane %v5375, 4
      %v5378 = vshll.u32 %v5095, 16
      %v5380 = vrot.slane %v5378, 5
      %v5381 = vor.u32 %v5377, %v5380
      %v5382 = vrot.slane %v5381, 4
      %v5384 = vshll.u32 %v5096, 16
      %v5386 = vrot.slane %v5384, 5
      %v5387 = vsel %vm990, %v5382, %v5386
      %v5388 = vshrl.u32 %v5096, 16
      %v5390 = vrot.slane %v5388, 4
      %v5391 = vor.u32 %v5390, %v5386
      %v5392 = vrot.slane %v5391, 4
      %v5394 = vshll.u32 %v5097, 16
      %v5396 = vrot.slane %v5394, 5
      %v5397 = vsel %vm990, %v5392, %v5396
      %v5399 = vshrl.u32 %v5098, 16
      %v5401 = vrot.slane %v5399, 4
      %v5402 = vshll.u32 %v5098, 16
      %v5404 = vrot.slane %v5402, 5
      %v5405 = vor.u32 %v5401, %v5404
      %v5406 = vrot.slane %v5405, 4
      %v5408 = vshll.u32 %v5099, 16
      %v5410 = vrot.slane %v5408, 5
      %v5411 = vsel %vm990, %v5406, %v5410
      %v5412 = vshrl.u32 %v5099, 16
      %v5414 = vrot.slane %v5412, 4
      %v5415 = vor.u32 %v5414, %v5410
      %v5416 = vrot.slane %v5415, 4
      %v5418 = vshll.u32 %v5100, 16
      %v5420 = vrot.slane %v5418, 5
      %v5421 = vsel %vm990, %v5416, %v5420
      %v5423 = vshrl.u32 %v5101, 16
      %v5425 = vrot.slane %v5423, 4
      %v5426 = vshll.u32 %v5101, 16
      %v5428 = vrot.slane %v5426, 5
      %v5429 = vor.u32 %v5425, %v5428
      %v5430 = vrot.slane %v5429, 4
      %v5432 = vshll.u32 %v5102, 16
      %v5434 = vrot.slane %v5432, 5
      %v5435 = vsel %vm990, %v5430, %v5434
      %v5436 = vshrl.u32 %v5102, 16
      %v5438 = vrot.slane %v5436, 4
      %v5439 = vor.u32 %v5438, %v5434
      %v5440 = vrot.slane %v5439, 4
      %v5442 = vshll.u32 %v5103, 16
      %v5444 = vrot.slane %v5442, 5
      %v5445 = vsel %vm990, %v5440, %v5444
      %v5447 = vshrl.u32 %v5104, 16
      %v5449 = vrot.slane %v5447, 4
      %v5450 = vshll.u32 %v5104, 16
      %v5452 = vrot.slane %v5450, 5
      %v5453 = vor.u32 %v5449, %v5452
      %v5454 = vrot.slane %v5453, 4
      %v5456 = vshll.u32 %v5105, 16
      %v5458 = vrot.slane %v5456, 5
      %v5459 = vsel %vm990, %v5454, %v5458
      %v5460 = vshrl.u32 %v5105, 16
      %v5462 = vrot.slane %v5460, 4
      %v5463 = vor.u32 %v5462, %v5458
      %v5464 = vrot.slane %v5463, 4
      %v5466 = vshll.u32 %v5106, 16
      %v5468 = vrot.slane %v5466, 5
      %v5469 = vsel %vm990, %v5464, %v5468
      %v5471 = vshrl.u32 %v5107, 16
      %v5473 = vrot.slane %v5471, 4
      %v5474 = vshll.u32 %v5107, 16
      %v5476 = vrot.slane %v5474, 5
      %v5477 = vor.u32 %v5473, %v5476
      %v5478 = vrot.slane %v5477, 4
      %v5480 = vshll.u32 %v5108, 16
      %v5482 = vrot.slane %v5480, 5
      %v5483 = vsel %vm990, %v5478, %v5482
      %v5484 = vshrl.u32 %v5108, 16
      %v5486 = vrot.slane %v5484, 4
      %v5487 = vor.u32 %v5486, %v5482
      %v5488 = vrot.slane %v5487, 4
      %v5490 = vshll.u32 %v5109, 16
      %v5492 = vrot.slane %v5490, 5
      %v5493 = vsel %vm990, %v5488, %v5492
      %v5494 = vunpack.c.l.b16 %v5123
      %v5495 = vunpack.c.l.b16 %v5133
      %v5496 = vunpack.c.l.b16 %v5147
      %v5497 = vunpack.c.l.b16 %v5157
      %v5498 = vunpack.c.l.b16 %v5171
      %v5499 = vunpack.c.l.b16 %v5181
      %v5500 = vunpack.c.l.b16 %v5195
      %v5501 = vunpack.c.l.b16 %v5205
      %v5502 = vunpack.c.l.b16 %v5219
      %v5503 = vunpack.c.l.b16 %v5229
      %v5504 = vunpack.c.l.b16 %v5243
      %v5505 = vunpack.c.l.b16 %v5253
      %v5506 = vunpack.c.l.b16 %v5267
      %v5507 = vunpack.c.l.b16 %v5277
      %v5508 = vunpack.c.l.b16 %v5291
      %v5509 = vunpack.c.l.b16 %v5301
      %v5510 = vunpack.c.l.b16 %v5315
      %v5511 = vunpack.c.l.b16 %v5325
      %v5512 = vunpack.c.l.b16 %v5339
      %v5513 = vunpack.c.l.b16 %v5349
      %v5514 = vunpack.c.l.b16 %v5363
      %v5515 = vunpack.c.l.b16 %v5373
      %v5516 = vunpack.c.l.b16 %v5387
      %v5517 = vunpack.c.l.b16 %v5397
      %v5518 = vunpack.c.l.b16 %v5411
      %v5519 = vunpack.c.l.b16 %v5421
      %v5520 = vunpack.c.l.b16 %v5435
      %v5521 = vunpack.c.l.b16 %v5445
      %v5522 = vunpack.c.l.b16 %v5459
      %v5523 = vunpack.c.l.b16 %v5469
      %v5524 = vunpack.c.l.b16 %v5483
      %v5525 = vunpack.c.l.b16 %v5493
      %v5526 = vpack.c.b16 %v5495, %v5494
      %v5527 = vpack.c.b16 %v5497, %v5496
      %v5528 = vpack.c.b16 %v5499, %v5498
      %v5529 = vpack.c.b16 %v5501, %v5500
      %v5530 = vpack.c.b16 %v5503, %v5502
      %v5531 = vpack.c.b16 %v5505, %v5504
      %v5532 = vpack.c.b16 %v5507, %v5506
      %v5533 = vpack.c.b16 %v5509, %v5508
      %v5534 = vpack.c.b16 %v5511, %v5510
      %v5535 = vpack.c.b16 %v5513, %v5512
      %v5536 = vpack.c.b16 %v5515, %v5514
      %v5537 = vpack.c.b16 %v5517, %v5516
      %v5538 = vpack.c.b16 %v5519, %v5518
      %v5539 = vpack.c.b16 %v5521, %v5520
      %v5540 = vpack.c.b16 %v5523, %v5522
      %v5541 = vpack.c.b16 %v5525, %v5524
      %5542 = vrot.lane.b32.xlu0 %v5526, 64
      %v5543 = vpop.permute.xlu0 %5542
      %5544 = vrot.lane.b32.xlu0 %v5527, 64
      %v5545 = vpop.permute.xlu0 %5544
      %5546 = vrot.lane.b32.xlu0 %v5528, 64
      %v5547 = vpop.permute.xlu0 %5546
      %5548 = vrot.lane.b32.xlu0 %v5529, 64
      %v5549 = vpop.permute.xlu0 %5548
      %5550 = vrot.lane.b32.xlu0 %v5530, 64
      %v5551 = vpop.permute.xlu0 %5550
      %5552 = vrot.lane.b32.xlu0 %v5531, 64
      %v5553 = vpop.permute.xlu0 %5552
      %5554 = vrot.lane.b32.xlu0 %v5532, 64
      %v5555 = vpop.permute.xlu0 %5554
      %5556 = vrot.lane.b32.xlu0 %v5533, 64
      %v5557 = vpop.permute.xlu0 %5556
      %5558 = vrot.lane.b32.xlu0 %v5534, 64
      %v5559 = vpop.permute.xlu0 %5558
      %5560 = vrot.lane.b32.xlu0 %v5535, 64
      %v5561 = vpop.permute.xlu0 %5560
      %5562 = vrot.lane.b32.xlu0 %v5536, 64
      %v5563 = vpop.permute.xlu0 %5562
      %5564 = vrot.lane.b32.xlu0 %v5537, 64
      %v5565 = vpop.permute.xlu0 %5564
      %5566 = vrot.lane.b32.xlu0 %v5538, 64
      %v5567 = vpop.permute.xlu0 %5566
      %5568 = vrot.lane.b32.xlu0 %v5539, 64
      %v5569 = vpop.permute.xlu0 %5568
      %5570 = vrot.lane.b32.xlu0 %v5540, 64
      %v5571 = vpop.permute.xlu0 %5570
      %5572 = vrot.lane.b32.xlu0 %v5541, 64
      %v5573 = vpop.permute.xlu0 %5572
      %vm5590 = vcmask 1048064
      %5591 = vst.msk [vmem:[#allocation5] sm:$0xff] %vm5590, %v5543
      %5592 = vst.msk [vmem:[#allocation5 + $0x28] sm:$0xff] %vm5590, %v5545
      %5593 = vst.msk [vmem:[#allocation5 + $0x50] sm:$0xff] %vm5590, %v5547
      %5594 = vst.msk [vmem:[#allocation5 + $0x78] sm:$0xff] %vm5590, %v5549
      %5595 = vst.msk [vmem:[#allocation5 + $0xa0] sm:$0xff] %vm5590, %v5551
      %5596 = vst.msk [vmem:[#allocation5 + $0xc8] sm:$0xff] %vm5590, %v5553
      %5597 = vst.msk [vmem:[#allocation5 + $0xf0] sm:$0xff] %vm5590, %v5555
      %5598 = vst.msk [vmem:[#allocation5 + $0x118] sm:$0xff] %vm5590, %v5557
      %5599 = vst.msk [vmem:[#allocation5 + $0x140] sm:$0xff] %vm5590, %v5559
      %5600 = vst.msk [vmem:[#allocation5 + $0x168] sm:$0xff] %vm5590, %v5561
      %5601 = vst.msk [vmem:[#allocation5 + $0x190] sm:$0xff] %vm5590, %v5563
      %5602 = vst.msk [vmem:[#allocation5 + $0x1b8] sm:$0xff] %vm5590, %v5565
      %5603 = vst.msk [vmem:[#allocation5 + $0x1e0] sm:$0xff] %vm5590, %v5567
      %5604 = vst.msk [vmem:[#allocation5 + $0x208] sm:$0xff] %vm5590, %v5569
      %5605 = vst.msk [vmem:[#allocation5 + $0x230] sm:$0xff] %vm5590, %v5571
      %5606 = vst.msk [vmem:[#allocation5 + $0x258] sm:$0xff] %vm5590, %v5573
      %v5607 = vld [vmem:[#allocation4] sm:$0xe]
      %v5608 = vld [vmem:[#allocation4 + $0x4] sm:$0xf]
      %v5609 = vld [vmem:[#allocation4 + $0x8] sm:$0x1]
      %v5610 = vld [vmem:[#allocation4 + $0xc] sm:$0xe]
      %v5611 = vld [vmem:[#allocation4 + $0x10] sm:$0xf]
      %v5612 = vld [vmem:[#allocation4 + $0x14] sm:$0x1]
      %v5613 = vld [vmem:[#allocation4 + $0x18] sm:$0xe]
      %v5614 = vld [vmem:[#allocation4 + $0x1c] sm:$0xf]
      %v5615 = vld [vmem:[#allocation4 + $0x20] sm:$0x1]
      %v5616 = vld [vmem:[#allocation4 + $0x24] sm:$0xe]
      %v5617 = vld [vmem:[#allocation4 + $0x28] sm:$0xf]
      %v5618 = vld [vmem:[#allocation4 + $0x2c] sm:$0x1]
      %v5619 = vld [vmem:[#allocation4 + $0x30] sm:$0xe]
      %v5620 = vld [vmem:[#allocation4 + $0x34] sm:$0xf]
      %v5621 = vld [vmem:[#allocation4 + $0x38] sm:$0x1]
      %v5622 = vld [vmem:[#allocation4 + $0x3c] sm:$0xe]
      %v5623 = vld [vmem:[#allocation4 + $0x40] sm:$0xf]
      %v5624 = vld [vmem:[#allocation4 + $0x44] sm:$0x1]
      %v5625 = vld [vmem:[#allocation4 + $0x48] sm:$0xe]
      %v5626 = vld [vmem:[#allocation4 + $0x4c] sm:$0xf]
      %v5627 = vld [vmem:[#allocation4 + $0x50] sm:$0x1]
      %v5628 = vld [vmem:[#allocation4 + $0x54] sm:$0xe]
      %v5629 = vld [vmem:[#allocation4 + $0x58] sm:$0xf]
      %v5630 = vld [vmem:[#allocation4 + $0x5c] sm:$0x1]
      %v5631 = vld [vmem:[#allocation4 + $0x60] sm:$0xe]
      %v5632 = vld [vmem:[#allocation4 + $0x64] sm:$0xf]
      %v5633 = vld [vmem:[#allocation4 + $0x68] sm:$0x1]
      %v5634 = vld [vmem:[#allocation4 + $0x6c] sm:$0xe]
      %v5635 = vld [vmem:[#allocation4 + $0x70] sm:$0xf]
      %v5636 = vld [vmem:[#allocation4 + $0x74] sm:$0x1]
      %v5637 = vld [vmem:[#allocation4 + $0x78] sm:$0xe]
      %v5638 = vld [vmem:[#allocation4 + $0x7c] sm:$0xf]
      %v5639 = vld [vmem:[#allocation4 + $0x80] sm:$0x1]
      %v5640 = vld [vmem:[#allocation4 + $0x84] sm:$0xe]
      %v5641 = vld [vmem:[#allocation4 + $0x88] sm:$0xf]
      %v5642 = vld [vmem:[#allocation4 + $0x8c] sm:$0x1]
      %v5643 = vld [vmem:[#allocation4 + $0x90] sm:$0xe]
      %v5644 = vld [vmem:[#allocation4 + $0x94] sm:$0xf]
      %v5645 = vld [vmem:[#allocation4 + $0x98] sm:$0x1]
      %v5646 = vld [vmem:[#allocation4 + $0x9c] sm:$0xe]
      %v5647 = vld [vmem:[#allocation4 + $0xa0] sm:$0xf]
      %v5648 = vld [vmem:[#allocation4 + $0xa4] sm:$0x1]
      %v5649 = vld [vmem:[#allocation4 + $0xa8] sm:$0xe]
      %v5650 = vld [vmem:[#allocation4 + $0xac] sm:$0xf]
      %v5651 = vld [vmem:[#allocation4 + $0xb0] sm:$0x1]
      %v5652 = vld [vmem:[#allocation4 + $0xb4] sm:$0xe]
      %v5653 = vld [vmem:[#allocation4 + $0xb8] sm:$0xf]
      %v5654 = vld [vmem:[#allocation4 + $0xbc] sm:$0x1]
      %v5703 = vrot.slane %v5607, 5
      %v5704 = vrot.slane %v5703, 4
      %v5705 = vrot.slane %v5608, 5
      %v5706 = vsel %vm1586, %v5704, %v5705
      %v5707 = vrot.slane %v5705, 4
      %v5708 = vrot.slane %v5609, 5
      %v5709 = vsel %vm1586, %v5707, %v5708
      %v5710 = vrot.slane %v5610, 5
      %v5711 = vrot.slane %v5710, 4
      %v5712 = vrot.slane %v5611, 5
      %v5713 = vsel %vm1586, %v5711, %v5712
      %v5714 = vrot.slane %v5712, 4
      %v5715 = vrot.slane %v5612, 5
      %v5716 = vsel %vm1586, %v5714, %v5715
      %v5717 = vrot.slane %v5613, 5
      %v5718 = vrot.slane %v5717, 4
      %v5719 = vrot.slane %v5614, 5
      %v5720 = vsel %vm1586, %v5718, %v5719
      %v5721 = vrot.slane %v5719, 4
      %v5722 = vrot.slane %v5615, 5
      %v5723 = vsel %vm1586, %v5721, %v5722
      %v5724 = vrot.slane %v5616, 5
      %v5725 = vrot.slane %v5724, 4
      %v5726 = vrot.slane %v5617, 5
      %v5727 = vsel %vm1586, %v5725, %v5726
      %v5728 = vrot.slane %v5726, 4
      %v5729 = vrot.slane %v5618, 5
      %v5730 = vsel %vm1586, %v5728, %v5729
      %v5731 = vrot.slane %v5619, 5
      %v5732 = vrot.slane %v5731, 4
      %v5733 = vrot.slane %v5620, 5
      %v5734 = vsel %vm1586, %v5732, %v5733
      %v5735 = vrot.slane %v5733, 4
      %v5736 = vrot.slane %v5621, 5
      %v5737 = vsel %vm1586, %v5735, %v5736
      %v5738 = vrot.slane %v5622, 5
      %v5739 = vrot.slane %v5738, 4
      %v5740 = vrot.slane %v5623, 5
      %v5741 = vsel %vm1586, %v5739, %v5740
      %v5742 = vrot.slane %v5740, 4
      %v5743 = vrot.slane %v5624, 5
      %v5744 = vsel %vm1586, %v5742, %v5743
      %v5745 = vrot.slane %v5625, 5
      %v5746 = vrot.slane %v5745, 4
      %v5747 = vrot.slane %v5626, 5
      %v5748 = vsel %vm1586, %v5746, %v5747
      %v5749 = vrot.slane %v5747, 4
      %v5750 = vrot.slane %v5627, 5
      %v5751 = vsel %vm1586, %v5749, %v5750
      %v5752 = vrot.slane %v5628, 5
      %v5753 = vrot.slane %v5752, 4
      %v5754 = vrot.slane %v5629, 5
      %v5755 = vsel %vm1586, %v5753, %v5754
      %v5756 = vrot.slane %v5754, 4
      %v5757 = vrot.slane %v5630, 5
      %v5758 = vsel %vm1586, %v5756, %v5757
      %v5759 = vrot.slane %v5631, 5
      %v5760 = vrot.slane %v5759, 4
      %v5761 = vrot.slane %v5632, 5
      %v5762 = vsel %vm1586, %v5760, %v5761
      %v5763 = vrot.slane %v5761, 4
      %v5764 = vrot.slane %v5633, 5
      %v5765 = vsel %vm1586, %v5763, %v5764
      %v5766 = vrot.slane %v5634, 5
      %v5767 = vrot.slane %v5766, 4
      %v5768 = vrot.slane %v5635, 5
      %v5769 = vsel %vm1586, %v5767, %v5768
      %v5770 = vrot.slane %v5768, 4
      %v5771 = vrot.slane %v5636, 5
      %v5772 = vsel %vm1586, %v5770, %v5771
      %v5773 = vrot.slane %v5637, 5
      %v5774 = vrot.slane %v5773, 4
      %v5775 = vrot.slane %v5638, 5
      %v5776 = vsel %vm1586, %v5774, %v5775
      %v5777 = vrot.slane %v5775, 4
      %v5778 = vrot.slane %v5639, 5
      %v5779 = vsel %vm1586, %v5777, %v5778
      %v5780 = vrot.slane %v5640, 5
      %v5781 = vrot.slane %v5780, 4
      %v5782 = vrot.slane %v5641, 5
      %v5783 = vsel %vm1586, %v5781, %v5782
      %v5784 = vrot.slane %v5782, 4
      %v5785 = vrot.slane %v5642, 5
      %v5786 = vsel %vm1586, %v5784, %v5785
      %v5787 = vrot.slane %v5643, 5
      %v5788 = vrot.slane %v5787, 4
      %v5789 = vrot.slane %v5644, 5
      %v5790 = vsel %vm1586, %v5788, %v5789
      %v5791 = vrot.slane %v5789, 4
      %v5792 = vrot.slane %v5645, 5
      %v5793 = vsel %vm1586, %v5791, %v5792
      %v5794 = vrot.slane %v5646, 5
      %v5795 = vrot.slane %v5794, 4
      %v5796 = vrot.slane %v5647, 5
      %v5797 = vsel %vm1586, %v5795, %v5796
      %v5798 = vrot.slane %v5796, 4
      %v5799 = vrot.slane %v5648, 5
      %v5800 = vsel %vm1586, %v5798, %v5799
      %v5801 = vrot.slane %v5649, 5
      %v5802 = vrot.slane %v5801, 4
      %v5803 = vrot.slane %v5650, 5
      %v5804 = vsel %vm1586, %v5802, %v5803
      %v5805 = vrot.slane %v5803, 4
      %v5806 = vrot.slane %v5651, 5
      %v5807 = vsel %vm1586, %v5805, %v5806
      %v5808 = vrot.slane %v5652, 5
      %v5809 = vrot.slane %v5808, 4
      %v5810 = vrot.slane %v5653, 5
      %v5811 = vsel %vm1586, %v5809, %v5810
      %v5812 = vrot.slane %v5810, 4
      %v5813 = vrot.slane %v5654, 5
      %v5814 = vsel %vm1586, %v5812, %v5813
      %v5815 = vunpack.c.l.b16 %v5706
      %v5816 = vunpack.c.l.b16 %v5709
      %v5817 = vunpack.c.l.b16 %v5713
      %v5818 = vunpack.c.l.b16 %v5716
      %v5819 = vunpack.c.l.b16 %v5720
      %v5820 = vunpack.c.l.b16 %v5723
      %v5821 = vunpack.c.l.b16 %v5727
      %v5822 = vunpack.c.l.b16 %v5730
      %v5823 = vunpack.c.l.b16 %v5734
      %v5824 = vunpack.c.l.b16 %v5737
      %v5825 = vunpack.c.l.b16 %v5741
      %v5826 = vunpack.c.l.b16 %v5744
      %v5827 = vunpack.c.l.b16 %v5748
      %v5828 = vunpack.c.l.b16 %v5751
      %v5829 = vunpack.c.l.b16 %v5755
      %v5830 = vunpack.c.l.b16 %v5758
      %v5831 = vunpack.c.l.b16 %v5762
      %v5832 = vunpack.c.l.b16 %v5765
      %v5833 = vunpack.c.l.b16 %v5769
      %v5834 = vunpack.c.l.b16 %v5772
      %v5835 = vunpack.c.l.b16 %v5776
      %v5836 = vunpack.c.l.b16 %v5779
      %v5837 = vunpack.c.l.b16 %v5783
      %v5838 = vunpack.c.l.b16 %v5786
      %v5839 = vunpack.c.l.b16 %v5790
      %v5840 = vunpack.c.l.b16 %v5793
      %v5841 = vunpack.c.l.b16 %v5797
      %v5842 = vunpack.c.l.b16 %v5800
      %v5843 = vunpack.c.l.b16 %v5804
      %v5844 = vunpack.c.l.b16 %v5807
      %v5845 = vunpack.c.l.b16 %v5811
      %v5846 = vunpack.c.l.b16 %v5814
      %v5847 = vpack.c.b16 %v5816, %v5815
      %v5848 = vpack.c.b16 %v5818, %v5817
      %v5849 = vpack.c.b16 %v5820, %v5819
      %v5850 = vpack.c.b16 %v5822, %v5821
      %v5851 = vpack.c.b16 %v5824, %v5823
      %v5852 = vpack.c.b16 %v5826, %v5825
      %v5853 = vpack.c.b16 %v5828, %v5827
      %v5854 = vpack.c.b16 %v5830, %v5829
      %v5855 = vpack.c.b16 %v5832, %v5831
      %v5856 = vpack.c.b16 %v5834, %v5833
      %v5857 = vpack.c.b16 %v5836, %v5835
      %v5858 = vpack.c.b16 %v5838, %v5837
      %v5859 = vpack.c.b16 %v5840, %v5839
      %v5860 = vpack.c.b16 %v5842, %v5841
      %v5861 = vpack.c.b16 %v5844, %v5843
      %v5862 = vpack.c.b16 %v5846, %v5845
      %5879 = vst.msk [vmem:[#allocation5 + $0x8] sm:$0xff] %vm5045, %v5847
      %5880 = vst.msk [vmem:[#allocation5 + $0x30] sm:$0xff] %vm5045, %v5848
      %5881 = vst.msk [vmem:[#allocation5 + $0x58] sm:$0xff] %vm5045, %v5849
      %5882 = vst.msk [vmem:[#allocation5 + $0x80] sm:$0xff] %vm5045, %v5850
      %5883 = vst.msk [vmem:[#allocation5 + $0xa8] sm:$0xff] %vm5045, %v5851
      %5884 = vst.msk [vmem:[#allocation5 + $0xd0] sm:$0xff] %vm5045, %v5852
      %5885 = vst.msk [vmem:[#allocation5 + $0xf8] sm:$0xff] %vm5045, %v5853
      %5886 = vst.msk [vmem:[#allocation5 + $0x120] sm:$0xff] %vm5045, %v5854
      %5887 = vst.msk [vmem:[#allocation5 + $0x148] sm:$0xff] %vm5045, %v5855
      %5888 = vst.msk [vmem:[#allocation5 + $0x170] sm:$0xff] %vm5045, %v5856
      %5889 = vst.msk [vmem:[#allocation5 + $0x198] sm:$0xff] %vm5045, %v5857
      %5890 = vst.msk [vmem:[#allocation5 + $0x1c0] sm:$0xff] %vm5045, %v5858
      %5891 = vst.msk [vmem:[#allocation5 + $0x1e8] sm:$0xff] %vm5045, %v5859
      %5892 = vst.msk [vmem:[#allocation5 + $0x210] sm:$0xff] %vm5045, %v5860
      %5893 = vst.msk [vmem:[#allocation5 + $0x238] sm:$0xff] %vm5045, %v5861
      %5894 = vst.msk [vmem:[#allocation5 + $0x260] sm:$0xff] %vm5045, %v5862
      %v5895 = vld [vmem:[%s4802] sm:$0xf]
      %v5896 = vld [vmem:[%s4802 + $0x4] sm:$0xf]
      %v5897 = vld [vmem:[%s4802 + $0xc] sm:$0xf]
      %v5898 = vld [vmem:[%s4802 + $0x10] sm:$0xf]
      %v5899 = vld [vmem:[%s4802 + $0x18] sm:$0xf]
      %v5900 = vld [vmem:[%s4802 + $0x1c] sm:$0xf]
      %v5901 = vld [vmem:[%s4802 + $0x24] sm:$0xf]
      %v5902 = vld [vmem:[%s4802 + $0x28] sm:$0xf]
      %v5903 = vld [vmem:[%s4802 + $0x30] sm:$0xf]
      %v5904 = vld [vmem:[%s4802 + $0x34] sm:$0xf]
      %v5905 = vld [vmem:[%s4802 + $0x3c] sm:$0xf]
      %v5906 = vld [vmem:[%s4802 + $0x40] sm:$0xf]
      %v5907 = vld [vmem:[%s4802 + $0x48] sm:$0xf]
      %v5908 = vld [vmem:[%s4802 + $0x4c] sm:$0xf]
      %v5909 = vld [vmem:[%s4802 + $0x54] sm:$0xf]
      %v5910 = vld [vmem:[%s4802 + $0x58] sm:$0xf]
      %v5911 = vld [vmem:[%s4802 + $0x60] sm:$0xf]
      %v5912 = vld [vmem:[%s4802 + $0x64] sm:$0xf]
      %v5913 = vld [vmem:[%s4802 + $0x6c] sm:$0xf]
      %v5914 = vld [vmem:[%s4802 + $0x70] sm:$0xf]
      %v5915 = vld [vmem:[%s4802 + $0x78] sm:$0xf]
      %v5916 = vld [vmem:[%s4802 + $0x7c] sm:$0xf]
      %v5917 = vld [vmem:[%s4802 + $0x84] sm:$0xf]
      %v5918 = vld [vmem:[%s4802 + $0x88] sm:$0xf]
      %v5919 = vld [vmem:[%s4802 + $0x90] sm:$0xf]
      %v5920 = vld [vmem:[%s4802 + $0x94] sm:$0xf]
      %v5921 = vld [vmem:[%s4802 + $0x9c] sm:$0xf]
      %v5922 = vld [vmem:[%s4802 + $0xa0] sm:$0xf]
      %v5923 = vld [vmem:[%s4802 + $0xa8] sm:$0xf]
      %v5924 = vld [vmem:[%s4802 + $0xac] sm:$0xf]
      %v5925 = vld [vmem:[%s4802 + $0xb4] sm:$0xf]
      %v5926 = vld [vmem:[%s4802 + $0xb8] sm:$0xf]
      %v5959 = vunpack.c.l.b16 %v5895
      %v5960 = vunpack.c.l.b16 %v5896
      %v5961 = vunpack.c.l.b16 %v5897
      %v5962 = vunpack.c.l.b16 %v5898
      %v5963 = vunpack.c.l.b16 %v5899
      %v5964 = vunpack.c.l.b16 %v5900
      %v5965 = vunpack.c.l.b16 %v5901
      %v5966 = vunpack.c.l.b16 %v5902
      %v5967 = vunpack.c.l.b16 %v5903
      %v5968 = vunpack.c.l.b16 %v5904
      %v5969 = vunpack.c.l.b16 %v5905
      %v5970 = vunpack.c.l.b16 %v5906
      %v5971 = vunpack.c.l.b16 %v5907
      %v5972 = vunpack.c.l.b16 %v5908
      %v5973 = vunpack.c.l.b16 %v5909
      %v5974 = vunpack.c.l.b16 %v5910
      %v5975 = vunpack.c.l.b16 %v5911
      %v5976 = vunpack.c.l.b16 %v5912
      %v5977 = vunpack.c.l.b16 %v5913
      %v5978 = vunpack.c.l.b16 %v5914
      %v5979 = vunpack.c.l.b16 %v5915
      %v5980 = vunpack.c.l.b16 %v5916
      %v5981 = vunpack.c.l.b16 %v5917
      %v5982 = vunpack.c.l.b16 %v5918
      %v5983 = vunpack.c.l.b16 %v5919
      %v5984 = vunpack.c.l.b16 %v5920
      %v5985 = vunpack.c.l.b16 %v5921
      %v5986 = vunpack.c.l.b16 %v5922
      %v5987 = vunpack.c.l.b16 %v5923
      %v5988 = vunpack.c.l.b16 %v5924
      %v5989 = vunpack.c.l.b16 %v5925
      %v5990 = vunpack.c.l.b16 %v5926
      %v5991 = vpack.c.b16 %v5960, %v5959
      %v5992 = vpack.c.b16 %v5962, %v5961
      %v5993 = vpack.c.b16 %v5964, %v5963
      %v5994 = vpack.c.b16 %v5966, %v5965
      %v5995 = vpack.c.b16 %v5968, %v5967
      %v5996 = vpack.c.b16 %v5970, %v5969
      %v5997 = vpack.c.b16 %v5972, %v5971
      %v5998 = vpack.c.b16 %v5974, %v5973
      %v5999 = vpack.c.b16 %v5976, %v5975
      %v6000 = vpack.c.b16 %v5978, %v5977
      %v6001 = vpack.c.b16 %v5980, %v5979
      %v6002 = vpack.c.b16 %v5982, %v5981
      %v6003 = vpack.c.b16 %v5984, %v5983
      %v6004 = vpack.c.b16 %v5986, %v5985
      %v6005 = vpack.c.b16 %v5988, %v5987
      %v6006 = vpack.c.b16 %v5990, %v5989
      %6007 = vrot.lane.b32.xlu0 %v5991, 64
      %v6008 = vpop.permute.xlu0 %6007
      %6009 = vrot.lane.b32.xlu0 %v5992, 64
      %v6010 = vpop.permute.xlu0 %6009
      %6011 = vrot.lane.b32.xlu0 %v5993, 64
      %v6012 = vpop.permute.xlu0 %6011
      %6013 = vrot.lane.b32.xlu0 %v5994, 64
      %v6014 = vpop.permute.xlu0 %6013
      %6015 = vrot.lane.b32.xlu0 %v5995, 64
      %v6016 = vpop.permute.xlu0 %6015
      %6017 = vrot.lane.b32.xlu0 %v5996, 64
      %v6018 = vpop.permute.xlu0 %6017
      %6019 = vrot.lane.b32.xlu0 %v5997, 64
      %v6020 = vpop.permute.xlu0 %6019
      %6021 = vrot.lane.b32.xlu0 %v5998, 64
      %v6022 = vpop.permute.xlu0 %6021
      %6023 = vrot.lane.b32.xlu0 %v5999, 64
      %v6024 = vpop.permute.xlu0 %6023
      %6025 = vrot.lane.b32.xlu0 %v6000, 64
      %v6026 = vpop.permute.xlu0 %6025
      %6027 = vrot.lane.b32.xlu0 %v6001, 64
      %v6028 = vpop.permute.xlu0 %6027
      %6029 = vrot.lane.b32.xlu0 %v6002, 64
      %v6030 = vpop.permute.xlu0 %6029
      %6031 = vrot.lane.b32.xlu0 %v6003, 64
      %v6032 = vpop.permute.xlu0 %6031
      %6033 = vrot.lane.b32.xlu0 %v6004, 64
      %v6034 = vpop.permute.xlu0 %6033
      %6035 = vrot.lane.b32.xlu0 %v6005, 64
      %v6036 = vpop.permute.xlu0 %6035
      %6037 = vrot.lane.b32.xlu0 %v6006, 64
      %v6038 = vpop.permute.xlu0 %6037
      %6055 = vst.msk [vmem:[#allocation5 + $0x8] sm:$0xff] %vm5590, %v6008
      %6056 = vst.msk [vmem:[#allocation5 + $0x30] sm:$0xff] %vm5590, %v6010
      %6057 = vst.msk [vmem:[#allocation5 + $0x58] sm:$0xff] %vm5590, %v6012
      %6058 = vst.msk [vmem:[#allocation5 + $0x80] sm:$0xff] %vm5590, %v6014
      %6059 = vst.msk [vmem:[#allocation5 + $0xa8] sm:$0xff] %vm5590, %v6016
      %6060 = vst.msk [vmem:[#allocation5 + $0xd0] sm:$0xff] %vm5590, %v6018
      %6061 = vst.msk [vmem:[#allocation5 + $0xf8] sm:$0xff] %vm5590, %v6020
      %6062 = vst.msk [vmem:[#allocation5 + $0x120] sm:$0xff] %vm5590, %v6022
      %6063 = vst.msk [vmem:[#allocation5 + $0x148] sm:$0xff] %vm5590, %v6024
      %6064 = vst.msk [vmem:[#allocation5 + $0x170] sm:$0xff] %vm5590, %v6026
      %6065 = vst.msk [vmem:[#allocation5 + $0x198] sm:$0xff] %vm5590, %v6028
      %6066 = vst.msk [vmem:[#allocation5 + $0x1c0] sm:$0xff] %vm5590, %v6030
      %6067 = vst.msk [vmem:[#allocation5 + $0x1e8] sm:$0xff] %vm5590, %v6032
      %6068 = vst.msk [vmem:[#allocation5 + $0x210] sm:$0xff] %vm5590, %v6034
      %6069 = vst.msk [vmem:[#allocation5 + $0x238] sm:$0xff] %vm5590, %v6036
      %6070 = vst.msk [vmem:[#allocation5 + $0x260] sm:$0xff] %vm5590, %v6038
      %v6071 = vld [vmem:[%s4802] sm:$0xf]
      %v6072 = vld [vmem:[%s4802 + $0x4] sm:$0xf]
      %v6073 = vld [vmem:[%s4802 + $0x8] sm:$0x1]
      %v6074 = vld [vmem:[%s4802 + $0xc] sm:$0xf]
      %v6075 = vld [vmem:[%s4802 + $0x10] sm:$0xf]
      %v6076 = vld [vmem:[%s4802 + $0x14] sm:$0x1]
      %v6077 = vld [vmem:[%s4802 + $0x18] sm:$0xf]
      %v6078 = vld [vmem:[%s4802 + $0x1c] sm:$0xf]
      %v6079 = vld [vmem:[%s4802 + $0x20] sm:$0x1]
      %v6080 = vld [vmem:[%s4802 + $0x24] sm:$0xf]
      %v6081 = vld [vmem:[%s4802 + $0x28] sm:$0xf]
      %v6082 = vld [vmem:[%s4802 + $0x2c] sm:$0x1]
      %v6083 = vld [vmem:[%s4802 + $0x30] sm:$0xf]
      %v6084 = vld [vmem:[%s4802 + $0x34] sm:$0xf]
      %v6085 = vld [vmem:[%s4802 + $0x38] sm:$0x1]
      %v6086 = vld [vmem:[%s4802 + $0x3c] sm:$0xf]
      %v6087 = vld [vmem:[%s4802 + $0x40] sm:$0xf]
      %v6088 = vld [vmem:[%s4802 + $0x44] sm:$0x1]
      %v6089 = vld [vmem:[%s4802 + $0x48] sm:$0xf]
      %v6090 = vld [vmem:[%s4802 + $0x4c] sm:$0xf]
      %v6091 = vld [vmem:[%s4802 + $0x50] sm:$0x1]
      %v6092 = vld [vmem:[%s4802 + $0x54] sm:$0xf]
      %v6093 = vld [vmem:[%s4802 + $0x58] sm:$0xf]
      %v6094 = vld [vmem:[%s4802 + $0x5c] sm:$0x1]
      %v6095 = vld [vmem:[%s4802 + $0x60] sm:$0xf]
      %v6096 = vld [vmem:[%s4802 + $0x64] sm:$0xf]
      %v6097 = vld [vmem:[%s4802 + $0x68] sm:$0x1]
      %v6098 = vld [vmem:[%s4802 + $0x6c] sm:$0xf]
      %v6099 = vld [vmem:[%s4802 + $0x70] sm:$0xf]
      %v6100 = vld [vmem:[%s4802 + $0x74] sm:$0x1]
      %v6101 = vld [vmem:[%s4802 + $0x78] sm:$0xf]
      %v6102 = vld [vmem:[%s4802 + $0x7c] sm:$0xf]
      %v6103 = vld [vmem:[%s4802 + $0x80] sm:$0x1]
      %v6104 = vld [vmem:[%s4802 + $0x84] sm:$0xf]
      %v6105 = vld [vmem:[%s4802 + $0x88] sm:$0xf]
      %v6106 = vld [vmem:[%s4802 + $0x8c] sm:$0x1]
      %v6107 = vld [vmem:[%s4802 + $0x90] sm:$0xf]
      %v6108 = vld [vmem:[%s4802 + $0x94] sm:$0xf]
      %v6109 = vld [vmem:[%s4802 + $0x98] sm:$0x1]
      %v6110 = vld [vmem:[%s4802 + $0x9c] sm:$0xf]
      %v6111 = vld [vmem:[%s4802 + $0xa0] sm:$0xf]
      %v6112 = vld [vmem:[%s4802 + $0xa4] sm:$0x1]
      %v6113 = vld [vmem:[%s4802 + $0xa8] sm:$0xf]
      %v6114 = vld [vmem:[%s4802 + $0xac] sm:$0xf]
      %v6115 = vld [vmem:[%s4802 + $0xb0] sm:$0x1]
      %v6116 = vld [vmem:[%s4802 + $0xb4] sm:$0xf]
      %v6117 = vld [vmem:[%s4802 + $0xb8] sm:$0xf]
      %v6118 = vld [vmem:[%s4802 + $0xbc] sm:$0x1]
      %v6120 = vshrl.u32 %v6071, 16
      %v6122 = vrot.slane %v6120, 4
      %v6123 = vshll.u32 %v6071, 16
      %v6125 = vrot.slane %v6123, 5
      %v6126 = vor.u32 %v6122, %v6125
      %v6127 = vrot.slane %v6126, 4
      %v6129 = vshll.u32 %v6072, 16
      %v6131 = vrot.slane %v6129, 5
      %v6132 = vsel %vm990, %v6127, %v6131
      %v6133 = vshrl.u32 %v6072, 16
      %v6135 = vrot.slane %v6133, 4
      %v6136 = vor.u32 %v6135, %v6131
      %v6137 = vrot.slane %v6136, 4
      %v6139 = vshll.u32 %v6073, 16
      %v6141 = vrot.slane %v6139, 5
      %v6142 = vsel %vm990, %v6137, %v6141
      %v6144 = vshrl.u32 %v6074, 16
      %v6146 = vrot.slane %v6144, 4
      %v6147 = vshll.u32 %v6074, 16
      %v6149 = vrot.slane %v6147, 5
      %v6150 = vor.u32 %v6146, %v6149
      %v6151 = vrot.slane %v6150, 4
      %v6153 = vshll.u32 %v6075, 16
      %v6155 = vrot.slane %v6153, 5
      %v6156 = vsel %vm990, %v6151, %v6155
      %v6157 = vshrl.u32 %v6075, 16
      %v6159 = vrot.slane %v6157, 4
      %v6160 = vor.u32 %v6159, %v6155
      %v6161 = vrot.slane %v6160, 4
      %v6163 = vshll.u32 %v6076, 16
      %v6165 = vrot.slane %v6163, 5
      %v6166 = vsel %vm990, %v6161, %v6165
      %v6168 = vshrl.u32 %v6077, 16
      %v6170 = vrot.slane %v6168, 4
      %v6171 = vshll.u32 %v6077, 16
      %v6173 = vrot.slane %v6171, 5
      %v6174 = vor.u32 %v6170, %v6173
      %v6175 = vrot.slane %v6174, 4
      %v6177 = vshll.u32 %v6078, 16
      %v6179 = vrot.slane %v6177, 5
      %v6180 = vsel %vm990, %v6175, %v6179
      %v6181 = vshrl.u32 %v6078, 16
      %v6183 = vrot.slane %v6181, 4
      %v6184 = vor.u32 %v6183, %v6179
      %v6185 = vrot.slane %v6184, 4
      %v6187 = vshll.u32 %v6079, 16
      %v6189 = vrot.slane %v6187, 5
      %v6190 = vsel %vm990, %v6185, %v6189
      %v6192 = vshrl.u32 %v6080, 16
      %v6194 = vrot.slane %v6192, 4
      %v6195 = vshll.u32 %v6080, 16
      %v6197 = vrot.slane %v6195, 5
      %v6198 = vor.u32 %v6194, %v6197
      %v6199 = vrot.slane %v6198, 4
      %v6201 = vshll.u32 %v6081, 16
      %v6203 = vrot.slane %v6201, 5
      %v6204 = vsel %vm990, %v6199, %v6203
      %v6205 = vshrl.u32 %v6081, 16
      %v6207 = vrot.slane %v6205, 4
      %v6208 = vor.u32 %v6207, %v6203
      %v6209 = vrot.slane %v6208, 4
      %v6211 = vshll.u32 %v6082, 16
      %v6213 = vrot.slane %v6211, 5
      %v6214 = vsel %vm990, %v6209, %v6213
      %v6216 = vshrl.u32 %v6083, 16
      %v6218 = vrot.slane %v6216, 4
      %v6219 = vshll.u32 %v6083, 16
      %v6221 = vrot.slane %v6219, 5
      %v6222 = vor.u32 %v6218, %v6221
      %v6223 = vrot.slane %v6222, 4
      %v6225 = vshll.u32 %v6084, 16
      %v6227 = vrot.slane %v6225, 5
      %v6228 = vsel %vm990, %v6223, %v6227
      %v6229 = vshrl.u32 %v6084, 16
      %v6231 = vrot.slane %v6229, 4
      %v6232 = vor.u32 %v6231, %v6227
      %v6233 = vrot.slane %v6232, 4
      %v6235 = vshll.u32 %v6085, 16
      %v6237 = vrot.slane %v6235, 5
      %v6238 = vsel %vm990, %v6233, %v6237
      %v6240 = vshrl.u32 %v6086, 16
      %v6242 = vrot.slane %v6240, 4
      %v6243 = vshll.u32 %v6086, 16
      %v6245 = vrot.slane %v6243, 5
      %v6246 = vor.u32 %v6242, %v6245
      %v6247 = vrot.slane %v6246, 4
      %v6249 = vshll.u32 %v6087, 16
      %v6251 = vrot.slane %v6249, 5
      %v6252 = vsel %vm990, %v6247, %v6251
      %v6253 = vshrl.u32 %v6087, 16
      %v6255 = vrot.slane %v6253, 4
      %v6256 = vor.u32 %v6255, %v6251
      %v6257 = vrot.slane %v6256, 4
      %v6259 = vshll.u32 %v6088, 16
      %v6261 = vrot.slane %v6259, 5
      %v6262 = vsel %vm990, %v6257, %v6261
      %v6264 = vshrl.u32 %v6089, 16
      %v6266 = vrot.slane %v6264, 4
      %v6267 = vshll.u32 %v6089, 16
      %v6269 = vrot.slane %v6267, 5
      %v6270 = vor.u32 %v6266, %v6269
      %v6271 = vrot.slane %v6270, 4
      %v6273 = vshll.u32 %v6090, 16
      %v6275 = vrot.slane %v6273, 5
      %v6276 = vsel %vm990, %v6271, %v6275
      %v6277 = vshrl.u32 %v6090, 16
      %v6279 = vrot.slane %v6277, 4
      %v6280 = vor.u32 %v6279, %v6275
      %v6281 = vrot.slane %v6280, 4
      %v6283 = vshll.u32 %v6091, 16
      %v6285 = vrot.slane %v6283, 5
      %v6286 = vsel %vm990, %v6281, %v6285
      %v6288 = vshrl.u32 %v6092, 16
      %v6290 = vrot.slane %v6288, 4
      %v6291 = vshll.u32 %v6092, 16
      %v6293 = vrot.slane %v6291, 5
      %v6294 = vor.u32 %v6290, %v6293
      %v6295 = vrot.slane %v6294, 4
      %v6297 = vshll.u32 %v6093, 16
      %v6299 = vrot.slane %v6297, 5
      %v6300 = vsel %vm990, %v6295, %v6299
      %v6301 = vshrl.u32 %v6093, 16
      %v6303 = vrot.slane %v6301, 4
      %v6304 = vor.u32 %v6303, %v6299
      %v6305 = vrot.slane %v6304, 4
      %v6307 = vshll.u32 %v6094, 16
      %v6309 = vrot.slane %v6307, 5
      %v6310 = vsel %vm990, %v6305, %v6309
      %v6312 = vshrl.u32 %v6095, 16
      %v6314 = vrot.slane %v6312, 4
      %v6315 = vshll.u32 %v6095, 16
      %v6317 = vrot.slane %v6315, 5
      %v6318 = vor.u32 %v6314, %v6317
      %v6319 = vrot.slane %v6318, 4
      %v6321 = vshll.u32 %v6096, 16
      %v6323 = vrot.slane %v6321, 5
      %v6324 = vsel %vm990, %v6319, %v6323
      %v6325 = vshrl.u32 %v6096, 16
      %v6327 = vrot.slane %v6325, 4
      %v6328 = vor.u32 %v6327, %v6323
      %v6329 = vrot.slane %v6328, 4
      %v6331 = vshll.u32 %v6097, 16
      %v6333 = vrot.slane %v6331, 5
      %v6334 = vsel %vm990, %v6329, %v6333
      %v6336 = vshrl.u32 %v6098, 16
      %v6338 = vrot.slane %v6336, 4
      %v6339 = vshll.u32 %v6098, 16
      %v6341 = vrot.slane %v6339, 5
      %v6342 = vor.u32 %v6338, %v6341
      %v6343 = vrot.slane %v6342, 4
      %v6345 = vshll.u32 %v6099, 16
      %v6347 = vrot.slane %v6345, 5
      %v6348 = vsel %vm990, %v6343, %v6347
      %v6349 = vshrl.u32 %v6099, 16
      %v6351 = vrot.slane %v6349, 4
      %v6352 = vor.u32 %v6351, %v6347
      %v6353 = vrot.slane %v6352, 4
      %v6355 = vshll.u32 %v6100, 16
      %v6357 = vrot.slane %v6355, 5
      %v6358 = vsel %vm990, %v6353, %v6357
      %v6360 = vshrl.u32 %v6101, 16
      %v6362 = vrot.slane %v6360, 4
      %v6363 = vshll.u32 %v6101, 16
      %v6365 = vrot.slane %v6363, 5
      %v6366 = vor.u32 %v6362, %v6365
      %v6367 = vrot.slane %v6366, 4
      %v6369 = vshll.u32 %v6102, 16
      %v6371 = vrot.slane %v6369, 5
      %v6372 = vsel %vm990, %v6367, %v6371
      %v6373 = vshrl.u32 %v6102, 16
      %v6375 = vrot.slane %v6373, 4
      %v6376 = vor.u32 %v6375, %v6371
      %v6377 = vrot.slane %v6376, 4
      %v6379 = vshll.u32 %v6103, 16
      %v6381 = vrot.slane %v6379, 5
      %v6382 = vsel %vm990, %v6377, %v6381
      %v6384 = vshrl.u32 %v6104, 16
      %v6386 = vrot.slane %v6384, 4
      %v6387 = vshll.u32 %v6104, 16
      %v6389 = vrot.slane %v6387, 5
      %v6390 = vor.u32 %v6386, %v6389
      %v6391 = vrot.slane %v6390, 4
      %v6393 = vshll.u32 %v6105, 16
      %v6395 = vrot.slane %v6393, 5
      %v6396 = vsel %vm990, %v6391, %v6395
      %v6397 = vshrl.u32 %v6105, 16
      %v6399 = vrot.slane %v6397, 4
      %v6400 = vor.u32 %v6399, %v6395
      %v6401 = vrot.slane %v6400, 4
      %v6403 = vshll.u32 %v6106, 16
      %v6405 = vrot.slane %v6403, 5
      %v6406 = vsel %vm990, %v6401, %v6405
      %v6408 = vshrl.u32 %v6107, 16
      %v6410 = vrot.slane %v6408, 4
      %v6411 = vshll.u32 %v6107, 16
      %v6413 = vrot.slane %v6411, 5
      %v6414 = vor.u32 %v6410, %v6413
      %v6415 = vrot.slane %v6414, 4
      %v6417 = vshll.u32 %v6108, 16
      %v6419 = vrot.slane %v6417, 5
      %v6420 = vsel %vm990, %v6415, %v6419
      %v6421 = vshrl.u32 %v6108, 16
      %v6423 = vrot.slane %v6421, 4
      %v6424 = vor.u32 %v6423, %v6419
      %v6425 = vrot.slane %v6424, 4
      %v6427 = vshll.u32 %v6109, 16
      %v6429 = vrot.slane %v6427, 5
      %v6430 = vsel %vm990, %v6425, %v6429
      %v6432 = vshrl.u32 %v6110, 16
      %v6434 = vrot.slane %v6432, 4
      %v6435 = vshll.u32 %v6110, 16
      %v6437 = vrot.slane %v6435, 5
      %v6438 = vor.u32 %v6434, %v6437
      %v6439 = vrot.slane %v6438, 4
      %v6441 = vshll.u32 %v6111, 16
      %v6443 = vrot.slane %v6441, 5
      %v6444 = vsel %vm990, %v6439, %v6443
      %v6445 = vshrl.u32 %v6111, 16
      %v6447 = vrot.slane %v6445, 4
      %v6448 = vor.u32 %v6447, %v6443
      %v6449 = vrot.slane %v6448, 4
      %v6451 = vshll.u32 %v6112, 16
      %v6453 = vrot.slane %v6451, 5
      %v6454 = vsel %vm990, %v6449, %v6453
      %v6456 = vshrl.u32 %v6113, 16
      %v6458 = vrot.slane %v6456, 4
      %v6459 = vshll.u32 %v6113, 16
      %v6461 = vrot.slane %v6459, 5
      %v6462 = vor.u32 %v6458, %v6461
      %v6463 = vrot.slane %v6462, 4
      %v6465 = vshll.u32 %v6114, 16
      %v6467 = vrot.slane %v6465, 5
      %v6468 = vsel %vm990, %v6463, %v6467
      %v6469 = vshrl.u32 %v6114, 16
      %v6471 = vrot.slane %v6469, 4
      %v6472 = vor.u32 %v6471, %v6467
      %v6473 = vrot.slane %v6472, 4
      %v6475 = vshll.u32 %v6115, 16
      %v6477 = vrot.slane %v6475, 5
      %v6478 = vsel %vm990, %v6473, %v6477
      %v6480 = vshrl.u32 %v6116, 16
      %v6482 = vrot.slane %v6480, 4
      %v6483 = vshll.u32 %v6116, 16
      %v6485 = vrot.slane %v6483, 5
      %v6486 = vor.u32 %v6482, %v6485
      %v6487 = vrot.slane %v6486, 4
      %v6489 = vshll.u32 %v6117, 16
      %v6491 = vrot.slane %v6489, 5
      %v6492 = vsel %vm990, %v6487, %v6491
      %v6493 = vshrl.u32 %v6117, 16
      %v6495 = vrot.slane %v6493, 4
      %v6496 = vor.u32 %v6495, %v6491
      %v6497 = vrot.slane %v6496, 4
      %v6499 = vshll.u32 %v6118, 16
      %v6501 = vrot.slane %v6499, 5
      %v6502 = vsel %vm990, %v6497, %v6501
      %v6503 = vunpack.c.l.b16 %v6132
      %v6504 = vunpack.c.l.b16 %v6142
      %v6505 = vunpack.c.l.b16 %v6156
      %v6506 = vunpack.c.l.b16 %v6166
      %v6507 = vunpack.c.l.b16 %v6180
      %v6508 = vunpack.c.l.b16 %v6190
      %v6509 = vunpack.c.l.b16 %v6204
      %v6510 = vunpack.c.l.b16 %v6214
      %v6511 = vunpack.c.l.b16 %v6228
      %v6512 = vunpack.c.l.b16 %v6238
      %v6513 = vunpack.c.l.b16 %v6252
      %v6514 = vunpack.c.l.b16 %v6262
      %v6515 = vunpack.c.l.b16 %v6276
      %v6516 = vunpack.c.l.b16 %v6286
      %v6517 = vunpack.c.l.b16 %v6300
      %v6518 = vunpack.c.l.b16 %v6310
      %v6519 = vunpack.c.l.b16 %v6324
      %v6520 = vunpack.c.l.b16 %v6334
      %v6521 = vunpack.c.l.b16 %v6348
      %v6522 = vunpack.c.l.b16 %v6358
      %v6523 = vunpack.c.l.b16 %v6372
      %v6524 = vunpack.c.l.b16 %v6382
      %v6525 = vunpack.c.l.b16 %v6396
      %v6526 = vunpack.c.l.b16 %v6406
      %v6527 = vunpack.c.l.b16 %v6420
      %v6528 = vunpack.c.l.b16 %v6430
      %v6529 = vunpack.c.l.b16 %v6444
      %v6530 = vunpack.c.l.b16 %v6454
      %v6531 = vunpack.c.l.b16 %v6468
      %v6532 = vunpack.c.l.b16 %v6478
      %v6533 = vunpack.c.l.b16 %v6492
      %v6534 = vunpack.c.l.b16 %v6502
      %v6535 = vpack.c.b16 %v6504, %v6503
      %v6536 = vpack.c.b16 %v6506, %v6505
      %v6537 = vpack.c.b16 %v6508, %v6507
      %v6538 = vpack.c.b16 %v6510, %v6509
      %v6539 = vpack.c.b16 %v6512, %v6511
      %v6540 = vpack.c.b16 %v6514, %v6513
      %v6541 = vpack.c.b16 %v6516, %v6515
      %v6542 = vpack.c.b16 %v6518, %v6517
      %v6543 = vpack.c.b16 %v6520, %v6519
      %v6544 = vpack.c.b16 %v6522, %v6521
      %v6545 = vpack.c.b16 %v6524, %v6523
      %v6546 = vpack.c.b16 %v6526, %v6525
      %v6547 = vpack.c.b16 %v6528, %v6527
      %v6548 = vpack.c.b16 %v6530, %v6529
      %v6549 = vpack.c.b16 %v6532, %v6531
      %v6550 = vpack.c.b16 %v6534, %v6533
      %6567 = vst.msk [vmem:[#allocation5 + $0x10] sm:$0xff] %vm5045, %v6535
      %6568 = vst.msk [vmem:[#allocation5 + $0x38] sm:$0xff] %vm5045, %v6536
      %6569 = vst.msk [vmem:[#allocation5 + $0x60] sm:$0xff] %vm5045, %v6537
      %6570 = vst.msk [vmem:[#allocation5 + $0x88] sm:$0xff] %vm5045, %v6538
      %6571 = vst.msk [vmem:[#allocation5 + $0xb0] sm:$0xff] %vm5045, %v6539
      %6572 = vst.msk [vmem:[#allocation5 + $0xd8] sm:$0xff] %vm5045, %v6540
      %6573 = vst.msk [vmem:[#allocation5 + $0x100] sm:$0xff] %vm5045, %v6541
      %6574 = vst.msk [vmem:[#allocation5 + $0x128] sm:$0xff] %vm5045, %v6542
      %6575 = vst.msk [vmem:[#allocation5 + $0x150] sm:$0xff] %vm5045, %v6543
      %6576 = vst.msk [vmem:[#allocation5 + $0x178] sm:$0xff] %vm5045, %v6544
      %6577 = vst.msk [vmem:[#allocation5 + $0x1a0] sm:$0xff] %vm5045, %v6545
      %6578 = vst.msk [vmem:[#allocation5 + $0x1c8] sm:$0xff] %vm5045, %v6546
      %6579 = vst.msk [vmem:[#allocation5 + $0x1f0] sm:$0xff] %vm5045, %v6547
      %6580 = vst.msk [vmem:[#allocation5 + $0x218] sm:$0xff] %vm5045, %v6548
      %6581 = vst.msk [vmem:[#allocation5 + $0x240] sm:$0xff] %vm5045, %v6549
      %6582 = vst.msk [vmem:[#allocation5 + $0x268] sm:$0xff] %vm5045, %v6550
      %v6583 = vld [vmem:[%s4802] sm:$0xe]
      %v6584 = vld [vmem:[%s4802 + $0x4] sm:$0xf]
      %v6585 = vld [vmem:[%s4802 + $0x8] sm:$0x1]
      %v6586 = vld [vmem:[%s4802 + $0xc] sm:$0xe]
      %v6587 = vld [vmem:[%s4802 + $0x10] sm:$0xf]
      %v6588 = vld [vmem:[%s4802 + $0x14] sm:$0x1]
      %v6589 = vld [vmem:[%s4802 + $0x18] sm:$0xe]
      %v6590 = vld [vmem:[%s4802 + $0x1c] sm:$0xf]
      %v6591 = vld [vmem:[%s4802 + $0x20] sm:$0x1]
      %v6592 = vld [vmem:[%s4802 + $0x24] sm:$0xe]
      %v6593 = vld [vmem:[%s4802 + $0x28] sm:$0xf]
      %v6594 = vld [vmem:[%s4802 + $0x2c] sm:$0x1]
      %v6595 = vld [vmem:[%s4802 + $0x30] sm:$0xe]
      %v6596 = vld [vmem:[%s4802 + $0x34] sm:$0xf]
      %v6597 = vld [vmem:[%s4802 + $0x38] sm:$0x1]
      %v6598 = vld [vmem:[%s4802 + $0x3c] sm:$0xe]
      %v6599 = vld [vmem:[%s4802 + $0x40] sm:$0xf]
      %v6600 = vld [vmem:[%s4802 + $0x44] sm:$0x1]
      %v6601 = vld [vmem:[%s4802 + $0x48] sm:$0xe]
      %v6602 = vld [vmem:[%s4802 + $0x4c] sm:$0xf]
      %v6603 = vld [vmem:[%s4802 + $0x50] sm:$0x1]
      %v6604 = vld [vmem:[%s4802 + $0x54] sm:$0xe]
      %v6605 = vld [vmem:[%s4802 + $0x58] sm:$0xf]
      %v6606 = vld [vmem:[%s4802 + $0x5c] sm:$0x1]
      %v6607 = vld [vmem:[%s4802 + $0x60] sm:$0xe]
      %v6608 = vld [vmem:[%s4802 + $0x64] sm:$0xf]
      %v6609 = vld [vmem:[%s4802 + $0x68] sm:$0x1]
      %v6610 = vld [vmem:[%s4802 + $0x6c] sm:$0xe]
      %v6611 = vld [vmem:[%s4802 + $0x70] sm:$0xf]
      %v6612 = vld [vmem:[%s4802 + $0x74] sm:$0x1]
      %v6613 = vld [vmem:[%s4802 + $0x78] sm:$0xe]
      %v6614 = vld [vmem:[%s4802 + $0x7c] sm:$0xf]
      %v6615 = vld [vmem:[%s4802 + $0x80] sm:$0x1]
      %v6616 = vld [vmem:[%s4802 + $0x84] sm:$0xe]
      %v6617 = vld [vmem:[%s4802 + $0x88] sm:$0xf]
      %v6618 = vld [vmem:[%s4802 + $0x8c] sm:$0x1]
      %v6619 = vld [vmem:[%s4802 + $0x90] sm:$0xe]
      %v6620 = vld [vmem:[%s4802 + $0x94] sm:$0xf]
      %v6621 = vld [vmem:[%s4802 + $0x98] sm:$0x1]
      %v6622 = vld [vmem:[%s4802 + $0x9c] sm:$0xe]
      %v6623 = vld [vmem:[%s4802 + $0xa0] sm:$0xf]
      %v6624 = vld [vmem:[%s4802 + $0xa4] sm:$0x1]
      %v6625 = vld [vmem:[%s4802 + $0xa8] sm:$0xe]
      %v6626 = vld [vmem:[%s4802 + $0xac] sm:$0xf]
      %v6627 = vld [vmem:[%s4802 + $0xb0] sm:$0x1]
      %v6628 = vld [vmem:[%s4802 + $0xb4] sm:$0xe]
      %v6629 = vld [vmem:[%s4802 + $0xb8] sm:$0xf]
      %v6630 = vld [vmem:[%s4802 + $0xbc] sm:$0x1]
      %v6679 = vrot.slane %v6583, 5
      %v6680 = vrot.slane %v6679, 4
      %v6681 = vrot.slane %v6584, 5
      %v6682 = vsel %vm1586, %v6680, %v6681
      %v6683 = vrot.slane %v6681, 4
      %v6684 = vrot.slane %v6585, 5
      %v6685 = vsel %vm1586, %v6683, %v6684
      %v6686 = vrot.slane %v6586, 5
      %v6687 = vrot.slane %v6686, 4
      %v6688 = vrot.slane %v6587, 5
      %v6689 = vsel %vm1586, %v6687, %v6688
      %v6690 = vrot.slane %v6688, 4
      %v6691 = vrot.slane %v6588, 5
      %v6692 = vsel %vm1586, %v6690, %v6691
      %v6693 = vrot.slane %v6589, 5
      %v6694 = vrot.slane %v6693, 4
      %v6695 = vrot.slane %v6590, 5
      %v6696 = vsel %vm1586, %v6694, %v6695
      %v6697 = vrot.slane %v6695, 4
      %v6698 = vrot.slane %v6591, 5
      %v6699 = vsel %vm1586, %v6697, %v6698
      %v6700 = vrot.slane %v6592, 5
      %v6701 = vrot.slane %v6700, 4
      %v6702 = vrot.slane %v6593, 5
      %v6703 = vsel %vm1586, %v6701, %v6702
      %v6704 = vrot.slane %v6702, 4
      %v6705 = vrot.slane %v6594, 5
      %v6706 = vsel %vm1586, %v6704, %v6705
      %v6707 = vrot.slane %v6595, 5
      %v6708 = vrot.slane %v6707, 4
      %v6709 = vrot.slane %v6596, 5
      %v6710 = vsel %vm1586, %v6708, %v6709
      %v6711 = vrot.slane %v6709, 4
      %v6712 = vrot.slane %v6597, 5
      %v6713 = vsel %vm1586, %v6711, %v6712
      %v6714 = vrot.slane %v6598, 5
      %v6715 = vrot.slane %v6714, 4
      %v6716 = vrot.slane %v6599, 5
      %v6717 = vsel %vm1586, %v6715, %v6716
      %v6718 = vrot.slane %v6716, 4
      %v6719 = vrot.slane %v6600, 5
      %v6720 = vsel %vm1586, %v6718, %v6719
      %v6721 = vrot.slane %v6601, 5
      %v6722 = vrot.slane %v6721, 4
      %v6723 = vrot.slane %v6602, 5
      %v6724 = vsel %vm1586, %v6722, %v6723
      %v6725 = vrot.slane %v6723, 4
      %v6726 = vrot.slane %v6603, 5
      %v6727 = vsel %vm1586, %v6725, %v6726
      %v6728 = vrot.slane %v6604, 5
      %v6729 = vrot.slane %v6728, 4
      %v6730 = vrot.slane %v6605, 5
      %v6731 = vsel %vm1586, %v6729, %v6730
      %v6732 = vrot.slane %v6730, 4
      %v6733 = vrot.slane %v6606, 5
      %v6734 = vsel %vm1586, %v6732, %v6733
      %v6735 = vrot.slane %v6607, 5
      %v6736 = vrot.slane %v6735, 4
      %v6737 = vrot.slane %v6608, 5
      %v6738 = vsel %vm1586, %v6736, %v6737
      %v6739 = vrot.slane %v6737, 4
      %v6740 = vrot.slane %v6609, 5
      %v6741 = vsel %vm1586, %v6739, %v6740
      %v6742 = vrot.slane %v6610, 5
      %v6743 = vrot.slane %v6742, 4
      %v6744 = vrot.slane %v6611, 5
      %v6745 = vsel %vm1586, %v6743, %v6744
      %v6746 = vrot.slane %v6744, 4
      %v6747 = vrot.slane %v6612, 5
      %v6748 = vsel %vm1586, %v6746, %v6747
      %v6749 = vrot.slane %v6613, 5
      %v6750 = vrot.slane %v6749, 4
      %v6751 = vrot.slane %v6614, 5
      %v6752 = vsel %vm1586, %v6750, %v6751
      %v6753 = vrot.slane %v6751, 4
      %v6754 = vrot.slane %v6615, 5
      %v6755 = vsel %vm1586, %v6753, %v6754
      %v6756 = vrot.slane %v6616, 5
      %v6757 = vrot.slane %v6756, 4
      %v6758 = vrot.slane %v6617, 5
      %v6759 = vsel %vm1586, %v6757, %v6758
      %v6760 = vrot.slane %v6758, 4
      %v6761 = vrot.slane %v6618, 5
      %v6762 = vsel %vm1586, %v6760, %v6761
      %v6763 = vrot.slane %v6619, 5
      %v6764 = vrot.slane %v6763, 4
      %v6765 = vrot.slane %v6620, 5
      %v6766 = vsel %vm1586, %v6764, %v6765
      %v6767 = vrot.slane %v6765, 4
      %v6768 = vrot.slane %v6621, 5
      %v6769 = vsel %vm1586, %v6767, %v6768
      %v6770 = vrot.slane %v6622, 5
      %v6771 = vrot.slane %v6770, 4
      %v6772 = vrot.slane %v6623, 5
      %v6773 = vsel %vm1586, %v6771, %v6772
      %v6774 = vrot.slane %v6772, 4
      %v6775 = vrot.slane %v6624, 5
      %v6776 = vsel %vm1586, %v6774, %v6775
      %v6777 = vrot.slane %v6625, 5
      %v6778 = vrot.slane %v6777, 4
      %v6779 = vrot.slane %v6626, 5
      %v6780 = vsel %vm1586, %v6778, %v6779
      %v6781 = vrot.slane %v6779, 4
      %v6782 = vrot.slane %v6627, 5
      %v6783 = vsel %vm1586, %v6781, %v6782
      %v6784 = vrot.slane %v6628, 5
      %v6785 = vrot.slane %v6784, 4
      %v6786 = vrot.slane %v6629, 5
      %v6787 = vsel %vm1586, %v6785, %v6786
      %v6788 = vrot.slane %v6786, 4
      %v6789 = vrot.slane %v6630, 5
      %v6790 = vsel %vm1586, %v6788, %v6789
      %v6791 = vunpack.c.l.b16 %v6682
      %v6792 = vunpack.c.l.b16 %v6685
      %v6793 = vunpack.c.l.b16 %v6689
      %v6794 = vunpack.c.l.b16 %v6692
      %v6795 = vunpack.c.l.b16 %v6696
      %v6796 = vunpack.c.l.b16 %v6699
      %v6797 = vunpack.c.l.b16 %v6703
      %v6798 = vunpack.c.l.b16 %v6706
      %v6799 = vunpack.c.l.b16 %v6710
      %v6800 = vunpack.c.l.b16 %v6713
      %v6801 = vunpack.c.l.b16 %v6717
      %v6802 = vunpack.c.l.b16 %v6720
      %v6803 = vunpack.c.l.b16 %v6724
      %v6804 = vunpack.c.l.b16 %v6727
      %v6805 = vunpack.c.l.b16 %v6731
      %v6806 = vunpack.c.l.b16 %v6734
      %v6807 = vunpack.c.l.b16 %v6738
      %v6808 = vunpack.c.l.b16 %v6741
      %v6809 = vunpack.c.l.b16 %v6745
      %v6810 = vunpack.c.l.b16 %v6748
      %v6811 = vunpack.c.l.b16 %v6752
      %v6812 = vunpack.c.l.b16 %v6755
      %v6813 = vunpack.c.l.b16 %v6759
      %v6814 = vunpack.c.l.b16 %v6762
      %v6815 = vunpack.c.l.b16 %v6766
      %v6816 = vunpack.c.l.b16 %v6769
      %v6817 = vunpack.c.l.b16 %v6773
      %v6818 = vunpack.c.l.b16 %v6776
      %v6819 = vunpack.c.l.b16 %v6780
      %v6820 = vunpack.c.l.b16 %v6783
      %v6821 = vunpack.c.l.b16 %v6787
      %v6822 = vunpack.c.l.b16 %v6790
      %v6823 = vpack.c.b16 %v6792, %v6791
      %v6824 = vpack.c.b16 %v6794, %v6793
      %v6825 = vpack.c.b16 %v6796, %v6795
      %v6826 = vpack.c.b16 %v6798, %v6797
      %v6827 = vpack.c.b16 %v6800, %v6799
      %v6828 = vpack.c.b16 %v6802, %v6801
      %v6829 = vpack.c.b16 %v6804, %v6803
      %v6830 = vpack.c.b16 %v6806, %v6805
      %v6831 = vpack.c.b16 %v6808, %v6807
      %v6832 = vpack.c.b16 %v6810, %v6809
      %v6833 = vpack.c.b16 %v6812, %v6811
      %v6834 = vpack.c.b16 %v6814, %v6813
      %v6835 = vpack.c.b16 %v6816, %v6815
      %v6836 = vpack.c.b16 %v6818, %v6817
      %v6837 = vpack.c.b16 %v6820, %v6819
      %v6838 = vpack.c.b16 %v6822, %v6821
      %6839 = vrot.lane.b32.xlu0 %v6823, 64
      %v6840 = vpop.permute.xlu0 %6839
      %6841 = vrot.lane.b32.xlu0 %v6824, 64
      %v6842 = vpop.permute.xlu0 %6841
      %6843 = vrot.lane.b32.xlu0 %v6825, 64
      %v6844 = vpop.permute.xlu0 %6843
      %6845 = vrot.lane.b32.xlu0 %v6826, 64
      %v6846 = vpop.permute.xlu0 %6845
      %6847 = vrot.lane.b32.xlu0 %v6827, 64
      %v6848 = vpop.permute.xlu0 %6847
      %6849 = vrot.lane.b32.xlu0 %v6828, 64
      %v6850 = vpop.permute.xlu0 %6849
      %6851 = vrot.lane.b32.xlu0 %v6829, 64
      %v6852 = vpop.permute.xlu0 %6851
      %6853 = vrot.lane.b32.xlu0 %v6830, 64
      %v6854 = vpop.permute.xlu0 %6853
      %6855 = vrot.lane.b32.xlu0 %v6831, 64
      %v6856 = vpop.permute.xlu0 %6855
      %6857 = vrot.lane.b32.xlu0 %v6832, 64
      %v6858 = vpop.permute.xlu0 %6857
      %6859 = vrot.lane.b32.xlu0 %v6833, 64
      %v6860 = vpop.permute.xlu0 %6859
      %6861 = vrot.lane.b32.xlu0 %v6834, 64
      %v6862 = vpop.permute.xlu0 %6861
      %6863 = vrot.lane.b32.xlu0 %v6835, 64
      %v6864 = vpop.permute.xlu0 %6863
      %6865 = vrot.lane.b32.xlu0 %v6836, 64
      %v6866 = vpop.permute.xlu0 %6865
      %6867 = vrot.lane.b32.xlu0 %v6837, 64
      %v6868 = vpop.permute.xlu0 %6867
      %6869 = vrot.lane.b32.xlu0 %v6838, 64
      %v6870 = vpop.permute.xlu0 %6869
      %6887 = vst.msk [vmem:[#allocation5 + $0x10] sm:$0xff] %vm5590, %v6840
      %6888 = vst.msk [vmem:[#allocation5 + $0x38] sm:$0xff] %vm5590, %v6842
      %6889 = vst.msk [vmem:[#allocation5 + $0x60] sm:$0xff] %vm5590, %v6844
      %6890 = vst.msk [vmem:[#allocation5 + $0x88] sm:$0xff] %vm5590, %v6846
      %6891 = vst.msk [vmem:[#allocation5 + $0xb0] sm:$0xff] %vm5590, %v6848
      %6892 = vst.msk [vmem:[#allocation5 + $0xd8] sm:$0xff] %vm5590, %v6850
      %6893 = vst.msk [vmem:[#allocation5 + $0x100] sm:$0xff] %vm5590, %v6852
      %6894 = vst.msk [vmem:[#allocation5 + $0x128] sm:$0xff] %vm5590, %v6854
      %6895 = vst.msk [vmem:[#allocation5 + $0x150] sm:$0xff] %vm5590, %v6856
      %6896 = vst.msk [vmem:[#allocation5 + $0x178] sm:$0xff] %vm5590, %v6858
      %6897 = vst.msk [vmem:[#allocation5 + $0x1a0] sm:$0xff] %vm5590, %v6860
      %6898 = vst.msk [vmem:[#allocation5 + $0x1c8] sm:$0xff] %vm5590, %v6862
      %6899 = vst.msk [vmem:[#allocation5 + $0x1f0] sm:$0xff] %vm5590, %v6864
      %6900 = vst.msk [vmem:[#allocation5 + $0x218] sm:$0xff] %vm5590, %v6866
      %6901 = vst.msk [vmem:[#allocation5 + $0x240] sm:$0xff] %vm5590, %v6868
      %6902 = vst.msk [vmem:[#allocation5 + $0x268] sm:$0xff] %vm5590, %v6870
      %s6903 = scalar_lea.vmem [#allocation4], 24
      %v6904 = vld [vmem:[%s6903] sm:$0xf]
      %v6905 = vld [vmem:[%s6903 + $0x4] sm:$0xf]
      %v6906 = vld [vmem:[%s6903 + $0xc] sm:$0xf]
      %v6907 = vld [vmem:[%s6903 + $0x10] sm:$0xf]
      %v6908 = vld [vmem:[%s6903 + $0x18] sm:$0xf]
      %v6909 = vld [vmem:[%s6903 + $0x1c] sm:$0xf]
      %v6910 = vld [vmem:[%s6903 + $0x24] sm:$0xf]
      %v6911 = vld [vmem:[%s6903 + $0x28] sm:$0xf]
      %v6912 = vld [vmem:[%s6903 + $0x30] sm:$0xf]
      %v6913 = vld [vmem:[%s6903 + $0x34] sm:$0xf]
      %v6914 = vld [vmem:[%s6903 + $0x3c] sm:$0xf]
      %v6915 = vld [vmem:[%s6903 + $0x40] sm:$0xf]
      %v6916 = vld [vmem:[%s6903 + $0x48] sm:$0xf]
      %v6917 = vld [vmem:[%s6903 + $0x4c] sm:$0xf]
      %v6918 = vld [vmem:[%s6903 + $0x54] sm:$0xf]
      %v6919 = vld [vmem:[%s6903 + $0x58] sm:$0xf]
      %v6920 = vld [vmem:[%s6903 + $0x60] sm:$0xf]
      %v6921 = vld [vmem:[%s6903 + $0x64] sm:$0xf]
      %v6922 = vld [vmem:[%s6903 + $0x6c] sm:$0xf]
      %v6923 = vld [vmem:[%s6903 + $0x70] sm:$0xf]
      %v6924 = vld [vmem:[%s6903 + $0x78] sm:$0xf]
      %v6925 = vld [vmem:[%s6903 + $0x7c] sm:$0xf]
      %v6926 = vld [vmem:[%s6903 + $0x84] sm:$0xf]
      %v6927 = vld [vmem:[%s6903 + $0x88] sm:$0xf]
      %v6928 = vld [vmem:[%s6903 + $0x90] sm:$0xf]
      %v6929 = vld [vmem:[%s6903 + $0x94] sm:$0xf]
      %v6930 = vld [vmem:[%s6903 + $0x9c] sm:$0xf]
      %v6931 = vld [vmem:[%s6903 + $0xa0] sm:$0xf]
      %v6932 = vld [vmem:[%s6903 + $0xa8] sm:$0xf]
      %v6933 = vld [vmem:[%s6903 + $0xac] sm:$0xf]
      %v6934 = vld [vmem:[%s6903 + $0xb4] sm:$0xf]
      %v6935 = vld [vmem:[%s6903 + $0xb8] sm:$0xf]
      %v6968 = vunpack.c.l.b16 %v6904
      %v6969 = vunpack.c.l.b16 %v6905
      %v6970 = vunpack.c.l.b16 %v6906
      %v6971 = vunpack.c.l.b16 %v6907
      %v6972 = vunpack.c.l.b16 %v6908
      %v6973 = vunpack.c.l.b16 %v6909
      %v6974 = vunpack.c.l.b16 %v6910
      %v6975 = vunpack.c.l.b16 %v6911
      %v6976 = vunpack.c.l.b16 %v6912
      %v6977 = vunpack.c.l.b16 %v6913
      %v6978 = vunpack.c.l.b16 %v6914
      %v6979 = vunpack.c.l.b16 %v6915
      %v6980 = vunpack.c.l.b16 %v6916
      %v6981 = vunpack.c.l.b16 %v6917
      %v6982 = vunpack.c.l.b16 %v6918
      %v6983 = vunpack.c.l.b16 %v6919
      %v6984 = vunpack.c.l.b16 %v6920
      %v6985 = vunpack.c.l.b16 %v6921
      %v6986 = vunpack.c.l.b16 %v6922
      %v6987 = vunpack.c.l.b16 %v6923
      %v6988 = vunpack.c.l.b16 %v6924
      %v6989 = vunpack.c.l.b16 %v6925
      %v6990 = vunpack.c.l.b16 %v6926
      %v6991 = vunpack.c.l.b16 %v6927
      %v6992 = vunpack.c.l.b16 %v6928
      %v6993 = vunpack.c.l.b16 %v6929
      %v6994 = vunpack.c.l.b16 %v6930
      %v6995 = vunpack.c.l.b16 %v6931
      %v6996 = vunpack.c.l.b16 %v6932
      %v6997 = vunpack.c.l.b16 %v6933
      %v6998 = vunpack.c.l.b16 %v6934
      %v6999 = vunpack.c.l.b16 %v6935
      %v7000 = vpack.c.b16 %v6969, %v6968
      %v7001 = vpack.c.b16 %v6971, %v6970
      %v7002 = vpack.c.b16 %v6973, %v6972
      %v7003 = vpack.c.b16 %v6975, %v6974
      %v7004 = vpack.c.b16 %v6977, %v6976
      %v7005 = vpack.c.b16 %v6979, %v6978
      %v7006 = vpack.c.b16 %v6981, %v6980
      %v7007 = vpack.c.b16 %v6983, %v6982
      %v7008 = vpack.c.b16 %v6985, %v6984
      %v7009 = vpack.c.b16 %v6987, %v6986
      %v7010 = vpack.c.b16 %v6989, %v6988
      %v7011 = vpack.c.b16 %v6991, %v6990
      %v7012 = vpack.c.b16 %v6993, %v6992
      %v7013 = vpack.c.b16 %v6995, %v6994
      %v7014 = vpack.c.b16 %v6997, %v6996
      %v7015 = vpack.c.b16 %v6999, %v6998
      %7032 = vst.msk [vmem:[#allocation5 + $0x18] sm:$0xff] %vm5045, %v7000
      %7033 = vst.msk [vmem:[#allocation5 + $0x40] sm:$0xff] %vm5045, %v7001
      %7034 = vst.msk [vmem:[#allocation5 + $0x68] sm:$0xff] %vm5045, %v7002
      %7035 = vst.msk [vmem:[#allocation5 + $0x90] sm:$0xff] %vm5045, %v7003
      %7036 = vst.msk [vmem:[#allocation5 + $0xb8] sm:$0xff] %vm5045, %v7004
      %7037 = vst.msk [vmem:[#allocation5 + $0xe0] sm:$0xff] %vm5045, %v7005
      %7038 = vst.msk [vmem:[#allocation5 + $0x108] sm:$0xff] %vm5045, %v7006
      %7039 = vst.msk [vmem:[#allocation5 + $0x130] sm:$0xff] %vm5045, %v7007
      %7040 = vst.msk [vmem:[#allocation5 + $0x158] sm:$0xff] %vm5045, %v7008
      %7041 = vst.msk [vmem:[#allocation5 + $0x180] sm:$0xff] %vm5045, %v7009
      %7042 = vst.msk [vmem:[#allocation5 + $0x1a8] sm:$0xff] %vm5045, %v7010
      %7043 = vst.msk [vmem:[#allocation5 + $0x1d0] sm:$0xff] %vm5045, %v7011
      %7044 = vst.msk [vmem:[#allocation5 + $0x1f8] sm:$0xff] %vm5045, %v7012
      %7045 = vst.msk [vmem:[#allocation5 + $0x220] sm:$0xff] %vm5045, %v7013
      %7046 = vst.msk [vmem:[#allocation5 + $0x248] sm:$0xff] %vm5045, %v7014
      %7047 = vst.msk [vmem:[#allocation5 + $0x270] sm:$0xff] %vm5045, %v7015
      %v7048 = vld [vmem:[%s6903] sm:$0xf]
      %v7049 = vld [vmem:[%s6903 + $0x4] sm:$0xf]
      %v7050 = vld [vmem:[%s6903 + $0x8] sm:$0x1]
      %v7051 = vld [vmem:[%s6903 + $0xc] sm:$0xf]
      %v7052 = vld [vmem:[%s6903 + $0x10] sm:$0xf]
      %v7053 = vld [vmem:[%s6903 + $0x14] sm:$0x1]
      %v7054 = vld [vmem:[%s6903 + $0x18] sm:$0xf]
      %v7055 = vld [vmem:[%s6903 + $0x1c] sm:$0xf]
      %v7056 = vld [vmem:[%s6903 + $0x20] sm:$0x1]
      %v7057 = vld [vmem:[%s6903 + $0x24] sm:$0xf]
      %v7058 = vld [vmem:[%s6903 + $0x28] sm:$0xf]
      %v7059 = vld [vmem:[%s6903 + $0x2c] sm:$0x1]
      %v7060 = vld [vmem:[%s6903 + $0x30] sm:$0xf]
      %v7061 = vld [vmem:[%s6903 + $0x34] sm:$0xf]
      %v7062 = vld [vmem:[%s6903 + $0x38] sm:$0x1]
      %v7063 = vld [vmem:[%s6903 + $0x3c] sm:$0xf]
      %v7064 = vld [vmem:[%s6903 + $0x40] sm:$0xf]
      %v7065 = vld [vmem:[%s6903 + $0x44] sm:$0x1]
      %v7066 = vld [vmem:[%s6903 + $0x48] sm:$0xf]
      %v7067 = vld [vmem:[%s6903 + $0x4c] sm:$0xf]
      %v7068 = vld [vmem:[%s6903 + $0x50] sm:$0x1]
      %v7069 = vld [vmem:[%s6903 + $0x54] sm:$0xf]
      %v7070 = vld [vmem:[%s6903 + $0x58] sm:$0xf]
      %v7071 = vld [vmem:[%s6903 + $0x5c] sm:$0x1]
      %v7072 = vld [vmem:[%s6903 + $0x60] sm:$0xf]
      %v7073 = vld [vmem:[%s6903 + $0x64] sm:$0xf]
      %v7074 = vld [vmem:[%s6903 + $0x68] sm:$0x1]
      %v7075 = vld [vmem:[%s6903 + $0x6c] sm:$0xf]
      %v7076 = vld [vmem:[%s6903 + $0x70] sm:$0xf]
      %v7077 = vld [vmem:[%s6903 + $0x74] sm:$0x1]
      %v7078 = vld [vmem:[%s6903 + $0x78] sm:$0xf]
      %v7079 = vld [vmem:[%s6903 + $0x7c] sm:$0xf]
      %v7080 = vld [vmem:[%s6903 + $0x80] sm:$0x1]
      %v7081 = vld [vmem:[%s6903 + $0x84] sm:$0xf]
      %v7082 = vld [vmem:[%s6903 + $0x88] sm:$0xf]
      %v7083 = vld [vmem:[%s6903 + $0x8c] sm:$0x1]
      %v7084 = vld [vmem:[%s6903 + $0x90] sm:$0xf]
      %v7085 = vld [vmem:[%s6903 + $0x94] sm:$0xf]
      %v7086 = vld [vmem:[%s6903 + $0x98] sm:$0x1]
      %v7087 = vld [vmem:[%s6903 + $0x9c] sm:$0xf]
      %v7088 = vld [vmem:[%s6903 + $0xa0] sm:$0xf]
      %v7089 = vld [vmem:[%s6903 + $0xa4] sm:$0x1]
      %v7090 = vld [vmem:[%s6903 + $0xa8] sm:$0xf]
      %v7091 = vld [vmem:[%s6903 + $0xac] sm:$0xf]
      %v7092 = vld [vmem:[%s6903 + $0xb0] sm:$0x1]
      %v7093 = vld [vmem:[%s6903 + $0xb4] sm:$0xf]
      %v7094 = vld [vmem:[%s6903 + $0xb8] sm:$0xf]
      %v7095 = vld [vmem:[%s6903 + $0xbc] sm:$0x1]
      %v7097 = vshrl.u32 %v7048, 16
      %v7099 = vrot.slane %v7097, 4
      %v7100 = vshll.u32 %v7048, 16
      %v7102 = vrot.slane %v7100, 5
      %v7103 = vor.u32 %v7099, %v7102
      %v7104 = vrot.slane %v7103, 4
      %v7106 = vshll.u32 %v7049, 16
      %v7108 = vrot.slane %v7106, 5
      %v7109 = vsel %vm990, %v7104, %v7108
      %v7110 = vshrl.u32 %v7049, 16
      %v7112 = vrot.slane %v7110, 4
      %v7113 = vor.u32 %v7112, %v7108
      %v7114 = vrot.slane %v7113, 4
      %v7116 = vshll.u32 %v7050, 16
      %v7118 = vrot.slane %v7116, 5
      %v7119 = vsel %vm990, %v7114, %v7118
      %v7121 = vshrl.u32 %v7051, 16
      %v7123 = vrot.slane %v7121, 4
      %v7124 = vshll.u32 %v7051, 16
      %v7126 = vrot.slane %v7124, 5
      %v7127 = vor.u32 %v7123, %v7126
      %v7128 = vrot.slane %v7127, 4
      %v7130 = vshll.u32 %v7052, 16
      %v7132 = vrot.slane %v7130, 5
      %v7133 = vsel %vm990, %v7128, %v7132
      %v7134 = vshrl.u32 %v7052, 16
      %v7136 = vrot.slane %v7134, 4
      %v7137 = vor.u32 %v7136, %v7132
      %v7138 = vrot.slane %v7137, 4
      %v7140 = vshll.u32 %v7053, 16
      %v7142 = vrot.slane %v7140, 5
      %v7143 = vsel %vm990, %v7138, %v7142
      %v7145 = vshrl.u32 %v7054, 16
      %v7147 = vrot.slane %v7145, 4
      %v7148 = vshll.u32 %v7054, 16
      %v7150 = vrot.slane %v7148, 5
      %v7151 = vor.u32 %v7147, %v7150
      %v7152 = vrot.slane %v7151, 4
      %v7154 = vshll.u32 %v7055, 16
      %v7156 = vrot.slane %v7154, 5
      %v7157 = vsel %vm990, %v7152, %v7156
      %v7158 = vshrl.u32 %v7055, 16
      %v7160 = vrot.slane %v7158, 4
      %v7161 = vor.u32 %v7160, %v7156
      %v7162 = vrot.slane %v7161, 4
      %v7164 = vshll.u32 %v7056, 16
      %v7166 = vrot.slane %v7164, 5
      %v7167 = vsel %vm990, %v7162, %v7166
      %v7169 = vshrl.u32 %v7057, 16
      %v7171 = vrot.slane %v7169, 4
      %v7172 = vshll.u32 %v7057, 16
      %v7174 = vrot.slane %v7172, 5
      %v7175 = vor.u32 %v7171, %v7174
      %v7176 = vrot.slane %v7175, 4
      %v7178 = vshll.u32 %v7058, 16
      %v7180 = vrot.slane %v7178, 5
      %v7181 = vsel %vm990, %v7176, %v7180
      %v7182 = vshrl.u32 %v7058, 16
      %v7184 = vrot.slane %v7182, 4
      %v7185 = vor.u32 %v7184, %v7180
      %v7186 = vrot.slane %v7185, 4
      %v7188 = vshll.u32 %v7059, 16
      %v7190 = vrot.slane %v7188, 5
      %v7191 = vsel %vm990, %v7186, %v7190
      %v7193 = vshrl.u32 %v7060, 16
      %v7195 = vrot.slane %v7193, 4
      %v7196 = vshll.u32 %v7060, 16
      %v7198 = vrot.slane %v7196, 5
      %v7199 = vor.u32 %v7195, %v7198
      %v7200 = vrot.slane %v7199, 4
      %v7202 = vshll.u32 %v7061, 16
      %v7204 = vrot.slane %v7202, 5
      %v7205 = vsel %vm990, %v7200, %v7204
      %v7206 = vshrl.u32 %v7061, 16
      %v7208 = vrot.slane %v7206, 4
      %v7209 = vor.u32 %v7208, %v7204
      %v7210 = vrot.slane %v7209, 4
      %v7212 = vshll.u32 %v7062, 16
      %v7214 = vrot.slane %v7212, 5
      %v7215 = vsel %vm990, %v7210, %v7214
      %v7217 = vshrl.u32 %v7063, 16
      %v7219 = vrot.slane %v7217, 4
      %v7220 = vshll.u32 %v7063, 16
      %v7222 = vrot.slane %v7220, 5
      %v7223 = vor.u32 %v7219, %v7222
      %v7224 = vrot.slane %v7223, 4
      %v7226 = vshll.u32 %v7064, 16
      %v7228 = vrot.slane %v7226, 5
      %v7229 = vsel %vm990, %v7224, %v7228
      %v7230 = vshrl.u32 %v7064, 16
      %v7232 = vrot.slane %v7230, 4
      %v7233 = vor.u32 %v7232, %v7228
      %v7234 = vrot.slane %v7233, 4
      %v7236 = vshll.u32 %v7065, 16
      %v7238 = vrot.slane %v7236, 5
      %v7239 = vsel %vm990, %v7234, %v7238
      %v7241 = vshrl.u32 %v7066, 16
      %v7243 = vrot.slane %v7241, 4
      %v7244 = vshll.u32 %v7066, 16
      %v7246 = vrot.slane %v7244, 5
      %v7247 = vor.u32 %v7243, %v7246
      %v7248 = vrot.slane %v7247, 4
      %v7250 = vshll.u32 %v7067, 16
      %v7252 = vrot.slane %v7250, 5
      %v7253 = vsel %vm990, %v7248, %v7252
      %v7254 = vshrl.u32 %v7067, 16
      %v7256 = vrot.slane %v7254, 4
      %v7257 = vor.u32 %v7256, %v7252
      %v7258 = vrot.slane %v7257, 4
      %v7260 = vshll.u32 %v7068, 16
      %v7262 = vrot.slane %v7260, 5
      %v7263 = vsel %vm990, %v7258, %v7262
      %v7265 = vshrl.u32 %v7069, 16
      %v7267 = vrot.slane %v7265, 4
      %v7268 = vshll.u32 %v7069, 16
      %v7270 = vrot.slane %v7268, 5
      %v7271 = vor.u32 %v7267, %v7270
      %v7272 = vrot.slane %v7271, 4
      %v7274 = vshll.u32 %v7070, 16
      %v7276 = vrot.slane %v7274, 5
      %v7277 = vsel %vm990, %v7272, %v7276
      %v7278 = vshrl.u32 %v7070, 16
      %v7280 = vrot.slane %v7278, 4
      %v7281 = vor.u32 %v7280, %v7276
      %v7282 = vrot.slane %v7281, 4
      %v7284 = vshll.u32 %v7071, 16
      %v7286 = vrot.slane %v7284, 5
      %v7287 = vsel %vm990, %v7282, %v7286
      %v7289 = vshrl.u32 %v7072, 16
      %v7291 = vrot.slane %v7289, 4
      %v7292 = vshll.u32 %v7072, 16
      %v7294 = vrot.slane %v7292, 5
      %v7295 = vor.u32 %v7291, %v7294
      %v7296 = vrot.slane %v7295, 4
      %v7298 = vshll.u32 %v7073, 16
      %v7300 = vrot.slane %v7298, 5
      %v7301 = vsel %vm990, %v7296, %v7300
      %v7302 = vshrl.u32 %v7073, 16
      %v7304 = vrot.slane %v7302, 4
      %v7305 = vor.u32 %v7304, %v7300
      %v7306 = vrot.slane %v7305, 4
      %v7308 = vshll.u32 %v7074, 16
      %v7310 = vrot.slane %v7308, 5
      %v7311 = vsel %vm990, %v7306, %v7310
      %v7313 = vshrl.u32 %v7075, 16
      %v7315 = vrot.slane %v7313, 4
      %v7316 = vshll.u32 %v7075, 16
      %v7318 = vrot.slane %v7316, 5
      %v7319 = vor.u32 %v7315, %v7318
      %v7320 = vrot.slane %v7319, 4
      %v7322 = vshll.u32 %v7076, 16
      %v7324 = vrot.slane %v7322, 5
      %v7325 = vsel %vm990, %v7320, %v7324
      %v7326 = vshrl.u32 %v7076, 16
      %v7328 = vrot.slane %v7326, 4
      %v7329 = vor.u32 %v7328, %v7324
      %v7330 = vrot.slane %v7329, 4
      %v7332 = vshll.u32 %v7077, 16
      %v7334 = vrot.slane %v7332, 5
      %v7335 = vsel %vm990, %v7330, %v7334
      %v7337 = vshrl.u32 %v7078, 16
      %v7339 = vrot.slane %v7337, 4
      %v7340 = vshll.u32 %v7078, 16
      %v7342 = vrot.slane %v7340, 5
      %v7343 = vor.u32 %v7339, %v7342
      %v7344 = vrot.slane %v7343, 4
      %v7346 = vshll.u32 %v7079, 16
      %v7348 = vrot.slane %v7346, 5
      %v7349 = vsel %vm990, %v7344, %v7348
      %v7350 = vshrl.u32 %v7079, 16
      %v7352 = vrot.slane %v7350, 4
      %v7353 = vor.u32 %v7352, %v7348
      %v7354 = vrot.slane %v7353, 4
      %v7356 = vshll.u32 %v7080, 16
      %v7358 = vrot.slane %v7356, 5
      %v7359 = vsel %vm990, %v7354, %v7358
      %v7361 = vshrl.u32 %v7081, 16
      %v7363 = vrot.slane %v7361, 4
      %v7364 = vshll.u32 %v7081, 16
      %v7366 = vrot.slane %v7364, 5
      %v7367 = vor.u32 %v7363, %v7366
      %v7368 = vrot.slane %v7367, 4
      %v7370 = vshll.u32 %v7082, 16
      %v7372 = vrot.slane %v7370, 5
      %v7373 = vsel %vm990, %v7368, %v7372
      %v7374 = vshrl.u32 %v7082, 16
      %v7376 = vrot.slane %v7374, 4
      %v7377 = vor.u32 %v7376, %v7372
      %v7378 = vrot.slane %v7377, 4
      %v7380 = vshll.u32 %v7083, 16
      %v7382 = vrot.slane %v7380, 5
      %v7383 = vsel %vm990, %v7378, %v7382
      %v7385 = vshrl.u32 %v7084, 16
      %v7387 = vrot.slane %v7385, 4
      %v7388 = vshll.u32 %v7084, 16
      %v7390 = vrot.slane %v7388, 5
      %v7391 = vor.u32 %v7387, %v7390
      %v7392 = vrot.slane %v7391, 4
      %v7394 = vshll.u32 %v7085, 16
      %v7396 = vrot.slane %v7394, 5
      %v7397 = vsel %vm990, %v7392, %v7396
      %v7398 = vshrl.u32 %v7085, 16
      %v7400 = vrot.slane %v7398, 4
      %v7401 = vor.u32 %v7400, %v7396
      %v7402 = vrot.slane %v7401, 4
      %v7404 = vshll.u32 %v7086, 16
      %v7406 = vrot.slane %v7404, 5
      %v7407 = vsel %vm990, %v7402, %v7406
      %v7409 = vshrl.u32 %v7087, 16
      %v7411 = vrot.slane %v7409, 4
      %v7412 = vshll.u32 %v7087, 16
      %v7414 = vrot.slane %v7412, 5
      %v7415 = vor.u32 %v7411, %v7414
      %v7416 = vrot.slane %v7415, 4
      %v7418 = vshll.u32 %v7088, 16
      %v7420 = vrot.slane %v7418, 5
      %v7421 = vsel %vm990, %v7416, %v7420
      %v7422 = vshrl.u32 %v7088, 16
      %v7424 = vrot.slane %v7422, 4
      %v7425 = vor.u32 %v7424, %v7420
      %v7426 = vrot.slane %v7425, 4
      %v7428 = vshll.u32 %v7089, 16
      %v7430 = vrot.slane %v7428, 5
      %v7431 = vsel %vm990, %v7426, %v7430
      %v7433 = vshrl.u32 %v7090, 16
      %v7435 = vrot.slane %v7433, 4
      %v7436 = vshll.u32 %v7090, 16
      %v7438 = vrot.slane %v7436, 5
      %v7439 = vor.u32 %v7435, %v7438
      %v7440 = vrot.slane %v7439, 4
      %v7442 = vshll.u32 %v7091, 16
      %v7444 = vrot.slane %v7442, 5
      %v7445 = vsel %vm990, %v7440, %v7444
      %v7446 = vshrl.u32 %v7091, 16
      %v7448 = vrot.slane %v7446, 4
      %v7449 = vor.u32 %v7448, %v7444
      %v7450 = vrot.slane %v7449, 4
      %v7452 = vshll.u32 %v7092, 16
      %v7454 = vrot.slane %v7452, 5
      %v7455 = vsel %vm990, %v7450, %v7454
      %v7457 = vshrl.u32 %v7093, 16
      %v7459 = vrot.slane %v7457, 4
      %v7460 = vshll.u32 %v7093, 16
      %v7462 = vrot.slane %v7460, 5
      %v7463 = vor.u32 %v7459, %v7462
      %v7464 = vrot.slane %v7463, 4
      %v7466 = vshll.u32 %v7094, 16
      %v7468 = vrot.slane %v7466, 5
      %v7469 = vsel %vm990, %v7464, %v7468
      %v7470 = vshrl.u32 %v7094, 16
      %v7472 = vrot.slane %v7470, 4
      %v7473 = vor.u32 %v7472, %v7468
      %v7474 = vrot.slane %v7473, 4
      %v7476 = vshll.u32 %v7095, 16
      %v7478 = vrot.slane %v7476, 5
      %v7479 = vsel %vm990, %v7474, %v7478
      %v7480 = vunpack.c.l.b16 %v7109
      %v7481 = vunpack.c.l.b16 %v7119
      %v7482 = vunpack.c.l.b16 %v7133
      %v7483 = vunpack.c.l.b16 %v7143
      %v7484 = vunpack.c.l.b16 %v7157
      %v7485 = vunpack.c.l.b16 %v7167
      %v7486 = vunpack.c.l.b16 %v7181
      %v7487 = vunpack.c.l.b16 %v7191
      %v7488 = vunpack.c.l.b16 %v7205
      %v7489 = vunpack.c.l.b16 %v7215
      %v7490 = vunpack.c.l.b16 %v7229
      %v7491 = vunpack.c.l.b16 %v7239
      %v7492 = vunpack.c.l.b16 %v7253
      %v7493 = vunpack.c.l.b16 %v7263
      %v7494 = vunpack.c.l.b16 %v7277
      %v7495 = vunpack.c.l.b16 %v7287
      %v7496 = vunpack.c.l.b16 %v7301
      %v7497 = vunpack.c.l.b16 %v7311
      %v7498 = vunpack.c.l.b16 %v7325
      %v7499 = vunpack.c.l.b16 %v7335
      %v7500 = vunpack.c.l.b16 %v7349
      %v7501 = vunpack.c.l.b16 %v7359
      %v7502 = vunpack.c.l.b16 %v7373
      %v7503 = vunpack.c.l.b16 %v7383
      %v7504 = vunpack.c.l.b16 %v7397
      %v7505 = vunpack.c.l.b16 %v7407
      %v7506 = vunpack.c.l.b16 %v7421
      %v7507 = vunpack.c.l.b16 %v7431
      %v7508 = vunpack.c.l.b16 %v7445
      %v7509 = vunpack.c.l.b16 %v7455
      %v7510 = vunpack.c.l.b16 %v7469
      %v7511 = vunpack.c.l.b16 %v7479
      %v7512 = vpack.c.b16 %v7481, %v7480
      %v7513 = vpack.c.b16 %v7483, %v7482
      %v7514 = vpack.c.b16 %v7485, %v7484
      %v7515 = vpack.c.b16 %v7487, %v7486
      %v7516 = vpack.c.b16 %v7489, %v7488
      %v7517 = vpack.c.b16 %v7491, %v7490
      %v7518 = vpack.c.b16 %v7493, %v7492
      %v7519 = vpack.c.b16 %v7495, %v7494
      %v7520 = vpack.c.b16 %v7497, %v7496
      %v7521 = vpack.c.b16 %v7499, %v7498
      %v7522 = vpack.c.b16 %v7501, %v7500
      %v7523 = vpack.c.b16 %v7503, %v7502
      %v7524 = vpack.c.b16 %v7505, %v7504
      %v7525 = vpack.c.b16 %v7507, %v7506
      %v7526 = vpack.c.b16 %v7509, %v7508
      %v7527 = vpack.c.b16 %v7511, %v7510
      %7528 = vrot.lane.b32.xlu0 %v7512, 64
      %v7529 = vpop.permute.xlu0 %7528
      %7530 = vrot.lane.b32.xlu0 %v7513, 64
      %v7531 = vpop.permute.xlu0 %7530
      %7532 = vrot.lane.b32.xlu0 %v7514, 64
      %v7533 = vpop.permute.xlu0 %7532
      %7534 = vrot.lane.b32.xlu0 %v7515, 64
      %v7535 = vpop.permute.xlu0 %7534
      %7536 = vrot.lane.b32.xlu0 %v7516, 64
      %v7537 = vpop.permute.xlu0 %7536
      %7538 = vrot.lane.b32.xlu0 %v7517, 64
      %v7539 = vpop.permute.xlu0 %7538
      %7540 = vrot.lane.b32.xlu0 %v7518, 64
      %v7541 = vpop.permute.xlu0 %7540
      %7542 = vrot.lane.b32.xlu0 %v7519, 64
      %v7543 = vpop.permute.xlu0 %7542
      %7544 = vrot.lane.b32.xlu0 %v7520, 64
      %v7545 = vpop.permute.xlu0 %7544
      %7546 = vrot.lane.b32.xlu0 %v7521, 64
      %v7547 = vpop.permute.xlu0 %7546
      %7548 = vrot.lane.b32.xlu0 %v7522, 64
      %v7549 = vpop.permute.xlu0 %7548
      %7550 = vrot.lane.b32.xlu0 %v7523, 64
      %v7551 = vpop.permute.xlu0 %7550
      %7552 = vrot.lane.b32.xlu0 %v7524, 64
      %v7553 = vpop.permute.xlu0 %7552
      %7554 = vrot.lane.b32.xlu0 %v7525, 64
      %v7555 = vpop.permute.xlu0 %7554
      %7556 = vrot.lane.b32.xlu0 %v7526, 64
      %v7557 = vpop.permute.xlu0 %7556
      %7558 = vrot.lane.b32.xlu0 %v7527, 64
      %v7559 = vpop.permute.xlu0 %7558
      %7576 = vst.msk [vmem:[#allocation5 + $0x18] sm:$0xff] %vm5590, %v7529
      %7577 = vst.msk [vmem:[#allocation5 + $0x40] sm:$0xff] %vm5590, %v7531
      %7578 = vst.msk [vmem:[#allocation5 + $0x68] sm:$0xff] %vm5590, %v7533
      %7579 = vst.msk [vmem:[#allocation5 + $0x90] sm:$0xff] %vm5590, %v7535
      %7580 = vst.msk [vmem:[#allocation5 + $0xb8] sm:$0xff] %vm5590, %v7537
      %7581 = vst.msk [vmem:[#allocation5 + $0xe0] sm:$0xff] %vm5590, %v7539
      %7582 = vst.msk [vmem:[#allocation5 + $0x108] sm:$0xff] %vm5590, %v7541
      %7583 = vst.msk [vmem:[#allocation5 + $0x130] sm:$0xff] %vm5590, %v7543
      %7584 = vst.msk [vmem:[#allocation5 + $0x158] sm:$0xff] %vm5590, %v7545
      %7585 = vst.msk [vmem:[#allocation5 + $0x180] sm:$0xff] %vm5590, %v7547
      %7586 = vst.msk [vmem:[#allocation5 + $0x1a8] sm:$0xff] %vm5590, %v7549
      %7587 = vst.msk [vmem:[#allocation5 + $0x1d0] sm:$0xff] %vm5590, %v7551
      %7588 = vst.msk [vmem:[#allocation5 + $0x1f8] sm:$0xff] %vm5590, %v7553
      %7589 = vst.msk [vmem:[#allocation5 + $0x220] sm:$0xff] %vm5590, %v7555
      %7590 = vst.msk [vmem:[#allocation5 + $0x248] sm:$0xff] %vm5590, %v7557
      %7591 = vst.msk [vmem:[#allocation5 + $0x270] sm:$0xff] %vm5590, %v7559
      %v7592 = vld [vmem:[%s6903] sm:$0xe]
      %v7593 = vld [vmem:[%s6903 + $0x4] sm:$0xf]
      %v7594 = vld [vmem:[%s6903 + $0x8] sm:$0x1]
      %v7595 = vld [vmem:[%s6903 + $0xc] sm:$0xe]
      %v7596 = vld [vmem:[%s6903 + $0x10] sm:$0xf]
      %v7597 = vld [vmem:[%s6903 + $0x14] sm:$0x1]
      %v7598 = vld [vmem:[%s6903 + $0x18] sm:$0xe]
      %v7599 = vld [vmem:[%s6903 + $0x1c] sm:$0xf]
      %v7600 = vld [vmem:[%s6903 + $0x20] sm:$0x1]
      %v7601 = vld [vmem:[%s6903 + $0x24] sm:$0xe]
      %v7602 = vld [vmem:[%s6903 + $0x28] sm:$0xf]
      %v7603 = vld [vmem:[%s6903 + $0x2c] sm:$0x1]
      %v7604 = vld [vmem:[%s6903 + $0x30] sm:$0xe]
      %v7605 = vld [vmem:[%s6903 + $0x34] sm:$0xf]
      %v7606 = vld [vmem:[%s6903 + $0x38] sm:$0x1]
      %v7607 = vld [vmem:[%s6903 + $0x3c] sm:$0xe]
      %v7608 = vld [vmem:[%s6903 + $0x40] sm:$0xf]
      %v7609 = vld [vmem:[%s6903 + $0x44] sm:$0x1]
      %v7610 = vld [vmem:[%s6903 + $0x48] sm:$0xe]
      %v7611 = vld [vmem:[%s6903 + $0x4c] sm:$0xf]
      %v7612 = vld [vmem:[%s6903 + $0x50] sm:$0x1]
      %v7613 = vld [vmem:[%s6903 + $0x54] sm:$0xe]
      %v7614 = vld [vmem:[%s6903 + $0x58] sm:$0xf]
      %v7615 = vld [vmem:[%s6903 + $0x5c] sm:$0x1]
      %v7616 = vld [vmem:[%s6903 + $0x60] sm:$0xe]
      %v7617 = vld [vmem:[%s6903 + $0x64] sm:$0xf]
      %v7618 = vld [vmem:[%s6903 + $0x68] sm:$0x1]
      %v7619 = vld [vmem:[%s6903 + $0x6c] sm:$0xe]
      %v7620 = vld [vmem:[%s6903 + $0x70] sm:$0xf]
      %v7621 = vld [vmem:[%s6903 + $0x74] sm:$0x1]
      %v7622 = vld [vmem:[%s6903 + $0x78] sm:$0xe]
      %v7623 = vld [vmem:[%s6903 + $0x7c] sm:$0xf]
      %v7624 = vld [vmem:[%s6903 + $0x80] sm:$0x1]
      %v7625 = vld [vmem:[%s6903 + $0x84] sm:$0xe]
      %v7626 = vld [vmem:[%s6903 + $0x88] sm:$0xf]
      %v7627 = vld [vmem:[%s6903 + $0x8c] sm:$0x1]
      %v7628 = vld [vmem:[%s6903 + $0x90] sm:$0xe]
      %v7629 = vld [vmem:[%s6903 + $0x94] sm:$0xf]
      %v7630 = vld [vmem:[%s6903 + $0x98] sm:$0x1]
      %v7631 = vld [vmem:[%s6903 + $0x9c] sm:$0xe]
      %v7632 = vld [vmem:[%s6903 + $0xa0] sm:$0xf]
      %v7633 = vld [vmem:[%s6903 + $0xa4] sm:$0x1]
      %v7634 = vld [vmem:[%s6903 + $0xa8] sm:$0xe]
      %v7635 = vld [vmem:[%s6903 + $0xac] sm:$0xf]
      %v7636 = vld [vmem:[%s6903 + $0xb0] sm:$0x1]
      %v7637 = vld [vmem:[%s6903 + $0xb4] sm:$0xe]
      %v7638 = vld [vmem:[%s6903 + $0xb8] sm:$0xf]
      %v7639 = vld [vmem:[%s6903 + $0xbc] sm:$0x1]
      %v7688 = vrot.slane %v7592, 5
      %v7689 = vrot.slane %v7688, 4
      %v7690 = vrot.slane %v7593, 5
      %v7691 = vsel %vm1586, %v7689, %v7690
      %v7692 = vrot.slane %v7690, 4
      %v7693 = vrot.slane %v7594, 5
      %v7694 = vsel %vm1586, %v7692, %v7693
      %v7695 = vrot.slane %v7595, 5
      %v7696 = vrot.slane %v7695, 4
      %v7697 = vrot.slane %v7596, 5
      %v7698 = vsel %vm1586, %v7696, %v7697
      %v7699 = vrot.slane %v7697, 4
      %v7700 = vrot.slane %v7597, 5
      %v7701 = vsel %vm1586, %v7699, %v7700
      %v7702 = vrot.slane %v7598, 5
      %v7703 = vrot.slane %v7702, 4
      %v7704 = vrot.slane %v7599, 5
      %v7705 = vsel %vm1586, %v7703, %v7704
      %v7706 = vrot.slane %v7704, 4
      %v7707 = vrot.slane %v7600, 5
      %v7708 = vsel %vm1586, %v7706, %v7707
      %v7709 = vrot.slane %v7601, 5
      %v7710 = vrot.slane %v7709, 4
      %v7711 = vrot.slane %v7602, 5
      %v7712 = vsel %vm1586, %v7710, %v7711
      %v7713 = vrot.slane %v7711, 4
      %v7714 = vrot.slane %v7603, 5
      %v7715 = vsel %vm1586, %v7713, %v7714
      %v7716 = vrot.slane %v7604, 5
      %v7717 = vrot.slane %v7716, 4
      %v7718 = vrot.slane %v7605, 5
      %v7719 = vsel %vm1586, %v7717, %v7718
      %v7720 = vrot.slane %v7718, 4
      %v7721 = vrot.slane %v7606, 5
      %v7722 = vsel %vm1586, %v7720, %v7721
      %v7723 = vrot.slane %v7607, 5
      %v7724 = vrot.slane %v7723, 4
      %v7725 = vrot.slane %v7608, 5
      %v7726 = vsel %vm1586, %v7724, %v7725
      %v7727 = vrot.slane %v7725, 4
      %v7728 = vrot.slane %v7609, 5
      %v7729 = vsel %vm1586, %v7727, %v7728
      %v7730 = vrot.slane %v7610, 5
      %v7731 = vrot.slane %v7730, 4
      %v7732 = vrot.slane %v7611, 5
      %v7733 = vsel %vm1586, %v7731, %v7732
      %v7734 = vrot.slane %v7732, 4
      %v7735 = vrot.slane %v7612, 5
      %v7736 = vsel %vm1586, %v7734, %v7735
      %v7737 = vrot.slane %v7613, 5
      %v7738 = vrot.slane %v7737, 4
      %v7739 = vrot.slane %v7614, 5
      %v7740 = vsel %vm1586, %v7738, %v7739
      %v7741 = vrot.slane %v7739, 4
      %v7742 = vrot.slane %v7615, 5
      %v7743 = vsel %vm1586, %v7741, %v7742
      %v7744 = vrot.slane %v7616, 5
      %v7745 = vrot.slane %v7744, 4
      %v7746 = vrot.slane %v7617, 5
      %v7747 = vsel %vm1586, %v7745, %v7746
      %v7748 = vrot.slane %v7746, 4
      %v7749 = vrot.slane %v7618, 5
      %v7750 = vsel %vm1586, %v7748, %v7749
      %v7751 = vrot.slane %v7619, 5
      %v7752 = vrot.slane %v7751, 4
      %v7753 = vrot.slane %v7620, 5
      %v7754 = vsel %vm1586, %v7752, %v7753
      %v7755 = vrot.slane %v7753, 4
      %v7756 = vrot.slane %v7621, 5
      %v7757 = vsel %vm1586, %v7755, %v7756
      %v7758 = vrot.slane %v7622, 5
      %v7759 = vrot.slane %v7758, 4
      %v7760 = vrot.slane %v7623, 5
      %v7761 = vsel %vm1586, %v7759, %v7760
      %v7762 = vrot.slane %v7760, 4
      %v7763 = vrot.slane %v7624, 5
      %v7764 = vsel %vm1586, %v7762, %v7763
      %v7765 = vrot.slane %v7625, 5
      %v7766 = vrot.slane %v7765, 4
      %v7767 = vrot.slane %v7626, 5
      %v7768 = vsel %vm1586, %v7766, %v7767
      %v7769 = vrot.slane %v7767, 4
      %v7770 = vrot.slane %v7627, 5
      %v7771 = vsel %vm1586, %v7769, %v7770
      %v7772 = vrot.slane %v7628, 5
      %v7773 = vrot.slane %v7772, 4
      %v7774 = vrot.slane %v7629, 5
      %v7775 = vsel %vm1586, %v7773, %v7774
      %v7776 = vrot.slane %v7774, 4
      %v7777 = vrot.slane %v7630, 5
      %v7778 = vsel %vm1586, %v7776, %v7777
      %v7779 = vrot.slane %v7631, 5
      %v7780 = vrot.slane %v7779, 4
      %v7781 = vrot.slane %v7632, 5
      %v7782 = vsel %vm1586, %v7780, %v7781
      %v7783 = vrot.slane %v7781, 4
      %v7784 = vrot.slane %v7633, 5
      %v7785 = vsel %vm1586, %v7783, %v7784
      %v7786 = vrot.slane %v7634, 5
      %v7787 = vrot.slane %v7786, 4
      %v7788 = vrot.slane %v7635, 5
      %v7789 = vsel %vm1586, %v7787, %v7788
      %v7790 = vrot.slane %v7788, 4
      %v7791 = vrot.slane %v7636, 5
      %v7792 = vsel %vm1586, %v7790, %v7791
      %v7793 = vrot.slane %v7637, 5
      %v7794 = vrot.slane %v7793, 4
      %v7795 = vrot.slane %v7638, 5
      %v7796 = vsel %vm1586, %v7794, %v7795
      %v7797 = vrot.slane %v7795, 4
      %v7798 = vrot.slane %v7639, 5
      %v7799 = vsel %vm1586, %v7797, %v7798
      %v7800 = vunpack.c.l.b16 %v7691
      %v7801 = vunpack.c.l.b16 %v7694
      %v7802 = vunpack.c.l.b16 %v7698
      %v7803 = vunpack.c.l.b16 %v7701
      %v7804 = vunpack.c.l.b16 %v7705
      %v7805 = vunpack.c.l.b16 %v7708
      %v7806 = vunpack.c.l.b16 %v7712
      %v7807 = vunpack.c.l.b16 %v7715
      %v7808 = vunpack.c.l.b16 %v7719
      %v7809 = vunpack.c.l.b16 %v7722
      %v7810 = vunpack.c.l.b16 %v7726
      %v7811 = vunpack.c.l.b16 %v7729
      %v7812 = vunpack.c.l.b16 %v7733
      %v7813 = vunpack.c.l.b16 %v7736
      %v7814 = vunpack.c.l.b16 %v7740
      %v7815 = vunpack.c.l.b16 %v7743
      %v7816 = vunpack.c.l.b16 %v7747
      %v7817 = vunpack.c.l.b16 %v7750
      %v7818 = vunpack.c.l.b16 %v7754
      %v7819 = vunpack.c.l.b16 %v7757
      %v7820 = vunpack.c.l.b16 %v7761
      %v7821 = vunpack.c.l.b16 %v7764
      %v7822 = vunpack.c.l.b16 %v7768
      %v7823 = vunpack.c.l.b16 %v7771
      %v7824 = vunpack.c.l.b16 %v7775
      %v7825 = vunpack.c.l.b16 %v7778
      %v7826 = vunpack.c.l.b16 %v7782
      %v7827 = vunpack.c.l.b16 %v7785
      %v7828 = vunpack.c.l.b16 %v7789
      %v7829 = vunpack.c.l.b16 %v7792
      %v7830 = vunpack.c.l.b16 %v7796
      %v7831 = vunpack.c.l.b16 %v7799
      %v7832 = vpack.c.b16 %v7801, %v7800
      %v7833 = vpack.c.b16 %v7803, %v7802
      %v7834 = vpack.c.b16 %v7805, %v7804
      %v7835 = vpack.c.b16 %v7807, %v7806
      %v7836 = vpack.c.b16 %v7809, %v7808
      %v7837 = vpack.c.b16 %v7811, %v7810
      %v7838 = vpack.c.b16 %v7813, %v7812
      %v7839 = vpack.c.b16 %v7815, %v7814
      %v7840 = vpack.c.b16 %v7817, %v7816
      %v7841 = vpack.c.b16 %v7819, %v7818
      %v7842 = vpack.c.b16 %v7821, %v7820
      %v7843 = vpack.c.b16 %v7823, %v7822
      %v7844 = vpack.c.b16 %v7825, %v7824
      %v7845 = vpack.c.b16 %v7827, %v7826
      %v7846 = vpack.c.b16 %v7829, %v7828
      %v7847 = vpack.c.b16 %v7831, %v7830
      %7864 = vst.msk [vmem:[#allocation5 + $0x20] sm:$0xff] %vm5045, %v7832
      %7865 = vst.msk [vmem:[#allocation5 + $0x48] sm:$0xff] %vm5045, %v7833
      %7866 = vst.msk [vmem:[#allocation5 + $0x70] sm:$0xff] %vm5045, %v7834
      %7867 = vst.msk [vmem:[#allocation5 + $0x98] sm:$0xff] %vm5045, %v7835
      %7868 = vst.msk [vmem:[#allocation5 + $0xc0] sm:$0xff] %vm5045, %v7836
      %7869 = vst.msk [vmem:[#allocation5 + $0xe8] sm:$0xff] %vm5045, %v7837
      %7870 = vst.msk [vmem:[#allocation5 + $0x110] sm:$0xff] %vm5045, %v7838
      %7871 = vst.msk [vmem:[#allocation5 + $0x138] sm:$0xff] %vm5045, %v7839
      %7872 = vst.msk [vmem:[#allocation5 + $0x160] sm:$0xff] %vm5045, %v7840
      %7873 = vst.msk [vmem:[#allocation5 + $0x188] sm:$0xff] %vm5045, %v7841
      %7874 = vst.msk [vmem:[#allocation5 + $0x1b0] sm:$0xff] %vm5045, %v7842
      %7875 = vst.msk [vmem:[#allocation5 + $0x1d8] sm:$0xff] %vm5045, %v7843
      %7876 = vst.msk [vmem:[#allocation5 + $0x200] sm:$0xff] %vm5045, %v7844
      %7877 = vst.msk [vmem:[#allocation5 + $0x228] sm:$0xff] %vm5045, %v7845
      %7878 = vst.msk [vmem:[#allocation5 + $0x250] sm:$0xff] %vm5045, %v7846
      %7879 = vst.msk [vmem:[#allocation5 + $0x278] sm:$0xff] %vm5045, %v7847
      %v7880 = vld [vmem:[#allocation5] sm:$0xff]
      %v7881 = vld [vmem:[#allocation5 + $0x8] sm:$0xff]
      %v7882 = vld [vmem:[#allocation5 + $0x10] sm:$0xff]
      %v7883 = vld [vmem:[#allocation5 + $0x18] sm:$0xff]
      %v7884 = vld [vmem:[#allocation5 + $0x20] sm:$0xff]
      %v7885 = vld [vmem:[#allocation5 + $0x28] sm:$0xff]
      %v7886 = vld [vmem:[#allocation5 + $0x30] sm:$0xff]
      %v7887 = vld [vmem:[#allocation5 + $0x38] sm:$0xff]
      %v7888 = vld [vmem:[#allocation5 + $0x40] sm:$0xff]
      %v7889 = vld [vmem:[#allocation5 + $0x48] sm:$0xff]
      %v7890 = vld [vmem:[#allocation5 + $0x50] sm:$0xff]
      %v7891 = vld [vmem:[#allocation5 + $0x58] sm:$0xff]
      %v7892 = vld [vmem:[#allocation5 + $0x60] sm:$0xff]
      %v7893 = vld [vmem:[#allocation5 + $0x68] sm:$0xff]
      %v7894 = vld [vmem:[#allocation5 + $0x70] sm:$0xff]
      %v7895 = vld [vmem:[#allocation5 + $0x78] sm:$0xff]
      %v7896 = vld [vmem:[#allocation5 + $0x80] sm:$0xff]
      %v7897 = vld [vmem:[#allocation5 + $0x88] sm:$0xff]
      %v7898 = vld [vmem:[#allocation5 + $0x90] sm:$0xff]
      %v7899 = vld [vmem:[#allocation5 + $0x98] sm:$0xff]
      %v7900 = vld [vmem:[#allocation5 + $0xa0] sm:$0xff]
      %v7901 = vld [vmem:[#allocation5 + $0xa8] sm:$0xff]
      %v7902 = vld [vmem:[#allocation5 + $0xb0] sm:$0xff]
      %v7903 = vld [vmem:[#allocation5 + $0xb8] sm:$0xff]
      %v7904 = vld [vmem:[#allocation5 + $0xc0] sm:$0xff]
      %v7905 = vld [vmem:[#allocation5 + $0xc8] sm:$0xff]
      %v7906 = vld [vmem:[#allocation5 + $0xd0] sm:$0xff]
      %v7907 = vld [vmem:[#allocation5 + $0xd8] sm:$0xff]
      %v7908 = vld [vmem:[#allocation5 + $0xe0] sm:$0xff]
      %v7909 = vld [vmem:[#allocation5 + $0xe8] sm:$0xff]
      %v7910 = vld [vmem:[#allocation5 + $0xf0] sm:$0xff]
      %v7911 = vld [vmem:[#allocation5 + $0xf8] sm:$0xff]
      %v7912 = vld [vmem:[#allocation5 + $0x100] sm:$0xff]
      %v7913 = vld [vmem:[#allocation5 + $0x108] sm:$0xff]
      %v7914 = vld [vmem:[#allocation5 + $0x110] sm:$0xff]
      %v7915 = vld [vmem:[#allocation5 + $0x118] sm:$0xff]
      %v7916 = vld [vmem:[#allocation5 + $0x120] sm:$0xff]
      %v7917 = vld [vmem:[#allocation5 + $0x128] sm:$0xff]
      %v7918 = vld [vmem:[#allocation5 + $0x130] sm:$0xff]
      %v7919 = vld [vmem:[#allocation5 + $0x138] sm:$0xff]
      %v7920 = vld [vmem:[#allocation5 + $0x140] sm:$0xff]
      %v7921 = vld [vmem:[#allocation5 + $0x148] sm:$0xff]
      %v7922 = vld [vmem:[#allocation5 + $0x150] sm:$0xff]
      %v7923 = vld [vmem:[#allocation5 + $0x158] sm:$0xff]
      %v7924 = vld [vmem:[#allocation5 + $0x160] sm:$0xff]
      %v7925 = vld [vmem:[#allocation5 + $0x168] sm:$0xff]
      %v7926 = vld [vmem:[#allocation5 + $0x170] sm:$0xff]
      %v7927 = vld [vmem:[#allocation5 + $0x178] sm:$0xff]
      %v7928 = vld [vmem:[#allocation5 + $0x180] sm:$0xff]
      %v7929 = vld [vmem:[#allocation5 + $0x188] sm:$0xff]
      %v7930 = vld [vmem:[#allocation5 + $0x190] sm:$0xff]
      %v7931 = vld [vmem:[#allocation5 + $0x198] sm:$0xff]
      %v7932 = vld [vmem:[#allocation5 + $0x1a0] sm:$0xff]
      %v7933 = vld [vmem:[#allocation5 + $0x1a8] sm:$0xff]
      %v7934 = vld [vmem:[#allocation5 + $0x1b0] sm:$0xff]
      %v7935 = vld [vmem:[#allocation5 + $0x1b8] sm:$0xff]
      %v7936 = vld [vmem:[#allocation5 + $0x1c0] sm:$0xff]
      %v7937 = vld [vmem:[#allocation5 + $0x1c8] sm:$0xff]
      %v7938 = vld [vmem:[#allocation5 + $0x1d0] sm:$0xff]
      %v7939 = vld [vmem:[#allocation5 + $0x1d8] sm:$0xff]
      %v7940 = vld [vmem:[#allocation5 + $0x1e0] sm:$0xff]
      %v7941 = vld [vmem:[#allocation5 + $0x1e8] sm:$0xff]
      %v7942 = vld [vmem:[#allocation5 + $0x1f0] sm:$0xff]
      %v7943 = vld [vmem:[#allocation5 + $0x1f8] sm:$0xff]
      %v7944 = vld [vmem:[#allocation5 + $0x200] sm:$0xff]
      %v7945 = vld [vmem:[#allocation5 + $0x208] sm:$0xff]
      %v7946 = vld [vmem:[#allocation5 + $0x210] sm:$0xff]
      %v7947 = vld [vmem:[#allocation5 + $0x218] sm:$0xff]
      %v7948 = vld [vmem:[#allocation5 + $0x220] sm:$0xff]
      %v7949 = vld [vmem:[#allocation5 + $0x228] sm:$0xff]
      %v7950 = vld [vmem:[#allocation5 + $0x230] sm:$0xff]
      %v7951 = vld [vmem:[#allocation5 + $0x238] sm:$0xff]
      %v7952 = vld [vmem:[#allocation5 + $0x240] sm:$0xff]
      %v7953 = vld [vmem:[#allocation5 + $0x248] sm:$0xff]
      %v7954 = vld [vmem:[#allocation5 + $0x250] sm:$0xff]
      %v7955 = vld [vmem:[#allocation5 + $0x258] sm:$0xff]
      %v7956 = vld [vmem:[#allocation5 + $0x260] sm:$0xff]
      %v7957 = vld [vmem:[#allocation5 + $0x268] sm:$0xff]
      %v7958 = vld [vmem:[#allocation5 + $0x270] sm:$0xff]
      %v7959 = vld [vmem:[#allocation5 + $0x278] sm:$0xff]
      %v7960 = vld [vmem:[%s3] sm:$0xf]
      %v7961 = vld [vmem:[%s3 + $0x4] sm:$0xf]
      %v7962 = vld [vmem:[%s3 + $0x8] sm:$0xf]
      %v7963 = vld [vmem:[%s3 + $0xc] sm:$0xf]
      %v7964 = vld [vmem:[%s3 + $0x10] sm:$0xf]
      %v7965 = vld [vmem:[%s3 + $0x14] sm:$0xf]
      %v7966 = vld [vmem:[%s3 + $0x18] sm:$0xf]
      %v7967 = vld [vmem:[%s3 + $0x1c] sm:$0xf]
      %v7968 = vld [vmem:[%s3 + $0x20] sm:$0xf]
      %v7969 = vld [vmem:[%s3 + $0x24] sm:$0xf]
      %v7970 = vld [vmem:[%s3 + $0x28] sm:$0xf]
      %v7971 = vld [vmem:[%s3 + $0x2c] sm:$0xf]
      %v7972 = vld [vmem:[%s3 + $0x30] sm:$0xf]
      %v7973 = vld [vmem:[%s3 + $0x34] sm:$0xf]
      %v7974 = vld [vmem:[%s3 + $0x38] sm:$0xf]
      %v7975 = vld [vmem:[%s3 + $0x3c] sm:$0xf]
      %v7976 = vld [vmem:[%s3 + $0x40] sm:$0xf]
      %v7977 = vld [vmem:[%s3 + $0x44] sm:$0xf]
      %v7978 = vld [vmem:[%s3 + $0x48] sm:$0xf]
      %v7979 = vld [vmem:[%s3 + $0x4c] sm:$0xf]
      %v7980 = vld [vmem:[%s3 + $0x50] sm:$0xf]
      %v7981 = vld [vmem:[%s3 + $0x54] sm:$0xf]
      %v7982 = vld [vmem:[%s3 + $0x58] sm:$0xf]
      %v7983 = vld [vmem:[%s3 + $0x5c] sm:$0xf]
      %v7984 = vld [vmem:[%s3 + $0x60] sm:$0xf]
      %v7985 = vld [vmem:[%s3 + $0x64] sm:$0xf]
      %v7986 = vld [vmem:[%s3 + $0x68] sm:$0xf]
      %v7987 = vld [vmem:[%s3 + $0x6c] sm:$0xf]
      %v7988 = vld [vmem:[%s3 + $0x70] sm:$0xf]
      %v7989 = vld [vmem:[%s3 + $0x74] sm:$0xf]
      %v7990 = vld [vmem:[%s3 + $0x78] sm:$0xf]
      %v7991 = vld [vmem:[%s3 + $0x7c] sm:$0xf]
      %v7992 = vld [vmem:[%s3 + $0x80] sm:$0xf]
      %v7993 = vld [vmem:[%s3 + $0x84] sm:$0xf]
      %v7994 = vld [vmem:[%s3 + $0x88] sm:$0xf]
      %v7995 = vld [vmem:[%s3 + $0x8c] sm:$0xf]
      %v7996 = vld [vmem:[%s3 + $0x90] sm:$0xf]
      %v7997 = vld [vmem:[%s3 + $0x94] sm:$0xf]
      %v7998 = vld [vmem:[%s3 + $0x98] sm:$0xf]
      %v7999 = vld [vmem:[%s3 + $0x9c] sm:$0xf]
      %v8000 = vld [vmem:[%s3 + $0xa0] sm:$0xf]
      %v8001 = vld [vmem:[%s3 + $0xa4] sm:$0xf]
      %v8002 = vld [vmem:[%s3 + $0xa8] sm:$0xf]
      %v8003 = vld [vmem:[%s3 + $0xac] sm:$0xf]
      %v8004 = vld [vmem:[%s3 + $0xb0] sm:$0xf]
      %v8005 = vld [vmem:[%s3 + $0xb4] sm:$0xf]
      %v8006 = vld [vmem:[%s3 + $0xb8] sm:$0xf]
      %v8007 = vld [vmem:[%s3 + $0xbc] sm:$0xf]
      %v8008 = vld [vmem:[%s3 + $0xc0] sm:$0xf]
      %v8009 = vld [vmem:[%s3 + $0xc4] sm:$0xf]
      %v8010 = vld [vmem:[%s3 + $0xc8] sm:$0xf]
      %v8011 = vld [vmem:[%s3 + $0xcc] sm:$0xf]
      %v8012 = vld [vmem:[%s3 + $0xd0] sm:$0xf]
      %v8013 = vld [vmem:[%s3 + $0xd4] sm:$0xf]
      %v8014 = vld [vmem:[%s3 + $0xd8] sm:$0xf]
      %v8015 = vld [vmem:[%s3 + $0xdc] sm:$0xf]
      %v8016 = vld [vmem:[%s3 + $0xe0] sm:$0xf]
      %v8017 = vld [vmem:[%s3 + $0xe4] sm:$0xf]
      %v8018 = vld [vmem:[%s3 + $0xe8] sm:$0xf]
      %v8019 = vld [vmem:[%s3 + $0xec] sm:$0xf]
      %v8020 = vld [vmem:[%s3 + $0xf0] sm:$0xf]
      %v8021 = vld [vmem:[%s3 + $0xf4] sm:$0xf]
      %v8022 = vld [vmem:[%s3 + $0xf8] sm:$0xf]
      %v8023 = vld [vmem:[%s3 + $0xfc] sm:$0xf]
      %v8024 = vld [vmem:[%s3 + $0x100] sm:$0xf]
      %v8025 = vld [vmem:[%s3 + $0x104] sm:$0xf]
      %v8026 = vld [vmem:[%s3 + $0x108] sm:$0xf]
      %v8027 = vld [vmem:[%s3 + $0x10c] sm:$0xf]
      %v8028 = vld [vmem:[%s3 + $0x110] sm:$0xf]
      %v8029 = vld [vmem:[%s3 + $0x114] sm:$0xf]
      %v8030 = vld [vmem:[%s3 + $0x118] sm:$0xf]
      %v8031 = vld [vmem:[%s3 + $0x11c] sm:$0xf]
      %v8032 = vld [vmem:[%s4] sm:$0x1]
      %v8034 = vlaneseq
      %v8035 = vshrl.u32 %v8034, 7
      %v8036 = vsub.s32 0, %v8035
      %v8037 = vrot.slane %v8032, %v8036
      %v8111 = vunpack.c.l.b16 %v7960
      %v8112 = vunpack.c.l.b16 %v7961
      %v8113 = vunpack.c.l.b16 %v7962
      %v8114 = vunpack.c.l.b16 %v7963
      %v8115 = vunpack.c.l.b16 %v7964
      %v8116 = vunpack.c.l.b16 %v7965
      %v8117 = vunpack.c.l.b16 %v7966
      %v8118 = vunpack.c.l.b16 %v7967
      %v8119 = vunpack.c.l.b16 %v7968
      %v8120 = vunpack.c.l.b16 %v7969
      %v8121 = vunpack.c.l.b16 %v7970
      %v8122 = vunpack.c.l.b16 %v7971
      %v8123 = vunpack.c.l.b16 %v7972
      %v8124 = vunpack.c.l.b16 %v7973
      %v8125 = vunpack.c.l.b16 %v7974
      %v8126 = vunpack.c.l.b16 %v7975
      %v8127 = vunpack.c.l.b16 %v7976
      %v8128 = vunpack.c.l.b16 %v7977
      %v8129 = vunpack.c.l.b16 %v7978
      %v8130 = vunpack.c.l.b16 %v7979
      %v8131 = vunpack.c.l.b16 %v7980
      %v8132 = vunpack.c.l.b16 %v7981
      %v8133 = vunpack.c.l.b16 %v7982
      %v8134 = vunpack.c.l.b16 %v7983
      %v8135 = vunpack.c.l.b16 %v7984
      %v8136 = vunpack.c.l.b16 %v7985
      %v8137 = vunpack.c.l.b16 %v7986
      %v8138 = vunpack.c.l.b16 %v7987
      %v8139 = vunpack.c.l.b16 %v7988
      %v8140 = vunpack.c.l.b16 %v7989
      %v8141 = vunpack.c.l.b16 %v7990
      %v8142 = vunpack.c.l.b16 %v7991
      %v8143 = vunpack.c.l.b16 %v7992
      %v8144 = vunpack.c.l.b16 %v7993
      %v8145 = vunpack.c.l.b16 %v7994
      %v8146 = vunpack.c.l.b16 %v7995
      %v8147 = vunpack.c.l.b16 %v7996
      %v8148 = vunpack.c.l.b16 %v7997
      %v8149 = vunpack.c.l.b16 %v7998
      %v8150 = vunpack.c.l.b16 %v7999
      %v8151 = vunpack.c.l.b16 %v8000
      %v8152 = vunpack.c.l.b16 %v8001
      %v8153 = vunpack.c.l.b16 %v8002
      %v8154 = vunpack.c.l.b16 %v8003
      %v8155 = vunpack.c.l.b16 %v8004
      %v8156 = vunpack.c.l.b16 %v8005
      %v8157 = vunpack.c.l.b16 %v8006
      %v8158 = vunpack.c.l.b16 %v8007
      %v8159 = vunpack.c.l.b16 %v8008
      %v8160 = vunpack.c.l.b16 %v8009
      %v8161 = vunpack.c.l.b16 %v8010
      %v8162 = vunpack.c.l.b16 %v8011
      %v8163 = vunpack.c.l.b16 %v8012
      %v8164 = vunpack.c.l.b16 %v8013
      %v8165 = vunpack.c.l.b16 %v8014
      %v8166 = vunpack.c.l.b16 %v8015
      %v8167 = vunpack.c.l.b16 %v8016
      %v8168 = vunpack.c.l.b16 %v8017
      %v8169 = vunpack.c.l.b16 %v8018
      %v8170 = vunpack.c.l.b16 %v8019
      %v8171 = vunpack.c.l.b16 %v8020
      %v8172 = vunpack.c.l.b16 %v8021
      %v8173 = vunpack.c.l.b16 %v8022
      %v8174 = vunpack.c.l.b16 %v8023
      %v8175 = vunpack.c.l.b16 %v8024
      %v8176 = vunpack.c.l.b16 %v8025
      %v8177 = vunpack.c.l.b16 %v8026
      %v8178 = vunpack.c.l.b16 %v8027
      %v8179 = vunpack.c.l.b16 %v8028
      %v8180 = vunpack.c.l.b16 %v8029
      %v8181 = vunpack.c.l.b16 %v8030
      %v8182 = vunpack.c.l.b16 %v8031
      %v8183 = vpack.c.b16 %v8112, %v8111
      %v8184 = vpack.c.b16 %v8114, %v8113
      %v8185 = vpack.c.b16 %v8116, %v8115
      %v8186 = vpack.c.b16 %v8118, %v8117
      %v8187 = vpack.c.b16 %v8120, %v8119
      %v8188 = vpack.c.b16 %v8122, %v8121
      %v8189 = vpack.c.b16 %v8124, %v8123
      %v8190 = vpack.c.b16 %v8126, %v8125
      %v8191 = vpack.c.b16 %v8128, %v8127
      %v8192 = vpack.c.b16 %v8130, %v8129
      %v8193 = vpack.c.b16 %v8132, %v8131
      %v8194 = vpack.c.b16 %v8134, %v8133
      %v8195 = vpack.c.b16 %v8136, %v8135
      %v8196 = vpack.c.b16 %v8138, %v8137
      %v8197 = vpack.c.b16 %v8140, %v8139
      %v8198 = vpack.c.b16 %v8142, %v8141
      %v8199 = vpack.c.b16 %v8144, %v8143
      %v8200 = vpack.c.b16 %v8146, %v8145
      %v8201 = vpack.c.b16 %v8148, %v8147
      %v8202 = vpack.c.b16 %v8150, %v8149
      %v8203 = vpack.c.b16 %v8152, %v8151
      %v8204 = vpack.c.b16 %v8154, %v8153
      %v8205 = vpack.c.b16 %v8156, %v8155
      %v8206 = vpack.c.b16 %v8158, %v8157
      %v8207 = vpack.c.b16 %v8160, %v8159
      %v8208 = vpack.c.b16 %v8162, %v8161
      %v8209 = vpack.c.b16 %v8164, %v8163
      %v8210 = vpack.c.b16 %v8166, %v8165
      %v8211 = vpack.c.b16 %v8168, %v8167
      %v8212 = vpack.c.b16 %v8170, %v8169
      %v8213 = vpack.c.b16 %v8172, %v8171
      %v8214 = vpack.c.b16 %v8174, %v8173
      %v8215 = vpack.c.b16 %v8176, %v8175
      %v8216 = vpack.c.b16 %v8178, %v8177
      %v8217 = vpack.c.b16 %v8180, %v8179
      %v8218 = vpack.c.b16 %v8182, %v8181
      %v8256 = vsel %vm5045, %v7884, 0
      %v8259 = vsel %vm5045, %v7889, 0
      %v8262 = vsel %vm5045, %v7894, 0
      %v8265 = vsel %vm5045, %v7899, 0
      %v8268 = vsel %vm5045, %v7904, 0
      %v8271 = vsel %vm5045, %v7909, 0
      %v8274 = vsel %vm5045, %v7914, 0
      %v8277 = vsel %vm5045, %v7919, 0
      %v8280 = vsel %vm5045, %v7924, 0
      %v8283 = vsel %vm5045, %v7929, 0
      %v8286 = vsel %vm5045, %v7934, 0
      %v8289 = vsel %vm5045, %v7939, 0
      %v8292 = vsel %vm5045, %v7944, 0
      %v8295 = vsel %vm5045, %v7949, 0
      %v8298 = vsel %vm5045, %v7954, 0
      %v8301 = vsel %vm5045, %v7959, 0
      %8303 = vmatprep.subr.bf16.mxu0 0
      %8304 = vmatpush1.bf16.msra.mxu0 %v8183
      %8305 = vmatprep.subr.bf16.mxu0 0
      %8306 = vmatpush1.bf16.msra.mxu0 %v8184
      %8307 = vmatprep.subr.bf16.mxu0 0
      %8308 = vmatpush1.bf16.msra.mxu0 %v8185
      %8309 = vmatprep.subr.bf16.mxu0 0
      %8310 = vmatpush1.bf16.msra.mxu0 %v8186
      %8311 = vmatprep.subr.bf16.mxu0 0
      %8312 = vmatpush1.bf16.msra.mxu0 %v8187
      %8313 = vmatprep.subr.bf16.mxu0 0
      %8314 = vmatpush1.bf16.msra.mxu0 %v8188
      %8315 = vmatprep.subr.bf16.mxu0 0
      %8316 = vmatpush1.bf16.msra.mxu0 %v8189
      %8317 = vmatprep.subr.bf16.mxu0 0
      %8318 = vmatpush1.bf16.msra.mxu0 %v8190
      %8319 = vmatprep.subr.bf16.mxu0 0
      %8320 = vmatpush1.bf16.msra.mxu0 %v8191
      %8321 = vmatprep.subr.bf16.mxu0 0
      %8322 = vmatpush1.bf16.msra.mxu0 %v8192
      %8323 = vmatprep.subr.bf16.mxu0 0
      %8324 = vmatpush1.bf16.msra.mxu0 %v8193
      %8325 = vmatprep.subr.bf16.mxu0 0
      %8326 = vmatpush1.bf16.msra.mxu0 %v8194
      %8327 = vmatprep.subr.bf16.mxu0 0
      %8328 = vmatpush1.bf16.msra.mxu0 %v8195
      %8329 = vmatprep.subr.bf16.mxu0 0
      %8330 = vmatpush1.bf16.msra.mxu0 %v8196
      %8331 = vmatprep.subr.bf16.mxu0 0
      %8332 = vmatpush1.bf16.msra.mxu0 %v8197
      %8333 = vmatprep.subr.bf16.mxu0 0
      %8334 = vmatpush1.bf16.msra.mxu0 %v8198
      %8335 = vmatprep.mubr.bf16.mxu0 %v7881
      %8336 = vmatmul.mubr.bf16.gmra.mrb[0].mxu0 %v7880
      %v8337 = vpop.f32.mrb[0].mxu0
      %v8338 = vadd.f32 %v8037, %v8337
      %v8339 = vpop.f32.mrb[0].mxu0
      %v8340 = vpop.f32.mrb[0].mxu0
      %v8341 = vadd.f32 %v8037, %v8340
      %v8342 = vpop.f32.mrb[0].mxu0
      %8343 = vmatprep.mubr.bf16.mxu0 %v7886
      %8344 = vmatmul.mubr.bf16.gmra.mrb[0].mxu0 %v7885
      %v8345 = vpop.f32.mrb[0].mxu0
      %v8346 = vadd.f32 %v8037, %v8345
      %v8347 = vpop.f32.mrb[0].mxu0
      %v8348 = vpop.f32.mrb[0].mxu0
      %v8349 = vadd.f32 %v8037, %v8348
      %v8350 = vpop.f32.mrb[0].mxu0
      %8351 = vmatprep.mubr.bf16.mxu0 %v7891
      %8352 = vmatmul.mubr.bf16.gmra.mrb[0].mxu0 %v7890
      %v8353 = vpop.f32.mrb[0].mxu0
      %v8354 = vadd.f32 %v8037, %v8353
      %v8355 = vpop.f32.mrb[0].mxu0
      %v8356 = vpop.f32.mrb[0].mxu0
      %v8357 = vadd.f32 %v8037, %v8356
      %v8358 = vpop.f32.mrb[0].mxu0
      %8359 = vmatprep.mubr.bf16.mxu0 %v7896
      %8360 = vmatmul.mubr.bf16.gmra.mrb[0].mxu0 %v7895
      %v8361 = vpop.f32.mrb[0].mxu0
      %v8362 = vadd.f32 %v8037, %v8361
      %v8363 = vpop.f32.mrb[0].mxu0
      %v8364 = vpop.f32.mrb[0].mxu0
      %v8365 = vadd.f32 %v8037, %v8364
      %v8366 = vpop.f32.mrb[0].mxu0
      %8367 = vmatprep.mubr.bf16.mxu0 %v7901
      %8368 = vmatmul.mubr.bf16.gmra.mrb[0].mxu0 %v7900
      %v8369 = vpop.f32.mrb[0].mxu0
      %v8370 = vadd.f32 %v8037, %v8369
      %v8371 = vpop.f32.mrb[0].mxu0
      %v8372 = vpop.f32.mrb[0].mxu0
      %v8373 = vadd.f32 %v8037, %v8372
      %v8374 = vpop.f32.mrb[0].mxu0
      %8375 = vmatprep.mubr.bf16.mxu0 %v7906
      %8376 = vmatmul.mubr.bf16.gmra.mrb[0].mxu0 %v7905
      %v8377 = vpop.f32.mrb[0].mxu0
      %v8378 = vadd.f32 %v8037, %v8377
      %v8379 = vpop.f32.mrb[0].mxu0
      %v8380 = vpop.f32.mrb[0].mxu0
      %v8381 = vadd.f32 %v8037, %v8380
      %v8382 = vpop.f32.mrb[0].mxu0
      %8383 = vmatprep.mubr.bf16.mxu0 %v7911
      %8384 = vmatmul.mubr.bf16.gmra.mrb[0].mxu0 %v7910
      %v8385 = vpop.f32.mrb[0].mxu0
      %v8386 = vadd.f32 %v8037, %v8385
      %v8387 = vpop.f32.mrb[0].mxu0
      %v8388 = vpop.f32.mrb[0].mxu0
      %v8389 = vadd.f32 %v8037, %v8388
      %v8390 = vpop.f32.mrb[0].mxu0
      %8391 = vmatprep.mubr.bf16.mxu0 %v7916
      %8392 = vmatmul.mubr.bf16.gmra.mrb[0].mxu0 %v7915
      %v8393 = vpop.f32.mrb[0].mxu0
      %v8394 = vadd.f32 %v8037, %v8393
      %v8395 = vpop.f32.mrb[0].mxu0
      %v8396 = vpop.f32.mrb[0].mxu0
      %v8397 = vadd.f32 %v8037, %v8396
      %v8398 = vpop.f32.mrb[0].mxu0
      %8399 = vmatprep.mubr.bf16.mxu0 %v7921
      %8400 = vmatmul.mubr.bf16.gmra.mrb[0].mxu0 %v7920
      %v8401 = vpop.f32.mrb[0].mxu0
      %v8402 = vadd.f32 %v8037, %v8401
      %v8403 = vpop.f32.mrb[0].mxu0
      %v8404 = vpop.f32.mrb[0].mxu0
      %v8405 = vadd.f32 %v8037, %v8404
      %v8406 = vpop.f32.mrb[0].mxu0
      %8407 = vmatprep.mubr.bf16.mxu0 %v7926
      %8408 = vmatmul.mubr.bf16.gmra.mrb[0].mxu0 %v7925
      %v8409 = vpop.f32.mrb[0].mxu0
      %v8410 = vadd.f32 %v8037, %v8409
      %v8411 = vpop.f32.mrb[0].mxu0
      %v8412 = vpop.f32.mrb[0].mxu0
      %v8413 = vadd.f32 %v8037, %v8412
      %v8414 = vpop.f32.mrb[0].mxu0
      %8415 = vmatprep.mubr.bf16.mxu0 %v7931
      %8416 = vmatmul.mubr.bf16.gmra.mrb[0].mxu0 %v7930
      %v8417 = vpop.f32.mrb[0].mxu0
      %v8418 = vadd.f32 %v8037, %v8417
      %v8419 = vpop.f32.mrb[0].mxu0
      %v8420 = vpop.f32.mrb[0].mxu0
      %v8421 = vadd.f32 %v8037, %v8420
      %v8422 = vpop.f32.mrb[0].mxu0
      %8423 = vmatprep.mubr.bf16.mxu0 %v7936
      %8424 = vmatmul.mubr.bf16.gmra.mrb[0].mxu0 %v7935
      %v8425 = vpop.f32.mrb[0].mxu0
      %v8426 = vadd.f32 %v8037, %v8425
      %v8427 = vpop.f32.mrb[0].mxu0
      %v8428 = vpop.f32.mrb[0].mxu0
      %v8429 = vadd.f32 %v8037, %v8428
      %v8430 = vpop.f32.mrb[0].mxu0
      %8431 = vmatprep.mubr.bf16.mxu0 %v7941
      %8432 = vmatmul.mubr.bf16.gmra.mrb[0].mxu0 %v7940
      %v8433 = vpop.f32.mrb[0].mxu0
      %v8434 = vadd.f32 %v8037, %v8433
      %v8435 = vpop.f32.mrb[0].mxu0
      %v8436 = vpop.f32.mrb[0].mxu0
      %v8437 = vadd.f32 %v8037, %v8436
      %v8438 = vpop.f32.mrb[0].mxu0
      %8439 = vmatprep.mubr.bf16.mxu0 %v7946
      %8440 = vmatmul.mubr.bf16.gmra.mrb[0].mxu0 %v7945
      %v8441 = vpop.f32.mrb[0].mxu0
      %v8442 = vadd.f32 %v8037, %v8441
      %v8443 = vpop.f32.mrb[0].mxu0
      %v8444 = vpop.f32.mrb[0].mxu0
      %v8445 = vadd.f32 %v8037, %v8444
      %v8446 = vpop.f32.mrb[0].mxu0
      %8447 = vmatprep.mubr.bf16.mxu0 %v7951
      %8448 = vmatmul.mubr.bf16.gmra.mrb[0].mxu0 %v7950
      %v8449 = vpop.f32.mrb[0].mxu0
      %v8450 = vadd.f32 %v8037, %v8449
      %v8451 = vpop.f32.mrb[0].mxu0
      %v8452 = vpop.f32.mrb[0].mxu0
      %v8453 = vadd.f32 %v8037, %v8452
      %v8454 = vpop.f32.mrb[0].mxu0
      %8455 = vmatprep.mubr.bf16.mxu0 %v7956
      %8456 = vmatmul.mubr.bf16.gmra.mrb[0].mxu0 %v7955
      %v8457 = vpop.f32.mrb[0].mxu0
      %v8458 = vadd.f32 %v8037, %v8457
      %v8459 = vpop.f32.mrb[0].mxu0
      %v8460 = vpop.f32.mrb[0].mxu0
      %v8461 = vadd.f32 %v8037, %v8460
      %v8462 = vpop.f32.mrb[0].mxu0
      %8463 = vdwg.mxu0
      %8464 = vmatprep.subr.bf16.mxu0 0
      %8465 = vmatpush1.bf16.msra.mxu0 %v8199
      %8466 = vmatprep.subr.bf16.mxu0 0
      %8467 = vmatpush1.bf16.msra.mxu0 %v8200
      %8468 = vmatprep.subr.bf16.mxu0 0
      %8469 = vmatpush1.bf16.msra.mxu0 %v8201
      %8470 = vmatprep.subr.bf16.mxu0 0
      %8471 = vmatpush1.bf16.msra.mxu0 %v8202
      %8472 = vmatprep.subr.bf16.mxu0 0
      %8473 = vmatpush1.bf16.msra.mxu0 %v8203
      %8474 = vmatprep.subr.bf16.mxu0 0
      %8475 = vmatpush1.bf16.msra.mxu0 %v8204
      %8476 = vmatprep.subr.bf16.mxu0 0
      %8477 = vmatpush1.bf16.msra.mxu0 %v8205
      %8478 = vmatprep.subr.bf16.mxu0 0
      %8479 = vmatpush1.bf16.msra.mxu0 %v8206
      %8480 = vmatprep.subr.bf16.mxu0 0
      %8481 = vmatpush1.bf16.msra.mxu0 %v8207
      %8482 = vmatprep.subr.bf16.mxu0 0
      %8483 = vmatpush1.bf16.msra.mxu0 %v8208
      %8484 = vmatprep.subr.bf16.mxu0 0
      %8485 = vmatpush1.bf16.msra.mxu0 %v8209
      %8486 = vmatprep.subr.bf16.mxu0 0
      %8487 = vmatpush1.bf16.msra.mxu0 %v8210
      %8488 = vmatprep.subr.bf16.mxu0 0
      %8489 = vmatpush1.bf16.msra.mxu0 %v8211
      %8490 = vmatprep.subr.bf16.mxu0 0
      %8491 = vmatpush1.bf16.msra.mxu0 %v8212
      %8492 = vmatprep.subr.bf16.mxu0 0
      %8493 = vmatpush1.bf16.msra.mxu0 %v8213
      %8494 = vmatprep.subr.bf16.mxu0 0
      %8495 = vmatpush1.bf16.msra.mxu0 %v8214
      %8496 = vmatprep.mubr.bf16.mxu0 %v7883
      %8497 = vmatmul.mubr.bf16.gmra.mrb[0].mxu0 %v7882
      %v8498 = vpop.f32.mrb[0].mxu0
      %v8499 = vadd.f32 %v8338, %v8498
      %v8500 = vpop.f32.mrb[0].mxu0
      %v8501 = vpop.f32.mrb[0].mxu0
      %v8502 = vadd.f32 %v8341, %v8501
      %v8503 = vpop.f32.mrb[0].mxu0
      %8504 = vmatprep.mubr.bf16.mxu0 %v7888
      %8505 = vmatmul.mubr.bf16.gmra.mrb[0].mxu0 %v7887
      %v8506 = vpop.f32.mrb[0].mxu0
      %v8507 = vadd.f32 %v8346, %v8506
      %v8508 = vpop.f32.mrb[0].mxu0
      %v8509 = vpop.f32.mrb[0].mxu0
      %v8510 = vadd.f32 %v8349, %v8509
      %v8511 = vpop.f32.mrb[0].mxu0
      %8512 = vmatprep.mubr.bf16.mxu0 %v7893
      %8513 = vmatmul.mubr.bf16.gmra.mrb[0].mxu0 %v7892
      %v8514 = vpop.f32.mrb[0].mxu0
      %v8515 = vadd.f32 %v8354, %v8514
      %v8516 = vpop.f32.mrb[0].mxu0
      %v8517 = vpop.f32.mrb[0].mxu0
      %v8518 = vadd.f32 %v8357, %v8517
      %v8519 = vpop.f32.mrb[0].mxu0
      %8520 = vmatprep.mubr.bf16.mxu0 %v7898
      %8521 = vmatmul.mubr.bf16.gmra.mrb[0].mxu0 %v7897
      %v8522 = vpop.f32.mrb[0].mxu0
      %v8523 = vadd.f32 %v8362, %v8522
      %v8524 = vpop.f32.mrb[0].mxu0
      %v8525 = vpop.f32.mrb[0].mxu0
      %v8526 = vadd.f32 %v8365, %v8525
      %v8527 = vpop.f32.mrb[0].mxu0
      %8528 = vmatprep.mubr.bf16.mxu0 %v7903
      %8529 = vmatmul.mubr.bf16.gmra.mrb[0].mxu0 %v7902
      %v8530 = vpop.f32.mrb[0].mxu0
      %v8531 = vadd.f32 %v8370, %v8530
      %v8532 = vpop.f32.mrb[0].mxu0
      %v8533 = vpop.f32.mrb[0].mxu0
      %v8534 = vadd.f32 %v8373, %v8533
      %v8535 = vpop.f32.mrb[0].mxu0
      %8536 = vmatprep.mubr.bf16.mxu0 %v7908
      %8537 = vmatmul.mubr.bf16.gmra.mrb[0].mxu0 %v7907
      %v8538 = vpop.f32.mrb[0].mxu0
      %v8539 = vadd.f32 %v8378, %v8538
      %v8540 = vpop.f32.mrb[0].mxu0
      %v8541 = vpop.f32.mrb[0].mxu0
      %v8542 = vadd.f32 %v8381, %v8541
      %v8543 = vpop.f32.mrb[0].mxu0
      %8544 = vmatprep.mubr.bf16.mxu0 %v7913
      %8545 = vmatmul.mubr.bf16.gmra.mrb[0].mxu0 %v7912
      %v8546 = vpop.f32.mrb[0].mxu0
      %v8547 = vadd.f32 %v8386, %v8546
      %v8548 = vpop.f32.mrb[0].mxu0
      %v8549 = vpop.f32.mrb[0].mxu0
      %v8550 = vadd.f32 %v8389, %v8549
      %v8551 = vpop.f32.mrb[0].mxu0
      %8552 = vmatprep.mubr.bf16.mxu0 %v7918
      %8553 = vmatmul.mubr.bf16.gmra.mrb[0].mxu0 %v7917
      %v8554 = vpop.f32.mrb[0].mxu0
      %v8555 = vadd.f32 %v8394, %v8554
      %v8556 = vpop.f32.mrb[0].mxu0
      %v8557 = vpop.f32.mrb[0].mxu0
      %v8558 = vadd.f32 %v8397, %v8557
      %v8559 = vpop.f32.mrb[0].mxu0
      %8560 = vmatprep.mubr.bf16.mxu0 %v7923
      %8561 = vmatmul.mubr.bf16.gmra.mrb[0].mxu0 %v7922
      %v8562 = vpop.f32.mrb[0].mxu0
      %v8563 = vadd.f32 %v8402, %v8562
      %v8564 = vpop.f32.mrb[0].mxu0
      %v8565 = vpop.f32.mrb[0].mxu0
      %v8566 = vadd.f32 %v8405, %v8565
      %v8567 = vpop.f32.mrb[0].mxu0
      %8568 = vmatprep.mubr.bf16.mxu0 %v7928
      %8569 = vmatmul.mubr.bf16.gmra.mrb[0].mxu0 %v7927
      %v8570 = vpop.f32.mrb[0].mxu0
      %v8571 = vadd.f32 %v8410, %v8570
      %v8572 = vpop.f32.mrb[0].mxu0
      %v8573 = vpop.f32.mrb[0].mxu0
      %v8574 = vadd.f32 %v8413, %v8573
      %v8575 = vpop.f32.mrb[0].mxu0
      %8576 = vmatprep.mubr.bf16.mxu0 %v7933
      %8577 = vmatmul.mubr.bf16.gmra.mrb[0].mxu0 %v7932
      %v8578 = vpop.f32.mrb[0].mxu0
      %v8579 = vadd.f32 %v8418, %v8578
      %v8580 = vpop.f32.mrb[0].mxu0
      %v8581 = vpop.f32.mrb[0].mxu0
      %v8582 = vadd.f32 %v8421, %v8581
      %v8583 = vpop.f32.mrb[0].mxu0
      %8584 = vmatprep.mubr.bf16.mxu0 %v7938
      %8585 = vmatmul.mubr.bf16.gmra.mrb[0].mxu0 %v7937
      %v8586 = vpop.f32.mrb[0].mxu0
      %v8587 = vadd.f32 %v8426, %v8586
      %v8588 = vpop.f32.mrb[0].mxu0
      %v8589 = vpop.f32.mrb[0].mxu0
      %v8590 = vadd.f32 %v8429, %v8589
      %v8591 = vpop.f32.mrb[0].mxu0
      %8592 = vmatprep.mubr.bf16.mxu0 %v7943
      %8593 = vmatmul.mubr.bf16.gmra.mrb[0].mxu0 %v7942
      %v8594 = vpop.f32.mrb[0].mxu0
      %v8595 = vadd.f32 %v8434, %v8594
      %v8596 = vpop.f32.mrb[0].mxu0
      %v8597 = vpop.f32.mrb[0].mxu0
      %v8598 = vadd.f32 %v8437, %v8597
      %v8599 = vpop.f32.mrb[0].mxu0
      %8600 = vmatprep.mubr.bf16.mxu0 %v7948
      %8601 = vmatmul.mubr.bf16.gmra.mrb[0].mxu0 %v7947
      %v8602 = vpop.f32.mrb[0].mxu0
      %v8603 = vadd.f32 %v8442, %v8602
      %v8604 = vpop.f32.mrb[0].mxu0
      %v8605 = vpop.f32.mrb[0].mxu0
      %v8606 = vadd.f32 %v8445, %v8605
      %v8607 = vpop.f32.mrb[0].mxu0
      %8608 = vmatprep.mubr.bf16.mxu0 %v7953
      %8609 = vmatmul.mubr.bf16.gmra.mrb[0].mxu0 %v7952
      %v8610 = vpop.f32.mrb[0].mxu0
      %v8611 = vadd.f32 %v8450, %v8610
      %v8612 = vpop.f32.mrb[0].mxu0
      %v8613 = vpop.f32.mrb[0].mxu0
      %v8614 = vadd.f32 %v8453, %v8613
      %v8615 = vpop.f32.mrb[0].mxu0
      %8616 = vmatprep.mubr.bf16.mxu0 %v7958
      %8617 = vmatmul.mubr.bf16.gmra.mrb[0].mxu0 %v7957
      %v8618 = vpop.f32.mrb[0].mxu0
      %v8619 = vadd.f32 %v8458, %v8618
      %v8620 = vpop.f32.mrb[0].mxu0
      %v8621 = vpop.f32.mrb[0].mxu0
      %v8622 = vadd.f32 %v8461, %v8621
      %v8623 = vpop.f32.mrb[0].mxu0
      %8624 = vdwg.mxu0
      %8625 = vmatprep.subr.bf16.mxu0 0
      %8626 = vmatpush1.bf16.msra.mxu0 %v8215
      %8627 = vmatprep.subr.bf16.mxu0 0
      %8628 = vmatpush1.bf16.msra.mxu0 %v8216
      %8629 = vmatprep.subr.bf16.mxu0 0
      %8630 = vmatpush1.bf16.msra.mxu0 %v8217
      %8631 = vmatprep.subr.bf16.mxu0 0
      %8632 = vmatpush1.bf16.msra.mxu0 %v8218
      %8633 = vmatprep.subr.bf16.mxu0 0
      %8634 = vmatpush1.bf16.msra.mxu0 0
      %8635 = vmatprep.subr.bf16.mxu0 0
      %8636 = vmatpush1.bf16.msra.mxu0 0
      %8637 = vmatprep.subr.bf16.mxu0 0
      %8638 = vmatpush1.bf16.msra.mxu0 0
      %8639 = vmatprep.subr.bf16.mxu0 0
      %8640 = vmatpush1.bf16.msra.mxu0 0
      %8641 = vmatprep.subr.bf16.mxu0 0
      %8642 = vmatpush1.bf16.msra.mxu0 0
      %8643 = vmatprep.subr.bf16.mxu0 0
      %8644 = vmatpush1.bf16.msra.mxu0 0
      %8645 = vmatprep.subr.bf16.mxu0 0
      %8646 = vmatpush1.bf16.msra.mxu0 0
      %8647 = vmatprep.subr.bf16.mxu0 0
      %8648 = vmatpush1.bf16.msra.mxu0 0
      %8649 = vmatprep.subr.bf16.mxu0 0
      %8650 = vmatpush1.bf16.msra.mxu0 0
      %8651 = vmatprep.subr.bf16.mxu0 0
      %8652 = vmatpush1.bf16.msra.mxu0 0
      %8653 = vmatprep.subr.bf16.mxu0 0
      %8654 = vmatpush1.bf16.msra.mxu0 0
      %8655 = vmatprep.subr.bf16.mxu0 0
      %8656 = vmatpush1.bf16.msra.mxu0 0
      %8657 = vmatprep.mubr.bf16.mxu0 0
      %8658 = vmatmul.mubr.bf16.gmra.mrb[0].mxu0 %v8256
      %v8659 = vpop.f32.mrb[0].mxu0
      %v8660 = vadd.f32 %v8499, %v8659
      %v8661 = vpop.f32.mrb[0].mxu0
      %v8662 = vpop.f32.mrb[0].mxu0
      %v8663 = vadd.f32 %v8502, %v8662
      %v8664 = vpop.f32.mrb[0].mxu0
      %8665 = vmatprep.mubr.bf16.mxu0 0
      %8666 = vmatmul.mubr.bf16.gmra.mrb[0].mxu0 %v8259
      %v8667 = vpop.f32.mrb[0].mxu0
      %v8668 = vadd.f32 %v8507, %v8667
      %v8669 = vpop.f32.mrb[0].mxu0
      %v8670 = vpop.f32.mrb[0].mxu0
      %v8671 = vadd.f32 %v8510, %v8670
      %v8672 = vpop.f32.mrb[0].mxu0
      %8673 = vmatprep.mubr.bf16.mxu0 0
      %8674 = vmatmul.mubr.bf16.gmra.mrb[0].mxu0 %v8262
      %v8675 = vpop.f32.mrb[0].mxu0
      %v8676 = vadd.f32 %v8515, %v8675
      %v8677 = vpop.f32.mrb[0].mxu0
      %v8678 = vpop.f32.mrb[0].mxu0
      %v8679 = vadd.f32 %v8518, %v8678
      %v8680 = vpop.f32.mrb[0].mxu0
      %8681 = vmatprep.mubr.bf16.mxu0 0
      %8682 = vmatmul.mubr.bf16.gmra.mrb[0].mxu0 %v8265
      %v8683 = vpop.f32.mrb[0].mxu0
      %v8684 = vadd.f32 %v8523, %v8683
      %v8685 = vpop.f32.mrb[0].mxu0
      %v8686 = vpop.f32.mrb[0].mxu0
      %v8687 = vadd.f32 %v8526, %v8686
      %v8688 = vpop.f32.mrb[0].mxu0
      %8689 = vmatprep.mubr.bf16.mxu0 0
      %8690 = vmatmul.mubr.bf16.gmra.mrb[0].mxu0 %v8268
      %v8691 = vpop.f32.mrb[0].mxu0
      %v8692 = vadd.f32 %v8531, %v8691
      %v8693 = vpop.f32.mrb[0].mxu0
      %v8694 = vpop.f32.mrb[0].mxu0
      %v8695 = vadd.f32 %v8534, %v8694
      %v8696 = vpop.f32.mrb[0].mxu0
      %8697 = vmatprep.mubr.bf16.mxu0 0
      %8698 = vmatmul.mubr.bf16.gmra.mrb[0].mxu0 %v8271
      %v8699 = vpop.f32.mrb[0].mxu0
      %v8700 = vadd.f32 %v8539, %v8699
      %v8701 = vpop.f32.mrb[0].mxu0
      %v8702 = vpop.f32.mrb[0].mxu0
      %v8703 = vadd.f32 %v8542, %v8702
      %v8704 = vpop.f32.mrb[0].mxu0
      %8705 = vmatprep.mubr.bf16.mxu0 0
      %8706 = vmatmul.mubr.bf16.gmra.mrb[0].mxu0 %v8274
      %v8707 = vpop.f32.mrb[0].mxu0
      %v8708 = vadd.f32 %v8547, %v8707
      %v8709 = vpop.f32.mrb[0].mxu0
      %v8710 = vpop.f32.mrb[0].mxu0
      %v8711 = vadd.f32 %v8550, %v8710
      %v8712 = vpop.f32.mrb[0].mxu0
      %8713 = vmatprep.mubr.bf16.mxu0 0
      %8714 = vmatmul.mubr.bf16.gmra.mrb[0].mxu0 %v8277
      %v8715 = vpop.f32.mrb[0].mxu0
      %v8716 = vadd.f32 %v8555, %v8715
      %v8717 = vpop.f32.mrb[0].mxu0
      %v8718 = vpop.f32.mrb[0].mxu0
      %v8719 = vadd.f32 %v8558, %v8718
      %v8720 = vpop.f32.mrb[0].mxu0
      %8721 = vmatprep.mubr.bf16.mxu0 0
      %8722 = vmatmul.mubr.bf16.gmra.mrb[0].mxu0 %v8280
      %v8723 = vpop.f32.mrb[0].mxu0
      %v8724 = vadd.f32 %v8563, %v8723
      %v8725 = vpop.f32.mrb[0].mxu0
      %v8726 = vpop.f32.mrb[0].mxu0
      %v8727 = vadd.f32 %v8566, %v8726
      %v8728 = vpop.f32.mrb[0].mxu0
      %8729 = vmatprep.mubr.bf16.mxu0 0
      %8730 = vmatmul.mubr.bf16.gmra.mrb[0].mxu0 %v8283
      %v8731 = vpop.f32.mrb[0].mxu0
      %v8732 = vadd.f32 %v8571, %v8731
      %v8733 = vpop.f32.mrb[0].mxu0
      %v8734 = vpop.f32.mrb[0].mxu0
      %v8735 = vadd.f32 %v8574, %v8734
      %v8736 = vpop.f32.mrb[0].mxu0
      %8737 = vmatprep.mubr.bf16.mxu0 0
      %8738 = vmatmul.mubr.bf16.gmra.mrb[0].mxu0 %v8286
      %v8739 = vpop.f32.mrb[0].mxu0
      %v8740 = vadd.f32 %v8579, %v8739
      %v8741 = vpop.f32.mrb[0].mxu0
      %v8742 = vpop.f32.mrb[0].mxu0
      %v8743 = vadd.f32 %v8582, %v8742
      %v8744 = vpop.f32.mrb[0].mxu0
      %8745 = vmatprep.mubr.bf16.mxu0 0
      %8746 = vmatmul.mubr.bf16.gmra.mrb[0].mxu0 %v8289
      %v8747 = vpop.f32.mrb[0].mxu0
      %v8748 = vadd.f32 %v8587, %v8747
      %v8749 = vpop.f32.mrb[0].mxu0
      %v8750 = vpop.f32.mrb[0].mxu0
      %v8751 = vadd.f32 %v8590, %v8750
      %v8752 = vpop.f32.mrb[0].mxu0
      %8753 = vmatprep.mubr.bf16.mxu0 0
      %8754 = vmatmul.mubr.bf16.gmra.mrb[0].mxu0 %v8292
      %v8755 = vpop.f32.mrb[0].mxu0
      %v8756 = vadd.f32 %v8595, %v8755
      %v8757 = vpop.f32.mrb[0].mxu0
      %v8758 = vpop.f32.mrb[0].mxu0
      %v8759 = vadd.f32 %v8598, %v8758
      %v8760 = vpop.f32.mrb[0].mxu0
      %8761 = vmatprep.mubr.bf16.mxu0 0
      %8762 = vmatmul.mubr.bf16.gmra.mrb[0].mxu0 %v8295
      %v8763 = vpop.f32.mrb[0].mxu0
      %v8764 = vadd.f32 %v8603, %v8763
      %v8765 = vpop.f32.mrb[0].mxu0
      %v8766 = vpop.f32.mrb[0].mxu0
      %v8767 = vadd.f32 %v8606, %v8766
      %v8768 = vpop.f32.mrb[0].mxu0
      %8769 = vmatprep.mubr.bf16.mxu0 0
      %8770 = vmatmul.mubr.bf16.gmra.mrb[0].mxu0 %v8298
      %v8771 = vpop.f32.mrb[0].mxu0
      %v8772 = vadd.f32 %v8611, %v8771
      %v8773 = vpop.f32.mrb[0].mxu0
      %v8774 = vpop.f32.mrb[0].mxu0
      %v8775 = vadd.f32 %v8614, %v8774
      %v8776 = vpop.f32.mrb[0].mxu0
      %8777 = vmatprep.mubr.bf16.mxu0 0
      %8778 = vmatmul.mubr.bf16.gmra.mrb[0].mxu0 %v8301
      %v8779 = vpop.f32.mrb[0].mxu0
      %v8780 = vadd.f32 %v8619, %v8779
      %v8781 = vpop.f32.mrb[0].mxu0
      %v8782 = vpop.f32.mrb[0].mxu0
      %v8783 = vadd.f32 %v8622, %v8782
      %v8784 = vpop.f32.mrb[0].mxu0
      %8785 = vdwg.mxu0
      %v8786 = vmax.f32 %v8660, 0.0
      %v8787 = vmax.f32 %v8663, 0.0
      %v8788 = vmax.f32 %v8668, 0.0
      %v8789 = vmax.f32 %v8671, 0.0
      %v8790 = vmax.f32 %v8676, 0.0
      %v8791 = vmax.f32 %v8679, 0.0
      %v8792 = vmax.f32 %v8684, 0.0
      %v8793 = vmax.f32 %v8687, 0.0
      %v8794 = vmax.f32 %v8692, 0.0
      %v8795 = vmax.f32 %v8695, 0.0
      %v8796 = vmax.f32 %v8700, 0.0
      %v8797 = vmax.f32 %v8703, 0.0
      %v8798 = vmax.f32 %v8708, 0.0
      %v8799 = vmax.f32 %v8711, 0.0
      %v8800 = vmax.f32 %v8716, 0.0
      %v8801 = vmax.f32 %v8719, 0.0
      %v8802 = vmax.f32 %v8724, 0.0
      %v8803 = vmax.f32 %v8727, 0.0
      %v8804 = vmax.f32 %v8732, 0.0
      %v8805 = vmax.f32 %v8735, 0.0
      %v8806 = vmax.f32 %v8740, 0.0
      %v8807 = vmax.f32 %v8743, 0.0
      %v8808 = vmax.f32 %v8748, 0.0
      %v8809 = vmax.f32 %v8751, 0.0
      %v8810 = vmax.f32 %v8756, 0.0
      %v8811 = vmax.f32 %v8759, 0.0
      %v8812 = vmax.f32 %v8764, 0.0
      %v8813 = vmax.f32 %v8767, 0.0
      %v8814 = vmax.f32 %v8772, 0.0
      %v8815 = vmax.f32 %v8775, 0.0
      %v8816 = vmax.f32 %v8780, 0.0
      %v8817 = vmax.f32 %v8783, 0.0
      %8818 = vst.msk [vmem:[#allocation6] sm:$0xff] %vm5045, %v8786
      %8819 = vst.msk [vmem:[#allocation6 + $0x8] sm:$0xff] %vm5045, %v8787
      %8820 = vst.msk [vmem:[#allocation6 + $0x10] sm:$0xff] %vm5045, %v8788
      %8821 = vst.msk [vmem:[#allocation6 + $0x18] sm:$0xff] %vm5045, %v8789
      %8822 = vst.msk [vmem:[#allocation6 + $0x20] sm:$0xff] %vm5045, %v8790
      %8823 = vst.msk [vmem:[#allocation6 + $0x28] sm:$0xff] %vm5045, %v8791
      %8824 = vst.msk [vmem:[#allocation6 + $0x30] sm:$0xff] %vm5045, %v8792
      %8825 = vst.msk [vmem:[#allocation6 + $0x38] sm:$0xff] %vm5045, %v8793
      %8826 = vst.msk [vmem:[#allocation6 + $0x40] sm:$0xff] %vm5045, %v8794
      %8827 = vst.msk [vmem:[#allocation6 + $0x48] sm:$0xff] %vm5045, %v8795
      %8828 = vst.msk [vmem:[#allocation6 + $0x50] sm:$0xff] %vm5045, %v8796
      %8829 = vst.msk [vmem:[#allocation6 + $0x58] sm:$0xff] %vm5045, %v8797
      %8830 = vst.msk [vmem:[#allocation6 + $0x60] sm:$0xff] %vm5045, %v8798
      %8831 = vst.msk [vmem:[#allocation6 + $0x68] sm:$0xff] %vm5045, %v8799
      %8832 = vst.msk [vmem:[#allocation6 + $0x70] sm:$0xff] %vm5045, %v8800
      %8833 = vst.msk [vmem:[#allocation6 + $0x78] sm:$0xff] %vm5045, %v8801
      %8834 = vst.msk [vmem:[#allocation6 + $0x80] sm:$0xff] %vm5045, %v8802
      %8835 = vst.msk [vmem:[#allocation6 + $0x88] sm:$0xff] %vm5045, %v8803
      %8836 = vst.msk [vmem:[#allocation6 + $0x90] sm:$0xff] %vm5045, %v8804
      %8837 = vst.msk [vmem:[#allocation6 + $0x98] sm:$0xff] %vm5045, %v8805
      %8838 = vst.msk [vmem:[#allocation6 + $0xa0] sm:$0xff] %vm5045, %v8806
      %8839 = vst.msk [vmem:[#allocation6 + $0xa8] sm:$0xff] %vm5045, %v8807
      %8840 = vst.msk [vmem:[#allocation6 + $0xb0] sm:$0xff] %vm5045, %v8808
      %8841 = vst.msk [vmem:[#allocation6 + $0xb8] sm:$0xff] %vm5045, %v8809
      %8842 = vst.msk [vmem:[#allocation6 + $0xc0] sm:$0xff] %vm5045, %v8810
      %8843 = vst.msk [vmem:[#allocation6 + $0xc8] sm:$0xff] %vm5045, %v8811
      %8844 = vst.msk [vmem:[#allocation6 + $0xd0] sm:$0xff] %vm5045, %v8812
      %8845 = vst.msk [vmem:[#allocation6 + $0xd8] sm:$0xff] %vm5045, %v8813
      %8846 = vst.msk [vmem:[#allocation6 + $0xe0] sm:$0xff] %vm5045, %v8814
      %8847 = vst.msk [vmem:[#allocation6 + $0xe8] sm:$0xff] %vm5045, %v8815
      %8848 = vst.msk [vmem:[#allocation6 + $0xf0] sm:$0xff] %vm5045, %v8816
      %8849 = vst.msk [vmem:[#allocation6 + $0xf8] sm:$0xff] %vm5045, %v8817
      %v8850 = vld [vmem:[#allocation6] ss:$2 sm:$0xff]
      %s8851 = scalar_lea.vmem [#allocation6], 16
      %v8852 = vld [vmem:[%s8851] ss:$2 sm:$0xff]
      %s8853 = scalar_lea.vmem [#allocation6], 32
      %v8854 = vld [vmem:[%s8853] ss:$2 sm:$0xff]
      %s8855 = scalar_lea.vmem [#allocation6], 48
      %v8856 = vld [vmem:[%s8855] ss:$2 sm:$0xff]
      %s8857 = scalar_lea.vmem [#allocation6], 64
      %v8858 = vld [vmem:[%s8857] ss:$2 sm:$0xff]
      %s8859 = scalar_lea.vmem [#allocation6], 80
      %v8860 = vld [vmem:[%s8859] ss:$2 sm:$0xff]
      %s8861 = scalar_lea.vmem [#allocation6], 96
      %v8862 = vld [vmem:[%s8861] ss:$2 sm:$0xff]
      %s8863 = scalar_lea.vmem [#allocation6], 112
      %v8864 = vld [vmem:[%s8863] ss:$2 sm:$0xff]
      %s8865 = scalar_lea.vmem [#allocation6], 128
      %v8866 = vld [vmem:[%s8865] ss:$2 sm:$0xff]
      %s8867 = scalar_lea.vmem [#allocation6], 144
      %v8868 = vld [vmem:[%s8867] ss:$2 sm:$0xff]
      %s8869 = scalar_lea.vmem [#allocation6], 160
      %v8870 = vld [vmem:[%s8869] ss:$2 sm:$0xff]
      %s8871 = scalar_lea.vmem [#allocation6], 176
      %v8872 = vld [vmem:[%s8871] ss:$2 sm:$0xff]
      %s8873 = scalar_lea.vmem [#allocation6], 192
      %v8874 = vld [vmem:[%s8873] ss:$2 sm:$0xff]
      %s8875 = scalar_lea.vmem [#allocation6], 208
      %v8876 = vld [vmem:[%s8875] ss:$2 sm:$0xff]
      %s8877 = scalar_lea.vmem [#allocation6], 224
      %v8878 = vld [vmem:[%s8877] ss:$2 sm:$0xff]
      %s8879 = scalar_lea.vmem [#allocation6], 240
      %v8880 = vld [vmem:[%s8879] ss:$2 sm:$0xff]
      %s8881 = scalar_lea.vmem [#allocation6], 1
      %v8882 = vld [vmem:[%s8881] ss:$2 sm:$0xff]
      %s8883 = scalar_lea.vmem [#allocation6], 17
      %v8884 = vld [vmem:[%s8883] ss:$2 sm:$0xff]
      %s8885 = scalar_lea.vmem [#allocation6], 33
      %v8886 = vld [vmem:[%s8885] ss:$2 sm:$0xff]
      %s8887 = scalar_lea.vmem [#allocation6], 49
      %v8888 = vld [vmem:[%s8887] ss:$2 sm:$0xff]
      %s8889 = scalar_lea.vmem [#allocation6], 65
      %v8890 = vld [vmem:[%s8889] ss:$2 sm:$0xff]
      %s8891 = scalar_lea.vmem [#allocation6], 81
      %v8892 = vld [vmem:[%s8891] ss:$2 sm:$0xff]
      %s8893 = scalar_lea.vmem [#allocation6], 97
      %v8894 = vld [vmem:[%s8893] ss:$2 sm:$0xff]
      %s8895 = scalar_lea.vmem [#allocation6], 113
      %v8896 = vld [vmem:[%s8895] ss:$2 sm:$0xff]
      %s8897 = scalar_lea.vmem [#allocation6], 129
      %v8898 = vld [vmem:[%s8897] ss:$2 sm:$0xff]
      %s8899 = scalar_lea.vmem [#allocation6], 145
      %v8900 = vld [vmem:[%s8899] ss:$2 sm:$0xff]
      %s8901 = scalar_lea.vmem [#allocation6], 161
      %v8902 = vld [vmem:[%s8901] ss:$2 sm:$0xff]
      %s8903 = scalar_lea.vmem [#allocation6], 177
      %v8904 = vld [vmem:[%s8903] ss:$2 sm:$0xff]
      %s8905 = scalar_lea.vmem [#allocation6], 193
      %v8906 = vld [vmem:[%s8905] ss:$2 sm:$0xff]
      %s8907 = scalar_lea.vmem [#allocation6], 209
      %v8908 = vld [vmem:[%s8907] ss:$2 sm:$0xff]
      %s8909 = scalar_lea.vmem [#allocation6], 225
      %v8910 = vld [vmem:[%s8909] ss:$2 sm:$0xff]
      %s8911 = scalar_lea.vmem [#allocation6], 241
      %v8912 = vld [vmem:[%s8911] ss:$2 sm:$0xff]
      %v8913 = vmax.f32 %v8850, %v8882
      %v8914 = vmax.f32 %v8852, %v8884
      %v8915 = vmax.f32 %v8854, %v8886
      %v8916 = vmax.f32 %v8856, %v8888
      %v8917 = vmax.f32 %v8858, %v8890
      %v8918 = vmax.f32 %v8860, %v8892
      %v8919 = vmax.f32 %v8862, %v8894
      %v8920 = vmax.f32 %v8864, %v8896
      %v8921 = vmax.f32 %v8866, %v8898
      %v8922 = vmax.f32 %v8868, %v8900
      %v8923 = vmax.f32 %v8870, %v8902
      %v8924 = vmax.f32 %v8872, %v8904
      %v8925 = vmax.f32 %v8874, %v8906
      %v8926 = vmax.f32 %v8876, %v8908
      %v8927 = vmax.f32 %v8878, %v8910
      %v8928 = vmax.f32 %v8880, %v8912
      %v8929 = vmax.f32 %v8913, %v8914
      %v8930 = vmax.f32 %v8915, %v8916
      %v8931 = vmax.f32 %v8917, %v8918
      %v8932 = vmax.f32 %v8919, %v8920
      %v8933 = vmax.f32 %v8921, %v8922
      %v8934 = vmax.f32 %v8923, %v8924
      %v8935 = vmax.f32 %v8925, %v8926
      %v8936 = vmax.f32 %v8927, %v8928
      %8937 = vxpose.xlu0.b32.start [1/16] %v8929, 128
      %8938 = vxpose.xlu0.b32.cont [2/16] %v8930, 128
      %8939 = vxpose.xlu0.b32.cont [3/16] %v8931, 128
      %8940 = vxpose.xlu0.b32.cont [4/16] %v8932, 128
      %8941 = vxpose.xlu0.b32.cont [5/16] %v8933, 128
      %8942 = vxpose.xlu0.b32.cont [6/16] %v8934, 128
      %8943 = vxpose.xlu0.b32.cont [7/16] %v8935, 128
      %8944 = vxpose.xlu0.b32.cont [8/16] %v8936, 128
      %8945 = vxpose.xlu0.b32.cont [9/16] 0.0, 128
      %8946 = vxpose.xlu0.b32.cont [10/16] 0.0, 128
      %8947 = vxpose.xlu0.b32.cont [11/16] 0.0, 128
      %8948 = vxpose.xlu0.b32.cont [12/16] 0.0, 128
      %8949 = vxpose.xlu0.b32.cont [13/16] 0.0, 128
      %8950 = vxpose.xlu0.b32.cont [14/16] 0.0, 128
      %8951 = vxpose.xlu0.b32.cont [15/16] 0.0, 128
      %8952 = vxpose.xlu0.b32.end [16/16] 0.0, 128
      %v8953 = vpop.trf.xlu0
      %v8954 = vpop.trf.xlu0
      %v8955 = vpop.trf.xlu0
      %v8956 = vpop.trf.xlu0
      %v8957 = vpop.trf.xlu0
      %v8958 = vpop.trf.xlu0
      %v8959 = vpop.trf.xlu0
      %v8960 = vpop.trf.xlu0
      %v8961 = vpop.trf.xlu0
      %v8962 = vpop.trf.xlu0
      %v8963 = vpop.trf.xlu0
      %v8964 = vpop.trf.xlu0
      %v8965 = vpop.trf.xlu0
      %v8966 = vpop.trf.xlu0
      %v8967 = vpop.trf.xlu0
      %v8968 = vpop.trf.xlu0
      %8969 = vst.msk [vmem:[%s264] sm:$0xff] %vm5045, %v8953
      %8970 = vst.msk [vmem:[%s264 + $0x8] sm:$0xff] %vm5045, %v8954
      %8971 = vst.msk [vmem:[%s264 + $0x10] sm:$0xff] %vm5045, %v8955
      %8972 = vst.msk [vmem:[%s264 + $0x18] sm:$0xff] %vm5045, %v8956
      %8973 = vst.msk [vmem:[%s264 + $0x20] sm:$0xff] %vm5045, %v8957
      %8974 = vst.msk [vmem:[%s264 + $0x28] sm:$0xff] %vm5045, %v8958
      %8975 = vst.msk [vmem:[%s264 + $0x30] sm:$0xff] %vm5045, %v8959
      %8976 = vst.msk [vmem:[%s264 + $0x38] sm:$0xff] %vm5045, %v8960
      %p8977 = scmp.lt.s32.totalorder %s18, 1
      %s8978 = scalar_select %p8977, %s18, 1
      %s8979 = smul.addr %s8978, 16
      %s8980 = smul.addr %s8979, 8
      %s8981 = scalar_lea.vmem %s5, %s8980
      %p8982 = scmp.lt.s32.totalorder %s18, 1
      %s8983 = scalar_select %p8982, %s18, 1
      %s8984 = smul.addr %s8983, 8
      %s8985 = smul.addr %s8984, 8
      %s8986 = scalar_lea.vmem %s6, %s8985
      // Predicated region
      $region41: #{_lambda_.1} parent=39 // pred_check
        %p8987 = pneg %p146
      $region42: #{_lambda_.1} parent=39 // pred_check_branch
        %8989 = sbr.rel (%p8987) target = $region44
      $region43: #{_lambda_.1} parent=39 // pred_region
        _
      $region44: #{_lambda_.1} parent=39 // pred_fallthru
        _
      // Predicated region
      $region45: #{_lambda_.1} parent=39 // pred_check
        %p8990 = pneg %p172
      $region46: #{_lambda_.1} parent=39 // pred_check_branch
        %8992 = sbr.rel (%p8990) target = $region48
      $region47: #{_lambda_.1} parent=39 // pred_region
        _
      $region48: #{_lambda_.1} parent=39 // pred_fallthru
        _
    $region40: #{_lambda_.1} parent=5 // pred_fallthru
      _
    %p8993 = scmp.le.s32.totalorder 2, %s13
    // Predicated region
    $region49: #{_lambda_.1} parent=5 // pred_check
      %p8994 = pneg %p8993
    $region50: #{_lambda_.1} parent=5 // pred_check_branch
      %8996 = sbr.rel (%p8994) target = $region52
    $region51: #{_lambda_.1} parent=5 // pred_region
      %s8997 = ssub.s32 %s13, 2
      // Predicated region
      $region53: #{_lambda_.1} parent=51 // pred_check
        %p8998 = pneg %p152
      $region54: #{_lambda_.1} parent=51 // pred_check_branch
        %9000 = sbr.rel (%p8998) target = $region56
      $region55: #{_lambda_.1} parent=51 // pred_region
        %p9001 = scmp.lt.s32.totalorder %s19, 1
        %s9002 = scalar_select %p9001, %s19, 1
        %s9003 = smul.addr %s9002, 16
        %s9004 = smul.addr %s9003, 8
        %s9005 = scalar_lea.vmem %s5, %s9004
      $region56: #{_lambda_.1} parent=51 // pred_fallthru
        _
      // Predicated region
      $region57: #{_lambda_.1} parent=51 // pred_check
        %p9006 = pneg %p178
      $region58: #{_lambda_.1} parent=51 // pred_check_branch
        %9008 = sbr.rel (%p9006) target = $region60
      $region59: #{_lambda_.1} parent=51 // pred_region
        %p9009 = scmp.lt.s32.totalorder %s19, 1
        %s9010 = scalar_select %p9009, %s19, 1
        %s9011 = smul.addr %s9010, 8
        %s9012 = smul.addr %s9011, 8
        %s9013 = scalar_lea.vmem %s6, %s9012
      $region60: #{_lambda_.1} parent=51 // pred_fallthru
        _
    $region52: #{_lambda_.1} parent=5 // pred_fallthru
      _
  $region6: #{_lambda_.1} parent=0 // loop_footer
    %s17 = sadd.s32 1, %s13
  $region7: #{_lambda_.1} parent=0 // loop_footer_branch
    %12 = sbr.rel target = $region3
  $region8: #{_lambda_.1} parent=0 // loop_exit
    _

</llo_original>
